<compile_context>
chip_gen: v6e
topology: v6e:2x2x1
jax: 0.10.0
libtpu: 0.0.40
codegen_flags: <defaults>
</compile_context>

<pallas_src>
import functools

import jax
import jax.numpy as jnp
from jax.experimental import pallas as pl
from jax.experimental.pallas import tpu as pltpu


def _round_up(x, m):
    return (x + m - 1) // m * m


def _full_block(a):
    zeros = (0,) * a.ndim
    return pl.BlockSpec(a.shape, lambda i, _z=zeros: _z)


# ----------------------------- fused network kernel ---------------------------
def _qnet_kernel(p1_ref, w1_ref, b1_ref, w2_ref, b2_ref, w3_ref, b3_ref,
                 wfc1_ref, bfc1_ref, wfc2_ref, bfc2_ref, o_ref,
                 p2_ref, a2_ref, p3_ref, a3c_ref,
                 *, oh2, ow2, oh3, ow3, k2, k3, bp):
    f32, bf16 = jnp.float32, jnp.bfloat16
    oc1 = w1_ref.shape[1]
    oc2 = w2_ref.shape[1]
    oc3 = w3_ref.shape[1]
    tpb = oh2 * ow2 * bp          # rows of p2 == rows per conv2-tap group of p1

    # conv1: one (tpb, K1) @ (K1, oc1) matmul per conv2 tap; bias + ReLU fused
    # into the epilogue and the result stored straight into the tap's lane band
    # of the conv2 patch slab p2 (so conv2 becomes ONE merged matmul).
    for t in range(k2 * k2):
        acc = jnp.dot(p1_ref[t * tpb:(t + 1) * tpb, :], w1_ref[...],
                      preferred_element_type=f32)
        acc = jnp.maximum(acc + b1_ref[...], 0.0)
        p2_ref[:, t * oc1:(t + 1) * oc1] = acc.astype(bf16)

    # conv2: ONE merged (tpb, k2*k2*oc1) @ (k2*k2*oc1, oc2) matmul.
    a2 = jnp.dot(p2_ref[...], w2_ref[...], preferred_element_type=f32)
    a2_ref[...] = jnp.maximum(a2 + b2_ref[...], 0.0).astype(bf16)

    # conv3 patch assembly: static contiguous block copies from the VMEM-
    # resident a2 into the conv3 patch slab p3 (rows ordered (pos3, b)).
    for kh in range(k3):
        for kw in range(k3):
            t3 = kh * k3 + kw
            for i3 in range(oh3):
                src = ((i3 + kh) * ow2 + kw) * bp
                dst = (i3 * ow3) * bp
                n = ow3 * bp
                p3_ref[dst:dst + n, t3 * oc2:(t3 + 1) * oc2] = \
                    a2_ref[src:src + n, :]

    # conv3: ONE merged (oh3*ow3*bp, k3*k3*oc2) @ (k3*k3*oc2, oc3) matmul.
    a3 = jnp.dot(p3_ref[...], w3_ref[...], preferred_element_type=f32)
    a3 = jnp.maximum(a3 + b3_ref[...], 0.0)

    # fc1 input: concatenate the conv3 positions along the feature (lane) axis
    # so fc1 is ONE (bp, oh3*ow3*oc3) @ (oh3*ow3*oc3, 512) matmul.
    for p in range(oh3 * ow3):
        a3c_ref[:, p * oc3:(p + 1) * oc3] = a3[p * bp:(p + 1) * bp, :].astype(bf16)

    h = jnp.dot(a3c_ref[...], wfc1_ref[...], preferred_element_type=f32)
    h = jnp.maximum(h + bfc1_ref[...], 0.0).astype(bf16)
    out = jnp.dot(h, wfc2_ref[...], preferred_element_type=f32) + bfc2_ref[...]
    o_ref[...] = out


def qnet_pallas(p1, kp, *, oh2, ow2, oh3, ow3, k2, k3, bp):
    oc1 = kp["w1"].shape[1]
    oc2 = kp["w2"].shape[1]
    oc3 = kp["w3"].shape[1]
    ap = kp["wfc2"].shape[1]
    args = (p1, kp["w1"], kp["b1"], kp["w2"], kp["b2"], kp["w3"], kp["b3"],
            kp["wfc1"], kp["bfc1"], kp["wfc2"], kp["bfc2"])
    kernel = functools.partial(_qnet_kernel, oh2=oh2, ow2=ow2, oh3=oh3,
                               ow3=ow3, k2=k2, k3=k3, bp=bp)
    return pl.pallas_call(
        kernel,
        out_shape=jax.ShapeDtypeStruct((bp, ap), jnp.float32),
        grid_spec=pltpu.PrefetchScalarGridSpec(
            num_scalar_prefetch=0,
            grid=(1,),
            in_specs=[_full_block(a) for a in args],
            out_specs=pl.BlockSpec((bp, ap), lambda i: (0, 0)),
            scratch_shapes=[
                pltpu.VMEM((oh2 * ow2 * bp, k2 * k2 * oc1), jnp.bfloat16),  # p2
                pltpu.VMEM((oh2 * ow2 * bp, oc2), jnp.bfloat16),            # a2
                pltpu.VMEM((oh3 * ow3 * bp, k3 * k3 * oc2), jnp.bfloat16),  # p3
                pltpu.VMEM((bp, oh3 * ow3 * oc3), jnp.bfloat16),            # fc1 in
            ],
        ),
        compiler_params=pltpu.CompilerParams(
            dimension_semantics=("arbitrary",)),
    )(*args)


# ------------------- one-time weight repack (not hot path) -------------------
def prepare_params(params):
    """PyTorch-layout params -> kernel layout: bf16, pre-transposed, pre-padded."""
    f32, bf16 = jnp.float32, jnp.bfloat16

    w1 = params["w1"]                        # (OC1, C, 8, 8)
    oc1, c, k1, _ = w1.shape
    w1m = w1.transpose(2, 3, 1, 0).reshape(k1 * k1 * c, oc1).astype(bf16)
    b1 = params["b1"].reshape(1, oc1).astype(f32)

    w2 = params["w2"]                        # (OC2, OC1, 4, 4)
    oc2, _, k2, _ = w2.shape
    w2m = w2.transpose(2, 3, 1, 0).reshape(k2 * k2 * oc1, oc2).astype(bf16)
    b2 = params["b2"].reshape(1, oc2).astype(f32)

    w3 = params["w3"]                        # (OC3, OC2, 3, 3)
    oc3, _, k3, _ = w3.shape
    w3m = w3.transpose(2, 3, 1, 0).reshape(k3 * k3 * oc2, oc3).astype(bf16)
    b3 = params["b3"].reshape(1, oc3).astype(f32)

    fc1_w = params["fc1_w"]                  # (feat, 512); feat = NCHW flatten
    feat, hdim = fc1_w.shape
    npos = feat // oc3                       # oh3 * ow3
    # reorder rows from channel-major (c, pos) to position-major (pos, c) to
    # match the kernel's lane-concatenated fc1 input.
    wfc1 = fc1_w.reshape(oc3, npos, hdim).transpose(1, 0, 2) \
                .reshape(npos * oc3, hdim).astype(bf16)
    bfc1 = params["fc1_b"].reshape(1, hdim).astype(f32)

    fc2_w = params["fc2_w"]                  # (512, A)
    acts = fc2_w.shape[1]
    ap = _round_up(max(acts, 128), 128)
    wfc2 = jnp.pad(fc2_w, ((0, 0), (0, ap - acts))).astype(bf16)
    bfc2 = jnp.pad(params["fc2_b"], (0, ap - acts)).reshape(1, ap).astype(f32)

    return dict(w1=w1m, b1=b1, w2=w2m, b2=b2, w3=w3m, b3=b3,
                wfc1=wfc1, bfc1=bfc1, wfc2=wfc2, bfc2=bfc2)


# ----------------------------- QLearner forward ------------------------------
def qlearner_forward(kp, x, *, num_actions):
    B, C, H, W = x.shape
    k1, s1 = 8, 4
    k2, s2 = 4, 2
    k3, s3 = 3, 1
    oh1, ow1 = (H - k1) // s1 + 1, (W - k1) // s1 + 1
    oh2, ow2 = (oh1 - k2) // s2 + 1, (ow1 - k2) // s2 + 1
    oh3, ow3 = (oh2 - k3) // s3 + 1, (ow2 - k3) // s3 + 1
    Bp = _round_up(B, 8)

    # NCHW -> NHWC once at the boundary; bf16 feeds for the MXU.
    xh = jnp.transpose(x, (0, 2, 3, 1)).astype(jnp.bfloat16)

    # conv1 im2col (layout glue only; all FLOPs live in the fused kernel).
    cols = [xh[:, kh:kh + s1 * oh1:s1, kw:kw + s1 * ow1:s1, :]
            for kh in range(k1) for kw in range(k1)]
    P = jnp.stack(cols, axis=3).reshape(B, oh1, ow1, k1 * k1 * C)

    # Duplicate conv1 patches per conv2 tap so the in-kernel conv2 patch
    # assembly is 16 contiguous band copies and conv2 is ONE merged matmul.
    taps = [P[:, kh:kh + s2 * oh2:s2, kw:kw + s2 * ow2:s2, :]
            for kh in range(k2) for kw in range(k2)]
    Pd = jnp.stack(taps, axis=0).transpose(0, 2, 3, 1, 4)   # (t2, i2, j2, B, K1)
    Pd = jnp.pad(Pd, ((0, 0), (0, 0), (0, 0), (0, Bp - B), (0, 0)))
    p1 = Pd.reshape(k2 * k2 * oh2 * ow2 * Bp, k1 * k1 * C)

    out = qnet_pallas(p1, kp, oh2=oh2, ow2=ow2, oh3=oh3, ow3=ow3,
                      k2=k2, k3=k3, bp=Bp)
    return out[:B, :num_actions]


# --------------------------------- init / ref ---------------------------------
def init_params(key, in_channels, hw, num_actions):
    H, W = hw
    oh1, ow1 = (H - 8) // 4 + 1, (W - 8) // 4 + 1
    oh2, ow2 = (oh1 - 4) // 2 + 1, (ow1 - 4) // 2 + 1
    oh3, ow3 = (oh2 - 3) // 1 + 1, (ow2 - 3) // 1 + 1
    feat = 64 * oh3 * ow3                                   # == feature_size()

    def unif(k, shape, fan_in):
        bound = 1.0 / jnp.sqrt(jnp.float32(fan_in))
        return jax.random.uniform(k, shape, jnp.float32, -bound, bound)

    ks = jax.random.split(key, 10)
    return {
        "w1": unif(ks[0], (32, in_channels, 8, 8), in_channels * 64),
        "b1": unif(ks[1], (32,), in_channels * 64),
        "w2": unif(ks[2], (64, 32, 4, 4), 32 * 16),
        "b2": unif(ks[3], (64,), 32 * 16),
        "w3": unif(ks[4], (64, 64, 3, 3), 64 * 9),
        "b3": unif(ks[5], (64,), 64 * 9),
        "fc1_w": unif(ks[6], (feat, 512), feat),            # stored as (in, out)
        "fc1_b": unif(ks[7], (512,), feat),
        "fc2_w": unif(ks[8], (512, num_actions), 512),
        "fc2_b": unif(ks[9], (num_actions,), 512),
    }


def _ref_forward(params, x):
    def conv(x, w, b, s):
        y = jax.lax.conv_general_dilated(
            x, w, (s, s), "VALID",
            dimension_numbers=("NCHW", "OIHW", "NCHW"))
        return jax.nn.relu(y + b[None, :, None, None])
    x = conv(x, params["w1"], params["b1"], 4)
    x = conv(x, params["w2"], params["b2"], 2)
    x = conv(x, params["w3"], params["b3"], 1)
    x = x.reshape(x.shape[0], -1)                           # NCHW flatten (C,H,W)
    x = jax.nn.relu(x @ params["fc1_w"] + params["fc1_b"])
    return x @ params["fc2_w"] + params["fc2_b"]


if __name__ == "__main__":
    key = jax.random.PRNGKey(0)
    k_par, k_x = jax.random.split(key)

    batch, in_channels, H, W = 2, 4, 48, 48                 # small Atari-like obs
    num_actions = 6

    params = init_params(k_par, in_channels, (H, W), num_actions)
    kparams = prepare_params(params)                        # one-time repack
    x = jax.random.normal(k_x, (batch, in_channels, H, W), jnp.float32)

    fwd = jax.jit(functools.partial(qlearner_forward, num_actions=num_actions))
    q_values = fwd(kparams, x)
    jax.block_until_ready(q_values)
    assert q_values.shape == (batch, num_actions)

    ref = _ref_forward(params, x)
    # bf16 MXU operands (f32 accumulation) -> loosened tolerance vs f32 ref.
    assert jnp.allclose(q_values, ref, rtol=5e-2, atol=5e-2), (
        f"max abs err {jnp.max(jnp.abs(q_values - ref))}")

    print("KERNEL_OK")
</pallas_src>

<mosaic_0001>
module attributes {stable_mosaic.version = 11 : i64} {
  func.func @_qnet_kernel(%arg0: i32, %arg1: memref<2048x256xbf16, #tpu.memory_space<vmem>>, %arg2: memref<256x32xbf16, #tpu.memory_space<vmem>>, %arg3: memref<1x32xf32, #tpu.memory_space<vmem>>, %arg4: memref<512x64xbf16, #tpu.memory_space<vmem>>, %arg5: memref<1x64xf32, #tpu.memory_space<vmem>>, %arg6: memref<576x64xbf16, #tpu.memory_space<vmem>>, %arg7: memref<1x64xf32, #tpu.memory_space<vmem>>, %arg8: memref<256x512xbf16, #tpu.memory_space<vmem>>, %arg9: memref<1x512xf32, #tpu.memory_space<vmem>>, %arg10: memref<512x128xbf16, #tpu.memory_space<vmem>>, %arg11: memref<1x128xf32, #tpu.memory_space<vmem>>, %arg12: memref<8x128xf32, #tpu.memory_space<vmem>>, %arg13: memref<128x512xbf16, #tpu.memory_space<vmem>>, %arg14: memref<128x64xbf16, #tpu.memory_space<vmem>>, %arg15: memref<32x576xbf16, #tpu.memory_space<vmem>>, %arg16: memref<8x256xbf16, #tpu.memory_space<vmem>>) attributes {dimension_semantics = [#tpu.dimension_semantics<arbitrary>], iteration_bounds = array<i64: 1>, scalar_prefetch = 0 : i64, scratch_operands = 4 : i64, tpu.core_type = #tpu.core_type<tc>, window_params = [{pipeline_mode = #tpu.pipeline_mode<synchronous>, transform_indices = @transform_0, window_bounds = array<i64: 2048, 256>}, {pipeline_mode = #tpu.pipeline_mode<synchronous>, transform_indices = @transform_1, window_bounds = array<i64: 256, 32>}, {pipeline_mode = #tpu.pipeline_mode<synchronous>, transform_indices = @transform_2, window_bounds = array<i64: 1, 32>}, {pipeline_mode = #tpu.pipeline_mode<synchronous>, transform_indices = @transform_3, window_bounds = array<i64: 512, 64>}, {pipeline_mode = #tpu.pipeline_mode<synchronous>, transform_indices = @transform_4, window_bounds = array<i64: 1, 64>}, {pipeline_mode = #tpu.pipeline_mode<synchronous>, transform_indices = @transform_5, window_bounds = array<i64: 576, 64>}, {pipeline_mode = #tpu.pipeline_mode<synchronous>, transform_indices = @transform_6, window_bounds = array<i64: 1, 64>}, {pipeline_mode = #tpu.pipeline_mode<synchronous>, transform_indices = @transform_7, window_bounds = array<i64: 256, 512>}, {pipeline_mode = #tpu.pipeline_mode<synchronous>, transform_indices = @transform_8, window_bounds = array<i64: 1, 512>}, {pipeline_mode = #tpu.pipeline_mode<synchronous>, transform_indices = @transform_9, window_bounds = array<i64: 512, 128>}, {pipeline_mode = #tpu.pipeline_mode<synchronous>, transform_indices = @transform_10, window_bounds = array<i64: 1, 128>}, {pipeline_mode = #tpu.pipeline_mode<synchronous>, transform_indices = @transform_11, window_bounds = array<i64: 8, 128>}]} {
    %c0 = arith.constant 0 : index
    %c0_0 = arith.constant 0 : index
    %0 = vector.load %arg1[%c0, %c0_0] : memref<2048x256xbf16, #tpu.memory_space<vmem>>, vector<128x256xbf16>
    %c0_1 = arith.constant 0 : index
    %c0_2 = arith.constant 0 : index
    %1 = vector.load %arg2[%c0_1, %c0_2] : memref<256x32xbf16, #tpu.memory_space<vmem>>, vector<256x32xbf16>
    %cst = arith.constant dense<0.000000e+00> : vector<128x32xf32>
    %2 = tpu.matmul %0, %1, %cst {dimension_numbers = #tpu.dot_dimension_numbers<[1], [0], [0], [1], [0, 0, 1, 1], [], []>} : vector<128x256xbf16>, vector<256x32xbf16>, vector<128x32xf32> -> vector<128x32xf32>
    %c0_3 = arith.constant 0 : index
    %c0_4 = arith.constant 0 : index
    %3 = vector.load %arg3[%c0_3, %c0_4] : memref<1x32xf32, #tpu.memory_space<vmem>>, vector<1x32xf32>
    %4 = vector.broadcast %3 : vector<1x32xf32> to vector<128x32xf32>
    %5 = arith.addf %2, %4 : vector<128x32xf32>
    %cst_5 = arith.constant 0.000000e+00 : f32
    %6 = vector.broadcast %cst_5 : f32 to vector<128x32xf32>
    %7 = arith.maximumf %5, %6 : vector<128x32xf32>
    %8 = arith.truncf %7 : vector<128x32xf32> to vector<128x32xbf16>
    %c0_6 = arith.constant 0 : index
    %c0_7 = arith.constant 0 : index
    %9 = vector.load %arg13[%c0_6, %c0_7] : memref<128x512xbf16, #tpu.memory_space<vmem>>, vector<128x32xbf16>
    tpu.vector_store %arg13[%c0_6, %c0_7], %8 {strides = array<i32>} : memref<128x512xbf16, #tpu.memory_space<vmem>>, vector<128x32xbf16>,
    %c128 = arith.constant 128 : index
    %c0_8 = arith.constant 0 : index
    %10 = vector.load %arg1[%c128, %c0_8] : memref<2048x256xbf16, #tpu.memory_space<vmem>>, vector<128x256xbf16>
    %c0_9 = arith.constant 0 : index
    %c0_10 = arith.constant 0 : index
    %11 = vector.load %arg2[%c0_9, %c0_10] : memref<256x32xbf16, #tpu.memory_space<vmem>>, vector<256x32xbf16>
    %cst_11 = arith.constant dense<0.000000e+00> : vector<128x32xf32>
    %12 = tpu.matmul %10, %11, %cst_11 {dimension_numbers = #tpu.dot_dimension_numbers<[1], [0], [0], [1], [0, 0, 1, 1], [], []>} : vector<128x256xbf16>, vector<256x32xbf16>, vector<128x32xf32> -> vector<128x32xf32>
    %c0_12 = arith.constant 0 : index
    %c0_13 = arith.constant 0 : index
    %13 = vector.load %arg3[%c0_12, %c0_13] : memref<1x32xf32, #tpu.memory_space<vmem>>, vector<1x32xf32>
    %14 = vector.broadcast %13 : vector<1x32xf32> to vector<128x32xf32>
    %15 = arith.addf %12, %14 : vector<128x32xf32>
    %cst_14 = arith.constant 0.000000e+00 : f32
    %16 = vector.broadcast %cst_14 : f32 to vector<128x32xf32>
    %17 = arith.maximumf %15, %16 : vector<128x32xf32>
    %18 = arith.truncf %17 : vector<128x32xf32> to vector<128x32xbf16>
    %c0_15 = arith.constant 0 : index
    %c32 = arith.constant 32 : index
    %19 = vector.load %arg13[%c0_15, %c32] : memref<128x512xbf16, #tpu.memory_space<vmem>>, vector<128x32xbf16>
    tpu.vector_store %arg13[%c0_15, %c32], %18 {strides = array<i32>} : memref<128x512xbf16, #tpu.memory_space<vmem>>, vector<128x32xbf16>,
    %c256 = arith.constant 256 : index
    %c0_16 = arith.constant 0 : index
    %20 = vector.load %arg1[%c256, %c0_16] : memref<2048x256xbf16, #tpu.memory_space<vmem>>, vector<128x256xbf16>
    %c0_17 = arith.constant 0 : index
    %c0_18 = arith.constant 0 : index
    %21 = vector.load %arg2[%c0_17, %c0_18] : memref<256x32xbf16, #tpu.memory_space<vmem>>, vector<256x32xbf16>
    %cst_19 = arith.constant dense<0.000000e+00> : vector<128x32xf32>
    %22 = tpu.matmul %20, %21, %cst_19 {dimension_numbers = #tpu.dot_dimension_numbers<[1], [0], [0], [1], [0, 0, 1, 1], [], []>} : vector<128x256xbf16>, vector<256x32xbf16>, vector<128x32xf32> -> vector<128x32xf32>
    %c0_20 = arith.constant 0 : index
    %c0_21 = arith.constant 0 : index
    %23 = vector.load %arg3[%c0_20, %c0_21] : memref<1x32xf32, #tpu.memory_space<vmem>>, vector<1x32xf32>
    %24 = vector.broadcast %23 : vector<1x32xf32> to vector<128x32xf32>
    %25 = arith.addf %22, %24 : vector<128x32xf32>
    %cst_22 = arith.constant 0.000000e+00 : f32
    %26 = vector.broadcast %cst_22 : f32 to vector<128x32xf32>
    %27 = arith.maximumf %25, %26 : vector<128x32xf32>
    %28 = arith.truncf %27 : vector<128x32xf32> to vector<128x32xbf16>
    %c0_23 = arith.constant 0 : index
    %c64 = arith.constant 64 : index
    %29 = vector.load %arg13[%c0_23, %c64] : memref<128x512xbf16, #tpu.memory_space<vmem>>, vector<128x32xbf16>
    tpu.vector_store %arg13[%c0_23, %c64], %28 {strides = array<i32>} : memref<128x512xbf16, #tpu.memory_space<vmem>>, vector<128x32xbf16>,
    %c384 = arith.constant 384 : index
    %c0_24 = arith.constant 0 : index
    %30 = vector.load %arg1[%c384, %c0_24] : memref<2048x256xbf16, #tpu.memory_space<vmem>>, vector<128x256xbf16>
    %c0_25 = arith.constant 0 : index
    %c0_26 = arith.constant 0 : index
    %31 = vector.load %arg2[%c0_25, %c0_26] : memref<256x32xbf16, #tpu.memory_space<vmem>>, vector<256x32xbf16>
    %cst_27 = arith.constant dense<0.000000e+00> : vector<128x32xf32>
    %32 = tpu.matmul %30, %31, %cst_27 {dimension_numbers = #tpu.dot_dimension_numbers<[1], [0], [0], [1], [0, 0, 1, 1], [], []>} : vector<128x256xbf16>, vector<256x32xbf16>, vector<128x32xf32> -> vector<128x32xf32>
    %c0_28 = arith.constant 0 : index
    %c0_29 = arith.constant 0 : index
    %33 = vector.load %arg3[%c0_28, %c0_29] : memref<1x32xf32, #tpu.memory_space<vmem>>, vector<1x32xf32>
    %34 = vector.broadcast %33 : vector<1x32xf32> to vector<128x32xf32>
    %35 = arith.addf %32, %34 : vector<128x32xf32>
    %cst_30 = arith.constant 0.000000e+00 : f32
    %36 = vector.broadcast %cst_30 : f32 to vector<128x32xf32>
    %37 = arith.maximumf %35, %36 : vector<128x32xf32>
    %38 = arith.truncf %37 : vector<128x32xf32> to vector<128x32xbf16>
    %c0_31 = arith.constant 0 : index
    %c96 = arith.constant 96 : index
    %39 = vector.load %arg13[%c0_31, %c96] : memref<128x512xbf16, #tpu.memory_space<vmem>>, vector<128x32xbf16>
    tpu.vector_store %arg13[%c0_31, %c96], %38 {strides = array<i32>} : memref<128x512xbf16, #tpu.memory_space<vmem>>, vector<128x32xbf16>,
    %c512 = arith.constant 512 : index
    %c0_32 = arith.constant 0 : index
    %40 = vector.load %arg1[%c512, %c0_32] : memref<2048x256xbf16, #tpu.memory_space<vmem>>, vector<128x256xbf16>
    %c0_33 = arith.constant 0 : index
    %c0_34 = arith.constant 0 : index
    %41 = vector.load %arg2[%c0_33, %c0_34] : memref<256x32xbf16, #tpu.memory_space<vmem>>, vector<256x32xbf16>
    %cst_35 = arith.constant dense<0.000000e+00> : vector<128x32xf32>
    %42 = tpu.matmul %40, %41, %cst_35 {dimension_numbers = #tpu.dot_dimension_numbers<[1], [0], [0], [1], [0, 0, 1, 1], [], []>} : vector<128x256xbf16>, vector<256x32xbf16>, vector<128x32xf32> -> vector<128x32xf32>
    %c0_36 = arith.constant 0 : index
    %c0_37 = arith.constant 0 : index
    %43 = vector.load %arg3[%c0_36, %c0_37] : memref<1x32xf32, #tpu.memory_space<vmem>>, vector<1x32xf32>
    %44 = vector.broadcast %43 : vector<1x32xf32> to vector<128x32xf32>
    %45 = arith.addf %42, %44 : vector<128x32xf32>
    %cst_38 = arith.constant 0.000000e+00 : f32
    %46 = vector.broadcast %cst_38 : f32 to vector<128x32xf32>
    %47 = arith.maximumf %45, %46 : vector<128x32xf32>
    %48 = arith.truncf %47 : vector<128x32xf32> to vector<128x32xbf16>
    %c0_39 = arith.constant 0 : index
    %c128_40 = arith.constant 128 : index
    %49 = vector.load %arg13[%c0_39, %c128_40] : memref<128x512xbf16, #tpu.memory_space<vmem>>, vector<128x32xbf16>
    tpu.vector_store %arg13[%c0_39, %c128_40], %48 {strides = array<i32>} : memref<128x512xbf16, #tpu.memory_space<vmem>>, vector<128x32xbf16>,
    %c640 = arith.constant 640 : index
    %c0_41 = arith.constant 0 : index
    %50 = vector.load %arg1[%c640, %c0_41] : memref<2048x256xbf16, #tpu.memory_space<vmem>>, vector<128x256xbf16>
    %c0_42 = arith.constant 0 : index
    %c0_43 = arith.constant 0 : index
    %51 = vector.load %arg2[%c0_42, %c0_43] : memref<256x32xbf16, #tpu.memory_space<vmem>>, vector<256x32xbf16>
    %cst_44 = arith.constant dense<0.000000e+00> : vector<128x32xf32>
    %52 = tpu.matmul %50, %51, %cst_44 {dimension_numbers = #tpu.dot_dimension_numbers<[1], [0], [0], [1], [0, 0, 1, 1], [], []>} : vector<128x256xbf16>, vector<256x32xbf16>, vector<128x32xf32> -> vector<128x32xf32>
    %c0_45 = arith.constant 0 : index
    %c0_46 = arith.constant 0 : index
    %53 = vector.load %arg3[%c0_45, %c0_46] : memref<1x32xf32, #tpu.memory_space<vmem>>, vector<1x32xf32>
    %54 = vector.broadcast %53 : vector<1x32xf32> to vector<128x32xf32>
    %55 = arith.addf %52, %54 : vector<128x32xf32>
    %cst_47 = arith.constant 0.000000e+00 : f32
    %56 = vector.broadcast %cst_47 : f32 to vector<128x32xf32>
    %57 = arith.maximumf %55, %56 : vector<128x32xf32>
    %58 = arith.truncf %57 : vector<128x32xf32> to vector<128x32xbf16>
    %c0_48 = arith.constant 0 : index
    %c160 = arith.constant 160 : index
    %59 = vector.load %arg13[%c0_48, %c160] : memref<128x512xbf16, #tpu.memory_space<vmem>>, vector<128x32xbf16>
    tpu.vector_store %arg13[%c0_48, %c160], %58 {strides = array<i32>} : memref<128x512xbf16, #tpu.memory_space<vmem>>, vector<128x32xbf16>,
    %c768 = arith.constant 768 : index
    %c0_49 = arith.constant 0 : index
    %60 = vector.load %arg1[%c768, %c0_49] : memref<2048x256xbf16, #tpu.memory_space<vmem>>, vector<128x256xbf16>
    %c0_50 = arith.constant 0 : index
    %c0_51 = arith.constant 0 : index
    %61 = vector.load %arg2[%c0_50, %c0_51] : memref<256x32xbf16, #tpu.memory_space<vmem>>, vector<256x32xbf16>
    %cst_52 = arith.constant dense<0.000000e+00> : vector<128x32xf32>
    %62 = tpu.matmul %60, %61, %cst_52 {dimension_numbers = #tpu.dot_dimension_numbers<[1], [0], [0], [1], [0, 0, 1, 1], [], []>} : vector<128x256xbf16>, vector<256x32xbf16>, vector<128x32xf32> -> vector<128x32xf32>
    %c0_53 = arith.constant 0 : index
    %c0_54 = arith.constant 0 : index
    %63 = vector.load %arg3[%c0_53, %c0_54] : memref<1x32xf32, #tpu.memory_space<vmem>>, vector<1x32xf32>
    %64 = vector.broadcast %63 : vector<1x32xf32> to vector<128x32xf32>
    %65 = arith.addf %62, %64 : vector<128x32xf32>
    %cst_55 = arith.constant 0.000000e+00 : f32
    %66 = vector.broadcast %cst_55 : f32 to vector<128x32xf32>
    %67 = arith.maximumf %65, %66 : vector<128x32xf32>
    %68 = arith.truncf %67 : vector<128x32xf32> to vector<128x32xbf16>
    %c0_56 = arith.constant 0 : index
    %c192 = arith.constant 192 : index
    %69 = vector.load %arg13[%c0_56, %c192] : memref<128x512xbf16, #tpu.memory_space<vmem>>, vector<128x32xbf16>
    tpu.vector_store %arg13[%c0_56, %c192], %68 {strides = array<i32>} : memref<128x512xbf16, #tpu.memory_space<vmem>>, vector<128x32xbf16>,
    %c896 = arith.constant 896 : index
    %c0_57 = arith.constant 0 : index
    %70 = vector.load %arg1[%c896, %c0_57] : memref<2048x256xbf16, #tpu.memory_space<vmem>>, vector<128x256xbf16>
    %c0_58 = arith.constant 0 : index
    %c0_59 = arith.constant 0 : index
    %71 = vector.load %arg2[%c0_58, %c0_59] : memref<256x32xbf16, #tpu.memory_space<vmem>>, vector<256x32xbf16>
    %cst_60 = arith.constant dense<0.000000e+00> : vector<128x32xf32>
    %72 = tpu.matmul %70, %71, %cst_60 {dimension_numbers = #tpu.dot_dimension_numbers<[1], [0], [0], [1], [0, 0, 1, 1], [], []>} : vector<128x256xbf16>, vector<256x32xbf16>, vector<128x32xf32> -> vector<128x32xf32>
    %c0_61 = arith.constant 0 : index
    %c0_62 = arith.constant 0 : index
    %73 = vector.load %arg3[%c0_61, %c0_62] : memref<1x32xf32, #tpu.memory_space<vmem>>, vector<1x32xf32>
    %74 = vector.broadcast %73 : vector<1x32xf32> to vector<128x32xf32>
    %75 = arith.addf %72, %74 : vector<128x32xf32>
    %cst_63 = arith.constant 0.000000e+00 : f32
    %76 = vector.broadcast %cst_63 : f32 to vector<128x32xf32>
    %77 = arith.maximumf %75, %76 : vector<128x32xf32>
    %78 = arith.truncf %77 : vector<128x32xf32> to vector<128x32xbf16>
    %c0_64 = arith.constant 0 : index
    %c224 = arith.constant 224 : index
    %79 = vector.load %arg13[%c0_64, %c224] : memref<128x512xbf16, #tpu.memory_space<vmem>>, vector<128x32xbf16>
    tpu.vector_store %arg13[%c0_64, %c224], %78 {strides = array<i32>} : memref<128x512xbf16, #tpu.memory_space<vmem>>, vector<128x32xbf16>,
    %c1024 = arith.constant 1024 : index
    %c0_65 = arith.constant 0 : index
    %80 = vector.load %arg1[%c1024, %c0_65] : memref<2048x256xbf16, #tpu.memory_space<vmem>>, vector<128x256xbf16>
    %c0_66 = arith.constant 0 : index
    %c0_67 = arith.constant 0 : index
    %81 = vector.load %arg2[%c0_66, %c0_67] : memref<256x32xbf16, #tpu.memory_space<vmem>>, vector<256x32xbf16>
    %cst_68 = arith.constant dense<0.000000e+00> : vector<128x32xf32>
    %82 = tpu.matmul %80, %81, %cst_68 {dimension_numbers = #tpu.dot_dimension_numbers<[1], [0], [0], [1], [0, 0, 1, 1], [], []>} : vector<128x256xbf16>, vector<256x32xbf16>, vector<128x32xf32> -> vector<128x32xf32>
    %c0_69 = arith.constant 0 : index
    %c0_70 = arith.constant 0 : index
    %83 = vector.load %arg3[%c0_69, %c0_70] : memref<1x32xf32, #tpu.memory_space<vmem>>, vector<1x32xf32>
    %84 = vector.broadcast %83 : vector<1x32xf32> to vector<128x32xf32>
    %85 = arith.addf %82, %84 : vector<128x32xf32>
    %cst_71 = arith.constant 0.000000e+00 : f32
    %86 = vector.broadcast %cst_71 : f32 to vector<128x32xf32>
    %87 = arith.maximumf %85, %86 : vector<128x32xf32>
    %88 = arith.truncf %87 : vector<128x32xf32> to vector<128x32xbf16>
    %c0_72 = arith.constant 0 : index
    %c256_73 = arith.constant 256 : index
    %89 = vector.load %arg13[%c0_72, %c256_73] : memref<128x512xbf16, #tpu.memory_space<vmem>>, vector<128x32xbf16>
    tpu.vector_store %arg13[%c0_72, %c256_73], %88 {strides = array<i32>} : memref<128x512xbf16, #tpu.memory_space<vmem>>, vector<128x32xbf16>,
    %c1152 = arith.constant 1152 : index
    %c0_74 = arith.constant 0 : index
    %90 = vector.load %arg1[%c1152, %c0_74] : memref<2048x256xbf16, #tpu.memory_space<vmem>>, vector<128x256xbf16>
    %c0_75 = arith.constant 0 : index
    %c0_76 = arith.constant 0 : index
    %91 = vector.load %arg2[%c0_75, %c0_76] : memref<256x32xbf16, #tpu.memory_space<vmem>>, vector<256x32xbf16>
    %cst_77 = arith.constant dense<0.000000e+00> : vector<128x32xf32>
    %92 = tpu.matmul %90, %91, %cst_77 {dimension_numbers = #tpu.dot_dimension_numbers<[1], [0], [0], [1], [0, 0, 1, 1], [], []>} : vector<128x256xbf16>, vector<256x32xbf16>, vector<128x32xf32> -> vector<128x32xf32>
    %c0_78 = arith.constant 0 : index
    %c0_79 = arith.constant 0 : index
    %93 = vector.load %arg3[%c0_78, %c0_79] : memref<1x32xf32, #tpu.memory_space<vmem>>, vector<1x32xf32>
    %94 = vector.broadcast %93 : vector<1x32xf32> to vector<128x32xf32>
    %95 = arith.addf %92, %94 : vector<128x32xf32>
    %cst_80 = arith.constant 0.000000e+00 : f32
    %96 = vector.broadcast %cst_80 : f32 to vector<128x32xf32>
    %97 = arith.maximumf %95, %96 : vector<128x32xf32>
    %98 = arith.truncf %97 : vector<128x32xf32> to vector<128x32xbf16>
    %c0_81 = arith.constant 0 : index
    %c288 = arith.constant 288 : index
    %99 = vector.load %arg13[%c0_81, %c288] : memref<128x512xbf16, #tpu.memory_space<vmem>>, vector<128x32xbf16>
    tpu.vector_store %arg13[%c0_81, %c288], %98 {strides = array<i32>} : memref<128x512xbf16, #tpu.memory_space<vmem>>, vector<128x32xbf16>,
    %c1280 = arith.constant 1280 : index
    %c0_82 = arith.constant 0 : index
    %100 = vector.load %arg1[%c1280, %c0_82] : memref<2048x256xbf16, #tpu.memory_space<vmem>>, vector<128x256xbf16>
    %c0_83 = arith.constant 0 : index
    %c0_84 = arith.constant 0 : index
    %101 = vector.load %arg2[%c0_83, %c0_84] : memref<256x32xbf16, #tpu.memory_space<vmem>>, vector<256x32xbf16>
    %cst_85 = arith.constant dense<0.000000e+00> : vector<128x32xf32>
    %102 = tpu.matmul %100, %101, %cst_85 {dimension_numbers = #tpu.dot_dimension_numbers<[1], [0], [0], [1], [0, 0, 1, 1], [], []>} : vector<128x256xbf16>, vector<256x32xbf16>, vector<128x32xf32> -> vector<128x32xf32>
    %c0_86 = arith.constant 0 : index
    %c0_87 = arith.constant 0 : index
    %103 = vector.load %arg3[%c0_86, %c0_87] : memref<1x32xf32, #tpu.memory_space<vmem>>, vector<1x32xf32>
    %104 = vector.broadcast %103 : vector<1x32xf32> to vector<128x32xf32>
    %105 = arith.addf %102, %104 : vector<128x32xf32>
    %cst_88 = arith.constant 0.000000e+00 : f32
    %106 = vector.broadcast %cst_88 : f32 to vector<128x32xf32>
    %107 = arith.maximumf %105, %106 : vector<128x32xf32>
    %108 = arith.truncf %107 : vector<128x32xf32> to vector<128x32xbf16>
    %c0_89 = arith.constant 0 : index
    %c320 = arith.constant 320 : index
    %109 = vector.load %arg13[%c0_89, %c320] : memref<128x512xbf16, #tpu.memory_space<vmem>>, vector<128x32xbf16>
    tpu.vector_store %arg13[%c0_89, %c320], %108 {strides = array<i32>} : memref<128x512xbf16, #tpu.memory_space<vmem>>, vector<128x32xbf16>,
    %c1408 = arith.constant 1408 : index
    %c0_90 = arith.constant 0 : index
    %110 = vector.load %arg1[%c1408, %c0_90] : memref<2048x256xbf16, #tpu.memory_space<vmem>>, vector<128x256xbf16>
    %c0_91 = arith.constant 0 : index
    %c0_92 = arith.constant 0 : index
    %111 = vector.load %arg2[%c0_91, %c0_92] : memref<256x32xbf16, #tpu.memory_space<vmem>>, vector<256x32xbf16>
    %cst_93 = arith.constant dense<0.000000e+00> : vector<128x32xf32>
    %112 = tpu.matmul %110, %111, %cst_93 {dimension_numbers = #tpu.dot_dimension_numbers<[1], [0], [0], [1], [0, 0, 1, 1], [], []>} : vector<128x256xbf16>, vector<256x32xbf16>, vector<128x32xf32> -> vector<128x32xf32>
    %c0_94 = arith.constant 0 : index
    %c0_95 = arith.constant 0 : index
    %113 = vector.load %arg3[%c0_94, %c0_95] : memref<1x32xf32, #tpu.memory_space<vmem>>, vector<1x32xf32>
    %114 = vector.broadcast %113 : vector<1x32xf32> to vector<128x32xf32>
    %115 = arith.addf %112, %114 : vector<128x32xf32>
    %cst_96 = arith.constant 0.000000e+00 : f32
    %116 = vector.broadcast %cst_96 : f32 to vector<128x32xf32>
    %117 = arith.maximumf %115, %116 : vector<128x32xf32>
    %118 = arith.truncf %117 : vector<128x32xf32> to vector<128x32xbf16>
    %c0_97 = arith.constant 0 : index
    %c352 = arith.constant 352 : index
    %119 = vector.load %arg13[%c0_97, %c352] : memref<128x512xbf16, #tpu.memory_space<vmem>>, vector<128x32xbf16>
    tpu.vector_store %arg13[%c0_97, %c352], %118 {strides = array<i32>} : memref<128x512xbf16, #tpu.memory_space<vmem>>, vector<128x32xbf16>,
    %c1536 = arith.constant 1536 : index
    %c0_98 = arith.constant 0 : index
    %120 = vector.load %arg1[%c1536, %c0_98] : memref<2048x256xbf16, #tpu.memory_space<vmem>>, vector<128x256xbf16>
    %c0_99 = arith.constant 0 : index
    %c0_100 = arith.constant 0 : index
    %121 = vector.load %arg2[%c0_99, %c0_100] : memref<256x32xbf16, #tpu.memory_space<vmem>>, vector<256x32xbf16>
    %cst_101 = arith.constant dense<0.000000e+00> : vector<128x32xf32>
    %122 = tpu.matmul %120, %121, %cst_101 {dimension_numbers = #tpu.dot_dimension_numbers<[1], [0], [0], [1], [0, 0, 1, 1], [], []>} : vector<128x256xbf16>, vector<256x32xbf16>, vector<128x32xf32> -> vector<128x32xf32>
    %c0_102 = arith.constant 0 : index
    %c0_103 = arith.constant 0 : index
    %123 = vector.load %arg3[%c0_102, %c0_103] : memref<1x32xf32, #tpu.memory_space<vmem>>, vector<1x32xf32>
    %124 = vector.broadcast %123 : vector<1x32xf32> to vector<128x32xf32>
    %125 = arith.addf %122, %124 : vector<128x32xf32>
    %cst_104 = arith.constant 0.000000e+00 : f32
    %126 = vector.broadcast %cst_104 : f32 to vector<128x32xf32>
    %127 = arith.maximumf %125, %126 : vector<128x32xf32>
    %128 = arith.truncf %127 : vector<128x32xf32> to vector<128x32xbf16>
    %c0_105 = arith.constant 0 : index
    %c384_106 = arith.constant 384 : index
    %129 = vector.load %arg13[%c0_105, %c384_106] : memref<128x512xbf16, #tpu.memory_space<vmem>>, vector<128x32xbf16>
    tpu.vector_store %arg13[%c0_105, %c384_106], %128 {strides = array<i32>} : memref<128x512xbf16, #tpu.memory_space<vmem>>, vector<128x32xbf16>,
    %c1664 = arith.constant 1664 : index
    %c0_107 = arith.constant 0 : index
    %130 = vector.load %arg1[%c1664, %c0_107] : memref<2048x256xbf16, #tpu.memory_space<vmem>>, vector<128x256xbf16>
    %c0_108 = arith.constant 0 : index
    %c0_109 = arith.constant 0 : index
    %131 = vector.load %arg2[%c0_108, %c0_109] : memref<256x32xbf16, #tpu.memory_space<vmem>>, vector<256x32xbf16>
    %cst_110 = arith.constant dense<0.000000e+00> : vector<128x32xf32>
    %132 = tpu.matmul %130, %131, %cst_110 {dimension_numbers = #tpu.dot_dimension_numbers<[1], [0], [0], [1], [0, 0, 1, 1], [], []>} : vector<128x256xbf16>, vector<256x32xbf16>, vector<128x32xf32> -> vector<128x32xf32>
    %c0_111 = arith.constant 0 : index
    %c0_112 = arith.constant 0 : index
    %133 = vector.load %arg3[%c0_111, %c0_112] : memref<1x32xf32, #tpu.memory_space<vmem>>, vector<1x32xf32>
    %134 = vector.broadcast %133 : vector<1x32xf32> to vector<128x32xf32>
    %135 = arith.addf %132, %134 : vector<128x32xf32>
    %cst_113 = arith.constant 0.000000e+00 : f32
    %136 = vector.broadcast %cst_113 : f32 to vector<128x32xf32>
    %137 = arith.maximumf %135, %136 : vector<128x32xf32>
    %138 = arith.truncf %137 : vector<128x32xf32> to vector<128x32xbf16>
    %c0_114 = arith.constant 0 : index
    %c416 = arith.constant 416 : index
    %139 = vector.load %arg13[%c0_114, %c416] : memref<128x512xbf16, #tpu.memory_space<vmem>>, vector<128x32xbf16>
    tpu.vector_store %arg13[%c0_114, %c416], %138 {strides = array<i32>} : memref<128x512xbf16, #tpu.memory_space<vmem>>, vector<128x32xbf16>,
    %c1792 = arith.constant 1792 : index
    %c0_115 = arith.constant 0 : index
    %140 = vector.load %arg1[%c1792, %c0_115] : memref<2048x256xbf16, #tpu.memory_space<vmem>>, vector<128x256xbf16>
    %c0_116 = arith.constant 0 : index
    %c0_117 = arith.constant 0 : index
    %141 = vector.load %arg2[%c0_116, %c0_117] : memref<256x32xbf16, #tpu.memory_space<vmem>>, vector<256x32xbf16>
    %cst_118 = arith.constant dense<0.000000e+00> : vector<128x32xf32>
    %142 = tpu.matmul %140, %141, %cst_118 {dimension_numbers = #tpu.dot_dimension_numbers<[1], [0], [0], [1], [0, 0, 1, 1], [], []>} : vector<128x256xbf16>, vector<256x32xbf16>, vector<128x32xf32> -> vector<128x32xf32>
    %c0_119 = arith.constant 0 : index
    %c0_120 = arith.constant 0 : index
    %143 = vector.load %arg3[%c0_119, %c0_120] : memref<1x32xf32, #tpu.memory_space<vmem>>, vector<1x32xf32>
    %144 = vector.broadcast %143 : vector<1x32xf32> to vector<128x32xf32>
    %145 = arith.addf %142, %144 : vector<128x32xf32>
    %cst_121 = arith.constant 0.000000e+00 : f32
    %146 = vector.broadcast %cst_121 : f32 to vector<128x32xf32>
    %147 = arith.maximumf %145, %146 : vector<128x32xf32>
    %148 = arith.truncf %147 : vector<128x32xf32> to vector<128x32xbf16>
    %c0_122 = arith.constant 0 : index
    %c448 = arith.constant 448 : index
    %149 = vector.load %arg13[%c0_122, %c448] : memref<128x512xbf16, #tpu.memory_space<vmem>>, vector<128x32xbf16>
    tpu.vector_store %arg13[%c0_122, %c448], %148 {strides = array<i32>} : memref<128x512xbf16, #tpu.memory_space<vmem>>, vector<128x32xbf16>,
    %c1920 = arith.constant 1920 : index
    %c0_123 = arith.constant 0 : index
    %150 = vector.load %arg1[%c1920, %c0_123] : memref<2048x256xbf16, #tpu.memory_space<vmem>>, vector<128x256xbf16>
    %c0_124 = arith.constant 0 : index
    %c0_125 = arith.constant 0 : index
    %151 = vector.load %arg2[%c0_124, %c0_125] : memref<256x32xbf16, #tpu.memory_space<vmem>>, vector<256x32xbf16>
    %cst_126 = arith.constant dense<0.000000e+00> : vector<128x32xf32>
    %152 = tpu.matmul %150, %151, %cst_126 {dimension_numbers = #tpu.dot_dimension_numbers<[1], [0], [0], [1], [0, 0, 1, 1], [], []>} : vector<128x256xbf16>, vector<256x32xbf16>, vector<128x32xf32> -> vector<128x32xf32>
    %c0_127 = arith.constant 0 : index
    %c0_128 = arith.constant 0 : index
    %153 = vector.load %arg3[%c0_127, %c0_128] : memref<1x32xf32, #tpu.memory_space<vmem>>, vector<1x32xf32>
    %154 = vector.broadcast %153 : vector<1x32xf32> to vector<128x32xf32>
    %155 = arith.addf %152, %154 : vector<128x32xf32>
    %cst_129 = arith.constant 0.000000e+00 : f32
    %156 = vector.broadcast %cst_129 : f32 to vector<128x32xf32>
    %157 = arith.maximumf %155, %156 : vector<128x32xf32>
    %158 = arith.truncf %157 : vector<128x32xf32> to vector<128x32xbf16>
    %c0_130 = arith.constant 0 : index
    %c480 = arith.constant 480 : index
    %159 = vector.load %arg13[%c0_130, %c480] : memref<128x512xbf16, #tpu.memory_space<vmem>>, vector<128x32xbf16>
    tpu.vector_store %arg13[%c0_130, %c480], %158 {strides = array<i32>} : memref<128x512xbf16, #tpu.memory_space<vmem>>, vector<128x32xbf16>,
    %c0_131 = arith.constant 0 : index
    %c0_132 = arith.constant 0 : index
    %160 = vector.load %arg13[%c0_131, %c0_132] : memref<128x512xbf16, #tpu.memory_space<vmem>>, vector<128x512xbf16>
    %c0_133 = arith.constant 0 : index
    %c0_134 = arith.constant 0 : index
    %161 = vector.load %arg4[%c0_133, %c0_134] : memref<512x64xbf16, #tpu.memory_space<vmem>>, vector<512x64xbf16>
    %cst_135 = arith.constant dense<0.000000e+00> : vector<128x64xf32>
    %162 = tpu.matmul %160, %161, %cst_135 {dimension_numbers = #tpu.dot_dimension_numbers<[1], [0], [0], [1], [0, 0, 1, 1], [], []>} : vector<128x512xbf16>, vector<512x64xbf16>, vector<128x64xf32> -> vector<128x64xf32>
    %c0_136 = arith.constant 0 : index
    %c0_137 = arith.constant 0 : index
    %163 = vector.load %arg5[%c0_136, %c0_137] : memref<1x64xf32, #tpu.memory_space<vmem>>, vector<1x64xf32>
    %164 = vector.broadcast %163 : vector<1x64xf32> to vector<128x64xf32>
    %165 = arith.addf %162, %164 : vector<128x64xf32>
    %cst_138 = arith.constant 0.000000e+00 : f32
    %166 = vector.broadcast %cst_138 : f32 to vector<128x64xf32>
    %167 = arith.maximumf %165, %166 : vector<128x64xf32>
    %168 = arith.truncf %167 : vector<128x64xf32> to vector<128x64xbf16>
    %c0_139 = arith.constant 0 : index
    %c0_140 = arith.constant 0 : index
    %169 = vector.load %arg14[%c0_139, %c0_140] : memref<128x64xbf16, #tpu.memory_space<vmem>>, vector<128x64xbf16>
    tpu.vector_store %arg14[%c0_139, %c0_140], %168 {strides = array<i32>} : memref<128x64xbf16, #tpu.memory_space<vmem>>, vector<128x64xbf16>,
    %c0_141 = arith.constant 0 : index
    %c0_142 = arith.constant 0 : index
    %170 = vector.load %arg14[%c0_141, %c0_142] : memref<128x64xbf16, #tpu.memory_space<vmem>>, vector<16x64xbf16>
    %c0_143 = arith.constant 0 : index
    %c0_144 = arith.constant 0 : index
    %171 = vector.load %arg15[%c0_143, %c0_144] : memref<32x576xbf16, #tpu.memory_space<vmem>>, vector<16x64xbf16>
    tpu.vector_store %arg15[%c0_143, %c0_144], %170 {strides = array<i32>} : memref<32x576xbf16, #tpu.memory_space<vmem>>, vector<16x64xbf16>,
    %c32_145 = arith.constant 32 : index
    %c0_146 = arith.constant 0 : index
    %172 = vector.load %arg14[%c32_145, %c0_146] : memref<128x64xbf16, #tpu.memory_space<vmem>>, vector<16x64xbf16>
    %c16 = arith.constant 16 : index
    %c0_147 = arith.constant 0 : index
    %173 = vector.load %arg15[%c16, %c0_147] : memref<32x576xbf16, #tpu.memory_space<vmem>>, vector<16x64xbf16>
    tpu.vector_store %arg15[%c16, %c0_147], %172 {strides = array<i32>} : memref<32x576xbf16, #tpu.memory_space<vmem>>, vector<16x64xbf16>,
    %c8 = arith.constant 8 : index
    %c0_148 = arith.constant 0 : index
    %174 = vector.load %arg14[%c8, %c0_148] : memref<128x64xbf16, #tpu.memory_space<vmem>>, vector<16x64xbf16>
    %c0_149 = arith.constant 0 : index
    %c64_150 = arith.constant 64 : index
    %175 = vector.load %arg15[%c0_149, %c64_150] : memref<32x576xbf16, #tpu.memory_space<vmem>>, vector<16x64xbf16>
    tpu.vector_store %arg15[%c0_149, %c64_150], %174 {strides = array<i32>} : memref<32x576xbf16, #tpu.memory_space<vmem>>, vector<16x64xbf16>,
    %c40 = arith.constant 40 : index
    %c0_151 = arith.constant 0 : index
    %176 = vector.load %arg14[%c40, %c0_151] : memref<128x64xbf16, #tpu.memory_space<vmem>>, vector<16x64xbf16>
    %c16_152 = arith.constant 16 : index
    %c64_153 = arith.constant 64 : index
    %177 = vector.load %arg15[%c16_152, %c64_153] : memref<32x576xbf16, #tpu.memory_space<vmem>>, vector<16x64xbf16>
    tpu.vector_store %arg15[%c16_152, %c64_153], %176 {strides = array<i32>} : memref<32x576xbf16, #tpu.memory_space<vmem>>, vector<16x64xbf16>,
    %c16_154 = arith.constant 16 : index
    %c0_155 = arith.constant 0 : index
    %178 = vector.load %arg14[%c16_154, %c0_155] : memref<128x64xbf16, #tpu.memory_space<vmem>>, vector<16x64xbf16>
    %c0_156 = arith.constant 0 : index
    %c128_157 = arith.constant 128 : index
    %179 = vector.load %arg15[%c0_156, %c128_157] : memref<32x576xbf16, #tpu.memory_space<vmem>>, vector<16x64xbf16>
    tpu.vector_store %arg15[%c0_156, %c128_157], %178 {strides = array<i32>} : memref<32x576xbf16, #tpu.memory_space<vmem>>, vector<16x64xbf16>,
    %c48 = arith.constant 48 : index
    %c0_158 = arith.constant 0 : index
    %180 = vector.load %arg14[%c48, %c0_158] : memref<128x64xbf16, #tpu.memory_space<vmem>>, vector<16x64xbf16>
    %c16_159 = arith.constant 16 : index
    %c128_160 = arith.constant 128 : index
    %181 = vector.load %arg15[%c16_159, %c128_160] : memref<32x576xbf16, #tpu.memory_space<vmem>>, vector<16x64xbf16>
    tpu.vector_store %arg15[%c16_159, %c128_160], %180 {strides = array<i32>} : memref<32x576xbf16, #tpu.memory_space<vmem>>, vector<16x64xbf16>,
    %c32_161 = arith.constant 32 : index
    %c0_162 = arith.constant 0 : index
    %182 = vector.load %arg14[%c32_161, %c0_162] : memref<128x64xbf16, #tpu.memory_space<vmem>>, vector<16x64xbf16>
    %c0_163 = arith.constant 0 : index
    %c192_164 = arith.constant 192 : index
    %183 = vector.load %arg15[%c0_163, %c192_164] : memref<32x576xbf16, #tpu.memory_space<vmem>>, vector<16x64xbf16>
    tpu.vector_store %arg15[%c0_163, %c192_164], %182 {strides = array<i32>} : memref<32x576xbf16, #tpu.memory_space<vmem>>, vector<16x64xbf16>,
    %c64_165 = arith.constant 64 : index
    %c0_166 = arith.constant 0 : index
    %184 = vector.load %arg14[%c64_165, %c0_166] : memref<128x64xbf16, #tpu.memory_space<vmem>>, vector<16x64xbf16>
    %c16_167 = arith.constant 16 : index
    %c192_168 = arith.constant 192 : index
    %185 = vector.load %arg15[%c16_167, %c192_168] : memref<32x576xbf16, #tpu.memory_space<vmem>>, vector<16x64xbf16>
    tpu.vector_store %arg15[%c16_167, %c192_168], %184 {strides = array<i32>} : memref<32x576xbf16, #tpu.memory_space<vmem>>, vector<16x64xbf16>,
    %c40_169 = arith.constant 40 : index
    %c0_170 = arith.constant 0 : index
    %186 = vector.load %arg14[%c40_169, %c0_170] : memref<128x64xbf16, #tpu.memory_space<vmem>>, vector<16x64xbf16>
    %c0_171 = arith.constant 0 : index
    %c256_172 = arith.constant 256 : index
    %187 = vector.load %arg15[%c0_171, %c256_172] : memref<32x576xbf16, #tpu.memory_space<vmem>>, vector<16x64xbf16>
    tpu.vector_store %arg15[%c0_171, %c256_172], %186 {strides = array<i32>} : memref<32x576xbf16, #tpu.memory_space<vmem>>, vector<16x64xbf16>,
    %c72 = arith.constant 72 : index
    %c0_173 = arith.constant 0 : index
    %188 = vector.load %arg14[%c72, %c0_173] : memref<128x64xbf16, #tpu.memory_space<vmem>>, vector<16x64xbf16>
    %c16_174 = arith.constant 16 : index
    %c256_175 = arith.constant 256 : index
    %189 = vector.load %arg15[%c16_174, %c256_175] : memref<32x576xbf16, #tpu.memory_space<vmem>>, vector<16x64xbf16>
    tpu.vector_store %arg15[%c16_174, %c256_175], %188 {strides = array<i32>} : memref<32x576xbf16, #tpu.memory_space<vmem>>, vector<16x64xbf16>,
    %c48_176 = arith.constant 48 : index
    %c0_177 = arith.constant 0 : index
    %190 = vector.load %arg14[%c48_176, %c0_177] : memref<128x64xbf16, #tpu.memory_space<vmem>>, vector<16x64xbf16>
    %c0_178 = arith.constant 0 : index
    %c320_179 = arith.constant 320 : index
    %191 = vector.load %arg15[%c0_178, %c320_179] : memref<32x576xbf16, #tpu.memory_space<vmem>>, vector<16x64xbf16>
    tpu.vector_store %arg15[%c0_178, %c320_179], %190 {strides = array<i32>} : memref<32x576xbf16, #tpu.memory_space<vmem>>, vector<16x64xbf16>,
    %c80 = arith.constant 80 : index
    %c0_180 = arith.constant 0 : index
    %192 = vector.load %arg14[%c80, %c0_180] : memref<128x64xbf16, #tpu.memory_space<vmem>>, vector<16x64xbf16>
    %c16_181 = arith.constant 16 : index
    %c320_182 = arith.constant 320 : index
    %193 = vector.load %arg15[%c16_181, %c320_182] : memref<32x576xbf16, #tpu.memory_space<vmem>>, vector<16x64xbf16>
    tpu.vector_store %arg15[%c16_181, %c320_182], %192 {strides = array<i32>} : memref<32x576xbf16, #tpu.memory_space<vmem>>, vector<16x64xbf16>,
    %c64_183 = arith.constant 64 : index
    %c0_184 = arith.constant 0 : index
    %194 = vector.load %arg14[%c64_183, %c0_184] : memref<128x64xbf16, #tpu.memory_space<vmem>>, vector<16x64xbf16>
    %c0_185 = arith.constant 0 : index
    %c384_186 = arith.constant 384 : index
    %195 = vector.load %arg15[%c0_185, %c384_186] : memref<32x576xbf16, #tpu.memory_space<vmem>>, vector<16x64xbf16>
    tpu.vector_store %arg15[%c0_185, %c384_186], %194 {strides = array<i32>} : memref<32x576xbf16, #tpu.memory_space<vmem>>, vector<16x64xbf16>,
    %c96_187 = arith.constant 96 : index
    %c0_188 = arith.constant 0 : index
    %196 = vector.load %arg14[%c96_187, %c0_188] : memref<128x64xbf16, #tpu.memory_space<vmem>>, vector<16x64xbf16>
    %c16_189 = arith.constant 16 : index
    %c384_190 = arith.constant 384 : index
    %197 = vector.load %arg15[%c16_189, %c384_190] : memref<32x576xbf16, #tpu.memory_space<vmem>>, vector<16x64xbf16>
    tpu.vector_store %arg15[%c16_189, %c384_190], %196 {strides = array<i32>} : memref<32x576xbf16, #tpu.memory_space<vmem>>, vector<16x64xbf16>,
    %c72_191 = arith.constant 72 : index
    %c0_192 = arith.constant 0 : index
    %198 = vector.load %arg14[%c72_191, %c0_192] : memref<128x64xbf16, #tpu.memory_space<vmem>>, vector<16x64xbf16>
    %c0_193 = arith.constant 0 : index
    %c448_194 = arith.constant 448 : index
    %199 = vector.load %arg15[%c0_193, %c448_194] : memref<32x576xbf16, #tpu.memory_space<vmem>>, vector<16x64xbf16>
    tpu.vector_store %arg15[%c0_193, %c448_194], %198 {strides = array<i32>} : memref<32x576xbf16, #tpu.memory_space<vmem>>, vector<16x64xbf16>,
    %c104 = arith.constant 104 : index
    %c0_195 = arith.constant 0 : index
    %200 = vector.load %arg14[%c104, %c0_195] : memref<128x64xbf16, #tpu.memory_space<vmem>>, vector<16x64xbf16>
    %c16_196 = arith.constant 16 : index
    %c448_197 = arith.constant 448 : index
    %201 = vector.load %arg15[%c16_196, %c448_197] : memref<32x576xbf16, #tpu.memory_space<vmem>>, vector<16x64xbf16>
    tpu.vector_store %arg15[%c16_196, %c448_197], %200 {strides = array<i32>} : memref<32x576xbf16, #tpu.memory_space<vmem>>, vector<16x64xbf16>,
    %c80_198 = arith.constant 80 : index
    %c0_199 = arith.constant 0 : index
    %202 = vector.load %arg14[%c80_198, %c0_199] : memref<128x64xbf16, #tpu.memory_space<vmem>>, vector<16x64xbf16>
    %c0_200 = arith.constant 0 : index
    %c512_201 = arith.constant 512 : index
    %203 = vector.load %arg15[%c0_200, %c512_201] : memref<32x576xbf16, #tpu.memory_space<vmem>>, vector<16x64xbf16>
    tpu.vector_store %arg15[%c0_200, %c512_201], %202 {strides = array<i32>} : memref<32x576xbf16, #tpu.memory_space<vmem>>, vector<16x64xbf16>,
    %c112 = arith.constant 112 : index
    %c0_202 = arith.constant 0 : index
    %204 = vector.load %arg14[%c112, %c0_202] : memref<128x64xbf16, #tpu.memory_space<vmem>>, vector<16x64xbf16>
    %c16_203 = arith.constant 16 : index
    %c512_204 = arith.constant 512 : index
    %205 = vector.load %arg15[%c16_203, %c512_204] : memref<32x576xbf16, #tpu.memory_space<vmem>>, vector<16x64xbf16>
    tpu.vector_store %arg15[%c16_203, %c512_204], %204 {strides = array<i32>} : memref<32x576xbf16, #tpu.memory_space<vmem>>, vector<16x64xbf16>,
    %c0_205 = arith.constant 0 : index
    %c0_206 = arith.constant 0 : index
    %206 = vector.load %arg15[%c0_205, %c0_206] : memref<32x576xbf16, #tpu.memory_space<vmem>>, vector<32x576xbf16>
    %c0_207 = arith.constant 0 : index
    %c0_208 = arith.constant 0 : index
    %207 = vector.load %arg6[%c0_207, %c0_208] : memref<576x64xbf16, #tpu.memory_space<vmem>>, vector<576x64xbf16>
    %cst_209 = arith.constant dense<0.000000e+00> : vector<32x64xf32>
    %208 = tpu.matmul %206, %207, %cst_209 {dimension_numbers = #tpu.dot_dimension_numbers<[1], [0], [0], [1], [0, 0, 1, 1], [], []>} : vector<32x576xbf16>, vector<576x64xbf16>, vector<32x64xf32> -> vector<32x64xf32>
    %c0_210 = arith.constant 0 : index
    %c0_211 = arith.constant 0 : index
    %209 = vector.load %arg7[%c0_210, %c0_211] : memref<1x64xf32, #tpu.memory_space<vmem>>, vector<1x64xf32>
    %210 = vector.broadcast %209 : vector<1x64xf32> to vector<32x64xf32>
    %211 = arith.addf %208, %210 : vector<32x64xf32>
    %cst_212 = arith.constant 0.000000e+00 : f32
    %212 = vector.broadcast %cst_212 : f32 to vector<32x64xf32>
    %213 = arith.maximumf %211, %212 : vector<32x64xf32>
    %214 = vector.extract_strided_slice %213 {offsets = [0, 0], sizes = [8, 64], strides = [1, 1]} : vector<32x64xf32> to vector<8x64xf32>
    %215 = arith.truncf %214 : vector<8x64xf32> to vector<8x64xbf16>
    %c0_213 = arith.constant 0 : index
    %c0_214 = arith.constant 0 : index
    %216 = vector.load %arg16[%c0_213, %c0_214] : memref<8x256xbf16, #tpu.memory_space<vmem>>, vector<8x64xbf16>
    tpu.vector_store %arg16[%c0_213, %c0_214], %215 {strides = array<i32>} : memref<8x256xbf16, #tpu.memory_space<vmem>>, vector<8x64xbf16>,
    %217 = vector.extract_strided_slice %213 {offsets = [8, 0], sizes = [8, 64], strides = [1, 1]} : vector<32x64xf32> to vector<8x64xf32>
    %218 = arith.truncf %217 : vector<8x64xf32> to vector<8x64xbf16>
    %c0_215 = arith.constant 0 : index
    %c64_216 = arith.constant 64 : index
    %219 = vector.load %arg16[%c0_215, %c64_216] : memref<8x256xbf16, #tpu.memory_space<vmem>>, vector<8x64xbf16>
    tpu.vector_store %arg16[%c0_215, %c64_216], %218 {strides = array<i32>} : memref<8x256xbf16, #tpu.memory_space<vmem>>, vector<8x64xbf16>,
    %220 = vector.extract_strided_slice %213 {offsets = [16, 0], sizes = [8, 64], strides = [1, 1]} : vector<32x64xf32> to vector<8x64xf32>
    %221 = arith.truncf %220 : vector<8x64xf32> to vector<8x64xbf16>
    %c0_217 = arith.constant 0 : index
    %c128_218 = arith.constant 128 : index
    %222 = vector.load %arg16[%c0_217, %c128_218] : memref<8x256xbf16, #tpu.memory_space<vmem>>, vector<8x64xbf16>
    tpu.vector_store %arg16[%c0_217, %c128_218], %221 {strides = array<i32>} : memref<8x256xbf16, #tpu.memory_space<vmem>>, vector<8x64xbf16>,
    %223 = vector.extract_strided_slice %213 {offsets = [24, 0], sizes = [8, 64], strides = [1, 1]} : vector<32x64xf32> to vector<8x64xf32>
    %224 = arith.truncf %223 : vector<8x64xf32> to vector<8x64xbf16>
    %c0_219 = arith.constant 0 : index
    %c192_220 = arith.constant 192 : index
    %225 = vector.load %arg16[%c0_219, %c192_220] : memref<8x256xbf16, #tpu.memory_space<vmem>>, vector<8x64xbf16>
    tpu.vector_store %arg16[%c0_219, %c192_220], %224 {strides = array<i32>} : memref<8x256xbf16, #tpu.memory_space<vmem>>, vector<8x64xbf16>,
    %c0_221 = arith.constant 0 : index
    %c0_222 = arith.constant 0 : index
    %226 = vector.load %arg16[%c0_221, %c0_222] : memref<8x256xbf16, #tpu.memory_space<vmem>>, vector<8x256xbf16>
    %c0_223 = arith.constant 0 : index
    %c0_224 = arith.constant 0 : index
    %227 = vector.load %arg8[%c0_223, %c0_224] : memref<256x512xbf16, #tpu.memory_space<vmem>>, vector<256x512xbf16>
    %cst_225 = arith.constant dense<0.000000e+00> : vector<8x512xf32>
    %228 = tpu.matmul %226, %227, %cst_225 {dimension_numbers = #tpu.dot_dimension_numbers<[1], [0], [0], [1], [0, 0, 1, 1], [], []>} : vector<8x256xbf16>, vector<256x512xbf16>, vector<8x512xf32> -> vector<8x512xf32>
    %c0_226 = arith.constant 0 : index
    %c0_227 = arith.constant 0 : index
    %229 = vector.load %arg9[%c0_226, %c0_227] : memref<1x512xf32, #tpu.memory_space<vmem>>, vector<1x512xf32>
    %230 = vector.broadcast %229 : vector<1x512xf32> to vector<8x512xf32>
    %231 = arith.addf %228, %230 : vector<8x512xf32>
    %cst_228 = arith.constant 0.000000e+00 : f32
    %232 = vector.broadcast %cst_228 : f32 to vector<8x512xf32>
    %233 = arith.maximumf %231, %232 : vector<8x512xf32>
    %234 = arith.truncf %233 : vector<8x512xf32> to vector<8x512xbf16>
    %c0_229 = arith.constant 0 : index
    %c0_230 = arith.constant 0 : index
    %235 = vector.load %arg10[%c0_229, %c0_230] : memref<512x128xbf16, #tpu.memory_space<vmem>>, vector<512x128xbf16>
    %cst_231 = arith.constant dense<0.000000e+00> : vector<8x128xf32>
    %236 = tpu.matmul %234, %235, %cst_231 {dimension_numbers = #tpu.dot_dimension_numbers<[1], [0], [0], [1], [0, 0, 1, 1], [], []>} : vector<8x512xbf16>, vector<512x128xbf16>, vector<8x128xf32> -> vector<8x128xf32>
    %c0_232 = arith.constant 0 : index
    %c0_233 = arith.constant 0 : index
    %237 = vector.load %arg11[%c0_232, %c0_233] : memref<1x128xf32, #tpu.memory_space<vmem>>, vector<1x128xf32>
    %238 = vector.broadcast %237 : vector<1x128xf32> to vector<8x128xf32>
    %239 = arith.addf %236, %238 : vector<8x128xf32>
    %c0_234 = arith.constant 0 : index
    %c0_235 = arith.constant 0 : index
    %240 = vector.load %arg12[%c0_234, %c0_235] : memref<8x128xf32, #tpu.memory_space<vmem>>, vector<8x128xf32>
    tpu.vector_store %arg12[%c0_234, %c0_235], %239 {strides = array<i32>} : memref<8x128xf32, #tpu.memory_space<vmem>>, vector<8x128xf32>,
    return
  }
  func.func @transform_0(%arg0: i32) -> (i32, i32) {
    %c0_i32 = arith.constant 0 : i32
    %c0_i32_0 = arith.constant 0 : i32
    %c0_i32_1 = arith.constant 0 : i32
    return %c0_i32, %c0_i32_0 : i32, i32
  }
  func.func @transform_1(%arg0: i32) -> (i32, i32) {
    %c0_i32 = arith.constant 0 : i32
    %c0_i32_0 = arith.constant 0 : i32
    %c0_i32_1 = arith.constant 0 : i32
    return %c0_i32, %c0_i32_0 : i32, i32
  }
  func.func @transform_2(%arg0: i32) -> (i32, i32) {
    %c0_i32 = arith.constant 0 : i32
    %c0_i32_0 = arith.constant 0 : i32
    %c0_i32_1 = arith.constant 0 : i32
    return %c0_i32, %c0_i32_0 : i32, i32
  }
  func.func @transform_3(%arg0: i32) -> (i32, i32) {
    %c0_i32 = arith.constant 0 : i32
    %c0_i32_0 = arith.constant 0 : i32
    %c0_i32_1 = arith.constant 0 : i32
    return %c0_i32, %c0_i32_0 : i32, i32
  }
  func.func @transform_4(%arg0: i32) -> (i32, i32) {
    %c0_i32 = arith.constant 0 : i32
    %c0_i32_0 = arith.constant 0 : i32
    %c0_i32_1 = arith.constant 0 : i32
    return %c0_i32, %c0_i32_0 : i32, i32
  }
  func.func @transform_5(%arg0: i32) -> (i32, i32) {
    %c0_i32 = arith.constant 0 : i32
    %c0_i32_0 = arith.constant 0 : i32
    %c0_i32_1 = arith.constant 0 : i32
    return %c0_i32, %c0_i32_0 : i32, i32
  }
  func.func @transform_6(%arg0: i32) -> (i32, i32) {
    %c0_i32 = arith.constant 0 : i32
    %c0_i32_0 = arith.constant 0 : i32
    %c0_i32_1 = arith.constant 0 : i32
    return %c0_i32, %c0_i32_0 : i32, i32
  }
  func.func @transform_7(%arg0: i32) -> (i32, i32) {
    %c0_i32 = arith.constant 0 : i32
    %c0_i32_0 = arith.constant 0 : i32
    %c0_i32_1 = arith.constant 0 : i32
    return %c0_i32, %c0_i32_0 : i32, i32
  }
  func.func @transform_8(%arg0: i32) -> (i32, i32) {
    %c0_i32 = arith.constant 0 : i32
    %c0_i32_0 = arith.constant 0 : i32
    %c0_i32_1 = arith.constant 0 : i32
    return %c0_i32, %c0_i32_0 : i32, i32
  }
  func.func @transform_9(%arg0: i32) -> (i32, i32) {
    %c0_i32 = arith.constant 0 : i32
    %c0_i32_0 = arith.constant 0 : i32
    %c0_i32_1 = arith.constant 0 : i32
    return %c0_i32, %c0_i32_0 : i32, i32
  }
  func.func @transform_10(%arg0: i32) -> (i32, i32) {
    %c0_i32 = arith.constant 0 : i32
    %c0_i32_0 = arith.constant 0 : i32
    %c0_i32_1 = arith.constant 0 : i32
    return %c0_i32, %c0_i32_0 : i32, i32
  }
  func.func @transform_11(%arg0: i32) -> (i32, i32) {
    %c0_i32 = arith.constant 0 : i32
    %c0_i32_0 = arith.constant 0 : i32
    %c0_i32_1 = arith.constant 0 : i32
    return %c0_i32, %c0_i32_0 : i32, i32
  }
}

</mosaic_0001>

<llo_original>
// kernel: qlearner_forward.1
$region0: #{qlearner_forward.1}
  #allocation0 [shape = 'u32[]', space=smem, size = 0x4, offset = 0x4, fixed_abs, tag = 'smem constant byte address 0x4 - core index']
  #allocation1 [shape = 'u32[144,128]{1,0:T(1,128)}', space=vmem, size = 0x12000, scoped, tag = 'internal scratch']
  #allocation2 [shape = 'bf16[128,512]{1,0:T(8,128)(2,1)}', space=vmem, size = 0x20000, scoped, tag = 'scratch operand']
  #allocation3 [shape = 'bf16[128,64]{1,0:T(8,128)(2,1)}', space=vmem, size = 0x8000, scoped, tag = 'scratch operand']
  #allocation4 [shape = 'bf16[32,576]{1,0:T(8,128)(2,1)}', space=vmem, size = 0xa000, scoped, tag = 'scratch operand']
  #allocation5 [shape = 'bf16[8,256]{1,0:T(8,128)(2,1)}', space=vmem, size = 0x1000, scoped, tag = 'scratch operand']
  %s0 = inlined_call_operand.vmem [shape: bf16[2048,256], index: 0, kind: input, shape index: {}]
  %s1 = inlined_call_operand.vmem [shape: bf16[256,32], index: 1, kind: input, shape index: {}]
  %s2 = inlined_call_operand.vmem [shape: f32[1,32], index: 2, kind: input, shape index: {}]
  %s3 = inlined_call_operand.vmem [shape: bf16[512,64], index: 3, kind: input, shape index: {}]
  %s4 = inlined_call_operand.vmem [shape: f32[1,64], index: 4, kind: input, shape index: {}]
  %s5 = inlined_call_operand.vmem [shape: bf16[576,64], index: 5, kind: input, shape index: {}]
  %s6 = inlined_call_operand.vmem [shape: f32[1,64], index: 6, kind: input, shape index: {}]
  %s7 = inlined_call_operand.vmem [shape: bf16[256,512], index: 7, kind: input, shape index: {}]
  %s8 = inlined_call_operand.vmem [shape: f32[1,512], index: 8, kind: input, shape index: {}]
  %s9 = inlined_call_operand.vmem [shape: bf16[512,128], index: 9, kind: input, shape index: {}]
  %s10 = inlined_call_operand.vmem [shape: f32[1,128], index: 10, kind: input, shape index: {}]
  %s11 = inlined_call_operand.vmem [shape: f32[8,128], index: 11, kind: output, shape index: {}]
  %s12 = sld [smem:[#allocation0]]
  $region54: #{qlearner_forward.1} parent=0
    _
  %s14 = ssub.s32 1, %s12
  %s15 = scalar_select 0, %s14, %s12
  // Predicated region
  $region2: #{qlearner_forward.1} parent=0 // pred_check
    _
  $region3: #{qlearner_forward.1} parent=0 // pred_check_branch
    %17 = sbr.rel (0) target = $region5
  $region4: #{qlearner_forward.1} parent=0 // pred_region
    _
  $region5: #{qlearner_forward.1} parent=0 // pred_fallthru
    _
  // Predicated region
  $region6: #{qlearner_forward.1} parent=0 // pred_check
    _
  $region7: #{qlearner_forward.1} parent=0 // pred_check_branch
    %19 = sbr.rel (0) target = $region9
  $region8: #{qlearner_forward.1} parent=0 // pred_region
    _
  $region9: #{qlearner_forward.1} parent=0 // pred_fallthru
    _
  // Predicated region
  $region10: #{qlearner_forward.1} parent=0 // pred_check
    _
  $region11: #{qlearner_forward.1} parent=0 // pred_check_branch
    %21 = sbr.rel (0) target = $region13
  $region12: #{qlearner_forward.1} parent=0 // pred_region
    _
  $region13: #{qlearner_forward.1} parent=0 // pred_fallthru
    _
  // Predicated region
  $region14: #{qlearner_forward.1} parent=0 // pred_check
    _
  $region15: #{qlearner_forward.1} parent=0 // pred_check_branch
    %23 = sbr.rel (0) target = $region17
  $region16: #{qlearner_forward.1} parent=0 // pred_region
    _
  $region17: #{qlearner_forward.1} parent=0 // pred_fallthru
    _
  // Predicated region
  $region18: #{qlearner_forward.1} parent=0 // pred_check
    _
  $region19: #{qlearner_forward.1} parent=0 // pred_check_branch
    %25 = sbr.rel (0) target = $region21
  $region20: #{qlearner_forward.1} parent=0 // pred_region
    _
  $region21: #{qlearner_forward.1} parent=0 // pred_fallthru
    _
  // Predicated region
  $region22: #{qlearner_forward.1} parent=0 // pred_check
    _
  $region23: #{qlearner_forward.1} parent=0 // pred_check_branch
    %27 = sbr.rel (0) target = $region25
  $region24: #{qlearner_forward.1} parent=0 // pred_region
    _
  $region25: #{qlearner_forward.1} parent=0 // pred_fallthru
    _
  // Predicated region
  $region26: #{qlearner_forward.1} parent=0 // pred_check
    _
  $region27: #{qlearner_forward.1} parent=0 // pred_check_branch
    %29 = sbr.rel (0) target = $region29
  $region28: #{qlearner_forward.1} parent=0 // pred_region
    _
  $region29: #{qlearner_forward.1} parent=0 // pred_fallthru
    _
  // Predicated region
  $region30: #{qlearner_forward.1} parent=0 // pred_check
    _
  $region31: #{qlearner_forward.1} parent=0 // pred_check_branch
    %31 = sbr.rel (0) target = $region33
  $region32: #{qlearner_forward.1} parent=0 // pred_region
    _
  $region33: #{qlearner_forward.1} parent=0 // pred_fallthru
    _
  // Predicated region
  $region34: #{qlearner_forward.1} parent=0 // pred_check
    _
  $region35: #{qlearner_forward.1} parent=0 // pred_check_branch
    %33 = sbr.rel (0) target = $region37
  $region36: #{qlearner_forward.1} parent=0 // pred_region
    _
  $region37: #{qlearner_forward.1} parent=0 // pred_fallthru
    _
  // Predicated region
  $region38: #{qlearner_forward.1} parent=0 // pred_check
    _
  $region39: #{qlearner_forward.1} parent=0 // pred_check_branch
    %35 = sbr.rel (0) target = $region41
  $region40: #{qlearner_forward.1} parent=0 // pred_region
    _
  $region41: #{qlearner_forward.1} parent=0 // pred_fallthru
    _
  // Predicated region
  $region42: #{qlearner_forward.1} parent=0 // pred_check
    _
  $region43: #{qlearner_forward.1} parent=0 // pred_check_branch
    %37 = sbr.rel (0) target = $region45
  $region44: #{qlearner_forward.1} parent=0 // pred_region
    _
  $region45: #{qlearner_forward.1} parent=0 // pred_fallthru
    _
  %v39 = vld [vmem:[%s0] sm:$0xff]
  %v40 = vld [vmem:[%s0 + $0x8] sm:$0xff]
  %v41 = vld [vmem:[%s0 + $0x10] sm:$0xff]
  %v42 = vld [vmem:[%s0 + $0x18] sm:$0xff]
  %v43 = vld [vmem:[%s0 + $0x20] sm:$0xff]
  %v44 = vld [vmem:[%s0 + $0x28] sm:$0xff]
  %v45 = vld [vmem:[%s0 + $0x30] sm:$0xff]
  %v46 = vld [vmem:[%s0 + $0x38] sm:$0xff]
  %v47 = vld [vmem:[%s0 + $0x40] sm:$0xff]
  %v48 = vld [vmem:[%s0 + $0x48] sm:$0xff]
  %v49 = vld [vmem:[%s0 + $0x50] sm:$0xff]
  %v50 = vld [vmem:[%s0 + $0x58] sm:$0xff]
  %v51 = vld [vmem:[%s0 + $0x60] sm:$0xff]
  %v52 = vld [vmem:[%s0 + $0x68] sm:$0xff]
  %v53 = vld [vmem:[%s0 + $0x70] sm:$0xff]
  %v54 = vld [vmem:[%s0 + $0x78] sm:$0xff]
  %v55 = vld [vmem:[%s1] sm:$0xf]
  %v56 = vld [vmem:[%s1 + $0x4] sm:$0xf]
  %v57 = vld [vmem:[%s1 + $0x8] sm:$0xf]
  %v58 = vld [vmem:[%s1 + $0xc] sm:$0xf]
  %v59 = vld [vmem:[%s1 + $0x10] sm:$0xf]
  %v60 = vld [vmem:[%s1 + $0x14] sm:$0xf]
  %v61 = vld [vmem:[%s1 + $0x18] sm:$0xf]
  %v62 = vld [vmem:[%s1 + $0x1c] sm:$0xf]
  %v63 = vld [vmem:[%s1 + $0x20] sm:$0xf]
  %v64 = vld [vmem:[%s1 + $0x24] sm:$0xf]
  %v65 = vld [vmem:[%s1 + $0x28] sm:$0xf]
  %v66 = vld [vmem:[%s1 + $0x2c] sm:$0xf]
  %v67 = vld [vmem:[%s1 + $0x30] sm:$0xf]
  %v68 = vld [vmem:[%s1 + $0x34] sm:$0xf]
  %v69 = vld [vmem:[%s1 + $0x38] sm:$0xf]
  %v70 = vld [vmem:[%s1 + $0x3c] sm:$0xf]
  %v71 = vld [vmem:[%s1 + $0x40] sm:$0xf]
  %v72 = vld [vmem:[%s1 + $0x44] sm:$0xf]
  %v73 = vld [vmem:[%s1 + $0x48] sm:$0xf]
  %v74 = vld [vmem:[%s1 + $0x4c] sm:$0xf]
  %v75 = vld [vmem:[%s1 + $0x50] sm:$0xf]
  %v76 = vld [vmem:[%s1 + $0x54] sm:$0xf]
  %v77 = vld [vmem:[%s1 + $0x58] sm:$0xf]
  %v78 = vld [vmem:[%s1 + $0x5c] sm:$0xf]
  %v79 = vld [vmem:[%s1 + $0x60] sm:$0xf]
  %v80 = vld [vmem:[%s1 + $0x64] sm:$0xf]
  %v81 = vld [vmem:[%s1 + $0x68] sm:$0xf]
  %v82 = vld [vmem:[%s1 + $0x6c] sm:$0xf]
  %v83 = vld [vmem:[%s1 + $0x70] sm:$0xf]
  %v84 = vld [vmem:[%s1 + $0x74] sm:$0xf]
  %v85 = vld [vmem:[%s1 + $0x78] sm:$0xf]
  %v86 = vld [vmem:[%s1 + $0x7c] sm:$0xf]
  %v87 = vld [vmem:[%s2] sm:$0x1]
  %v89 = vlaneseq
  %v90 = vshrl.u32 %v89, 7
  %v91 = vsub.s32 0, %v90
  %v92 = vrot.slane %v87, %v91
  %v110 = vunpack.c.l.b16 %v39
  %v111 = vunpack.c.h.b16 %v39
  %v112 = vunpack.c.l.b16 %v40
  %v113 = vunpack.c.h.b16 %v40
  %v114 = vunpack.c.l.b16 %v41
  %v115 = vunpack.c.h.b16 %v41
  %v116 = vunpack.c.l.b16 %v42
  %v117 = vunpack.c.h.b16 %v42
  %v118 = vunpack.c.l.b16 %v43
  %v119 = vunpack.c.h.b16 %v43
  %v120 = vunpack.c.l.b16 %v44
  %v121 = vunpack.c.h.b16 %v44
  %v122 = vunpack.c.l.b16 %v45
  %v123 = vunpack.c.h.b16 %v45
  %v124 = vunpack.c.l.b16 %v46
  %v125 = vunpack.c.h.b16 %v46
  %v126 = vunpack.c.l.b16 %v47
  %v127 = vunpack.c.h.b16 %v47
  %v128 = vunpack.c.l.b16 %v48
  %v129 = vunpack.c.h.b16 %v48
  %v130 = vunpack.c.l.b16 %v49
  %v131 = vunpack.c.h.b16 %v49
  %v132 = vunpack.c.l.b16 %v50
  %v133 = vunpack.c.h.b16 %v50
  %v134 = vunpack.c.l.b16 %v51
  %v135 = vunpack.c.h.b16 %v51
  %v136 = vunpack.c.l.b16 %v52
  %v137 = vunpack.c.h.b16 %v52
  %v138 = vunpack.c.l.b16 %v53
  %v139 = vunpack.c.h.b16 %v53
  %v140 = vunpack.c.l.b16 %v54
  %v141 = vunpack.c.h.b16 %v54
  %v142 = vpack.c.b16 %v112, %v110
  %v143 = vpack.c.b16 %v113, %v111
  %v144 = vpack.c.b16 %v116, %v114
  %v145 = vpack.c.b16 %v117, %v115
  %v146 = vpack.c.b16 %v120, %v118
  %v147 = vpack.c.b16 %v121, %v119
  %v148 = vpack.c.b16 %v124, %v122
  %v149 = vpack.c.b16 %v125, %v123
  %v150 = vpack.c.b16 %v128, %v126
  %v151 = vpack.c.b16 %v129, %v127
  %v152 = vpack.c.b16 %v132, %v130
  %v153 = vpack.c.b16 %v133, %v131
  %v154 = vpack.c.b16 %v136, %v134
  %v155 = vpack.c.b16 %v137, %v135
  %v156 = vpack.c.b16 %v140, %v138
  %v157 = vpack.c.b16 %v141, %v139
  %v206 = vunpack.c.l.b16 %v55
  %v207 = vunpack.c.l.b16 %v56
  %v208 = vunpack.c.l.b16 %v57
  %v209 = vunpack.c.l.b16 %v58
  %v210 = vunpack.c.l.b16 %v59
  %v211 = vunpack.c.l.b16 %v60
  %v212 = vunpack.c.l.b16 %v61
  %v213 = vunpack.c.l.b16 %v62
  %v214 = vunpack.c.l.b16 %v63
  %v215 = vunpack.c.l.b16 %v64
  %v216 = vunpack.c.l.b16 %v65
  %v217 = vunpack.c.l.b16 %v66
  %v218 = vunpack.c.l.b16 %v67
  %v219 = vunpack.c.l.b16 %v68
  %v220 = vunpack.c.l.b16 %v69
  %v221 = vunpack.c.l.b16 %v70
  %v222 = vunpack.c.l.b16 %v71
  %v223 = vunpack.c.l.b16 %v72
  %v224 = vunpack.c.l.b16 %v73
  %v225 = vunpack.c.l.b16 %v74
  %v226 = vunpack.c.l.b16 %v75
  %v227 = vunpack.c.l.b16 %v76
  %v228 = vunpack.c.l.b16 %v77
  %v229 = vunpack.c.l.b16 %v78
  %v230 = vunpack.c.l.b16 %v79
  %v231 = vunpack.c.l.b16 %v80
  %v232 = vunpack.c.l.b16 %v81
  %v233 = vunpack.c.l.b16 %v82
  %v234 = vunpack.c.l.b16 %v83
  %v235 = vunpack.c.l.b16 %v84
  %v236 = vunpack.c.l.b16 %v85
  %v237 = vunpack.c.l.b16 %v86
  %v238 = vpack.c.b16 %v207, %v206
  %v239 = vpack.c.b16 %v209, %v208
  %v240 = vpack.c.b16 %v211, %v210
  %v241 = vpack.c.b16 %v213, %v212
  %v242 = vpack.c.b16 %v215, %v214
  %v243 = vpack.c.b16 %v217, %v216
  %v244 = vpack.c.b16 %v219, %v218
  %v245 = vpack.c.b16 %v221, %v220
  %v246 = vpack.c.b16 %v223, %v222
  %v247 = vpack.c.b16 %v225, %v224
  %v248 = vpack.c.b16 %v227, %v226
  %v249 = vpack.c.b16 %v229, %v228
  %v250 = vpack.c.b16 %v231, %v230
  %v251 = vpack.c.b16 %v233, %v232
  %v252 = vpack.c.b16 %v235, %v234
  %v253 = vpack.c.b16 %v237, %v236
  %270 = vmatprep.subr.bf16.mxu0 0
  %271 = vmatpush1.bf16.msra.mxu0 %v245
  %272 = vmatprep.subr.bf16.mxu0 0
  %273 = vmatpush1.bf16.msra.mxu0 %v244
  %274 = vmatprep.subr.bf16.mxu0 0
  %275 = vmatpush1.bf16.msra.mxu0 %v243
  %276 = vmatprep.subr.bf16.mxu0 0
  %277 = vmatpush1.bf16.msra.mxu0 %v242
  %278 = vmatprep.subr.bf16.mxu0 0
  %279 = vmatpush1.bf16.msra.mxu0 %v241
  %280 = vmatprep.subr.bf16.mxu0 0
  %281 = vmatpush1.bf16.msra.mxu0 %v240
  %282 = vmatprep.subr.bf16.mxu0 0
  %283 = vmatpush1.bf16.msra.mxu0 %v239
  %284 = vmatprep.subr.bf16.mxu0 0
  %285 = vmatpush1.bf16.msra.mxu0 %v238
  %286 = vmatprep.subr.bf16.mxu0 0
  %287 = vmatpush2.bf16.msra.mxu0 %v253
  %288 = vmatprep.subr.bf16.mxu0 0
  %289 = vmatpush2.bf16.msra.mxu0 %v252
  %290 = vmatprep.subr.bf16.mxu0 0
  %291 = vmatpush2.bf16.msra.mxu0 %v251
  %292 = vmatprep.subr.bf16.mxu0 0
  %293 = vmatpush2.bf16.msra.mxu0 %v250
  %294 = vmatprep.subr.bf16.mxu0 0
  %295 = vmatpush2.bf16.msra.mxu0 %v249
  %296 = vmatprep.subr.bf16.mxu0 0
  %297 = vmatpush2.bf16.msra.mxu0 %v248
  %298 = vmatprep.subr.bf16.mxu0 0
  %299 = vmatpush2.bf16.msra.mxu0 %v247
  %300 = vmatprep.subr.bf16.mxu0 0
  %301 = vmatpush2.bf16.msra.mxu0 %v246
  %302 = vmatprep.mubr.bf16.mxu0 %v143
  %303 = vmatmul.mubr.bf16.gmra.mxu0 %v142
  %v304 = vpop.f32.mrf.mxu0
  %v305 = vadd.f32 %v92, %v304
  %v306 = vpop.f32.mrf.mxu0
  %v307 = vpop.f32.mrf.mxu0
  %v308 = vadd.f32 %v92, %v307
  %v309 = vpop.f32.mrf.mxu0
  %310 = vmatprep.mubr.bf16.mxu0 %v145
  %311 = vmatmul.mubr.bf16.gmra.mxu0 %v144
  %v312 = vpop.f32.mrf.mxu0
  %v313 = vadd.f32 %v92, %v312
  %v314 = vpop.f32.mrf.mxu0
  %v315 = vpop.f32.mrf.mxu0
  %v316 = vadd.f32 %v92, %v315
  %v317 = vpop.f32.mrf.mxu0
  %318 = vmatprep.mubr.bf16.mxu0 %v147
  %319 = vmatmul.mubr.bf16.gmra.mxu0 %v146
  %v320 = vpop.f32.mrf.mxu0
  %v321 = vadd.f32 %v92, %v320
  %v322 = vpop.f32.mrf.mxu0
  %v323 = vpop.f32.mrf.mxu0
  %v324 = vadd.f32 %v92, %v323
  %v325 = vpop.f32.mrf.mxu0
  %326 = vmatprep.mubr.bf16.mxu0 %v149
  %327 = vmatmul.mubr.bf16.gmra.mxu0 %v148
  %v328 = vpop.f32.mrf.mxu0
  %v329 = vadd.f32 %v92, %v328
  %v330 = vpop.f32.mrf.mxu0
  %v331 = vpop.f32.mrf.mxu0
  %v332 = vadd.f32 %v92, %v331
  %v333 = vpop.f32.mrf.mxu0
  %334 = vmatprep.mubr.bf16.mxu0 %v151
  %335 = vmatmul.mubr.bf16.gmra.mxu0 %v150
  %v336 = vpop.f32.mrf.mxu0
  %v337 = vadd.f32 %v92, %v336
  %v338 = vpop.f32.mrf.mxu0
  %v339 = vpop.f32.mrf.mxu0
  %v340 = vadd.f32 %v92, %v339
  %v341 = vpop.f32.mrf.mxu0
  %342 = vmatprep.mubr.bf16.mxu0 %v153
  %343 = vmatmul.mubr.bf16.gmra.mxu0 %v152
  %v344 = vpop.f32.mrf.mxu0
  %v345 = vadd.f32 %v92, %v344
  %v346 = vpop.f32.mrf.mxu0
  %v347 = vpop.f32.mrf.mxu0
  %v348 = vadd.f32 %v92, %v347
  %v349 = vpop.f32.mrf.mxu0
  %350 = vmatprep.mubr.bf16.mxu0 %v155
  %351 = vmatmul.mubr.bf16.gmra.mxu0 %v154
  %v352 = vpop.f32.mrf.mxu0
  %v353 = vadd.f32 %v92, %v352
  %v354 = vpop.f32.mrf.mxu0
  %v355 = vpop.f32.mrf.mxu0
  %v356 = vadd.f32 %v92, %v355
  %v357 = vpop.f32.mrf.mxu0
  %358 = vmatprep.mubr.bf16.mxu0 %v157
  %359 = vmatmul.mubr.bf16.gmra.mxu0 %v156
  %v360 = vpop.f32.mrf.mxu0
  %v361 = vadd.f32 %v92, %v360
  %v362 = vpop.f32.mrf.mxu0
  %v363 = vpop.f32.mrf.mxu0
  %v364 = vadd.f32 %v92, %v363
  %v365 = vpop.f32.mrf.mxu0
  %366 = vdwg.mxu0
  %v367 = vmax.f32 %v305, 0.0
  %v368 = vmax.f32 %v308, 0.0
  %v369 = vmax.f32 %v313, 0.0
  %v370 = vmax.f32 %v316, 0.0
  %v371 = vmax.f32 %v321, 0.0
  %v372 = vmax.f32 %v324, 0.0
  %v373 = vmax.f32 %v329, 0.0
  %v374 = vmax.f32 %v332, 0.0
  %v375 = vmax.f32 %v337, 0.0
  %v376 = vmax.f32 %v340, 0.0
  %v377 = vmax.f32 %v345, 0.0
  %v378 = vmax.f32 %v348, 0.0
  %v379 = vmax.f32 %v353, 0.0
  %v380 = vmax.f32 %v356, 0.0
  %v381 = vmax.f32 %v361, 0.0
  %v382 = vmax.f32 %v364, 0.0
  %v383 = vpack.c.bf16 %v368, %v367
  %v384 = vpack.c.bf16 %v370, %v369
  %v385 = vpack.c.bf16 %v372, %v371
  %v386 = vpack.c.bf16 %v374, %v373
  %v387 = vpack.c.bf16 %v376, %v375
  %v388 = vpack.c.bf16 %v378, %v377
  %v389 = vpack.c.bf16 %v380, %v379
  %v390 = vpack.c.bf16 %v382, %v381
  %v399 = vunpack.c.l.b16 %v383
  %v400 = vunpack.c.h.b16 %v383
  %v401 = vunpack.c.l.b16 %v384
  %v402 = vunpack.c.h.b16 %v384
  %v403 = vunpack.c.l.b16 %v385
  %v404 = vunpack.c.h.b16 %v385
  %v405 = vunpack.c.l.b16 %v386
  %v406 = vunpack.c.h.b16 %v386
  %v407 = vunpack.c.l.b16 %v387
  %v408 = vunpack.c.h.b16 %v387
  %v409 = vunpack.c.l.b16 %v388
  %v410 = vunpack.c.h.b16 %v388
  %v411 = vunpack.c.l.b16 %v389
  %v412 = vunpack.c.h.b16 %v389
  %v413 = vunpack.c.l.b16 %v390
  %v414 = vunpack.c.h.b16 %v390
  %v415 = vpack.c.b16 %v399, %v399
  %v416 = vpack.c.b16 %v400, %v400
  %v417 = vpack.c.b16 %v401, %v401
  %v418 = vpack.c.b16 %v402, %v402
  %v419 = vpack.c.b16 %v403, %v403
  %v420 = vpack.c.b16 %v404, %v404
  %v421 = vpack.c.b16 %v405, %v405
  %v422 = vpack.c.b16 %v406, %v406
  %v423 = vpack.c.b16 %v407, %v407
  %v424 = vpack.c.b16 %v408, %v408
  %v425 = vpack.c.b16 %v409, %v409
  %v426 = vpack.c.b16 %v410, %v410
  %v427 = vpack.c.b16 %v411, %v411
  %v428 = vpack.c.b16 %v412, %v412
  %v429 = vpack.c.b16 %v413, %v413
  %v430 = vpack.c.b16 %v414, %v414
  %vm447 = vcmask 257024
  %448 = vst.msk [vmem:[#allocation2] sm:$0xf] %vm447, %v415
  %449 = vst.msk [vmem:[#allocation2 + $0x10] sm:$0xf] %vm447, %v416
  %450 = vst.msk [vmem:[#allocation2 + $0x20] sm:$0xf] %vm447, %v417
  %451 = vst.msk [vmem:[#allocation2 + $0x30] sm:$0xf] %vm447, %v418
  %452 = vst.msk [vmem:[#allocation2 + $0x40] sm:$0xf] %vm447, %v419
  %453 = vst.msk [vmem:[#allocation2 + $0x50] sm:$0xf] %vm447, %v420
  %454 = vst.msk [vmem:[#allocation2 + $0x60] sm:$0xf] %vm447, %v421
  %455 = vst.msk [vmem:[#allocation2 + $0x70] sm:$0xf] %vm447, %v422
  %456 = vst.msk [vmem:[#allocation2 + $0x80] sm:$0xf] %vm447, %v423
  %457 = vst.msk [vmem:[#allocation2 + $0x90] sm:$0xf] %vm447, %v424
  %458 = vst.msk [vmem:[#allocation2 + $0xa0] sm:$0xf] %vm447, %v425
  %459 = vst.msk [vmem:[#allocation2 + $0xb0] sm:$0xf] %vm447, %v426
  %460 = vst.msk [vmem:[#allocation2 + $0xc0] sm:$0xf] %vm447, %v427
  %461 = vst.msk [vmem:[#allocation2 + $0xd0] sm:$0xf] %vm447, %v428
  %462 = vst.msk [vmem:[#allocation2 + $0xe0] sm:$0xf] %vm447, %v429
  %463 = vst.msk [vmem:[#allocation2 + $0xf0] sm:$0xf] %vm447, %v430
  %v464 = vld [vmem:[%s0 + $0x80] sm:$0xff]
  %v465 = vld [vmem:[%s0 + $0x88] sm:$0xff]
  %v466 = vld [vmem:[%s0 + $0x90] sm:$0xff]
  %v467 = vld [vmem:[%s0 + $0x98] sm:$0xff]
  %v468 = vld [vmem:[%s0 + $0xa0] sm:$0xff]
  %v469 = vld [vmem:[%s0 + $0xa8] sm:$0xff]
  %v470 = vld [vmem:[%s0 + $0xb0] sm:$0xff]
  %v471 = vld [vmem:[%s0 + $0xb8] sm:$0xff]
  %v472 = vld [vmem:[%s0 + $0xc0] sm:$0xff]
  %v473 = vld [vmem:[%s0 + $0xc8] sm:$0xff]
  %v474 = vld [vmem:[%s0 + $0xd0] sm:$0xff]
  %v475 = vld [vmem:[%s0 + $0xd8] sm:$0xff]
  %v476 = vld [vmem:[%s0 + $0xe0] sm:$0xff]
  %v477 = vld [vmem:[%s0 + $0xe8] sm:$0xff]
  %v478 = vld [vmem:[%s0 + $0xf0] sm:$0xff]
  %v479 = vld [vmem:[%s0 + $0xf8] sm:$0xff]
  %v480 = vld [vmem:[%s1] sm:$0xf]
  %v481 = vld [vmem:[%s1 + $0x4] sm:$0xf]
  %v482 = vld [vmem:[%s1 + $0x8] sm:$0xf]
  %v483 = vld [vmem:[%s1 + $0xc] sm:$0xf]
  %v484 = vld [vmem:[%s1 + $0x10] sm:$0xf]
  %v485 = vld [vmem:[%s1 + $0x14] sm:$0xf]
  %v486 = vld [vmem:[%s1 + $0x18] sm:$0xf]
  %v487 = vld [vmem:[%s1 + $0x1c] sm:$0xf]
  %v488 = vld [vmem:[%s1 + $0x20] sm:$0xf]
  %v489 = vld [vmem:[%s1 + $0x24] sm:$0xf]
  %v490 = vld [vmem:[%s1 + $0x28] sm:$0xf]
  %v491 = vld [vmem:[%s1 + $0x2c] sm:$0xf]
  %v492 = vld [vmem:[%s1 + $0x30] sm:$0xf]
  %v493 = vld [vmem:[%s1 + $0x34] sm:$0xf]
  %v494 = vld [vmem:[%s1 + $0x38] sm:$0xf]
  %v495 = vld [vmem:[%s1 + $0x3c] sm:$0xf]
  %v496 = vld [vmem:[%s1 + $0x40] sm:$0xf]
  %v497 = vld [vmem:[%s1 + $0x44] sm:$0xf]
  %v498 = vld [vmem:[%s1 + $0x48] sm:$0xf]
  %v499 = vld [vmem:[%s1 + $0x4c] sm:$0xf]
  %v500 = vld [vmem:[%s1 + $0x50] sm:$0xf]
  %v501 = vld [vmem:[%s1 + $0x54] sm:$0xf]
  %v502 = vld [vmem:[%s1 + $0x58] sm:$0xf]
  %v503 = vld [vmem:[%s1 + $0x5c] sm:$0xf]
  %v504 = vld [vmem:[%s1 + $0x60] sm:$0xf]
  %v505 = vld [vmem:[%s1 + $0x64] sm:$0xf]
  %v506 = vld [vmem:[%s1 + $0x68] sm:$0xf]
  %v507 = vld [vmem:[%s1 + $0x6c] sm:$0xf]
  %v508 = vld [vmem:[%s1 + $0x70] sm:$0xf]
  %v509 = vld [vmem:[%s1 + $0x74] sm:$0xf]
  %v510 = vld [vmem:[%s1 + $0x78] sm:$0xf]
  %v511 = vld [vmem:[%s1 + $0x7c] sm:$0xf]
  %v512 = vld [vmem:[%s2] sm:$0x1]
  %v514 = vlaneseq
  %v515 = vshrl.u32 %v514, 7
  %v516 = vsub.s32 0, %v515
  %v517 = vrot.slane %v512, %v516
  %v535 = vunpack.c.l.b16 %v464
  %v536 = vunpack.c.h.b16 %v464
  %v537 = vunpack.c.l.b16 %v465
  %v538 = vunpack.c.h.b16 %v465
  %v539 = vunpack.c.l.b16 %v466
  %v540 = vunpack.c.h.b16 %v466
  %v541 = vunpack.c.l.b16 %v467
  %v542 = vunpack.c.h.b16 %v467
  %v543 = vunpack.c.l.b16 %v468
  %v544 = vunpack.c.h.b16 %v468
  %v545 = vunpack.c.l.b16 %v469
  %v546 = vunpack.c.h.b16 %v469
  %v547 = vunpack.c.l.b16 %v470
  %v548 = vunpack.c.h.b16 %v470
  %v549 = vunpack.c.l.b16 %v471
  %v550 = vunpack.c.h.b16 %v471
  %v551 = vunpack.c.l.b16 %v472
  %v552 = vunpack.c.h.b16 %v472
  %v553 = vunpack.c.l.b16 %v473
  %v554 = vunpack.c.h.b16 %v473
  %v555 = vunpack.c.l.b16 %v474
  %v556 = vunpack.c.h.b16 %v474
  %v557 = vunpack.c.l.b16 %v475
  %v558 = vunpack.c.h.b16 %v475
  %v559 = vunpack.c.l.b16 %v476
  %v560 = vunpack.c.h.b16 %v476
  %v561 = vunpack.c.l.b16 %v477
  %v562 = vunpack.c.h.b16 %v477
  %v563 = vunpack.c.l.b16 %v478
  %v564 = vunpack.c.h.b16 %v478
  %v565 = vunpack.c.l.b16 %v479
  %v566 = vunpack.c.h.b16 %v479
  %v567 = vpack.c.b16 %v537, %v535
  %v568 = vpack.c.b16 %v538, %v536
  %v569 = vpack.c.b16 %v541, %v539
  %v570 = vpack.c.b16 %v542, %v540
  %v571 = vpack.c.b16 %v545, %v543
  %v572 = vpack.c.b16 %v546, %v544
  %v573 = vpack.c.b16 %v549, %v547
  %v574 = vpack.c.b16 %v550, %v548
  %v575 = vpack.c.b16 %v553, %v551
  %v576 = vpack.c.b16 %v554, %v552
  %v577 = vpack.c.b16 %v557, %v555
  %v578 = vpack.c.b16 %v558, %v556
  %v579 = vpack.c.b16 %v561, %v559
  %v580 = vpack.c.b16 %v562, %v560
  %v581 = vpack.c.b16 %v565, %v563
  %v582 = vpack.c.b16 %v566, %v564
  %v631 = vunpack.c.l.b16 %v480
  %v632 = vunpack.c.l.b16 %v481
  %v633 = vunpack.c.l.b16 %v482
  %v634 = vunpack.c.l.b16 %v483
  %v635 = vunpack.c.l.b16 %v484
  %v636 = vunpack.c.l.b16 %v485
  %v637 = vunpack.c.l.b16 %v486
  %v638 = vunpack.c.l.b16 %v487
  %v639 = vunpack.c.l.b16 %v488
  %v640 = vunpack.c.l.b16 %v489
  %v641 = vunpack.c.l.b16 %v490
  %v642 = vunpack.c.l.b16 %v491
  %v643 = vunpack.c.l.b16 %v492
  %v644 = vunpack.c.l.b16 %v493
  %v645 = vunpack.c.l.b16 %v494
  %v646 = vunpack.c.l.b16 %v495
  %v647 = vunpack.c.l.b16 %v496
  %v648 = vunpack.c.l.b16 %v497
  %v649 = vunpack.c.l.b16 %v498
  %v650 = vunpack.c.l.b16 %v499
  %v651 = vunpack.c.l.b16 %v500
  %v652 = vunpack.c.l.b16 %v501
  %v653 = vunpack.c.l.b16 %v502
  %v654 = vunpack.c.l.b16 %v503
  %v655 = vunpack.c.l.b16 %v504
  %v656 = vunpack.c.l.b16 %v505
  %v657 = vunpack.c.l.b16 %v506
  %v658 = vunpack.c.l.b16 %v507
  %v659 = vunpack.c.l.b16 %v508
  %v660 = vunpack.c.l.b16 %v509
  %v661 = vunpack.c.l.b16 %v510
  %v662 = vunpack.c.l.b16 %v511
  %v663 = vpack.c.b16 %v632, %v631
  %v664 = vpack.c.b16 %v634, %v633
  %v665 = vpack.c.b16 %v636, %v635
  %v666 = vpack.c.b16 %v638, %v637
  %v667 = vpack.c.b16 %v640, %v639
  %v668 = vpack.c.b16 %v642, %v641
  %v669 = vpack.c.b16 %v644, %v643
  %v670 = vpack.c.b16 %v646, %v645
  %v671 = vpack.c.b16 %v648, %v647
  %v672 = vpack.c.b16 %v650, %v649
  %v673 = vpack.c.b16 %v652, %v651
  %v674 = vpack.c.b16 %v654, %v653
  %v675 = vpack.c.b16 %v656, %v655
  %v676 = vpack.c.b16 %v658, %v657
  %v677 = vpack.c.b16 %v660, %v659
  %v678 = vpack.c.b16 %v662, %v661
  %695 = vmatprep.subr.bf16.mxu0 0
  %696 = vmatpush1.bf16.msra.mxu0 %v670
  %697 = vmatprep.subr.bf16.mxu0 0
  %698 = vmatpush1.bf16.msra.mxu0 %v669
  %699 = vmatprep.subr.bf16.mxu0 0
  %700 = vmatpush1.bf16.msra.mxu0 %v668
  %701 = vmatprep.subr.bf16.mxu0 0
  %702 = vmatpush1.bf16.msra.mxu0 %v667
  %703 = vmatprep.subr.bf16.mxu0 0
  %704 = vmatpush1.bf16.msra.mxu0 %v666
  %705 = vmatprep.subr.bf16.mxu0 0
  %706 = vmatpush1.bf16.msra.mxu0 %v665
  %707 = vmatprep.subr.bf16.mxu0 0
  %708 = vmatpush1.bf16.msra.mxu0 %v664
  %709 = vmatprep.subr.bf16.mxu0 0
  %710 = vmatpush1.bf16.msra.mxu0 %v663
  %711 = vmatprep.subr.bf16.mxu0 0
  %712 = vmatpush2.bf16.msra.mxu0 %v678
  %713 = vmatprep.subr.bf16.mxu0 0
  %714 = vmatpush2.bf16.msra.mxu0 %v677
  %715 = vmatprep.subr.bf16.mxu0 0
  %716 = vmatpush2.bf16.msra.mxu0 %v676
  %717 = vmatprep.subr.bf16.mxu0 0
  %718 = vmatpush2.bf16.msra.mxu0 %v675
  %719 = vmatprep.subr.bf16.mxu0 0
  %720 = vmatpush2.bf16.msra.mxu0 %v674
  %721 = vmatprep.subr.bf16.mxu0 0
  %722 = vmatpush2.bf16.msra.mxu0 %v673
  %723 = vmatprep.subr.bf16.mxu0 0
  %724 = vmatpush2.bf16.msra.mxu0 %v672
  %725 = vmatprep.subr.bf16.mxu0 0
  %726 = vmatpush2.bf16.msra.mxu0 %v671
  %727 = vmatprep.mubr.bf16.mxu0 %v568
  %728 = vmatmul.mubr.bf16.gmra.mxu0 %v567
  %v729 = vpop.f32.mrf.mxu0
  %v730 = vadd.f32 %v517, %v729
  %v731 = vpop.f32.mrf.mxu0
  %v732 = vpop.f32.mrf.mxu0
  %v733 = vadd.f32 %v517, %v732
  %v734 = vpop.f32.mrf.mxu0
  %735 = vmatprep.mubr.bf16.mxu0 %v570
  %736 = vmatmul.mubr.bf16.gmra.mxu0 %v569
  %v737 = vpop.f32.mrf.mxu0
  %v738 = vadd.f32 %v517, %v737
  %v739 = vpop.f32.mrf.mxu0
  %v740 = vpop.f32.mrf.mxu0
  %v741 = vadd.f32 %v517, %v740
  %v742 = vpop.f32.mrf.mxu0
  %743 = vmatprep.mubr.bf16.mxu0 %v572
  %744 = vmatmul.mubr.bf16.gmra.mxu0 %v571
  %v745 = vpop.f32.mrf.mxu0
  %v746 = vadd.f32 %v517, %v745
  %v747 = vpop.f32.mrf.mxu0
  %v748 = vpop.f32.mrf.mxu0
  %v749 = vadd.f32 %v517, %v748
  %v750 = vpop.f32.mrf.mxu0
  %751 = vmatprep.mubr.bf16.mxu0 %v574
  %752 = vmatmul.mubr.bf16.gmra.mxu0 %v573
  %v753 = vpop.f32.mrf.mxu0
  %v754 = vadd.f32 %v517, %v753
  %v755 = vpop.f32.mrf.mxu0
  %v756 = vpop.f32.mrf.mxu0
  %v757 = vadd.f32 %v517, %v756
  %v758 = vpop.f32.mrf.mxu0
  %759 = vmatprep.mubr.bf16.mxu0 %v576
  %760 = vmatmul.mubr.bf16.gmra.mxu0 %v575
  %v761 = vpop.f32.mrf.mxu0
  %v762 = vadd.f32 %v517, %v761
  %v763 = vpop.f32.mrf.mxu0
  %v764 = vpop.f32.mrf.mxu0
  %v765 = vadd.f32 %v517, %v764
  %v766 = vpop.f32.mrf.mxu0
  %767 = vmatprep.mubr.bf16.mxu0 %v578
  %768 = vmatmul.mubr.bf16.gmra.mxu0 %v577
  %v769 = vpop.f32.mrf.mxu0
  %v770 = vadd.f32 %v517, %v769
  %v771 = vpop.f32.mrf.mxu0
  %v772 = vpop.f32.mrf.mxu0
  %v773 = vadd.f32 %v517, %v772
  %v774 = vpop.f32.mrf.mxu0
  %775 = vmatprep.mubr.bf16.mxu0 %v580
  %776 = vmatmul.mubr.bf16.gmra.mxu0 %v579
  %v777 = vpop.f32.mrf.mxu0
  %v778 = vadd.f32 %v517, %v777
  %v779 = vpop.f32.mrf.mxu0
  %v780 = vpop.f32.mrf.mxu0
  %v781 = vadd.f32 %v517, %v780
  %v782 = vpop.f32.mrf.mxu0
  %783 = vmatprep.mubr.bf16.mxu0 %v582
  %784 = vmatmul.mubr.bf16.gmra.mxu0 %v581
  %v785 = vpop.f32.mrf.mxu0
  %v786 = vadd.f32 %v517, %v785
  %v787 = vpop.f32.mrf.mxu0
  %v788 = vpop.f32.mrf.mxu0
  %v789 = vadd.f32 %v517, %v788
  %v790 = vpop.f32.mrf.mxu0
  %791 = vdwg.mxu0
  %v792 = vmax.f32 %v730, 0.0
  %v793 = vmax.f32 %v733, 0.0
  %v794 = vmax.f32 %v738, 0.0
  %v795 = vmax.f32 %v741, 0.0
  %v796 = vmax.f32 %v746, 0.0
  %v797 = vmax.f32 %v749, 0.0
  %v798 = vmax.f32 %v754, 0.0
  %v799 = vmax.f32 %v757, 0.0
  %v800 = vmax.f32 %v762, 0.0
  %v801 = vmax.f32 %v765, 0.0
  %v802 = vmax.f32 %v770, 0.0
  %v803 = vmax.f32 %v773, 0.0
  %v804 = vmax.f32 %v778, 0.0
  %v805 = vmax.f32 %v781, 0.0
  %v806 = vmax.f32 %v786, 0.0
  %v807 = vmax.f32 %v789, 0.0
  %v808 = vpack.c.bf16 %v793, %v792
  %v809 = vpack.c.bf16 %v795, %v794
  %v810 = vpack.c.bf16 %v797, %v796
  %v811 = vpack.c.bf16 %v799, %v798
  %v812 = vpack.c.bf16 %v801, %v800
  %v813 = vpack.c.bf16 %v803, %v802
  %v814 = vpack.c.bf16 %v805, %v804
  %v815 = vpack.c.bf16 %v807, %v806
  %v824 = vunpack.c.l.b16 %v808
  %v825 = vunpack.c.h.b16 %v808
  %v826 = vunpack.c.l.b16 %v809
  %v827 = vunpack.c.h.b16 %v809
  %v828 = vunpack.c.l.b16 %v810
  %v829 = vunpack.c.h.b16 %v810
  %v830 = vunpack.c.l.b16 %v811
  %v831 = vunpack.c.h.b16 %v811
  %v832 = vunpack.c.l.b16 %v812
  %v833 = vunpack.c.h.b16 %v812
  %v834 = vunpack.c.l.b16 %v813
  %v835 = vunpack.c.h.b16 %v813
  %v836 = vunpack.c.l.b16 %v814
  %v837 = vunpack.c.h.b16 %v814
  %v838 = vunpack.c.l.b16 %v815
  %v839 = vunpack.c.h.b16 %v815
  %v840 = vpack.c.b16 %v824, %v824
  %v841 = vpack.c.b16 %v825, %v825
  %v842 = vpack.c.b16 %v826, %v826
  %v843 = vpack.c.b16 %v827, %v827
  %v844 = vpack.c.b16 %v828, %v828
  %v845 = vpack.c.b16 %v829, %v829
  %v846 = vpack.c.b16 %v830, %v830
  %v847 = vpack.c.b16 %v831, %v831
  %v848 = vpack.c.b16 %v832, %v832
  %v849 = vpack.c.b16 %v833, %v833
  %v850 = vpack.c.b16 %v834, %v834
  %v851 = vpack.c.b16 %v835, %v835
  %v852 = vpack.c.b16 %v836, %v836
  %v853 = vpack.c.b16 %v837, %v837
  %v854 = vpack.c.b16 %v838, %v838
  %v855 = vpack.c.b16 %v839, %v839
  %856 = vrot.lane.b32.xlu0 %v840, 32
  %v857 = vpop.permute.xlu0 %856
  %858 = vrot.lane.b32.xlu0 %v841, 32
  %v859 = vpop.permute.xlu0 %858
  %860 = vrot.lane.b32.xlu0 %v842, 32
  %v861 = vpop.permute.xlu0 %860
  %862 = vrot.lane.b32.xlu0 %v843, 32
  %v863 = vpop.permute.xlu0 %862
  %864 = vrot.lane.b32.xlu0 %v844, 32
  %v865 = vpop.permute.xlu0 %864
  %866 = vrot.lane.b32.xlu0 %v845, 32
  %v867 = vpop.permute.xlu0 %866
  %868 = vrot.lane.b32.xlu0 %v846, 32
  %v869 = vpop.permute.xlu0 %868
  %870 = vrot.lane.b32.xlu0 %v847, 32
  %v871 = vpop.permute.xlu0 %870
  %872 = vrot.lane.b32.xlu0 %v848, 32
  %v873 = vpop.permute.xlu0 %872
  %874 = vrot.lane.b32.xlu0 %v849, 32
  %v875 = vpop.permute.xlu0 %874
  %876 = vrot.lane.b32.xlu0 %v850, 32
  %v877 = vpop.permute.xlu0 %876
  %878 = vrot.lane.b32.xlu0 %v851, 32
  %v879 = vpop.permute.xlu0 %878
  %880 = vrot.lane.b32.xlu0 %v852, 32
  %v881 = vpop.permute.xlu0 %880
  %882 = vrot.lane.b32.xlu0 %v853, 32
  %v883 = vpop.permute.xlu0 %882
  %884 = vrot.lane.b32.xlu0 %v854, 32
  %v885 = vpop.permute.xlu0 %884
  %886 = vrot.lane.b32.xlu0 %v855, 32
  %v887 = vpop.permute.xlu0 %886
  %vm904 = vcmask 519424
  %905 = vst.msk [vmem:[#allocation2] sm:$0xf] %vm904, %v857
  %906 = vst.msk [vmem:[#allocation2 + $0x10] sm:$0xf] %vm904, %v859
  %907 = vst.msk [vmem:[#allocation2 + $0x20] sm:$0xf] %vm904, %v861
  %908 = vst.msk [vmem:[#allocation2 + $0x30] sm:$0xf] %vm904, %v863
  %909 = vst.msk [vmem:[#allocation2 + $0x40] sm:$0xf] %vm904, %v865
  %910 = vst.msk [vmem:[#allocation2 + $0x50] sm:$0xf] %vm904, %v867
  %911 = vst.msk [vmem:[#allocation2 + $0x60] sm:$0xf] %vm904, %v869
  %912 = vst.msk [vmem:[#allocation2 + $0x70] sm:$0xf] %vm904, %v871
  %913 = vst.msk [vmem:[#allocation2 + $0x80] sm:$0xf] %vm904, %v873
  %914 = vst.msk [vmem:[#allocation2 + $0x90] sm:$0xf] %vm904, %v875
  %915 = vst.msk [vmem:[#allocation2 + $0xa0] sm:$0xf] %vm904, %v877
  %916 = vst.msk [vmem:[#allocation2 + $0xb0] sm:$0xf] %vm904, %v879
  %917 = vst.msk [vmem:[#allocation2 + $0xc0] sm:$0xf] %vm904, %v881
  %918 = vst.msk [vmem:[#allocation2 + $0xd0] sm:$0xf] %vm904, %v883
  %919 = vst.msk [vmem:[#allocation2 + $0xe0] sm:$0xf] %vm904, %v885
  %920 = vst.msk [vmem:[#allocation2 + $0xf0] sm:$0xf] %vm904, %v887
  %v921 = vld [vmem:[%s0 + $0x100] sm:$0xff]
  %v922 = vld [vmem:[%s0 + $0x108] sm:$0xff]
  %v923 = vld [vmem:[%s0 + $0x110] sm:$0xff]
  %v924 = vld [vmem:[%s0 + $0x118] sm:$0xff]
  %v925 = vld [vmem:[%s0 + $0x120] sm:$0xff]
  %v926 = vld [vmem:[%s0 + $0x128] sm:$0xff]
  %v927 = vld [vmem:[%s0 + $0x130] sm:$0xff]
  %v928 = vld [vmem:[%s0 + $0x138] sm:$0xff]
  %v929 = vld [vmem:[%s0 + $0x140] sm:$0xff]
  %v930 = vld [vmem:[%s0 + $0x148] sm:$0xff]
  %v931 = vld [vmem:[%s0 + $0x150] sm:$0xff]
  %v932 = vld [vmem:[%s0 + $0x158] sm:$0xff]
  %v933 = vld [vmem:[%s0 + $0x160] sm:$0xff]
  %v934 = vld [vmem:[%s0 + $0x168] sm:$0xff]
  %v935 = vld [vmem:[%s0 + $0x170] sm:$0xff]
  %v936 = vld [vmem:[%s0 + $0x178] sm:$0xff]
  %v937 = vld [vmem:[%s1] sm:$0xf]
  %v938 = vld [vmem:[%s1 + $0x4] sm:$0xf]
  %v939 = vld [vmem:[%s1 + $0x8] sm:$0xf]
  %v940 = vld [vmem:[%s1 + $0xc] sm:$0xf]
  %v941 = vld [vmem:[%s1 + $0x10] sm:$0xf]
  %v942 = vld [vmem:[%s1 + $0x14] sm:$0xf]
  %v943 = vld [vmem:[%s1 + $0x18] sm:$0xf]
  %v944 = vld [vmem:[%s1 + $0x1c] sm:$0xf]
  %v945 = vld [vmem:[%s1 + $0x20] sm:$0xf]
  %v946 = vld [vmem:[%s1 + $0x24] sm:$0xf]
  %v947 = vld [vmem:[%s1 + $0x28] sm:$0xf]
  %v948 = vld [vmem:[%s1 + $0x2c] sm:$0xf]
  %v949 = vld [vmem:[%s1 + $0x30] sm:$0xf]
  %v950 = vld [vmem:[%s1 + $0x34] sm:$0xf]
  %v951 = vld [vmem:[%s1 + $0x38] sm:$0xf]
  %v952 = vld [vmem:[%s1 + $0x3c] sm:$0xf]
  %v953 = vld [vmem:[%s1 + $0x40] sm:$0xf]
  %v954 = vld [vmem:[%s1 + $0x44] sm:$0xf]
  %v955 = vld [vmem:[%s1 + $0x48] sm:$0xf]
  %v956 = vld [vmem:[%s1 + $0x4c] sm:$0xf]
  %v957 = vld [vmem:[%s1 + $0x50] sm:$0xf]
  %v958 = vld [vmem:[%s1 + $0x54] sm:$0xf]
  %v959 = vld [vmem:[%s1 + $0x58] sm:$0xf]
  %v960 = vld [vmem:[%s1 + $0x5c] sm:$0xf]
  %v961 = vld [vmem:[%s1 + $0x60] sm:$0xf]
  %v962 = vld [vmem:[%s1 + $0x64] sm:$0xf]
  %v963 = vld [vmem:[%s1 + $0x68] sm:$0xf]
  %v964 = vld [vmem:[%s1 + $0x6c] sm:$0xf]
  %v965 = vld [vmem:[%s1 + $0x70] sm:$0xf]
  %v966 = vld [vmem:[%s1 + $0x74] sm:$0xf]
  %v967 = vld [vmem:[%s1 + $0x78] sm:$0xf]
  %v968 = vld [vmem:[%s1 + $0x7c] sm:$0xf]
  %v969 = vld [vmem:[%s2] sm:$0x1]
  %v971 = vlaneseq
  %v972 = vshrl.u32 %v971, 7
  %v973 = vsub.s32 0, %v972
  %v974 = vrot.slane %v969, %v973
  %v992 = vunpack.c.l.b16 %v921
  %v993 = vunpack.c.h.b16 %v921
  %v994 = vunpack.c.l.b16 %v922
  %v995 = vunpack.c.h.b16 %v922
  %v996 = vunpack.c.l.b16 %v923
  %v997 = vunpack.c.h.b16 %v923
  %v998 = vunpack.c.l.b16 %v924
  %v999 = vunpack.c.h.b16 %v924
  %v1000 = vunpack.c.l.b16 %v925
  %v1001 = vunpack.c.h.b16 %v925
  %v1002 = vunpack.c.l.b16 %v926
  %v1003 = vunpack.c.h.b16 %v926
  %v1004 = vunpack.c.l.b16 %v927
  %v1005 = vunpack.c.h.b16 %v927
  %v1006 = vunpack.c.l.b16 %v928
  %v1007 = vunpack.c.h.b16 %v928
  %v1008 = vunpack.c.l.b16 %v929
  %v1009 = vunpack.c.h.b16 %v929
  %v1010 = vunpack.c.l.b16 %v930
  %v1011 = vunpack.c.h.b16 %v930
  %v1012 = vunpack.c.l.b16 %v931
  %v1013 = vunpack.c.h.b16 %v931
  %v1014 = vunpack.c.l.b16 %v932
  %v1015 = vunpack.c.h.b16 %v932
  %v1016 = vunpack.c.l.b16 %v933
  %v1017 = vunpack.c.h.b16 %v933
  %v1018 = vunpack.c.l.b16 %v934
  %v1019 = vunpack.c.h.b16 %v934
  %v1020 = vunpack.c.l.b16 %v935
  %v1021 = vunpack.c.h.b16 %v935
  %v1022 = vunpack.c.l.b16 %v936
  %v1023 = vunpack.c.h.b16 %v936
  %v1024 = vpack.c.b16 %v994, %v992
  %v1025 = vpack.c.b16 %v995, %v993
  %v1026 = vpack.c.b16 %v998, %v996
  %v1027 = vpack.c.b16 %v999, %v997
  %v1028 = vpack.c.b16 %v1002, %v1000
  %v1029 = vpack.c.b16 %v1003, %v1001
  %v1030 = vpack.c.b16 %v1006, %v1004
  %v1031 = vpack.c.b16 %v1007, %v1005
  %v1032 = vpack.c.b16 %v1010, %v1008
  %v1033 = vpack.c.b16 %v1011, %v1009
  %v1034 = vpack.c.b16 %v1014, %v1012
  %v1035 = vpack.c.b16 %v1015, %v1013
  %v1036 = vpack.c.b16 %v1018, %v1016
  %v1037 = vpack.c.b16 %v1019, %v1017
  %v1038 = vpack.c.b16 %v1022, %v1020
  %v1039 = vpack.c.b16 %v1023, %v1021
  %v1088 = vunpack.c.l.b16 %v937
  %v1089 = vunpack.c.l.b16 %v938
  %v1090 = vunpack.c.l.b16 %v939
  %v1091 = vunpack.c.l.b16 %v940
  %v1092 = vunpack.c.l.b16 %v941
  %v1093 = vunpack.c.l.b16 %v942
  %v1094 = vunpack.c.l.b16 %v943
  %v1095 = vunpack.c.l.b16 %v944
  %v1096 = vunpack.c.l.b16 %v945
  %v1097 = vunpack.c.l.b16 %v946
  %v1098 = vunpack.c.l.b16 %v947
  %v1099 = vunpack.c.l.b16 %v948
  %v1100 = vunpack.c.l.b16 %v949
  %v1101 = vunpack.c.l.b16 %v950
  %v1102 = vunpack.c.l.b16 %v951
  %v1103 = vunpack.c.l.b16 %v952
  %v1104 = vunpack.c.l.b16 %v953
  %v1105 = vunpack.c.l.b16 %v954
  %v1106 = vunpack.c.l.b16 %v955
  %v1107 = vunpack.c.l.b16 %v956
  %v1108 = vunpack.c.l.b16 %v957
  %v1109 = vunpack.c.l.b16 %v958
  %v1110 = vunpack.c.l.b16 %v959
  %v1111 = vunpack.c.l.b16 %v960
  %v1112 = vunpack.c.l.b16 %v961
  %v1113 = vunpack.c.l.b16 %v962
  %v1114 = vunpack.c.l.b16 %v963
  %v1115 = vunpack.c.l.b16 %v964
  %v1116 = vunpack.c.l.b16 %v965
  %v1117 = vunpack.c.l.b16 %v966
  %v1118 = vunpack.c.l.b16 %v967
  %v1119 = vunpack.c.l.b16 %v968
  %v1120 = vpack.c.b16 %v1089, %v1088
  %v1121 = vpack.c.b16 %v1091, %v1090
  %v1122 = vpack.c.b16 %v1093, %v1092
  %v1123 = vpack.c.b16 %v1095, %v1094
  %v1124 = vpack.c.b16 %v1097, %v1096
  %v1125 = vpack.c.b16 %v1099, %v1098
  %v1126 = vpack.c.b16 %v1101, %v1100
  %v1127 = vpack.c.b16 %v1103, %v1102
  %v1128 = vpack.c.b16 %v1105, %v1104
  %v1129 = vpack.c.b16 %v1107, %v1106
  %v1130 = vpack.c.b16 %v1109, %v1108
  %v1131 = vpack.c.b16 %v1111, %v1110
  %v1132 = vpack.c.b16 %v1113, %v1112
  %v1133 = vpack.c.b16 %v1115, %v1114
  %v1134 = vpack.c.b16 %v1117, %v1116
  %v1135 = vpack.c.b16 %v1119, %v1118
  %1152 = vmatprep.subr.bf16.mxu0 0
  %1153 = vmatpush1.bf16.msra.mxu0 %v1127
  %1154 = vmatprep.subr.bf16.mxu0 0
  %1155 = vmatpush1.bf16.msra.mxu0 %v1126
  %1156 = vmatprep.subr.bf16.mxu0 0
  %1157 = vmatpush1.bf16.msra.mxu0 %v1125
  %1158 = vmatprep.subr.bf16.mxu0 0
  %1159 = vmatpush1.bf16.msra.mxu0 %v1124
  %1160 = vmatprep.subr.bf16.mxu0 0
  %1161 = vmatpush1.bf16.msra.mxu0 %v1123
  %1162 = vmatprep.subr.bf16.mxu0 0
  %1163 = vmatpush1.bf16.msra.mxu0 %v1122
  %1164 = vmatprep.subr.bf16.mxu0 0
  %1165 = vmatpush1.bf16.msra.mxu0 %v1121
  %1166 = vmatprep.subr.bf16.mxu0 0
  %1167 = vmatpush1.bf16.msra.mxu0 %v1120
  %1168 = vmatprep.subr.bf16.mxu0 0
  %1169 = vmatpush2.bf16.msra.mxu0 %v1135
  %1170 = vmatprep.subr.bf16.mxu0 0
  %1171 = vmatpush2.bf16.msra.mxu0 %v1134
  %1172 = vmatprep.subr.bf16.mxu0 0
  %1173 = vmatpush2.bf16.msra.mxu0 %v1133
  %1174 = vmatprep.subr.bf16.mxu0 0
  %1175 = vmatpush2.bf16.msra.mxu0 %v1132
  %1176 = vmatprep.subr.bf16.mxu0 0
  %1177 = vmatpush2.bf16.msra.mxu0 %v1131
  %1178 = vmatprep.subr.bf16.mxu0 0
  %1179 = vmatpush2.bf16.msra.mxu0 %v1130
  %1180 = vmatprep.subr.bf16.mxu0 0
  %1181 = vmatpush2.bf16.msra.mxu0 %v1129
  %1182 = vmatprep.subr.bf16.mxu0 0
  %1183 = vmatpush2.bf16.msra.mxu0 %v1128
  %1184 = vmatprep.mubr.bf16.mxu0 %v1025
  %1185 = vmatmul.mubr.bf16.gmra.mxu0 %v1024
  %v1186 = vpop.f32.mrf.mxu0
  %v1187 = vadd.f32 %v974, %v1186
  %v1188 = vpop.f32.mrf.mxu0
  %v1189 = vpop.f32.mrf.mxu0
  %v1190 = vadd.f32 %v974, %v1189
  %v1191 = vpop.f32.mrf.mxu0
  %1192 = vmatprep.mubr.bf16.mxu0 %v1027
  %1193 = vmatmul.mubr.bf16.gmra.mxu0 %v1026
  %v1194 = vpop.f32.mrf.mxu0
  %v1195 = vadd.f32 %v974, %v1194
  %v1196 = vpop.f32.mrf.mxu0
  %v1197 = vpop.f32.mrf.mxu0
  %v1198 = vadd.f32 %v974, %v1197
  %v1199 = vpop.f32.mrf.mxu0
  %1200 = vmatprep.mubr.bf16.mxu0 %v1029
  %1201 = vmatmul.mubr.bf16.gmra.mxu0 %v1028
  %v1202 = vpop.f32.mrf.mxu0
  %v1203 = vadd.f32 %v974, %v1202
  %v1204 = vpop.f32.mrf.mxu0
  %v1205 = vpop.f32.mrf.mxu0
  %v1206 = vadd.f32 %v974, %v1205
  %v1207 = vpop.f32.mrf.mxu0
  %1208 = vmatprep.mubr.bf16.mxu0 %v1031
  %1209 = vmatmul.mubr.bf16.gmra.mxu0 %v1030
  %v1210 = vpop.f32.mrf.mxu0
  %v1211 = vadd.f32 %v974, %v1210
  %v1212 = vpop.f32.mrf.mxu0
  %v1213 = vpop.f32.mrf.mxu0
  %v1214 = vadd.f32 %v974, %v1213
  %v1215 = vpop.f32.mrf.mxu0
  %1216 = vmatprep.mubr.bf16.mxu0 %v1033
  %1217 = vmatmul.mubr.bf16.gmra.mxu0 %v1032
  %v1218 = vpop.f32.mrf.mxu0
  %v1219 = vadd.f32 %v974, %v1218
  %v1220 = vpop.f32.mrf.mxu0
  %v1221 = vpop.f32.mrf.mxu0
  %v1222 = vadd.f32 %v974, %v1221
  %v1223 = vpop.f32.mrf.mxu0
  %1224 = vmatprep.mubr.bf16.mxu0 %v1035
  %1225 = vmatmul.mubr.bf16.gmra.mxu0 %v1034
  %v1226 = vpop.f32.mrf.mxu0
  %v1227 = vadd.f32 %v974, %v1226
  %v1228 = vpop.f32.mrf.mxu0
  %v1229 = vpop.f32.mrf.mxu0
  %v1230 = vadd.f32 %v974, %v1229
  %v1231 = vpop.f32.mrf.mxu0
  %1232 = vmatprep.mubr.bf16.mxu0 %v1037
  %1233 = vmatmul.mubr.bf16.gmra.mxu0 %v1036
  %v1234 = vpop.f32.mrf.mxu0
  %v1235 = vadd.f32 %v974, %v1234
  %v1236 = vpop.f32.mrf.mxu0
  %v1237 = vpop.f32.mrf.mxu0
  %v1238 = vadd.f32 %v974, %v1237
  %v1239 = vpop.f32.mrf.mxu0
  %1240 = vmatprep.mubr.bf16.mxu0 %v1039
  %1241 = vmatmul.mubr.bf16.gmra.mxu0 %v1038
  %v1242 = vpop.f32.mrf.mxu0
  %v1243 = vadd.f32 %v974, %v1242
  %v1244 = vpop.f32.mrf.mxu0
  %v1245 = vpop.f32.mrf.mxu0
  %v1246 = vadd.f32 %v974, %v1245
  %v1247 = vpop.f32.mrf.mxu0
  %1248 = vdwg.mxu0
  %v1249 = vmax.f32 %v1187, 0.0
  %v1250 = vmax.f32 %v1190, 0.0
  %v1251 = vmax.f32 %v1195, 0.0
  %v1252 = vmax.f32 %v1198, 0.0
  %v1253 = vmax.f32 %v1203, 0.0
  %v1254 = vmax.f32 %v1206, 0.0
  %v1255 = vmax.f32 %v1211, 0.0
  %v1256 = vmax.f32 %v1214, 0.0
  %v1257 = vmax.f32 %v1219, 0.0
  %v1258 = vmax.f32 %v1222, 0.0
  %v1259 = vmax.f32 %v1227, 0.0
  %v1260 = vmax.f32 %v1230, 0.0
  %v1261 = vmax.f32 %v1235, 0.0
  %v1262 = vmax.f32 %v1238, 0.0
  %v1263 = vmax.f32 %v1243, 0.0
  %v1264 = vmax.f32 %v1246, 0.0
  %v1265 = vpack.c.bf16 %v1250, %v1249
  %v1266 = vpack.c.bf16 %v1252, %v1251
  %v1267 = vpack.c.bf16 %v1254, %v1253
  %v1268 = vpack.c.bf16 %v1256, %v1255
  %v1269 = vpack.c.bf16 %v1258, %v1257
  %v1270 = vpack.c.bf16 %v1260, %v1259
  %v1271 = vpack.c.bf16 %v1262, %v1261
  %v1272 = vpack.c.bf16 %v1264, %v1263
  %v1281 = vunpack.c.l.b16 %v1265
  %v1282 = vunpack.c.h.b16 %v1265
  %v1283 = vunpack.c.l.b16 %v1266
  %v1284 = vunpack.c.h.b16 %v1266
  %v1285 = vunpack.c.l.b16 %v1267
  %v1286 = vunpack.c.h.b16 %v1267
  %v1287 = vunpack.c.l.b16 %v1268
  %v1288 = vunpack.c.h.b16 %v1268
  %v1289 = vunpack.c.l.b16 %v1269
  %v1290 = vunpack.c.h.b16 %v1269
  %v1291 = vunpack.c.l.b16 %v1270
  %v1292 = vunpack.c.h.b16 %v1270
  %v1293 = vunpack.c.l.b16 %v1271
  %v1294 = vunpack.c.h.b16 %v1271
  %v1295 = vunpack.c.l.b16 %v1272
  %v1296 = vunpack.c.h.b16 %v1272
  %v1297 = vpack.c.b16 %v1281, %v1281
  %v1298 = vpack.c.b16 %v1282, %v1282
  %v1299 = vpack.c.b16 %v1283, %v1283
  %v1300 = vpack.c.b16 %v1284, %v1284
  %v1301 = vpack.c.b16 %v1285, %v1285
  %v1302 = vpack.c.b16 %v1286, %v1286
  %v1303 = vpack.c.b16 %v1287, %v1287
  %v1304 = vpack.c.b16 %v1288, %v1288
  %v1305 = vpack.c.b16 %v1289, %v1289
  %v1306 = vpack.c.b16 %v1290, %v1290
  %v1307 = vpack.c.b16 %v1291, %v1291
  %v1308 = vpack.c.b16 %v1292, %v1292
  %v1309 = vpack.c.b16 %v1293, %v1293
  %v1310 = vpack.c.b16 %v1294, %v1294
  %v1311 = vpack.c.b16 %v1295, %v1295
  %v1312 = vpack.c.b16 %v1296, %v1296
  %1313 = vrot.lane.b32.xlu0 %v1297, 64
  %v1314 = vpop.permute.xlu0 %1313
  %1315 = vrot.lane.b32.xlu0 %v1298, 64
  %v1316 = vpop.permute.xlu0 %1315
  %1317 = vrot.lane.b32.xlu0 %v1299, 64
  %v1318 = vpop.permute.xlu0 %1317
  %1319 = vrot.lane.b32.xlu0 %v1300, 64
  %v1320 = vpop.permute.xlu0 %1319
  %1321 = vrot.lane.b32.xlu0 %v1301, 64
  %v1322 = vpop.permute.xlu0 %1321
  %1323 = vrot.lane.b32.xlu0 %v1302, 64
  %v1324 = vpop.permute.xlu0 %1323
  %1325 = vrot.lane.b32.xlu0 %v1303, 64
  %v1326 = vpop.permute.xlu0 %1325
  %1327 = vrot.lane.b32.xlu0 %v1304, 64
  %v1328 = vpop.permute.xlu0 %1327
  %1329 = vrot.lane.b32.xlu0 %v1305, 64
  %v1330 = vpop.permute.xlu0 %1329
  %1331 = vrot.lane.b32.xlu0 %v1306, 64
  %v1332 = vpop.permute.xlu0 %1331
  %1333 = vrot.lane.b32.xlu0 %v1307, 64
  %v1334 = vpop.permute.xlu0 %1333
  %1335 = vrot.lane.b32.xlu0 %v1308, 64
  %v1336 = vpop.permute.xlu0 %1335
  %1337 = vrot.lane.b32.xlu0 %v1309, 64
  %v1338 = vpop.permute.xlu0 %1337
  %1339 = vrot.lane.b32.xlu0 %v1310, 64
  %v1340 = vpop.permute.xlu0 %1339
  %1341 = vrot.lane.b32.xlu0 %v1311, 64
  %v1342 = vpop.permute.xlu0 %1341
  %1343 = vrot.lane.b32.xlu0 %v1312, 64
  %v1344 = vpop.permute.xlu0 %1343
  %vm1361 = vcmask 781824
  %1362 = vst.msk [vmem:[#allocation2] sm:$0xf] %vm1361, %v1314
  %1363 = vst.msk [vmem:[#allocation2 + $0x10] sm:$0xf] %vm1361, %v1316
  %1364 = vst.msk [vmem:[#allocation2 + $0x20] sm:$0xf] %vm1361, %v1318
  %1365 = vst.msk [vmem:[#allocation2 + $0x30] sm:$0xf] %vm1361, %v1320
  %1366 = vst.msk [vmem:[#allocation2 + $0x40] sm:$0xf] %vm1361, %v1322
  %1367 = vst.msk [vmem:[#allocation2 + $0x50] sm:$0xf] %vm1361, %v1324
  %1368 = vst.msk [vmem:[#allocation2 + $0x60] sm:$0xf] %vm1361, %v1326
  %1369 = vst.msk [vmem:[#allocation2 + $0x70] sm:$0xf] %vm1361, %v1328
  %1370 = vst.msk [vmem:[#allocation2 + $0x80] sm:$0xf] %vm1361, %v1330
  %1371 = vst.msk [vmem:[#allocation2 + $0x90] sm:$0xf] %vm1361, %v1332
  %1372 = vst.msk [vmem:[#allocation2 + $0xa0] sm:$0xf] %vm1361, %v1334
  %1373 = vst.msk [vmem:[#allocation2 + $0xb0] sm:$0xf] %vm1361, %v1336
  %1374 = vst.msk [vmem:[#allocation2 + $0xc0] sm:$0xf] %vm1361, %v1338
  %1375 = vst.msk [vmem:[#allocation2 + $0xd0] sm:$0xf] %vm1361, %v1340
  %1376 = vst.msk [vmem:[#allocation2 + $0xe0] sm:$0xf] %vm1361, %v1342
  %1377 = vst.msk [vmem:[#allocation2 + $0xf0] sm:$0xf] %vm1361, %v1344
  %v1378 = vld [vmem:[%s0 + $0x180] sm:$0xff]
  %v1379 = vld [vmem:[%s0 + $0x188] sm:$0xff]
  %v1380 = vld [vmem:[%s0 + $0x190] sm:$0xff]
  %v1381 = vld [vmem:[%s0 + $0x198] sm:$0xff]
  %v1382 = vld [vmem:[%s0 + $0x1a0] sm:$0xff]
  %v1383 = vld [vmem:[%s0 + $0x1a8] sm:$0xff]
  %v1384 = vld [vmem:[%s0 + $0x1b0] sm:$0xff]
  %v1385 = vld [vmem:[%s0 + $0x1b8] sm:$0xff]
  %v1386 = vld [vmem:[%s0 + $0x1c0] sm:$0xff]
  %v1387 = vld [vmem:[%s0 + $0x1c8] sm:$0xff]
  %v1388 = vld [vmem:[%s0 + $0x1d0] sm:$0xff]
  %v1389 = vld [vmem:[%s0 + $0x1d8] sm:$0xff]
  %v1390 = vld [vmem:[%s0 + $0x1e0] sm:$0xff]
  %v1391 = vld [vmem:[%s0 + $0x1e8] sm:$0xff]
  %v1392 = vld [vmem:[%s0 + $0x1f0] sm:$0xff]
  %v1393 = vld [vmem:[%s0 + $0x1f8] sm:$0xff]
  %v1394 = vld [vmem:[%s1] sm:$0xf]
  %v1395 = vld [vmem:[%s1 + $0x4] sm:$0xf]
  %v1396 = vld [vmem:[%s1 + $0x8] sm:$0xf]
  %v1397 = vld [vmem:[%s1 + $0xc] sm:$0xf]
  %v1398 = vld [vmem:[%s1 + $0x10] sm:$0xf]
  %v1399 = vld [vmem:[%s1 + $0x14] sm:$0xf]
  %v1400 = vld [vmem:[%s1 + $0x18] sm:$0xf]
  %v1401 = vld [vmem:[%s1 + $0x1c] sm:$0xf]
  %v1402 = vld [vmem:[%s1 + $0x20] sm:$0xf]
  %v1403 = vld [vmem:[%s1 + $0x24] sm:$0xf]
  %v1404 = vld [vmem:[%s1 + $0x28] sm:$0xf]
  %v1405 = vld [vmem:[%s1 + $0x2c] sm:$0xf]
  %v1406 = vld [vmem:[%s1 + $0x30] sm:$0xf]
  %v1407 = vld [vmem:[%s1 + $0x34] sm:$0xf]
  %v1408 = vld [vmem:[%s1 + $0x38] sm:$0xf]
  %v1409 = vld [vmem:[%s1 + $0x3c] sm:$0xf]
  %v1410 = vld [vmem:[%s1 + $0x40] sm:$0xf]
  %v1411 = vld [vmem:[%s1 + $0x44] sm:$0xf]
  %v1412 = vld [vmem:[%s1 + $0x48] sm:$0xf]
  %v1413 = vld [vmem:[%s1 + $0x4c] sm:$0xf]
  %v1414 = vld [vmem:[%s1 + $0x50] sm:$0xf]
  %v1415 = vld [vmem:[%s1 + $0x54] sm:$0xf]
  %v1416 = vld [vmem:[%s1 + $0x58] sm:$0xf]
  %v1417 = vld [vmem:[%s1 + $0x5c] sm:$0xf]
  %v1418 = vld [vmem:[%s1 + $0x60] sm:$0xf]
  %v1419 = vld [vmem:[%s1 + $0x64] sm:$0xf]
  %v1420 = vld [vmem:[%s1 + $0x68] sm:$0xf]
  %v1421 = vld [vmem:[%s1 + $0x6c] sm:$0xf]
  %v1422 = vld [vmem:[%s1 + $0x70] sm:$0xf]
  %v1423 = vld [vmem:[%s1 + $0x74] sm:$0xf]
  %v1424 = vld [vmem:[%s1 + $0x78] sm:$0xf]
  %v1425 = vld [vmem:[%s1 + $0x7c] sm:$0xf]
  %v1426 = vld [vmem:[%s2] sm:$0x1]
  %v1428 = vlaneseq
  %v1429 = vshrl.u32 %v1428, 7
  %v1430 = vsub.s32 0, %v1429
  %v1431 = vrot.slane %v1426, %v1430
  %v1449 = vunpack.c.l.b16 %v1378
  %v1450 = vunpack.c.h.b16 %v1378
  %v1451 = vunpack.c.l.b16 %v1379
  %v1452 = vunpack.c.h.b16 %v1379
  %v1453 = vunpack.c.l.b16 %v1380
  %v1454 = vunpack.c.h.b16 %v1380
  %v1455 = vunpack.c.l.b16 %v1381
  %v1456 = vunpack.c.h.b16 %v1381
  %v1457 = vunpack.c.l.b16 %v1382
  %v1458 = vunpack.c.h.b16 %v1382
  %v1459 = vunpack.c.l.b16 %v1383
  %v1460 = vunpack.c.h.b16 %v1383
  %v1461 = vunpack.c.l.b16 %v1384
  %v1462 = vunpack.c.h.b16 %v1384
  %v1463 = vunpack.c.l.b16 %v1385
  %v1464 = vunpack.c.h.b16 %v1385
  %v1465 = vunpack.c.l.b16 %v1386
  %v1466 = vunpack.c.h.b16 %v1386
  %v1467 = vunpack.c.l.b16 %v1387
  %v1468 = vunpack.c.h.b16 %v1387
  %v1469 = vunpack.c.l.b16 %v1388
  %v1470 = vunpack.c.h.b16 %v1388
  %v1471 = vunpack.c.l.b16 %v1389
  %v1472 = vunpack.c.h.b16 %v1389
  %v1473 = vunpack.c.l.b16 %v1390
  %v1474 = vunpack.c.h.b16 %v1390
  %v1475 = vunpack.c.l.b16 %v1391
  %v1476 = vunpack.c.h.b16 %v1391
  %v1477 = vunpack.c.l.b16 %v1392
  %v1478 = vunpack.c.h.b16 %v1392
  %v1479 = vunpack.c.l.b16 %v1393
  %v1480 = vunpack.c.h.b16 %v1393
  %v1481 = vpack.c.b16 %v1451, %v1449
  %v1482 = vpack.c.b16 %v1452, %v1450
  %v1483 = vpack.c.b16 %v1455, %v1453
  %v1484 = vpack.c.b16 %v1456, %v1454
  %v1485 = vpack.c.b16 %v1459, %v1457
  %v1486 = vpack.c.b16 %v1460, %v1458
  %v1487 = vpack.c.b16 %v1463, %v1461
  %v1488 = vpack.c.b16 %v1464, %v1462
  %v1489 = vpack.c.b16 %v1467, %v1465
  %v1490 = vpack.c.b16 %v1468, %v1466
  %v1491 = vpack.c.b16 %v1471, %v1469
  %v1492 = vpack.c.b16 %v1472, %v1470
  %v1493 = vpack.c.b16 %v1475, %v1473
  %v1494 = vpack.c.b16 %v1476, %v1474
  %v1495 = vpack.c.b16 %v1479, %v1477
  %v1496 = vpack.c.b16 %v1480, %v1478
  %v1545 = vunpack.c.l.b16 %v1394
  %v1546 = vunpack.c.l.b16 %v1395
  %v1547 = vunpack.c.l.b16 %v1396
  %v1548 = vunpack.c.l.b16 %v1397
  %v1549 = vunpack.c.l.b16 %v1398
  %v1550 = vunpack.c.l.b16 %v1399
  %v1551 = vunpack.c.l.b16 %v1400
  %v1552 = vunpack.c.l.b16 %v1401
  %v1553 = vunpack.c.l.b16 %v1402
  %v1554 = vunpack.c.l.b16 %v1403
  %v1555 = vunpack.c.l.b16 %v1404
  %v1556 = vunpack.c.l.b16 %v1405
  %v1557 = vunpack.c.l.b16 %v1406
  %v1558 = vunpack.c.l.b16 %v1407
  %v1559 = vunpack.c.l.b16 %v1408
  %v1560 = vunpack.c.l.b16 %v1409
  %v1561 = vunpack.c.l.b16 %v1410
  %v1562 = vunpack.c.l.b16 %v1411
  %v1563 = vunpack.c.l.b16 %v1412
  %v1564 = vunpack.c.l.b16 %v1413
  %v1565 = vunpack.c.l.b16 %v1414
  %v1566 = vunpack.c.l.b16 %v1415
  %v1567 = vunpack.c.l.b16 %v1416
  %v1568 = vunpack.c.l.b16 %v1417
  %v1569 = vunpack.c.l.b16 %v1418
  %v1570 = vunpack.c.l.b16 %v1419
  %v1571 = vunpack.c.l.b16 %v1420
  %v1572 = vunpack.c.l.b16 %v1421
  %v1573 = vunpack.c.l.b16 %v1422
  %v1574 = vunpack.c.l.b16 %v1423
  %v1575 = vunpack.c.l.b16 %v1424
  %v1576 = vunpack.c.l.b16 %v1425
  %v1577 = vpack.c.b16 %v1546, %v1545
  %v1578 = vpack.c.b16 %v1548, %v1547
  %v1579 = vpack.c.b16 %v1550, %v1549
  %v1580 = vpack.c.b16 %v1552, %v1551
  %v1581 = vpack.c.b16 %v1554, %v1553
  %v1582 = vpack.c.b16 %v1556, %v1555
  %v1583 = vpack.c.b16 %v1558, %v1557
  %v1584 = vpack.c.b16 %v1560, %v1559
  %v1585 = vpack.c.b16 %v1562, %v1561
  %v1586 = vpack.c.b16 %v1564, %v1563
  %v1587 = vpack.c.b16 %v1566, %v1565
  %v1588 = vpack.c.b16 %v1568, %v1567
  %v1589 = vpack.c.b16 %v1570, %v1569
  %v1590 = vpack.c.b16 %v1572, %v1571
  %v1591 = vpack.c.b16 %v1574, %v1573
  %v1592 = vpack.c.b16 %v1576, %v1575
  %1609 = vmatprep.subr.bf16.mxu0 0
  %1610 = vmatpush1.bf16.msra.mxu0 %v1584
  %1611 = vmatprep.subr.bf16.mxu0 0
  %1612 = vmatpush1.bf16.msra.mxu0 %v1583
  %1613 = vmatprep.subr.bf16.mxu0 0
  %1614 = vmatpush1.bf16.msra.mxu0 %v1582
  %1615 = vmatprep.subr.bf16.mxu0 0
  %1616 = vmatpush1.bf16.msra.mxu0 %v1581
  %1617 = vmatprep.subr.bf16.mxu0 0
  %1618 = vmatpush1.bf16.msra.mxu0 %v1580
  %1619 = vmatprep.subr.bf16.mxu0 0
  %1620 = vmatpush1.bf16.msra.mxu0 %v1579
  %1621 = vmatprep.subr.bf16.mxu0 0
  %1622 = vmatpush1.bf16.msra.mxu0 %v1578
  %1623 = vmatprep.subr.bf16.mxu0 0
  %1624 = vmatpush1.bf16.msra.mxu0 %v1577
  %1625 = vmatprep.subr.bf16.mxu0 0
  %1626 = vmatpush2.bf16.msra.mxu0 %v1592
  %1627 = vmatprep.subr.bf16.mxu0 0
  %1628 = vmatpush2.bf16.msra.mxu0 %v1591
  %1629 = vmatprep.subr.bf16.mxu0 0
  %1630 = vmatpush2.bf16.msra.mxu0 %v1590
  %1631 = vmatprep.subr.bf16.mxu0 0
  %1632 = vmatpush2.bf16.msra.mxu0 %v1589
  %1633 = vmatprep.subr.bf16.mxu0 0
  %1634 = vmatpush2.bf16.msra.mxu0 %v1588
  %1635 = vmatprep.subr.bf16.mxu0 0
  %1636 = vmatpush2.bf16.msra.mxu0 %v1587
  %1637 = vmatprep.subr.bf16.mxu0 0
  %1638 = vmatpush2.bf16.msra.mxu0 %v1586
  %1639 = vmatprep.subr.bf16.mxu0 0
  %1640 = vmatpush2.bf16.msra.mxu0 %v1585
  %1641 = vmatprep.mubr.bf16.mxu0 %v1482
  %1642 = vmatmul.mubr.bf16.gmra.mxu0 %v1481
  %v1643 = vpop.f32.mrf.mxu0
  %v1644 = vadd.f32 %v1431, %v1643
  %v1645 = vpop.f32.mrf.mxu0
  %v1646 = vpop.f32.mrf.mxu0
  %v1647 = vadd.f32 %v1431, %v1646
  %v1648 = vpop.f32.mrf.mxu0
  %1649 = vmatprep.mubr.bf16.mxu0 %v1484
  %1650 = vmatmul.mubr.bf16.gmra.mxu0 %v1483
  %v1651 = vpop.f32.mrf.mxu0
  %v1652 = vadd.f32 %v1431, %v1651
  %v1653 = vpop.f32.mrf.mxu0
  %v1654 = vpop.f32.mrf.mxu0
  %v1655 = vadd.f32 %v1431, %v1654
  %v1656 = vpop.f32.mrf.mxu0
  %1657 = vmatprep.mubr.bf16.mxu0 %v1486
  %1658 = vmatmul.mubr.bf16.gmra.mxu0 %v1485
  %v1659 = vpop.f32.mrf.mxu0
  %v1660 = vadd.f32 %v1431, %v1659
  %v1661 = vpop.f32.mrf.mxu0
  %v1662 = vpop.f32.mrf.mxu0
  %v1663 = vadd.f32 %v1431, %v1662
  %v1664 = vpop.f32.mrf.mxu0
  %1665 = vmatprep.mubr.bf16.mxu0 %v1488
  %1666 = vmatmul.mubr.bf16.gmra.mxu0 %v1487
  %v1667 = vpop.f32.mrf.mxu0
  %v1668 = vadd.f32 %v1431, %v1667
  %v1669 = vpop.f32.mrf.mxu0
  %v1670 = vpop.f32.mrf.mxu0
  %v1671 = vadd.f32 %v1431, %v1670
  %v1672 = vpop.f32.mrf.mxu0
  %1673 = vmatprep.mubr.bf16.mxu0 %v1490
  %1674 = vmatmul.mubr.bf16.gmra.mxu0 %v1489
  %v1675 = vpop.f32.mrf.mxu0
  %v1676 = vadd.f32 %v1431, %v1675
  %v1677 = vpop.f32.mrf.mxu0
  %v1678 = vpop.f32.mrf.mxu0
  %v1679 = vadd.f32 %v1431, %v1678
  %v1680 = vpop.f32.mrf.mxu0
  %1681 = vmatprep.mubr.bf16.mxu0 %v1492
  %1682 = vmatmul.mubr.bf16.gmra.mxu0 %v1491
  %v1683 = vpop.f32.mrf.mxu0
  %v1684 = vadd.f32 %v1431, %v1683
  %v1685 = vpop.f32.mrf.mxu0
  %v1686 = vpop.f32.mrf.mxu0
  %v1687 = vadd.f32 %v1431, %v1686
  %v1688 = vpop.f32.mrf.mxu0
  %1689 = vmatprep.mubr.bf16.mxu0 %v1494
  %1690 = vmatmul.mubr.bf16.gmra.mxu0 %v1493
  %v1691 = vpop.f32.mrf.mxu0
  %v1692 = vadd.f32 %v1431, %v1691
  %v1693 = vpop.f32.mrf.mxu0
  %v1694 = vpop.f32.mrf.mxu0
  %v1695 = vadd.f32 %v1431, %v1694
  %v1696 = vpop.f32.mrf.mxu0
  %1697 = vmatprep.mubr.bf16.mxu0 %v1496
  %1698 = vmatmul.mubr.bf16.gmra.mxu0 %v1495
  %v1699 = vpop.f32.mrf.mxu0
  %v1700 = vadd.f32 %v1431, %v1699
  %v1701 = vpop.f32.mrf.mxu0
  %v1702 = vpop.f32.mrf.mxu0
  %v1703 = vadd.f32 %v1431, %v1702
  %v1704 = vpop.f32.mrf.mxu0
  %1705 = vdwg.mxu0
  %v1706 = vmax.f32 %v1644, 0.0
  %v1707 = vmax.f32 %v1647, 0.0
  %v1708 = vmax.f32 %v1652, 0.0
  %v1709 = vmax.f32 %v1655, 0.0
  %v1710 = vmax.f32 %v1660, 0.0
  %v1711 = vmax.f32 %v1663, 0.0
  %v1712 = vmax.f32 %v1668, 0.0
  %v1713 = vmax.f32 %v1671, 0.0
  %v1714 = vmax.f32 %v1676, 0.0
  %v1715 = vmax.f32 %v1679, 0.0
  %v1716 = vmax.f32 %v1684, 0.0
  %v1717 = vmax.f32 %v1687, 0.0
  %v1718 = vmax.f32 %v1692, 0.0
  %v1719 = vmax.f32 %v1695, 0.0
  %v1720 = vmax.f32 %v1700, 0.0
  %v1721 = vmax.f32 %v1703, 0.0
  %v1722 = vpack.c.bf16 %v1707, %v1706
  %v1723 = vpack.c.bf16 %v1709, %v1708
  %v1724 = vpack.c.bf16 %v1711, %v1710
  %v1725 = vpack.c.bf16 %v1713, %v1712
  %v1726 = vpack.c.bf16 %v1715, %v1714
  %v1727 = vpack.c.bf16 %v1717, %v1716
  %v1728 = vpack.c.bf16 %v1719, %v1718
  %v1729 = vpack.c.bf16 %v1721, %v1720
  %v1738 = vunpack.c.l.b16 %v1722
  %v1739 = vunpack.c.h.b16 %v1722
  %v1740 = vunpack.c.l.b16 %v1723
  %v1741 = vunpack.c.h.b16 %v1723
  %v1742 = vunpack.c.l.b16 %v1724
  %v1743 = vunpack.c.h.b16 %v1724
  %v1744 = vunpack.c.l.b16 %v1725
  %v1745 = vunpack.c.h.b16 %v1725
  %v1746 = vunpack.c.l.b16 %v1726
  %v1747 = vunpack.c.h.b16 %v1726
  %v1748 = vunpack.c.l.b16 %v1727
  %v1749 = vunpack.c.h.b16 %v1727
  %v1750 = vunpack.c.l.b16 %v1728
  %v1751 = vunpack.c.h.b16 %v1728
  %v1752 = vunpack.c.l.b16 %v1729
  %v1753 = vunpack.c.h.b16 %v1729
  %v1754 = vpack.c.b16 %v1738, %v1738
  %v1755 = vpack.c.b16 %v1739, %v1739
  %v1756 = vpack.c.b16 %v1740, %v1740
  %v1757 = vpack.c.b16 %v1741, %v1741
  %v1758 = vpack.c.b16 %v1742, %v1742
  %v1759 = vpack.c.b16 %v1743, %v1743
  %v1760 = vpack.c.b16 %v1744, %v1744
  %v1761 = vpack.c.b16 %v1745, %v1745
  %v1762 = vpack.c.b16 %v1746, %v1746
  %v1763 = vpack.c.b16 %v1747, %v1747
  %v1764 = vpack.c.b16 %v1748, %v1748
  %v1765 = vpack.c.b16 %v1749, %v1749
  %v1766 = vpack.c.b16 %v1750, %v1750
  %v1767 = vpack.c.b16 %v1751, %v1751
  %v1768 = vpack.c.b16 %v1752, %v1752
  %v1769 = vpack.c.b16 %v1753, %v1753
  %1770 = vrot.lane.b32.xlu0 %v1754, 96
  %v1771 = vpop.permute.xlu0 %1770
  %1772 = vrot.lane.b32.xlu0 %v1755, 96
  %v1773 = vpop.permute.xlu0 %1772
  %1774 = vrot.lane.b32.xlu0 %v1756, 96
  %v1775 = vpop.permute.xlu0 %1774
  %1776 = vrot.lane.b32.xlu0 %v1757, 96
  %v1777 = vpop.permute.xlu0 %1776
  %1778 = vrot.lane.b32.xlu0 %v1758, 96
  %v1779 = vpop.permute.xlu0 %1778
  %1780 = vrot.lane.b32.xlu0 %v1759, 96
  %v1781 = vpop.permute.xlu0 %1780
  %1782 = vrot.lane.b32.xlu0 %v1760, 96
  %v1783 = vpop.permute.xlu0 %1782
  %1784 = vrot.lane.b32.xlu0 %v1761, 96
  %v1785 = vpop.permute.xlu0 %1784
  %1786 = vrot.lane.b32.xlu0 %v1762, 96
  %v1787 = vpop.permute.xlu0 %1786
  %1788 = vrot.lane.b32.xlu0 %v1763, 96
  %v1789 = vpop.permute.xlu0 %1788
  %1790 = vrot.lane.b32.xlu0 %v1764, 96
  %v1791 = vpop.permute.xlu0 %1790
  %1792 = vrot.lane.b32.xlu0 %v1765, 96
  %v1793 = vpop.permute.xlu0 %1792
  %1794 = vrot.lane.b32.xlu0 %v1766, 96
  %v1795 = vpop.permute.xlu0 %1794
  %1796 = vrot.lane.b32.xlu0 %v1767, 96
  %v1797 = vpop.permute.xlu0 %1796
  %1798 = vrot.lane.b32.xlu0 %v1768, 96
  %v1799 = vpop.permute.xlu0 %1798
  %1800 = vrot.lane.b32.xlu0 %v1769, 96
  %v1801 = vpop.permute.xlu0 %1800
  %vm1818 = vcmask 1044224
  %1819 = vst.msk [vmem:[#allocation2] sm:$0xf] %vm1818, %v1771
  %1820 = vst.msk [vmem:[#allocation2 + $0x10] sm:$0xf] %vm1818, %v1773
  %1821 = vst.msk [vmem:[#allocation2 + $0x20] sm:$0xf] %vm1818, %v1775
  %1822 = vst.msk [vmem:[#allocation2 + $0x30] sm:$0xf] %vm1818, %v1777
  %1823 = vst.msk [vmem:[#allocation2 + $0x40] sm:$0xf] %vm1818, %v1779
  %1824 = vst.msk [vmem:[#allocation2 + $0x50] sm:$0xf] %vm1818, %v1781
  %1825 = vst.msk [vmem:[#allocation2 + $0x60] sm:$0xf] %vm1818, %v1783
  %1826 = vst.msk [vmem:[#allocation2 + $0x70] sm:$0xf] %vm1818, %v1785
  %1827 = vst.msk [vmem:[#allocation2 + $0x80] sm:$0xf] %vm1818, %v1787
  %1828 = vst.msk [vmem:[#allocation2 + $0x90] sm:$0xf] %vm1818, %v1789
  %1829 = vst.msk [vmem:[#allocation2 + $0xa0] sm:$0xf] %vm1818, %v1791
  %1830 = vst.msk [vmem:[#allocation2 + $0xb0] sm:$0xf] %vm1818, %v1793
  %1831 = vst.msk [vmem:[#allocation2 + $0xc0] sm:$0xf] %vm1818, %v1795
  %1832 = vst.msk [vmem:[#allocation2 + $0xd0] sm:$0xf] %vm1818, %v1797
  %1833 = vst.msk [vmem:[#allocation2 + $0xe0] sm:$0xf] %vm1818, %v1799
  %1834 = vst.msk [vmem:[#allocation2 + $0xf0] sm:$0xf] %vm1818, %v1801
  %v1835 = vld [vmem:[%s0 + $0x200] sm:$0xff]
  %v1836 = vld [vmem:[%s0 + $0x208] sm:$0xff]
  %v1837 = vld [vmem:[%s0 + $0x210] sm:$0xff]
  %v1838 = vld [vmem:[%s0 + $0x218] sm:$0xff]
  %v1839 = vld [vmem:[%s0 + $0x220] sm:$0xff]
  %v1840 = vld [vmem:[%s0 + $0x228] sm:$0xff]
  %v1841 = vld [vmem:[%s0 + $0x230] sm:$0xff]
  %v1842 = vld [vmem:[%s0 + $0x238] sm:$0xff]
  %v1843 = vld [vmem:[%s0 + $0x240] sm:$0xff]
  %v1844 = vld [vmem:[%s0 + $0x248] sm:$0xff]
  %v1845 = vld [vmem:[%s0 + $0x250] sm:$0xff]
  %v1846 = vld [vmem:[%s0 + $0x258] sm:$0xff]
  %v1847 = vld [vmem:[%s0 + $0x260] sm:$0xff]
  %v1848 = vld [vmem:[%s0 + $0x268] sm:$0xff]
  %v1849 = vld [vmem:[%s0 + $0x270] sm:$0xff]
  %v1850 = vld [vmem:[%s0 + $0x278] sm:$0xff]
  %v1851 = vld [vmem:[%s1] sm:$0xf]
  %v1852 = vld [vmem:[%s1 + $0x4] sm:$0xf]
  %v1853 = vld [vmem:[%s1 + $0x8] sm:$0xf]
  %v1854 = vld [vmem:[%s1 + $0xc] sm:$0xf]
  %v1855 = vld [vmem:[%s1 + $0x10] sm:$0xf]
  %v1856 = vld [vmem:[%s1 + $0x14] sm:$0xf]
  %v1857 = vld [vmem:[%s1 + $0x18] sm:$0xf]
  %v1858 = vld [vmem:[%s1 + $0x1c] sm:$0xf]
  %v1859 = vld [vmem:[%s1 + $0x20] sm:$0xf]
  %v1860 = vld [vmem:[%s1 + $0x24] sm:$0xf]
  %v1861 = vld [vmem:[%s1 + $0x28] sm:$0xf]
  %v1862 = vld [vmem:[%s1 + $0x2c] sm:$0xf]
  %v1863 = vld [vmem:[%s1 + $0x30] sm:$0xf]
  %v1864 = vld [vmem:[%s1 + $0x34] sm:$0xf]
  %v1865 = vld [vmem:[%s1 + $0x38] sm:$0xf]
  %v1866 = vld [vmem:[%s1 + $0x3c] sm:$0xf]
  %v1867 = vld [vmem:[%s1 + $0x40] sm:$0xf]
  %v1868 = vld [vmem:[%s1 + $0x44] sm:$0xf]
  %v1869 = vld [vmem:[%s1 + $0x48] sm:$0xf]
  %v1870 = vld [vmem:[%s1 + $0x4c] sm:$0xf]
  %v1871 = vld [vmem:[%s1 + $0x50] sm:$0xf]
  %v1872 = vld [vmem:[%s1 + $0x54] sm:$0xf]
  %v1873 = vld [vmem:[%s1 + $0x58] sm:$0xf]
  %v1874 = vld [vmem:[%s1 + $0x5c] sm:$0xf]
  %v1875 = vld [vmem:[%s1 + $0x60] sm:$0xf]
  %v1876 = vld [vmem:[%s1 + $0x64] sm:$0xf]
  %v1877 = vld [vmem:[%s1 + $0x68] sm:$0xf]
  %v1878 = vld [vmem:[%s1 + $0x6c] sm:$0xf]
  %v1879 = vld [vmem:[%s1 + $0x70] sm:$0xf]
  %v1880 = vld [vmem:[%s1 + $0x74] sm:$0xf]
  %v1881 = vld [vmem:[%s1 + $0x78] sm:$0xf]
  %v1882 = vld [vmem:[%s1 + $0x7c] sm:$0xf]
  %v1883 = vld [vmem:[%s2] sm:$0x1]
  %v1885 = vlaneseq
  %v1886 = vshrl.u32 %v1885, 7
  %v1887 = vsub.s32 0, %v1886
  %v1888 = vrot.slane %v1883, %v1887
  %v1906 = vunpack.c.l.b16 %v1835
  %v1907 = vunpack.c.h.b16 %v1835
  %v1908 = vunpack.c.l.b16 %v1836
  %v1909 = vunpack.c.h.b16 %v1836
  %v1910 = vunpack.c.l.b16 %v1837
  %v1911 = vunpack.c.h.b16 %v1837
  %v1912 = vunpack.c.l.b16 %v1838
  %v1913 = vunpack.c.h.b16 %v1838
  %v1914 = vunpack.c.l.b16 %v1839
  %v1915 = vunpack.c.h.b16 %v1839
  %v1916 = vunpack.c.l.b16 %v1840
  %v1917 = vunpack.c.h.b16 %v1840
  %v1918 = vunpack.c.l.b16 %v1841
  %v1919 = vunpack.c.h.b16 %v1841
  %v1920 = vunpack.c.l.b16 %v1842
  %v1921 = vunpack.c.h.b16 %v1842
  %v1922 = vunpack.c.l.b16 %v1843
  %v1923 = vunpack.c.h.b16 %v1843
  %v1924 = vunpack.c.l.b16 %v1844
  %v1925 = vunpack.c.h.b16 %v1844
  %v1926 = vunpack.c.l.b16 %v1845
  %v1927 = vunpack.c.h.b16 %v1845
  %v1928 = vunpack.c.l.b16 %v1846
  %v1929 = vunpack.c.h.b16 %v1846
  %v1930 = vunpack.c.l.b16 %v1847
  %v1931 = vunpack.c.h.b16 %v1847
  %v1932 = vunpack.c.l.b16 %v1848
  %v1933 = vunpack.c.h.b16 %v1848
  %v1934 = vunpack.c.l.b16 %v1849
  %v1935 = vunpack.c.h.b16 %v1849
  %v1936 = vunpack.c.l.b16 %v1850
  %v1937 = vunpack.c.h.b16 %v1850
  %v1938 = vpack.c.b16 %v1908, %v1906
  %v1939 = vpack.c.b16 %v1909, %v1907
  %v1940 = vpack.c.b16 %v1912, %v1910
  %v1941 = vpack.c.b16 %v1913, %v1911
  %v1942 = vpack.c.b16 %v1916, %v1914
  %v1943 = vpack.c.b16 %v1917, %v1915
  %v1944 = vpack.c.b16 %v1920, %v1918
  %v1945 = vpack.c.b16 %v1921, %v1919
  %v1946 = vpack.c.b16 %v1924, %v1922
  %v1947 = vpack.c.b16 %v1925, %v1923
  %v1948 = vpack.c.b16 %v1928, %v1926
  %v1949 = vpack.c.b16 %v1929, %v1927
  %v1950 = vpack.c.b16 %v1932, %v1930
  %v1951 = vpack.c.b16 %v1933, %v1931
  %v1952 = vpack.c.b16 %v1936, %v1934
  %v1953 = vpack.c.b16 %v1937, %v1935
  %v2002 = vunpack.c.l.b16 %v1851
  %v2003 = vunpack.c.l.b16 %v1852
  %v2004 = vunpack.c.l.b16 %v1853
  %v2005 = vunpack.c.l.b16 %v1854
  %v2006 = vunpack.c.l.b16 %v1855
  %v2007 = vunpack.c.l.b16 %v1856
  %v2008 = vunpack.c.l.b16 %v1857
  %v2009 = vunpack.c.l.b16 %v1858
  %v2010 = vunpack.c.l.b16 %v1859
  %v2011 = vunpack.c.l.b16 %v1860
  %v2012 = vunpack.c.l.b16 %v1861
  %v2013 = vunpack.c.l.b16 %v1862
  %v2014 = vunpack.c.l.b16 %v1863
  %v2015 = vunpack.c.l.b16 %v1864
  %v2016 = vunpack.c.l.b16 %v1865
  %v2017 = vunpack.c.l.b16 %v1866
  %v2018 = vunpack.c.l.b16 %v1867
  %v2019 = vunpack.c.l.b16 %v1868
  %v2020 = vunpack.c.l.b16 %v1869
  %v2021 = vunpack.c.l.b16 %v1870
  %v2022 = vunpack.c.l.b16 %v1871
  %v2023 = vunpack.c.l.b16 %v1872
  %v2024 = vunpack.c.l.b16 %v1873
  %v2025 = vunpack.c.l.b16 %v1874
  %v2026 = vunpack.c.l.b16 %v1875
  %v2027 = vunpack.c.l.b16 %v1876
  %v2028 = vunpack.c.l.b16 %v1877
  %v2029 = vunpack.c.l.b16 %v1878
  %v2030 = vunpack.c.l.b16 %v1879
  %v2031 = vunpack.c.l.b16 %v1880
  %v2032 = vunpack.c.l.b16 %v1881
  %v2033 = vunpack.c.l.b16 %v1882
  %v2034 = vpack.c.b16 %v2003, %v2002
  %v2035 = vpack.c.b16 %v2005, %v2004
  %v2036 = vpack.c.b16 %v2007, %v2006
  %v2037 = vpack.c.b16 %v2009, %v2008
  %v2038 = vpack.c.b16 %v2011, %v2010
  %v2039 = vpack.c.b16 %v2013, %v2012
  %v2040 = vpack.c.b16 %v2015, %v2014
  %v2041 = vpack.c.b16 %v2017, %v2016
  %v2042 = vpack.c.b16 %v2019, %v2018
  %v2043 = vpack.c.b16 %v2021, %v2020
  %v2044 = vpack.c.b16 %v2023, %v2022
  %v2045 = vpack.c.b16 %v2025, %v2024
  %v2046 = vpack.c.b16 %v2027, %v2026
  %v2047 = vpack.c.b16 %v2029, %v2028
  %v2048 = vpack.c.b16 %v2031, %v2030
  %v2049 = vpack.c.b16 %v2033, %v2032
  %2066 = vmatprep.subr.bf16.mxu0 0
  %2067 = vmatpush1.bf16.msra.mxu0 %v2041
  %2068 = vmatprep.subr.bf16.mxu0 0
  %2069 = vmatpush1.bf16.msra.mxu0 %v2040
  %2070 = vmatprep.subr.bf16.mxu0 0
  %2071 = vmatpush1.bf16.msra.mxu0 %v2039
  %2072 = vmatprep.subr.bf16.mxu0 0
  %2073 = vmatpush1.bf16.msra.mxu0 %v2038
  %2074 = vmatprep.subr.bf16.mxu0 0
  %2075 = vmatpush1.bf16.msra.mxu0 %v2037
  %2076 = vmatprep.subr.bf16.mxu0 0
  %2077 = vmatpush1.bf16.msra.mxu0 %v2036
  %2078 = vmatprep.subr.bf16.mxu0 0
  %2079 = vmatpush1.bf16.msra.mxu0 %v2035
  %2080 = vmatprep.subr.bf16.mxu0 0
  %2081 = vmatpush1.bf16.msra.mxu0 %v2034
  %2082 = vmatprep.subr.bf16.mxu0 0
  %2083 = vmatpush2.bf16.msra.mxu0 %v2049
  %2084 = vmatprep.subr.bf16.mxu0 0
  %2085 = vmatpush2.bf16.msra.mxu0 %v2048
  %2086 = vmatprep.subr.bf16.mxu0 0
  %2087 = vmatpush2.bf16.msra.mxu0 %v2047
  %2088 = vmatprep.subr.bf16.mxu0 0
  %2089 = vmatpush2.bf16.msra.mxu0 %v2046
  %2090 = vmatprep.subr.bf16.mxu0 0
  %2091 = vmatpush2.bf16.msra.mxu0 %v2045
  %2092 = vmatprep.subr.bf16.mxu0 0
  %2093 = vmatpush2.bf16.msra.mxu0 %v2044
  %2094 = vmatprep.subr.bf16.mxu0 0
  %2095 = vmatpush2.bf16.msra.mxu0 %v2043
  %2096 = vmatprep.subr.bf16.mxu0 0
  %2097 = vmatpush2.bf16.msra.mxu0 %v2042
  %2098 = vmatprep.mubr.bf16.mxu0 %v1939
  %2099 = vmatmul.mubr.bf16.gmra.mxu0 %v1938
  %v2100 = vpop.f32.mrf.mxu0
  %v2101 = vadd.f32 %v1888, %v2100
  %v2102 = vpop.f32.mrf.mxu0
  %v2103 = vpop.f32.mrf.mxu0
  %v2104 = vadd.f32 %v1888, %v2103
  %v2105 = vpop.f32.mrf.mxu0
  %2106 = vmatprep.mubr.bf16.mxu0 %v1941
  %2107 = vmatmul.mubr.bf16.gmra.mxu0 %v1940
  %v2108 = vpop.f32.mrf.mxu0
  %v2109 = vadd.f32 %v1888, %v2108
  %v2110 = vpop.f32.mrf.mxu0
  %v2111 = vpop.f32.mrf.mxu0
  %v2112 = vadd.f32 %v1888, %v2111
  %v2113 = vpop.f32.mrf.mxu0
  %2114 = vmatprep.mubr.bf16.mxu0 %v1943
  %2115 = vmatmul.mubr.bf16.gmra.mxu0 %v1942
  %v2116 = vpop.f32.mrf.mxu0
  %v2117 = vadd.f32 %v1888, %v2116
  %v2118 = vpop.f32.mrf.mxu0
  %v2119 = vpop.f32.mrf.mxu0
  %v2120 = vadd.f32 %v1888, %v2119
  %v2121 = vpop.f32.mrf.mxu0
  %2122 = vmatprep.mubr.bf16.mxu0 %v1945
  %2123 = vmatmul.mubr.bf16.gmra.mxu0 %v1944
  %v2124 = vpop.f32.mrf.mxu0
  %v2125 = vadd.f32 %v1888, %v2124
  %v2126 = vpop.f32.mrf.mxu0
  %v2127 = vpop.f32.mrf.mxu0
  %v2128 = vadd.f32 %v1888, %v2127
  %v2129 = vpop.f32.mrf.mxu0
  %2130 = vmatprep.mubr.bf16.mxu0 %v1947
  %2131 = vmatmul.mubr.bf16.gmra.mxu0 %v1946
  %v2132 = vpop.f32.mrf.mxu0
  %v2133 = vadd.f32 %v1888, %v2132
  %v2134 = vpop.f32.mrf.mxu0
  %v2135 = vpop.f32.mrf.mxu0
  %v2136 = vadd.f32 %v1888, %v2135
  %v2137 = vpop.f32.mrf.mxu0
  %2138 = vmatprep.mubr.bf16.mxu0 %v1949
  %2139 = vmatmul.mubr.bf16.gmra.mxu0 %v1948
  %v2140 = vpop.f32.mrf.mxu0
  %v2141 = vadd.f32 %v1888, %v2140
  %v2142 = vpop.f32.mrf.mxu0
  %v2143 = vpop.f32.mrf.mxu0
  %v2144 = vadd.f32 %v1888, %v2143
  %v2145 = vpop.f32.mrf.mxu0
  %2146 = vmatprep.mubr.bf16.mxu0 %v1951
  %2147 = vmatmul.mubr.bf16.gmra.mxu0 %v1950
  %v2148 = vpop.f32.mrf.mxu0
  %v2149 = vadd.f32 %v1888, %v2148
  %v2150 = vpop.f32.mrf.mxu0
  %v2151 = vpop.f32.mrf.mxu0
  %v2152 = vadd.f32 %v1888, %v2151
  %v2153 = vpop.f32.mrf.mxu0
  %2154 = vmatprep.mubr.bf16.mxu0 %v1953
  %2155 = vmatmul.mubr.bf16.gmra.mxu0 %v1952
  %v2156 = vpop.f32.mrf.mxu0
  %v2157 = vadd.f32 %v1888, %v2156
  %v2158 = vpop.f32.mrf.mxu0
  %v2159 = vpop.f32.mrf.mxu0
  %v2160 = vadd.f32 %v1888, %v2159
  %v2161 = vpop.f32.mrf.mxu0
  %2162 = vdwg.mxu0
  %v2163 = vmax.f32 %v2101, 0.0
  %v2164 = vmax.f32 %v2104, 0.0
  %v2165 = vmax.f32 %v2109, 0.0
  %v2166 = vmax.f32 %v2112, 0.0
  %v2167 = vmax.f32 %v2117, 0.0
  %v2168 = vmax.f32 %v2120, 0.0
  %v2169 = vmax.f32 %v2125, 0.0
  %v2170 = vmax.f32 %v2128, 0.0
  %v2171 = vmax.f32 %v2133, 0.0
  %v2172 = vmax.f32 %v2136, 0.0
  %v2173 = vmax.f32 %v2141, 0.0
  %v2174 = vmax.f32 %v2144, 0.0
  %v2175 = vmax.f32 %v2149, 0.0
  %v2176 = vmax.f32 %v2152, 0.0
  %v2177 = vmax.f32 %v2157, 0.0
  %v2178 = vmax.f32 %v2160, 0.0
  %v2179 = vpack.c.bf16 %v2164, %v2163
  %v2180 = vpack.c.bf16 %v2166, %v2165
  %v2181 = vpack.c.bf16 %v2168, %v2167
  %v2182 = vpack.c.bf16 %v2170, %v2169
  %v2183 = vpack.c.bf16 %v2172, %v2171
  %v2184 = vpack.c.bf16 %v2174, %v2173
  %v2185 = vpack.c.bf16 %v2176, %v2175
  %v2186 = vpack.c.bf16 %v2178, %v2177
  %v2195 = vunpack.c.l.b16 %v2179
  %v2196 = vunpack.c.h.b16 %v2179
  %v2197 = vunpack.c.l.b16 %v2180
  %v2198 = vunpack.c.h.b16 %v2180
  %v2199 = vunpack.c.l.b16 %v2181
  %v2200 = vunpack.c.h.b16 %v2181
  %v2201 = vunpack.c.l.b16 %v2182
  %v2202 = vunpack.c.h.b16 %v2182
  %v2203 = vunpack.c.l.b16 %v2183
  %v2204 = vunpack.c.h.b16 %v2183
  %v2205 = vunpack.c.l.b16 %v2184
  %v2206 = vunpack.c.h.b16 %v2184
  %v2207 = vunpack.c.l.b16 %v2185
  %v2208 = vunpack.c.h.b16 %v2185
  %v2209 = vunpack.c.l.b16 %v2186
  %v2210 = vunpack.c.h.b16 %v2186
  %v2211 = vpack.c.b16 %v2195, %v2195
  %v2212 = vpack.c.b16 %v2196, %v2196
  %v2213 = vpack.c.b16 %v2197, %v2197
  %v2214 = vpack.c.b16 %v2198, %v2198
  %v2215 = vpack.c.b16 %v2199, %v2199
  %v2216 = vpack.c.b16 %v2200, %v2200
  %v2217 = vpack.c.b16 %v2201, %v2201
  %v2218 = vpack.c.b16 %v2202, %v2202
  %v2219 = vpack.c.b16 %v2203, %v2203
  %v2220 = vpack.c.b16 %v2204, %v2204
  %v2221 = vpack.c.b16 %v2205, %v2205
  %v2222 = vpack.c.b16 %v2206, %v2206
  %v2223 = vpack.c.b16 %v2207, %v2207
  %v2224 = vpack.c.b16 %v2208, %v2208
  %v2225 = vpack.c.b16 %v2209, %v2209
  %v2226 = vpack.c.b16 %v2210, %v2210
  %2243 = vst.msk [vmem:[#allocation2 + $0x4] sm:$0xf] %vm447, %v2211
  %2244 = vst.msk [vmem:[#allocation2 + $0x14] sm:$0xf] %vm447, %v2212
  %2245 = vst.msk [vmem:[#allocation2 + $0x24] sm:$0xf] %vm447, %v2213
  %2246 = vst.msk [vmem:[#allocation2 + $0x34] sm:$0xf] %vm447, %v2214
  %2247 = vst.msk [vmem:[#allocation2 + $0x44] sm:$0xf] %vm447, %v2215
  %2248 = vst.msk [vmem:[#allocation2 + $0x54] sm:$0xf] %vm447, %v2216
  %2249 = vst.msk [vmem:[#allocation2 + $0x64] sm:$0xf] %vm447, %v2217
  %2250 = vst.msk [vmem:[#allocation2 + $0x74] sm:$0xf] %vm447, %v2218
  %2251 = vst.msk [vmem:[#allocation2 + $0x84] sm:$0xf] %vm447, %v2219
  %2252 = vst.msk [vmem:[#allocation2 + $0x94] sm:$0xf] %vm447, %v2220
  %2253 = vst.msk [vmem:[#allocation2 + $0xa4] sm:$0xf] %vm447, %v2221
  %2254 = vst.msk [vmem:[#allocation2 + $0xb4] sm:$0xf] %vm447, %v2222
  %2255 = vst.msk [vmem:[#allocation2 + $0xc4] sm:$0xf] %vm447, %v2223
  %2256 = vst.msk [vmem:[#allocation2 + $0xd4] sm:$0xf] %vm447, %v2224
  %2257 = vst.msk [vmem:[#allocation2 + $0xe4] sm:$0xf] %vm447, %v2225
  %2258 = vst.msk [vmem:[#allocation2 + $0xf4] sm:$0xf] %vm447, %v2226
  %v2259 = vld [vmem:[%s0 + $0x280] sm:$0xff]
  %v2260 = vld [vmem:[%s0 + $0x288] sm:$0xff]
  %v2261 = vld [vmem:[%s0 + $0x290] sm:$0xff]
  %v2262 = vld [vmem:[%s0 + $0x298] sm:$0xff]
  %v2263 = vld [vmem:[%s0 + $0x2a0] sm:$0xff]
  %v2264 = vld [vmem:[%s0 + $0x2a8] sm:$0xff]
  %v2265 = vld [vmem:[%s0 + $0x2b0] sm:$0xff]
  %v2266 = vld [vmem:[%s0 + $0x2b8] sm:$0xff]
  %v2267 = vld [vmem:[%s0 + $0x2c0] sm:$0xff]
  %v2268 = vld [vmem:[%s0 + $0x2c8] sm:$0xff]
  %v2269 = vld [vmem:[%s0 + $0x2d0] sm:$0xff]
  %v2270 = vld [vmem:[%s0 + $0x2d8] sm:$0xff]
  %v2271 = vld [vmem:[%s0 + $0x2e0] sm:$0xff]
  %v2272 = vld [vmem:[%s0 + $0x2e8] sm:$0xff]
  %v2273 = vld [vmem:[%s0 + $0x2f0] sm:$0xff]
  %v2274 = vld [vmem:[%s0 + $0x2f8] sm:$0xff]
  %v2275 = vld [vmem:[%s1] sm:$0xf]
  %v2276 = vld [vmem:[%s1 + $0x4] sm:$0xf]
  %v2277 = vld [vmem:[%s1 + $0x8] sm:$0xf]
  %v2278 = vld [vmem:[%s1 + $0xc] sm:$0xf]
  %v2279 = vld [vmem:[%s1 + $0x10] sm:$0xf]
  %v2280 = vld [vmem:[%s1 + $0x14] sm:$0xf]
  %v2281 = vld [vmem:[%s1 + $0x18] sm:$0xf]
  %v2282 = vld [vmem:[%s1 + $0x1c] sm:$0xf]
  %v2283 = vld [vmem:[%s1 + $0x20] sm:$0xf]
  %v2284 = vld [vmem:[%s1 + $0x24] sm:$0xf]
  %v2285 = vld [vmem:[%s1 + $0x28] sm:$0xf]
  %v2286 = vld [vmem:[%s1 + $0x2c] sm:$0xf]
  %v2287 = vld [vmem:[%s1 + $0x30] sm:$0xf]
  %v2288 = vld [vmem:[%s1 + $0x34] sm:$0xf]
  %v2289 = vld [vmem:[%s1 + $0x38] sm:$0xf]
  %v2290 = vld [vmem:[%s1 + $0x3c] sm:$0xf]
  %v2291 = vld [vmem:[%s1 + $0x40] sm:$0xf]
  %v2292 = vld [vmem:[%s1 + $0x44] sm:$0xf]
  %v2293 = vld [vmem:[%s1 + $0x48] sm:$0xf]
  %v2294 = vld [vmem:[%s1 + $0x4c] sm:$0xf]
  %v2295 = vld [vmem:[%s1 + $0x50] sm:$0xf]
  %v2296 = vld [vmem:[%s1 + $0x54] sm:$0xf]
  %v2297 = vld [vmem:[%s1 + $0x58] sm:$0xf]
  %v2298 = vld [vmem:[%s1 + $0x5c] sm:$0xf]
  %v2299 = vld [vmem:[%s1 + $0x60] sm:$0xf]
  %v2300 = vld [vmem:[%s1 + $0x64] sm:$0xf]
  %v2301 = vld [vmem:[%s1 + $0x68] sm:$0xf]
  %v2302 = vld [vmem:[%s1 + $0x6c] sm:$0xf]
  %v2303 = vld [vmem:[%s1 + $0x70] sm:$0xf]
  %v2304 = vld [vmem:[%s1 + $0x74] sm:$0xf]
  %v2305 = vld [vmem:[%s1 + $0x78] sm:$0xf]
  %v2306 = vld [vmem:[%s1 + $0x7c] sm:$0xf]
  %v2307 = vld [vmem:[%s2] sm:$0x1]
  %v2309 = vlaneseq
  %v2310 = vshrl.u32 %v2309, 7
  %v2311 = vsub.s32 0, %v2310
  %v2312 = vrot.slane %v2307, %v2311
  %v2330 = vunpack.c.l.b16 %v2259
  %v2331 = vunpack.c.h.b16 %v2259
  %v2332 = vunpack.c.l.b16 %v2260
  %v2333 = vunpack.c.h.b16 %v2260
  %v2334 = vunpack.c.l.b16 %v2261
  %v2335 = vunpack.c.h.b16 %v2261
  %v2336 = vunpack.c.l.b16 %v2262
  %v2337 = vunpack.c.h.b16 %v2262
  %v2338 = vunpack.c.l.b16 %v2263
  %v2339 = vunpack.c.h.b16 %v2263
  %v2340 = vunpack.c.l.b16 %v2264
  %v2341 = vunpack.c.h.b16 %v2264
  %v2342 = vunpack.c.l.b16 %v2265
  %v2343 = vunpack.c.h.b16 %v2265
  %v2344 = vunpack.c.l.b16 %v2266
  %v2345 = vunpack.c.h.b16 %v2266
  %v2346 = vunpack.c.l.b16 %v2267
  %v2347 = vunpack.c.h.b16 %v2267
  %v2348 = vunpack.c.l.b16 %v2268
  %v2349 = vunpack.c.h.b16 %v2268
  %v2350 = vunpack.c.l.b16 %v2269
  %v2351 = vunpack.c.h.b16 %v2269
  %v2352 = vunpack.c.l.b16 %v2270
  %v2353 = vunpack.c.h.b16 %v2270
  %v2354 = vunpack.c.l.b16 %v2271
  %v2355 = vunpack.c.h.b16 %v2271
  %v2356 = vunpack.c.l.b16 %v2272
  %v2357 = vunpack.c.h.b16 %v2272
  %v2358 = vunpack.c.l.b16 %v2273
  %v2359 = vunpack.c.h.b16 %v2273
  %v2360 = vunpack.c.l.b16 %v2274
  %v2361 = vunpack.c.h.b16 %v2274
  %v2362 = vpack.c.b16 %v2332, %v2330
  %v2363 = vpack.c.b16 %v2333, %v2331
  %v2364 = vpack.c.b16 %v2336, %v2334
  %v2365 = vpack.c.b16 %v2337, %v2335
  %v2366 = vpack.c.b16 %v2340, %v2338
  %v2367 = vpack.c.b16 %v2341, %v2339
  %v2368 = vpack.c.b16 %v2344, %v2342
  %v2369 = vpack.c.b16 %v2345, %v2343
  %v2370 = vpack.c.b16 %v2348, %v2346
  %v2371 = vpack.c.b16 %v2349, %v2347
  %v2372 = vpack.c.b16 %v2352, %v2350
  %v2373 = vpack.c.b16 %v2353, %v2351
  %v2374 = vpack.c.b16 %v2356, %v2354
  %v2375 = vpack.c.b16 %v2357, %v2355
  %v2376 = vpack.c.b16 %v2360, %v2358
  %v2377 = vpack.c.b16 %v2361, %v2359
  %v2426 = vunpack.c.l.b16 %v2275
  %v2427 = vunpack.c.l.b16 %v2276
  %v2428 = vunpack.c.l.b16 %v2277
  %v2429 = vunpack.c.l.b16 %v2278
  %v2430 = vunpack.c.l.b16 %v2279
  %v2431 = vunpack.c.l.b16 %v2280
  %v2432 = vunpack.c.l.b16 %v2281
  %v2433 = vunpack.c.l.b16 %v2282
  %v2434 = vunpack.c.l.b16 %v2283
  %v2435 = vunpack.c.l.b16 %v2284
  %v2436 = vunpack.c.l.b16 %v2285
  %v2437 = vunpack.c.l.b16 %v2286
  %v2438 = vunpack.c.l.b16 %v2287
  %v2439 = vunpack.c.l.b16 %v2288
  %v2440 = vunpack.c.l.b16 %v2289
  %v2441 = vunpack.c.l.b16 %v2290
  %v2442 = vunpack.c.l.b16 %v2291
  %v2443 = vunpack.c.l.b16 %v2292
  %v2444 = vunpack.c.l.b16 %v2293
  %v2445 = vunpack.c.l.b16 %v2294
  %v2446 = vunpack.c.l.b16 %v2295
  %v2447 = vunpack.c.l.b16 %v2296
  %v2448 = vunpack.c.l.b16 %v2297
  %v2449 = vunpack.c.l.b16 %v2298
  %v2450 = vunpack.c.l.b16 %v2299
  %v2451 = vunpack.c.l.b16 %v2300
  %v2452 = vunpack.c.l.b16 %v2301
  %v2453 = vunpack.c.l.b16 %v2302
  %v2454 = vunpack.c.l.b16 %v2303
  %v2455 = vunpack.c.l.b16 %v2304
  %v2456 = vunpack.c.l.b16 %v2305
  %v2457 = vunpack.c.l.b16 %v2306
  %v2458 = vpack.c.b16 %v2427, %v2426
  %v2459 = vpack.c.b16 %v2429, %v2428
  %v2460 = vpack.c.b16 %v2431, %v2430
  %v2461 = vpack.c.b16 %v2433, %v2432
  %v2462 = vpack.c.b16 %v2435, %v2434
  %v2463 = vpack.c.b16 %v2437, %v2436
  %v2464 = vpack.c.b16 %v2439, %v2438
  %v2465 = vpack.c.b16 %v2441, %v2440
  %v2466 = vpack.c.b16 %v2443, %v2442
  %v2467 = vpack.c.b16 %v2445, %v2444
  %v2468 = vpack.c.b16 %v2447, %v2446
  %v2469 = vpack.c.b16 %v2449, %v2448
  %v2470 = vpack.c.b16 %v2451, %v2450
  %v2471 = vpack.c.b16 %v2453, %v2452
  %v2472 = vpack.c.b16 %v2455, %v2454
  %v2473 = vpack.c.b16 %v2457, %v2456
  %2490 = vmatprep.subr.bf16.mxu0 0
  %2491 = vmatpush1.bf16.msra.mxu0 %v2465
  %2492 = vmatprep.subr.bf16.mxu0 0
  %2493 = vmatpush1.bf16.msra.mxu0 %v2464
  %2494 = vmatprep.subr.bf16.mxu0 0
  %2495 = vmatpush1.bf16.msra.mxu0 %v2463
  %2496 = vmatprep.subr.bf16.mxu0 0
  %2497 = vmatpush1.bf16.msra.mxu0 %v2462
  %2498 = vmatprep.subr.bf16.mxu0 0
  %2499 = vmatpush1.bf16.msra.mxu0 %v2461
  %2500 = vmatprep.subr.bf16.mxu0 0
  %2501 = vmatpush1.bf16.msra.mxu0 %v2460
  %2502 = vmatprep.subr.bf16.mxu0 0
  %2503 = vmatpush1.bf16.msra.mxu0 %v2459
  %2504 = vmatprep.subr.bf16.mxu0 0
  %2505 = vmatpush1.bf16.msra.mxu0 %v2458
  %2506 = vmatprep.subr.bf16.mxu0 0
  %2507 = vmatpush2.bf16.msra.mxu0 %v2473
  %2508 = vmatprep.subr.bf16.mxu0 0
  %2509 = vmatpush2.bf16.msra.mxu0 %v2472
  %2510 = vmatprep.subr.bf16.mxu0 0
  %2511 = vmatpush2.bf16.msra.mxu0 %v2471
  %2512 = vmatprep.subr.bf16.mxu0 0
  %2513 = vmatpush2.bf16.msra.mxu0 %v2470
  %2514 = vmatprep.subr.bf16.mxu0 0
  %2515 = vmatpush2.bf16.msra.mxu0 %v2469
  %2516 = vmatprep.subr.bf16.mxu0 0
  %2517 = vmatpush2.bf16.msra.mxu0 %v2468
  %2518 = vmatprep.subr.bf16.mxu0 0
  %2519 = vmatpush2.bf16.msra.mxu0 %v2467
  %2520 = vmatprep.subr.bf16.mxu0 0
  %2521 = vmatpush2.bf16.msra.mxu0 %v2466
  %2522 = vmatprep.mubr.bf16.mxu0 %v2363
  %2523 = vmatmul.mubr.bf16.gmra.mxu0 %v2362
  %v2524 = vpop.f32.mrf.mxu0
  %v2525 = vadd.f32 %v2312, %v2524
  %v2526 = vpop.f32.mrf.mxu0
  %v2527 = vpop.f32.mrf.mxu0
  %v2528 = vadd.f32 %v2312, %v2527
  %v2529 = vpop.f32.mrf.mxu0
  %2530 = vmatprep.mubr.bf16.mxu0 %v2365
  %2531 = vmatmul.mubr.bf16.gmra.mxu0 %v2364
  %v2532 = vpop.f32.mrf.mxu0
  %v2533 = vadd.f32 %v2312, %v2532
  %v2534 = vpop.f32.mrf.mxu0
  %v2535 = vpop.f32.mrf.mxu0
  %v2536 = vadd.f32 %v2312, %v2535
  %v2537 = vpop.f32.mrf.mxu0
  %2538 = vmatprep.mubr.bf16.mxu0 %v2367
  %2539 = vmatmul.mubr.bf16.gmra.mxu0 %v2366
  %v2540 = vpop.f32.mrf.mxu0
  %v2541 = vadd.f32 %v2312, %v2540
  %v2542 = vpop.f32.mrf.mxu0
  %v2543 = vpop.f32.mrf.mxu0
  %v2544 = vadd.f32 %v2312, %v2543
  %v2545 = vpop.f32.mrf.mxu0
  %2546 = vmatprep.mubr.bf16.mxu0 %v2369
  %2547 = vmatmul.mubr.bf16.gmra.mxu0 %v2368
  %v2548 = vpop.f32.mrf.mxu0
  %v2549 = vadd.f32 %v2312, %v2548
  %v2550 = vpop.f32.mrf.mxu0
  %v2551 = vpop.f32.mrf.mxu0
  %v2552 = vadd.f32 %v2312, %v2551
  %v2553 = vpop.f32.mrf.mxu0
  %2554 = vmatprep.mubr.bf16.mxu0 %v2371
  %2555 = vmatmul.mubr.bf16.gmra.mxu0 %v2370
  %v2556 = vpop.f32.mrf.mxu0
  %v2557 = vadd.f32 %v2312, %v2556
  %v2558 = vpop.f32.mrf.mxu0
  %v2559 = vpop.f32.mrf.mxu0
  %v2560 = vadd.f32 %v2312, %v2559
  %v2561 = vpop.f32.mrf.mxu0
  %2562 = vmatprep.mubr.bf16.mxu0 %v2373
  %2563 = vmatmul.mubr.bf16.gmra.mxu0 %v2372
  %v2564 = vpop.f32.mrf.mxu0
  %v2565 = vadd.f32 %v2312, %v2564
  %v2566 = vpop.f32.mrf.mxu0
  %v2567 = vpop.f32.mrf.mxu0
  %v2568 = vadd.f32 %v2312, %v2567
  %v2569 = vpop.f32.mrf.mxu0
  %2570 = vmatprep.mubr.bf16.mxu0 %v2375
  %2571 = vmatmul.mubr.bf16.gmra.mxu0 %v2374
  %v2572 = vpop.f32.mrf.mxu0
  %v2573 = vadd.f32 %v2312, %v2572
  %v2574 = vpop.f32.mrf.mxu0
  %v2575 = vpop.f32.mrf.mxu0
  %v2576 = vadd.f32 %v2312, %v2575
  %v2577 = vpop.f32.mrf.mxu0
  %2578 = vmatprep.mubr.bf16.mxu0 %v2377
  %2579 = vmatmul.mubr.bf16.gmra.mxu0 %v2376
  %v2580 = vpop.f32.mrf.mxu0
  %v2581 = vadd.f32 %v2312, %v2580
  %v2582 = vpop.f32.mrf.mxu0
  %v2583 = vpop.f32.mrf.mxu0
  %v2584 = vadd.f32 %v2312, %v2583
  %v2585 = vpop.f32.mrf.mxu0
  %2586 = vdwg.mxu0
  %v2587 = vmax.f32 %v2525, 0.0
  %v2588 = vmax.f32 %v2528, 0.0
  %v2589 = vmax.f32 %v2533, 0.0
  %v2590 = vmax.f32 %v2536, 0.0
  %v2591 = vmax.f32 %v2541, 0.0
  %v2592 = vmax.f32 %v2544, 0.0
  %v2593 = vmax.f32 %v2549, 0.0
  %v2594 = vmax.f32 %v2552, 0.0
  %v2595 = vmax.f32 %v2557, 0.0
  %v2596 = vmax.f32 %v2560, 0.0
  %v2597 = vmax.f32 %v2565, 0.0
  %v2598 = vmax.f32 %v2568, 0.0
  %v2599 = vmax.f32 %v2573, 0.0
  %v2600 = vmax.f32 %v2576, 0.0
  %v2601 = vmax.f32 %v2581, 0.0
  %v2602 = vmax.f32 %v2584, 0.0
  %v2603 = vpack.c.bf16 %v2588, %v2587
  %v2604 = vpack.c.bf16 %v2590, %v2589
  %v2605 = vpack.c.bf16 %v2592, %v2591
  %v2606 = vpack.c.bf16 %v2594, %v2593
  %v2607 = vpack.c.bf16 %v2596, %v2595
  %v2608 = vpack.c.bf16 %v2598, %v2597
  %v2609 = vpack.c.bf16 %v2600, %v2599
  %v2610 = vpack.c.bf16 %v2602, %v2601
  %v2619 = vunpack.c.l.b16 %v2603
  %v2620 = vunpack.c.h.b16 %v2603
  %v2621 = vunpack.c.l.b16 %v2604
  %v2622 = vunpack.c.h.b16 %v2604
  %v2623 = vunpack.c.l.b16 %v2605
  %v2624 = vunpack.c.h.b16 %v2605
  %v2625 = vunpack.c.l.b16 %v2606
  %v2626 = vunpack.c.h.b16 %v2606
  %v2627 = vunpack.c.l.b16 %v2607
  %v2628 = vunpack.c.h.b16 %v2607
  %v2629 = vunpack.c.l.b16 %v2608
  %v2630 = vunpack.c.h.b16 %v2608
  %v2631 = vunpack.c.l.b16 %v2609
  %v2632 = vunpack.c.h.b16 %v2609
  %v2633 = vunpack.c.l.b16 %v2610
  %v2634 = vunpack.c.h.b16 %v2610
  %v2635 = vpack.c.b16 %v2619, %v2619
  %v2636 = vpack.c.b16 %v2620, %v2620
  %v2637 = vpack.c.b16 %v2621, %v2621
  %v2638 = vpack.c.b16 %v2622, %v2622
  %v2639 = vpack.c.b16 %v2623, %v2623
  %v2640 = vpack.c.b16 %v2624, %v2624
  %v2641 = vpack.c.b16 %v2625, %v2625
  %v2642 = vpack.c.b16 %v2626, %v2626
  %v2643 = vpack.c.b16 %v2627, %v2627
  %v2644 = vpack.c.b16 %v2628, %v2628
  %v2645 = vpack.c.b16 %v2629, %v2629
  %v2646 = vpack.c.b16 %v2630, %v2630
  %v2647 = vpack.c.b16 %v2631, %v2631
  %v2648 = vpack.c.b16 %v2632, %v2632
  %v2649 = vpack.c.b16 %v2633, %v2633
  %v2650 = vpack.c.b16 %v2634, %v2634
  %2651 = vrot.lane.b32.xlu0 %v2635, 32
  %v2652 = vpop.permute.xlu0 %2651
  %2653 = vrot.lane.b32.xlu0 %v2636, 32
  %v2654 = vpop.permute.xlu0 %2653
  %2655 = vrot.lane.b32.xlu0 %v2637, 32
  %v2656 = vpop.permute.xlu0 %2655
  %2657 = vrot.lane.b32.xlu0 %v2638, 32
  %v2658 = vpop.permute.xlu0 %2657
  %2659 = vrot.lane.b32.xlu0 %v2639, 32
  %v2660 = vpop.permute.xlu0 %2659
  %2661 = vrot.lane.b32.xlu0 %v2640, 32
  %v2662 = vpop.permute.xlu0 %2661
  %2663 = vrot.lane.b32.xlu0 %v2641, 32
  %v2664 = vpop.permute.xlu0 %2663
  %2665 = vrot.lane.b32.xlu0 %v2642, 32
  %v2666 = vpop.permute.xlu0 %2665
  %2667 = vrot.lane.b32.xlu0 %v2643, 32
  %v2668 = vpop.permute.xlu0 %2667
  %2669 = vrot.lane.b32.xlu0 %v2644, 32
  %v2670 = vpop.permute.xlu0 %2669
  %2671 = vrot.lane.b32.xlu0 %v2645, 32
  %v2672 = vpop.permute.xlu0 %2671
  %2673 = vrot.lane.b32.xlu0 %v2646, 32
  %v2674 = vpop.permute.xlu0 %2673
  %2675 = vrot.lane.b32.xlu0 %v2647, 32
  %v2676 = vpop.permute.xlu0 %2675
  %2677 = vrot.lane.b32.xlu0 %v2648, 32
  %v2678 = vpop.permute.xlu0 %2677
  %2679 = vrot.lane.b32.xlu0 %v2649, 32
  %v2680 = vpop.permute.xlu0 %2679
  %2681 = vrot.lane.b32.xlu0 %v2650, 32
  %v2682 = vpop.permute.xlu0 %2681
  %2699 = vst.msk [vmem:[#allocation2 + $0x4] sm:$0xf] %vm904, %v2652
  %2700 = vst.msk [vmem:[#allocation2 + $0x14] sm:$0xf] %vm904, %v2654
  %2701 = vst.msk [vmem:[#allocation2 + $0x24] sm:$0xf] %vm904, %v2656
  %2702 = vst.msk [vmem:[#allocation2 + $0x34] sm:$0xf] %vm904, %v2658
  %2703 = vst.msk [vmem:[#allocation2 + $0x44] sm:$0xf] %vm904, %v2660
  %2704 = vst.msk [vmem:[#allocation2 + $0x54] sm:$0xf] %vm904, %v2662
  %2705 = vst.msk [vmem:[#allocation2 + $0x64] sm:$0xf] %vm904, %v2664
  %2706 = vst.msk [vmem:[#allocation2 + $0x74] sm:$0xf] %vm904, %v2666
  %2707 = vst.msk [vmem:[#allocation2 + $0x84] sm:$0xf] %vm904, %v2668
  %2708 = vst.msk [vmem:[#allocation2 + $0x94] sm:$0xf] %vm904, %v2670
  %2709 = vst.msk [vmem:[#allocation2 + $0xa4] sm:$0xf] %vm904, %v2672
  %2710 = vst.msk [vmem:[#allocation2 + $0xb4] sm:$0xf] %vm904, %v2674
  %2711 = vst.msk [vmem:[#allocation2 + $0xc4] sm:$0xf] %vm904, %v2676
  %2712 = vst.msk [vmem:[#allocation2 + $0xd4] sm:$0xf] %vm904, %v2678
  %2713 = vst.msk [vmem:[#allocation2 + $0xe4] sm:$0xf] %vm904, %v2680
  %2714 = vst.msk [vmem:[#allocation2 + $0xf4] sm:$0xf] %vm904, %v2682
  %v2715 = vld [vmem:[%s0 + $0x300] sm:$0xff]
  %v2716 = vld [vmem:[%s0 + $0x308] sm:$0xff]
  %v2717 = vld [vmem:[%s0 + $0x310] sm:$0xff]
  %v2718 = vld [vmem:[%s0 + $0x318] sm:$0xff]
  %v2719 = vld [vmem:[%s0 + $0x320] sm:$0xff]
  %v2720 = vld [vmem:[%s0 + $0x328] sm:$0xff]
  %v2721 = vld [vmem:[%s0 + $0x330] sm:$0xff]
  %v2722 = vld [vmem:[%s0 + $0x338] sm:$0xff]
  %v2723 = vld [vmem:[%s0 + $0x340] sm:$0xff]
  %v2724 = vld [vmem:[%s0 + $0x348] sm:$0xff]
  %v2725 = vld [vmem:[%s0 + $0x350] sm:$0xff]
  %v2726 = vld [vmem:[%s0 + $0x358] sm:$0xff]
  %v2727 = vld [vmem:[%s0 + $0x360] sm:$0xff]
  %v2728 = vld [vmem:[%s0 + $0x368] sm:$0xff]
  %v2729 = vld [vmem:[%s0 + $0x370] sm:$0xff]
  %v2730 = vld [vmem:[%s0 + $0x378] sm:$0xff]
  %v2731 = vld [vmem:[%s1] sm:$0xf]
  %v2732 = vld [vmem:[%s1 + $0x4] sm:$0xf]
  %v2733 = vld [vmem:[%s1 + $0x8] sm:$0xf]
  %v2734 = vld [vmem:[%s1 + $0xc] sm:$0xf]
  %v2735 = vld [vmem:[%s1 + $0x10] sm:$0xf]
  %v2736 = vld [vmem:[%s1 + $0x14] sm:$0xf]
  %v2737 = vld [vmem:[%s1 + $0x18] sm:$0xf]
  %v2738 = vld [vmem:[%s1 + $0x1c] sm:$0xf]
  %v2739 = vld [vmem:[%s1 + $0x20] sm:$0xf]
  %v2740 = vld [vmem:[%s1 + $0x24] sm:$0xf]
  %v2741 = vld [vmem:[%s1 + $0x28] sm:$0xf]
  %v2742 = vld [vmem:[%s1 + $0x2c] sm:$0xf]
  %v2743 = vld [vmem:[%s1 + $0x30] sm:$0xf]
  %v2744 = vld [vmem:[%s1 + $0x34] sm:$0xf]
  %v2745 = vld [vmem:[%s1 + $0x38] sm:$0xf]
  %v2746 = vld [vmem:[%s1 + $0x3c] sm:$0xf]
  %v2747 = vld [vmem:[%s1 + $0x40] sm:$0xf]
  %v2748 = vld [vmem:[%s1 + $0x44] sm:$0xf]
  %v2749 = vld [vmem:[%s1 + $0x48] sm:$0xf]
  %v2750 = vld [vmem:[%s1 + $0x4c] sm:$0xf]
  %v2751 = vld [vmem:[%s1 + $0x50] sm:$0xf]
  %v2752 = vld [vmem:[%s1 + $0x54] sm:$0xf]
  %v2753 = vld [vmem:[%s1 + $0x58] sm:$0xf]
  %v2754 = vld [vmem:[%s1 + $0x5c] sm:$0xf]
  %v2755 = vld [vmem:[%s1 + $0x60] sm:$0xf]
  %v2756 = vld [vmem:[%s1 + $0x64] sm:$0xf]
  %v2757 = vld [vmem:[%s1 + $0x68] sm:$0xf]
  %v2758 = vld [vmem:[%s1 + $0x6c] sm:$0xf]
  %v2759 = vld [vmem:[%s1 + $0x70] sm:$0xf]
  %v2760 = vld [vmem:[%s1 + $0x74] sm:$0xf]
  %v2761 = vld [vmem:[%s1 + $0x78] sm:$0xf]
  %v2762 = vld [vmem:[%s1 + $0x7c] sm:$0xf]
  %v2763 = vld [vmem:[%s2] sm:$0x1]
  %v2765 = vlaneseq
  %v2766 = vshrl.u32 %v2765, 7
  %v2767 = vsub.s32 0, %v2766
  %v2768 = vrot.slane %v2763, %v2767
  %v2786 = vunpack.c.l.b16 %v2715
  %v2787 = vunpack.c.h.b16 %v2715
  %v2788 = vunpack.c.l.b16 %v2716
  %v2789 = vunpack.c.h.b16 %v2716
  %v2790 = vunpack.c.l.b16 %v2717
  %v2791 = vunpack.c.h.b16 %v2717
  %v2792 = vunpack.c.l.b16 %v2718
  %v2793 = vunpack.c.h.b16 %v2718
  %v2794 = vunpack.c.l.b16 %v2719
  %v2795 = vunpack.c.h.b16 %v2719
  %v2796 = vunpack.c.l.b16 %v2720
  %v2797 = vunpack.c.h.b16 %v2720
  %v2798 = vunpack.c.l.b16 %v2721
  %v2799 = vunpack.c.h.b16 %v2721
  %v2800 = vunpack.c.l.b16 %v2722
  %v2801 = vunpack.c.h.b16 %v2722
  %v2802 = vunpack.c.l.b16 %v2723
  %v2803 = vunpack.c.h.b16 %v2723
  %v2804 = vunpack.c.l.b16 %v2724
  %v2805 = vunpack.c.h.b16 %v2724
  %v2806 = vunpack.c.l.b16 %v2725
  %v2807 = vunpack.c.h.b16 %v2725
  %v2808 = vunpack.c.l.b16 %v2726
  %v2809 = vunpack.c.h.b16 %v2726
  %v2810 = vunpack.c.l.b16 %v2727
  %v2811 = vunpack.c.h.b16 %v2727
  %v2812 = vunpack.c.l.b16 %v2728
  %v2813 = vunpack.c.h.b16 %v2728
  %v2814 = vunpack.c.l.b16 %v2729
  %v2815 = vunpack.c.h.b16 %v2729
  %v2816 = vunpack.c.l.b16 %v2730
  %v2817 = vunpack.c.h.b16 %v2730
  %v2818 = vpack.c.b16 %v2788, %v2786
  %v2819 = vpack.c.b16 %v2789, %v2787
  %v2820 = vpack.c.b16 %v2792, %v2790
  %v2821 = vpack.c.b16 %v2793, %v2791
  %v2822 = vpack.c.b16 %v2796, %v2794
  %v2823 = vpack.c.b16 %v2797, %v2795
  %v2824 = vpack.c.b16 %v2800, %v2798
  %v2825 = vpack.c.b16 %v2801, %v2799
  %v2826 = vpack.c.b16 %v2804, %v2802
  %v2827 = vpack.c.b16 %v2805, %v2803
  %v2828 = vpack.c.b16 %v2808, %v2806
  %v2829 = vpack.c.b16 %v2809, %v2807
  %v2830 = vpack.c.b16 %v2812, %v2810
  %v2831 = vpack.c.b16 %v2813, %v2811
  %v2832 = vpack.c.b16 %v2816, %v2814
  %v2833 = vpack.c.b16 %v2817, %v2815
  %v2882 = vunpack.c.l.b16 %v2731
  %v2883 = vunpack.c.l.b16 %v2732
  %v2884 = vunpack.c.l.b16 %v2733
  %v2885 = vunpack.c.l.b16 %v2734
  %v2886 = vunpack.c.l.b16 %v2735
  %v2887 = vunpack.c.l.b16 %v2736
  %v2888 = vunpack.c.l.b16 %v2737
  %v2889 = vunpack.c.l.b16 %v2738
  %v2890 = vunpack.c.l.b16 %v2739
  %v2891 = vunpack.c.l.b16 %v2740
  %v2892 = vunpack.c.l.b16 %v2741
  %v2893 = vunpack.c.l.b16 %v2742
  %v2894 = vunpack.c.l.b16 %v2743
  %v2895 = vunpack.c.l.b16 %v2744
  %v2896 = vunpack.c.l.b16 %v2745
  %v2897 = vunpack.c.l.b16 %v2746
  %v2898 = vunpack.c.l.b16 %v2747
  %v2899 = vunpack.c.l.b16 %v2748
  %v2900 = vunpack.c.l.b16 %v2749
  %v2901 = vunpack.c.l.b16 %v2750
  %v2902 = vunpack.c.l.b16 %v2751
  %v2903 = vunpack.c.l.b16 %v2752
  %v2904 = vunpack.c.l.b16 %v2753
  %v2905 = vunpack.c.l.b16 %v2754
  %v2906 = vunpack.c.l.b16 %v2755
  %v2907 = vunpack.c.l.b16 %v2756
  %v2908 = vunpack.c.l.b16 %v2757
  %v2909 = vunpack.c.l.b16 %v2758
  %v2910 = vunpack.c.l.b16 %v2759
  %v2911 = vunpack.c.l.b16 %v2760
  %v2912 = vunpack.c.l.b16 %v2761
  %v2913 = vunpack.c.l.b16 %v2762
  %v2914 = vpack.c.b16 %v2883, %v2882
  %v2915 = vpack.c.b16 %v2885, %v2884
  %v2916 = vpack.c.b16 %v2887, %v2886
  %v2917 = vpack.c.b16 %v2889, %v2888
  %v2918 = vpack.c.b16 %v2891, %v2890
  %v2919 = vpack.c.b16 %v2893, %v2892
  %v2920 = vpack.c.b16 %v2895, %v2894
  %v2921 = vpack.c.b16 %v2897, %v2896
  %v2922 = vpack.c.b16 %v2899, %v2898
  %v2923 = vpack.c.b16 %v2901, %v2900
  %v2924 = vpack.c.b16 %v2903, %v2902
  %v2925 = vpack.c.b16 %v2905, %v2904
  %v2926 = vpack.c.b16 %v2907, %v2906
  %v2927 = vpack.c.b16 %v2909, %v2908
  %v2928 = vpack.c.b16 %v2911, %v2910
  %v2929 = vpack.c.b16 %v2913, %v2912
  %2946 = vmatprep.subr.bf16.mxu0 0
  %2947 = vmatpush1.bf16.msra.mxu0 %v2921
  %2948 = vmatprep.subr.bf16.mxu0 0
  %2949 = vmatpush1.bf16.msra.mxu0 %v2920
  %2950 = vmatprep.subr.bf16.mxu0 0
  %2951 = vmatpush1.bf16.msra.mxu0 %v2919
  %2952 = vmatprep.subr.bf16.mxu0 0
  %2953 = vmatpush1.bf16.msra.mxu0 %v2918
  %2954 = vmatprep.subr.bf16.mxu0 0
  %2955 = vmatpush1.bf16.msra.mxu0 %v2917
  %2956 = vmatprep.subr.bf16.mxu0 0
  %2957 = vmatpush1.bf16.msra.mxu0 %v2916
  %2958 = vmatprep.subr.bf16.mxu0 0
  %2959 = vmatpush1.bf16.msra.mxu0 %v2915
  %2960 = vmatprep.subr.bf16.mxu0 0
  %2961 = vmatpush1.bf16.msra.mxu0 %v2914
  %2962 = vmatprep.subr.bf16.mxu0 0
  %2963 = vmatpush2.bf16.msra.mxu0 %v2929
  %2964 = vmatprep.subr.bf16.mxu0 0
  %2965 = vmatpush2.bf16.msra.mxu0 %v2928
  %2966 = vmatprep.subr.bf16.mxu0 0
  %2967 = vmatpush2.bf16.msra.mxu0 %v2927
  %2968 = vmatprep.subr.bf16.mxu0 0
  %2969 = vmatpush2.bf16.msra.mxu0 %v2926
  %2970 = vmatprep.subr.bf16.mxu0 0
  %2971 = vmatpush2.bf16.msra.mxu0 %v2925
  %2972 = vmatprep.subr.bf16.mxu0 0
  %2973 = vmatpush2.bf16.msra.mxu0 %v2924
  %2974 = vmatprep.subr.bf16.mxu0 0
  %2975 = vmatpush2.bf16.msra.mxu0 %v2923
  %2976 = vmatprep.subr.bf16.mxu0 0
  %2977 = vmatpush2.bf16.msra.mxu0 %v2922
  %2978 = vmatprep.mubr.bf16.mxu0 %v2819
  %2979 = vmatmul.mubr.bf16.gmra.mxu0 %v2818
  %v2980 = vpop.f32.mrf.mxu0
  %v2981 = vadd.f32 %v2768, %v2980
  %v2982 = vpop.f32.mrf.mxu0
  %v2983 = vpop.f32.mrf.mxu0
  %v2984 = vadd.f32 %v2768, %v2983
  %v2985 = vpop.f32.mrf.mxu0
  %2986 = vmatprep.mubr.bf16.mxu0 %v2821
  %2987 = vmatmul.mubr.bf16.gmra.mxu0 %v2820
  %v2988 = vpop.f32.mrf.mxu0
  %v2989 = vadd.f32 %v2768, %v2988
  %v2990 = vpop.f32.mrf.mxu0
  %v2991 = vpop.f32.mrf.mxu0
  %v2992 = vadd.f32 %v2768, %v2991
  %v2993 = vpop.f32.mrf.mxu0
  %2994 = vmatprep.mubr.bf16.mxu0 %v2823
  %2995 = vmatmul.mubr.bf16.gmra.mxu0 %v2822
  %v2996 = vpop.f32.mrf.mxu0
  %v2997 = vadd.f32 %v2768, %v2996
  %v2998 = vpop.f32.mrf.mxu0
  %v2999 = vpop.f32.mrf.mxu0
  %v3000 = vadd.f32 %v2768, %v2999
  %v3001 = vpop.f32.mrf.mxu0
  %3002 = vmatprep.mubr.bf16.mxu0 %v2825
  %3003 = vmatmul.mubr.bf16.gmra.mxu0 %v2824
  %v3004 = vpop.f32.mrf.mxu0
  %v3005 = vadd.f32 %v2768, %v3004
  %v3006 = vpop.f32.mrf.mxu0
  %v3007 = vpop.f32.mrf.mxu0
  %v3008 = vadd.f32 %v2768, %v3007
  %v3009 = vpop.f32.mrf.mxu0
  %3010 = vmatprep.mubr.bf16.mxu0 %v2827
  %3011 = vmatmul.mubr.bf16.gmra.mxu0 %v2826
  %v3012 = vpop.f32.mrf.mxu0
  %v3013 = vadd.f32 %v2768, %v3012
  %v3014 = vpop.f32.mrf.mxu0
  %v3015 = vpop.f32.mrf.mxu0
  %v3016 = vadd.f32 %v2768, %v3015
  %v3017 = vpop.f32.mrf.mxu0
  %3018 = vmatprep.mubr.bf16.mxu0 %v2829
  %3019 = vmatmul.mubr.bf16.gmra.mxu0 %v2828
  %v3020 = vpop.f32.mrf.mxu0
  %v3021 = vadd.f32 %v2768, %v3020
  %v3022 = vpop.f32.mrf.mxu0
  %v3023 = vpop.f32.mrf.mxu0
  %v3024 = vadd.f32 %v2768, %v3023
  %v3025 = vpop.f32.mrf.mxu0
  %3026 = vmatprep.mubr.bf16.mxu0 %v2831
  %3027 = vmatmul.mubr.bf16.gmra.mxu0 %v2830
  %v3028 = vpop.f32.mrf.mxu0
  %v3029 = vadd.f32 %v2768, %v3028
  %v3030 = vpop.f32.mrf.mxu0
  %v3031 = vpop.f32.mrf.mxu0
  %v3032 = vadd.f32 %v2768, %v3031
  %v3033 = vpop.f32.mrf.mxu0
  %3034 = vmatprep.mubr.bf16.mxu0 %v2833
  %3035 = vmatmul.mubr.bf16.gmra.mxu0 %v2832
  %v3036 = vpop.f32.mrf.mxu0
  %v3037 = vadd.f32 %v2768, %v3036
  %v3038 = vpop.f32.mrf.mxu0
  %v3039 = vpop.f32.mrf.mxu0
  %v3040 = vadd.f32 %v2768, %v3039
  %v3041 = vpop.f32.mrf.mxu0
  %3042 = vdwg.mxu0
  %v3043 = vmax.f32 %v2981, 0.0
  %v3044 = vmax.f32 %v2984, 0.0
  %v3045 = vmax.f32 %v2989, 0.0
  %v3046 = vmax.f32 %v2992, 0.0
  %v3047 = vmax.f32 %v2997, 0.0
  %v3048 = vmax.f32 %v3000, 0.0
  %v3049 = vmax.f32 %v3005, 0.0
  %v3050 = vmax.f32 %v3008, 0.0
  %v3051 = vmax.f32 %v3013, 0.0
  %v3052 = vmax.f32 %v3016, 0.0
  %v3053 = vmax.f32 %v3021, 0.0
  %v3054 = vmax.f32 %v3024, 0.0
  %v3055 = vmax.f32 %v3029, 0.0
  %v3056 = vmax.f32 %v3032, 0.0
  %v3057 = vmax.f32 %v3037, 0.0
  %v3058 = vmax.f32 %v3040, 0.0
  %v3059 = vpack.c.bf16 %v3044, %v3043
  %v3060 = vpack.c.bf16 %v3046, %v3045
  %v3061 = vpack.c.bf16 %v3048, %v3047
  %v3062 = vpack.c.bf16 %v3050, %v3049
  %v3063 = vpack.c.bf16 %v3052, %v3051
  %v3064 = vpack.c.bf16 %v3054, %v3053
  %v3065 = vpack.c.bf16 %v3056, %v3055
  %v3066 = vpack.c.bf16 %v3058, %v3057
  %v3075 = vunpack.c.l.b16 %v3059
  %v3076 = vunpack.c.h.b16 %v3059
  %v3077 = vunpack.c.l.b16 %v3060
  %v3078 = vunpack.c.h.b16 %v3060
  %v3079 = vunpack.c.l.b16 %v3061
  %v3080 = vunpack.c.h.b16 %v3061
  %v3081 = vunpack.c.l.b16 %v3062
  %v3082 = vunpack.c.h.b16 %v3062
  %v3083 = vunpack.c.l.b16 %v3063
  %v3084 = vunpack.c.h.b16 %v3063
  %v3085 = vunpack.c.l.b16 %v3064
  %v3086 = vunpack.c.h.b16 %v3064
  %v3087 = vunpack.c.l.b16 %v3065
  %v3088 = vunpack.c.h.b16 %v3065
  %v3089 = vunpack.c.l.b16 %v3066
  %v3090 = vunpack.c.h.b16 %v3066
  %v3091 = vpack.c.b16 %v3075, %v3075
  %v3092 = vpack.c.b16 %v3076, %v3076
  %v3093 = vpack.c.b16 %v3077, %v3077
  %v3094 = vpack.c.b16 %v3078, %v3078
  %v3095 = vpack.c.b16 %v3079, %v3079
  %v3096 = vpack.c.b16 %v3080, %v3080
  %v3097 = vpack.c.b16 %v3081, %v3081
  %v3098 = vpack.c.b16 %v3082, %v3082
  %v3099 = vpack.c.b16 %v3083, %v3083
  %v3100 = vpack.c.b16 %v3084, %v3084
  %v3101 = vpack.c.b16 %v3085, %v3085
  %v3102 = vpack.c.b16 %v3086, %v3086
  %v3103 = vpack.c.b16 %v3087, %v3087
  %v3104 = vpack.c.b16 %v3088, %v3088
  %v3105 = vpack.c.b16 %v3089, %v3089
  %v3106 = vpack.c.b16 %v3090, %v3090
  %3107 = vrot.lane.b32.xlu0 %v3091, 64
  %v3108 = vpop.permute.xlu0 %3107
  %3109 = vrot.lane.b32.xlu0 %v3092, 64
  %v3110 = vpop.permute.xlu0 %3109
  %3111 = vrot.lane.b32.xlu0 %v3093, 64
  %v3112 = vpop.permute.xlu0 %3111
  %3113 = vrot.lane.b32.xlu0 %v3094, 64
  %v3114 = vpop.permute.xlu0 %3113
  %3115 = vrot.lane.b32.xlu0 %v3095, 64
  %v3116 = vpop.permute.xlu0 %3115
  %3117 = vrot.lane.b32.xlu0 %v3096, 64
  %v3118 = vpop.permute.xlu0 %3117
  %3119 = vrot.lane.b32.xlu0 %v3097, 64
  %v3120 = vpop.permute.xlu0 %3119
  %3121 = vrot.lane.b32.xlu0 %v3098, 64
  %v3122 = vpop.permute.xlu0 %3121
  %3123 = vrot.lane.b32.xlu0 %v3099, 64
  %v3124 = vpop.permute.xlu0 %3123
  %3125 = vrot.lane.b32.xlu0 %v3100, 64
  %v3126 = vpop.permute.xlu0 %3125
  %3127 = vrot.lane.b32.xlu0 %v3101, 64
  %v3128 = vpop.permute.xlu0 %3127
  %3129 = vrot.lane.b32.xlu0 %v3102, 64
  %v3130 = vpop.permute.xlu0 %3129
  %3131 = vrot.lane.b32.xlu0 %v3103, 64
  %v3132 = vpop.permute.xlu0 %3131
  %3133 = vrot.lane.b32.xlu0 %v3104, 64
  %v3134 = vpop.permute.xlu0 %3133
  %3135 = vrot.lane.b32.xlu0 %v3105, 64
  %v3136 = vpop.permute.xlu0 %3135
  %3137 = vrot.lane.b32.xlu0 %v3106, 64
  %v3138 = vpop.permute.xlu0 %3137
  %3155 = vst.msk [vmem:[#allocation2 + $0x4] sm:$0xf] %vm1361, %v3108
  %3156 = vst.msk [vmem:[#allocation2 + $0x14] sm:$0xf] %vm1361, %v3110
  %3157 = vst.msk [vmem:[#allocation2 + $0x24] sm:$0xf] %vm1361, %v3112
  %3158 = vst.msk [vmem:[#allocation2 + $0x34] sm:$0xf] %vm1361, %v3114
  %3159 = vst.msk [vmem:[#allocation2 + $0x44] sm:$0xf] %vm1361, %v3116
  %3160 = vst.msk [vmem:[#allocation2 + $0x54] sm:$0xf] %vm1361, %v3118
  %3161 = vst.msk [vmem:[#allocation2 + $0x64] sm:$0xf] %vm1361, %v3120
  %3162 = vst.msk [vmem:[#allocation2 + $0x74] sm:$0xf] %vm1361, %v3122
  %3163 = vst.msk [vmem:[#allocation2 + $0x84] sm:$0xf] %vm1361, %v3124
  %3164 = vst.msk [vmem:[#allocation2 + $0x94] sm:$0xf] %vm1361, %v3126
  %3165 = vst.msk [vmem:[#allocation2 + $0xa4] sm:$0xf] %vm1361, %v3128
  %3166 = vst.msk [vmem:[#allocation2 + $0xb4] sm:$0xf] %vm1361, %v3130
  %3167 = vst.msk [vmem:[#allocation2 + $0xc4] sm:$0xf] %vm1361, %v3132
  %3168 = vst.msk [vmem:[#allocation2 + $0xd4] sm:$0xf] %vm1361, %v3134
  %3169 = vst.msk [vmem:[#allocation2 + $0xe4] sm:$0xf] %vm1361, %v3136
  %3170 = vst.msk [vmem:[#allocation2 + $0xf4] sm:$0xf] %vm1361, %v3138
  %v3171 = vld [vmem:[%s0 + $0x380] sm:$0xff]
  %v3172 = vld [vmem:[%s0 + $0x388] sm:$0xff]
  %v3173 = vld [vmem:[%s0 + $0x390] sm:$0xff]
  %v3174 = vld [vmem:[%s0 + $0x398] sm:$0xff]
  %v3175 = vld [vmem:[%s0 + $0x3a0] sm:$0xff]
  %v3176 = vld [vmem:[%s0 + $0x3a8] sm:$0xff]
  %v3177 = vld [vmem:[%s0 + $0x3b0] sm:$0xff]
  %v3178 = vld [vmem:[%s0 + $0x3b8] sm:$0xff]
  %v3179 = vld [vmem:[%s0 + $0x3c0] sm:$0xff]
  %v3180 = vld [vmem:[%s0 + $0x3c8] sm:$0xff]
  %v3181 = vld [vmem:[%s0 + $0x3d0] sm:$0xff]
  %v3182 = vld [vmem:[%s0 + $0x3d8] sm:$0xff]
  %v3183 = vld [vmem:[%s0 + $0x3e0] sm:$0xff]
  %v3184 = vld [vmem:[%s0 + $0x3e8] sm:$0xff]
  %v3185 = vld [vmem:[%s0 + $0x3f0] sm:$0xff]
  %v3186 = vld [vmem:[%s0 + $0x3f8] sm:$0xff]
  %v3187 = vld [vmem:[%s1] sm:$0xf]
  %v3188 = vld [vmem:[%s1 + $0x4] sm:$0xf]
  %v3189 = vld [vmem:[%s1 + $0x8] sm:$0xf]
  %v3190 = vld [vmem:[%s1 + $0xc] sm:$0xf]
  %v3191 = vld [vmem:[%s1 + $0x10] sm:$0xf]
  %v3192 = vld [vmem:[%s1 + $0x14] sm:$0xf]
  %v3193 = vld [vmem:[%s1 + $0x18] sm:$0xf]
  %v3194 = vld [vmem:[%s1 + $0x1c] sm:$0xf]
  %v3195 = vld [vmem:[%s1 + $0x20] sm:$0xf]
  %v3196 = vld [vmem:[%s1 + $0x24] sm:$0xf]
  %v3197 = vld [vmem:[%s1 + $0x28] sm:$0xf]
  %v3198 = vld [vmem:[%s1 + $0x2c] sm:$0xf]
  %v3199 = vld [vmem:[%s1 + $0x30] sm:$0xf]
  %v3200 = vld [vmem:[%s1 + $0x34] sm:$0xf]
  %v3201 = vld [vmem:[%s1 + $0x38] sm:$0xf]
  %v3202 = vld [vmem:[%s1 + $0x3c] sm:$0xf]
  %v3203 = vld [vmem:[%s1 + $0x40] sm:$0xf]
  %v3204 = vld [vmem:[%s1 + $0x44] sm:$0xf]
  %v3205 = vld [vmem:[%s1 + $0x48] sm:$0xf]
  %v3206 = vld [vmem:[%s1 + $0x4c] sm:$0xf]
  %v3207 = vld [vmem:[%s1 + $0x50] sm:$0xf]
  %v3208 = vld [vmem:[%s1 + $0x54] sm:$0xf]
  %v3209 = vld [vmem:[%s1 + $0x58] sm:$0xf]
  %v3210 = vld [vmem:[%s1 + $0x5c] sm:$0xf]
  %v3211 = vld [vmem:[%s1 + $0x60] sm:$0xf]
  %v3212 = vld [vmem:[%s1 + $0x64] sm:$0xf]
  %v3213 = vld [vmem:[%s1 + $0x68] sm:$0xf]
  %v3214 = vld [vmem:[%s1 + $0x6c] sm:$0xf]
  %v3215 = vld [vmem:[%s1 + $0x70] sm:$0xf]
  %v3216 = vld [vmem:[%s1 + $0x74] sm:$0xf]
  %v3217 = vld [vmem:[%s1 + $0x78] sm:$0xf]
  %v3218 = vld [vmem:[%s1 + $0x7c] sm:$0xf]
  %v3219 = vld [vmem:[%s2] sm:$0x1]
  %v3221 = vlaneseq
  %v3222 = vshrl.u32 %v3221, 7
  %v3223 = vsub.s32 0, %v3222
  %v3224 = vrot.slane %v3219, %v3223
  %v3242 = vunpack.c.l.b16 %v3171
  %v3243 = vunpack.c.h.b16 %v3171
  %v3244 = vunpack.c.l.b16 %v3172
  %v3245 = vunpack.c.h.b16 %v3172
  %v3246 = vunpack.c.l.b16 %v3173
  %v3247 = vunpack.c.h.b16 %v3173
  %v3248 = vunpack.c.l.b16 %v3174
  %v3249 = vunpack.c.h.b16 %v3174
  %v3250 = vunpack.c.l.b16 %v3175
  %v3251 = vunpack.c.h.b16 %v3175
  %v3252 = vunpack.c.l.b16 %v3176
  %v3253 = vunpack.c.h.b16 %v3176
  %v3254 = vunpack.c.l.b16 %v3177
  %v3255 = vunpack.c.h.b16 %v3177
  %v3256 = vunpack.c.l.b16 %v3178
  %v3257 = vunpack.c.h.b16 %v3178
  %v3258 = vunpack.c.l.b16 %v3179
  %v3259 = vunpack.c.h.b16 %v3179
  %v3260 = vunpack.c.l.b16 %v3180
  %v3261 = vunpack.c.h.b16 %v3180
  %v3262 = vunpack.c.l.b16 %v3181
  %v3263 = vunpack.c.h.b16 %v3181
  %v3264 = vunpack.c.l.b16 %v3182
  %v3265 = vunpack.c.h.b16 %v3182
  %v3266 = vunpack.c.l.b16 %v3183
  %v3267 = vunpack.c.h.b16 %v3183
  %v3268 = vunpack.c.l.b16 %v3184
  %v3269 = vunpack.c.h.b16 %v3184
  %v3270 = vunpack.c.l.b16 %v3185
  %v3271 = vunpack.c.h.b16 %v3185
  %v3272 = vunpack.c.l.b16 %v3186
  %v3273 = vunpack.c.h.b16 %v3186
  %v3274 = vpack.c.b16 %v3244, %v3242
  %v3275 = vpack.c.b16 %v3245, %v3243
  %v3276 = vpack.c.b16 %v3248, %v3246
  %v3277 = vpack.c.b16 %v3249, %v3247
  %v3278 = vpack.c.b16 %v3252, %v3250
  %v3279 = vpack.c.b16 %v3253, %v3251
  %v3280 = vpack.c.b16 %v3256, %v3254
  %v3281 = vpack.c.b16 %v3257, %v3255
  %v3282 = vpack.c.b16 %v3260, %v3258
  %v3283 = vpack.c.b16 %v3261, %v3259
  %v3284 = vpack.c.b16 %v3264, %v3262
  %v3285 = vpack.c.b16 %v3265, %v3263
  %v3286 = vpack.c.b16 %v3268, %v3266
  %v3287 = vpack.c.b16 %v3269, %v3267
  %v3288 = vpack.c.b16 %v3272, %v3270
  %v3289 = vpack.c.b16 %v3273, %v3271
  %v3338 = vunpack.c.l.b16 %v3187
  %v3339 = vunpack.c.l.b16 %v3188
  %v3340 = vunpack.c.l.b16 %v3189
  %v3341 = vunpack.c.l.b16 %v3190
  %v3342 = vunpack.c.l.b16 %v3191
  %v3343 = vunpack.c.l.b16 %v3192
  %v3344 = vunpack.c.l.b16 %v3193
  %v3345 = vunpack.c.l.b16 %v3194
  %v3346 = vunpack.c.l.b16 %v3195
  %v3347 = vunpack.c.l.b16 %v3196
  %v3348 = vunpack.c.l.b16 %v3197
  %v3349 = vunpack.c.l.b16 %v3198
  %v3350 = vunpack.c.l.b16 %v3199
  %v3351 = vunpack.c.l.b16 %v3200
  %v3352 = vunpack.c.l.b16 %v3201
  %v3353 = vunpack.c.l.b16 %v3202
  %v3354 = vunpack.c.l.b16 %v3203
  %v3355 = vunpack.c.l.b16 %v3204
  %v3356 = vunpack.c.l.b16 %v3205
  %v3357 = vunpack.c.l.b16 %v3206
  %v3358 = vunpack.c.l.b16 %v3207
  %v3359 = vunpack.c.l.b16 %v3208
  %v3360 = vunpack.c.l.b16 %v3209
  %v3361 = vunpack.c.l.b16 %v3210
  %v3362 = vunpack.c.l.b16 %v3211
  %v3363 = vunpack.c.l.b16 %v3212
  %v3364 = vunpack.c.l.b16 %v3213
  %v3365 = vunpack.c.l.b16 %v3214
  %v3366 = vunpack.c.l.b16 %v3215
  %v3367 = vunpack.c.l.b16 %v3216
  %v3368 = vunpack.c.l.b16 %v3217
  %v3369 = vunpack.c.l.b16 %v3218
  %v3370 = vpack.c.b16 %v3339, %v3338
  %v3371 = vpack.c.b16 %v3341, %v3340
  %v3372 = vpack.c.b16 %v3343, %v3342
  %v3373 = vpack.c.b16 %v3345, %v3344
  %v3374 = vpack.c.b16 %v3347, %v3346
  %v3375 = vpack.c.b16 %v3349, %v3348
  %v3376 = vpack.c.b16 %v3351, %v3350
  %v3377 = vpack.c.b16 %v3353, %v3352
  %v3378 = vpack.c.b16 %v3355, %v3354
  %v3379 = vpack.c.b16 %v3357, %v3356
  %v3380 = vpack.c.b16 %v3359, %v3358
  %v3381 = vpack.c.b16 %v3361, %v3360
  %v3382 = vpack.c.b16 %v3363, %v3362
  %v3383 = vpack.c.b16 %v3365, %v3364
  %v3384 = vpack.c.b16 %v3367, %v3366
  %v3385 = vpack.c.b16 %v3369, %v3368
  %3402 = vmatprep.subr.bf16.mxu0 0
  %3403 = vmatpush1.bf16.msra.mxu0 %v3377
  %3404 = vmatprep.subr.bf16.mxu0 0
  %3405 = vmatpush1.bf16.msra.mxu0 %v3376
  %3406 = vmatprep.subr.bf16.mxu0 0
  %3407 = vmatpush1.bf16.msra.mxu0 %v3375
  %3408 = vmatprep.subr.bf16.mxu0 0
  %3409 = vmatpush1.bf16.msra.mxu0 %v3374
  %3410 = vmatprep.subr.bf16.mxu0 0
  %3411 = vmatpush1.bf16.msra.mxu0 %v3373
  %3412 = vmatprep.subr.bf16.mxu0 0
  %3413 = vmatpush1.bf16.msra.mxu0 %v3372
  %3414 = vmatprep.subr.bf16.mxu0 0
  %3415 = vmatpush1.bf16.msra.mxu0 %v3371
  %3416 = vmatprep.subr.bf16.mxu0 0
  %3417 = vmatpush1.bf16.msra.mxu0 %v3370
  %3418 = vmatprep.subr.bf16.mxu0 0
  %3419 = vmatpush2.bf16.msra.mxu0 %v3385
  %3420 = vmatprep.subr.bf16.mxu0 0
  %3421 = vmatpush2.bf16.msra.mxu0 %v3384
  %3422 = vmatprep.subr.bf16.mxu0 0
  %3423 = vmatpush2.bf16.msra.mxu0 %v3383
  %3424 = vmatprep.subr.bf16.mxu0 0
  %3425 = vmatpush2.bf16.msra.mxu0 %v3382
  %3426 = vmatprep.subr.bf16.mxu0 0
  %3427 = vmatpush2.bf16.msra.mxu0 %v3381
  %3428 = vmatprep.subr.bf16.mxu0 0
  %3429 = vmatpush2.bf16.msra.mxu0 %v3380
  %3430 = vmatprep.subr.bf16.mxu0 0
  %3431 = vmatpush2.bf16.msra.mxu0 %v3379
  %3432 = vmatprep.subr.bf16.mxu0 0
  %3433 = vmatpush2.bf16.msra.mxu0 %v3378
  %3434 = vmatprep.mubr.bf16.mxu0 %v3275
  %3435 = vmatmul.mubr.bf16.gmra.mxu0 %v3274
  %v3436 = vpop.f32.mrf.mxu0
  %v3437 = vadd.f32 %v3224, %v3436
  %v3438 = vpop.f32.mrf.mxu0
  %v3439 = vpop.f32.mrf.mxu0
  %v3440 = vadd.f32 %v3224, %v3439
  %v3441 = vpop.f32.mrf.mxu0
  %3442 = vmatprep.mubr.bf16.mxu0 %v3277
  %3443 = vmatmul.mubr.bf16.gmra.mxu0 %v3276
  %v3444 = vpop.f32.mrf.mxu0
  %v3445 = vadd.f32 %v3224, %v3444
  %v3446 = vpop.f32.mrf.mxu0
  %v3447 = vpop.f32.mrf.mxu0
  %v3448 = vadd.f32 %v3224, %v3447
  %v3449 = vpop.f32.mrf.mxu0
  %3450 = vmatprep.mubr.bf16.mxu0 %v3279
  %3451 = vmatmul.mubr.bf16.gmra.mxu0 %v3278
  %v3452 = vpop.f32.mrf.mxu0
  %v3453 = vadd.f32 %v3224, %v3452
  %v3454 = vpop.f32.mrf.mxu0
  %v3455 = vpop.f32.mrf.mxu0
  %v3456 = vadd.f32 %v3224, %v3455
  %v3457 = vpop.f32.mrf.mxu0
  %3458 = vmatprep.mubr.bf16.mxu0 %v3281
  %3459 = vmatmul.mubr.bf16.gmra.mxu0 %v3280
  %v3460 = vpop.f32.mrf.mxu0
  %v3461 = vadd.f32 %v3224, %v3460
  %v3462 = vpop.f32.mrf.mxu0
  %v3463 = vpop.f32.mrf.mxu0
  %v3464 = vadd.f32 %v3224, %v3463
  %v3465 = vpop.f32.mrf.mxu0
  %3466 = vmatprep.mubr.bf16.mxu0 %v3283
  %3467 = vmatmul.mubr.bf16.gmra.mxu0 %v3282
  %v3468 = vpop.f32.mrf.mxu0
  %v3469 = vadd.f32 %v3224, %v3468
  %v3470 = vpop.f32.mrf.mxu0
  %v3471 = vpop.f32.mrf.mxu0
  %v3472 = vadd.f32 %v3224, %v3471
  %v3473 = vpop.f32.mrf.mxu0
  %3474 = vmatprep.mubr.bf16.mxu0 %v3285
  %3475 = vmatmul.mubr.bf16.gmra.mxu0 %v3284
  %v3476 = vpop.f32.mrf.mxu0
  %v3477 = vadd.f32 %v3224, %v3476
  %v3478 = vpop.f32.mrf.mxu0
  %v3479 = vpop.f32.mrf.mxu0
  %v3480 = vadd.f32 %v3224, %v3479
  %v3481 = vpop.f32.mrf.mxu0
  %3482 = vmatprep.mubr.bf16.mxu0 %v3287
  %3483 = vmatmul.mubr.bf16.gmra.mxu0 %v3286
  %v3484 = vpop.f32.mrf.mxu0
  %v3485 = vadd.f32 %v3224, %v3484
  %v3486 = vpop.f32.mrf.mxu0
  %v3487 = vpop.f32.mrf.mxu0
  %v3488 = vadd.f32 %v3224, %v3487
  %v3489 = vpop.f32.mrf.mxu0
  %3490 = vmatprep.mubr.bf16.mxu0 %v3289
  %3491 = vmatmul.mubr.bf16.gmra.mxu0 %v3288
  %v3492 = vpop.f32.mrf.mxu0
  %v3493 = vadd.f32 %v3224, %v3492
  %v3494 = vpop.f32.mrf.mxu0
  %v3495 = vpop.f32.mrf.mxu0
  %v3496 = vadd.f32 %v3224, %v3495
  %v3497 = vpop.f32.mrf.mxu0
  %3498 = vdwg.mxu0
  %v3499 = vmax.f32 %v3437, 0.0
  %v3500 = vmax.f32 %v3440, 0.0
  %v3501 = vmax.f32 %v3445, 0.0
  %v3502 = vmax.f32 %v3448, 0.0
  %v3503 = vmax.f32 %v3453, 0.0
  %v3504 = vmax.f32 %v3456, 0.0
  %v3505 = vmax.f32 %v3461, 0.0
  %v3506 = vmax.f32 %v3464, 0.0
  %v3507 = vmax.f32 %v3469, 0.0
  %v3508 = vmax.f32 %v3472, 0.0
  %v3509 = vmax.f32 %v3477, 0.0
  %v3510 = vmax.f32 %v3480, 0.0
  %v3511 = vmax.f32 %v3485, 0.0
  %v3512 = vmax.f32 %v3488, 0.0
  %v3513 = vmax.f32 %v3493, 0.0
  %v3514 = vmax.f32 %v3496, 0.0
  %v3515 = vpack.c.bf16 %v3500, %v3499
  %v3516 = vpack.c.bf16 %v3502, %v3501
  %v3517 = vpack.c.bf16 %v3504, %v3503
  %v3518 = vpack.c.bf16 %v3506, %v3505
  %v3519 = vpack.c.bf16 %v3508, %v3507
  %v3520 = vpack.c.bf16 %v3510, %v3509
  %v3521 = vpack.c.bf16 %v3512, %v3511
  %v3522 = vpack.c.bf16 %v3514, %v3513
  %v3531 = vunpack.c.l.b16 %v3515
  %v3532 = vunpack.c.h.b16 %v3515
  %v3533 = vunpack.c.l.b16 %v3516
  %v3534 = vunpack.c.h.b16 %v3516
  %v3535 = vunpack.c.l.b16 %v3517
  %v3536 = vunpack.c.h.b16 %v3517
  %v3537 = vunpack.c.l.b16 %v3518
  %v3538 = vunpack.c.h.b16 %v3518
  %v3539 = vunpack.c.l.b16 %v3519
  %v3540 = vunpack.c.h.b16 %v3519
  %v3541 = vunpack.c.l.b16 %v3520
  %v3542 = vunpack.c.h.b16 %v3520
  %v3543 = vunpack.c.l.b16 %v3521
  %v3544 = vunpack.c.h.b16 %v3521
  %v3545 = vunpack.c.l.b16 %v3522
  %v3546 = vunpack.c.h.b16 %v3522
  %v3547 = vpack.c.b16 %v3531, %v3531
  %v3548 = vpack.c.b16 %v3532, %v3532
  %v3549 = vpack.c.b16 %v3533, %v3533
  %v3550 = vpack.c.b16 %v3534, %v3534
  %v3551 = vpack.c.b16 %v3535, %v3535
  %v3552 = vpack.c.b16 %v3536, %v3536
  %v3553 = vpack.c.b16 %v3537, %v3537
  %v3554 = vpack.c.b16 %v3538, %v3538
  %v3555 = vpack.c.b16 %v3539, %v3539
  %v3556 = vpack.c.b16 %v3540, %v3540
  %v3557 = vpack.c.b16 %v3541, %v3541
  %v3558 = vpack.c.b16 %v3542, %v3542
  %v3559 = vpack.c.b16 %v3543, %v3543
  %v3560 = vpack.c.b16 %v3544, %v3544
  %v3561 = vpack.c.b16 %v3545, %v3545
  %v3562 = vpack.c.b16 %v3546, %v3546
  %3563 = vrot.lane.b32.xlu0 %v3547, 96
  %v3564 = vpop.permute.xlu0 %3563
  %3565 = vrot.lane.b32.xlu0 %v3548, 96
  %v3566 = vpop.permute.xlu0 %3565
  %3567 = vrot.lane.b32.xlu0 %v3549, 96
  %v3568 = vpop.permute.xlu0 %3567
  %3569 = vrot.lane.b32.xlu0 %v3550, 96
  %v3570 = vpop.permute.xlu0 %3569
  %3571 = vrot.lane.b32.xlu0 %v3551, 96
  %v3572 = vpop.permute.xlu0 %3571
  %3573 = vrot.lane.b32.xlu0 %v3552, 96
  %v3574 = vpop.permute.xlu0 %3573
  %3575 = vrot.lane.b32.xlu0 %v3553, 96
  %v3576 = vpop.permute.xlu0 %3575
  %3577 = vrot.lane.b32.xlu0 %v3554, 96
  %v3578 = vpop.permute.xlu0 %3577
  %3579 = vrot.lane.b32.xlu0 %v3555, 96
  %v3580 = vpop.permute.xlu0 %3579
  %3581 = vrot.lane.b32.xlu0 %v3556, 96
  %v3582 = vpop.permute.xlu0 %3581
  %3583 = vrot.lane.b32.xlu0 %v3557, 96
  %v3584 = vpop.permute.xlu0 %3583
  %3585 = vrot.lane.b32.xlu0 %v3558, 96
  %v3586 = vpop.permute.xlu0 %3585
  %3587 = vrot.lane.b32.xlu0 %v3559, 96
  %v3588 = vpop.permute.xlu0 %3587
  %3589 = vrot.lane.b32.xlu0 %v3560, 96
  %v3590 = vpop.permute.xlu0 %3589
  %3591 = vrot.lane.b32.xlu0 %v3561, 96
  %v3592 = vpop.permute.xlu0 %3591
  %3593 = vrot.lane.b32.xlu0 %v3562, 96
  %v3594 = vpop.permute.xlu0 %3593
  %3611 = vst.msk [vmem:[#allocation2 + $0x4] sm:$0xf] %vm1818, %v3564
  %3612 = vst.msk [vmem:[#allocation2 + $0x14] sm:$0xf] %vm1818, %v3566
  %3613 = vst.msk [vmem:[#allocation2 + $0x24] sm:$0xf] %vm1818, %v3568
  %3614 = vst.msk [vmem:[#allocation2 + $0x34] sm:$0xf] %vm1818, %v3570
  %3615 = vst.msk [vmem:[#allocation2 + $0x44] sm:$0xf] %vm1818, %v3572
  %3616 = vst.msk [vmem:[#allocation2 + $0x54] sm:$0xf] %vm1818, %v3574
  %3617 = vst.msk [vmem:[#allocation2 + $0x64] sm:$0xf] %vm1818, %v3576
  %3618 = vst.msk [vmem:[#allocation2 + $0x74] sm:$0xf] %vm1818, %v3578
  %3619 = vst.msk [vmem:[#allocation2 + $0x84] sm:$0xf] %vm1818, %v3580
  %3620 = vst.msk [vmem:[#allocation2 + $0x94] sm:$0xf] %vm1818, %v3582
  %3621 = vst.msk [vmem:[#allocation2 + $0xa4] sm:$0xf] %vm1818, %v3584
  %3622 = vst.msk [vmem:[#allocation2 + $0xb4] sm:$0xf] %vm1818, %v3586
  %3623 = vst.msk [vmem:[#allocation2 + $0xc4] sm:$0xf] %vm1818, %v3588
  %3624 = vst.msk [vmem:[#allocation2 + $0xd4] sm:$0xf] %vm1818, %v3590
  %3625 = vst.msk [vmem:[#allocation2 + $0xe4] sm:$0xf] %vm1818, %v3592
  %3626 = vst.msk [vmem:[#allocation2 + $0xf4] sm:$0xf] %vm1818, %v3594
  %v3627 = vld [vmem:[%s0 + $0x400] sm:$0xff]
  %v3628 = vld [vmem:[%s0 + $0x408] sm:$0xff]
  %v3629 = vld [vmem:[%s0 + $0x410] sm:$0xff]
  %v3630 = vld [vmem:[%s0 + $0x418] sm:$0xff]
  %v3631 = vld [vmem:[%s0 + $0x420] sm:$0xff]
  %v3632 = vld [vmem:[%s0 + $0x428] sm:$0xff]
  %v3633 = vld [vmem:[%s0 + $0x430] sm:$0xff]
  %v3634 = vld [vmem:[%s0 + $0x438] sm:$0xff]
  %v3635 = vld [vmem:[%s0 + $0x440] sm:$0xff]
  %v3636 = vld [vmem:[%s0 + $0x448] sm:$0xff]
  %v3637 = vld [vmem:[%s0 + $0x450] sm:$0xff]
  %v3638 = vld [vmem:[%s0 + $0x458] sm:$0xff]
  %v3639 = vld [vmem:[%s0 + $0x460] sm:$0xff]
  %v3640 = vld [vmem:[%s0 + $0x468] sm:$0xff]
  %v3641 = vld [vmem:[%s0 + $0x470] sm:$0xff]
  %v3642 = vld [vmem:[%s0 + $0x478] sm:$0xff]
  %v3643 = vld [vmem:[%s1] sm:$0xf]
  %v3644 = vld [vmem:[%s1 + $0x4] sm:$0xf]
  %v3645 = vld [vmem:[%s1 + $0x8] sm:$0xf]
  %v3646 = vld [vmem:[%s1 + $0xc] sm:$0xf]
  %v3647 = vld [vmem:[%s1 + $0x10] sm:$0xf]
  %v3648 = vld [vmem:[%s1 + $0x14] sm:$0xf]
  %v3649 = vld [vmem:[%s1 + $0x18] sm:$0xf]
  %v3650 = vld [vmem:[%s1 + $0x1c] sm:$0xf]
  %v3651 = vld [vmem:[%s1 + $0x20] sm:$0xf]
  %v3652 = vld [vmem:[%s1 + $0x24] sm:$0xf]
  %v3653 = vld [vmem:[%s1 + $0x28] sm:$0xf]
  %v3654 = vld [vmem:[%s1 + $0x2c] sm:$0xf]
  %v3655 = vld [vmem:[%s1 + $0x30] sm:$0xf]
  %v3656 = vld [vmem:[%s1 + $0x34] sm:$0xf]
  %v3657 = vld [vmem:[%s1 + $0x38] sm:$0xf]
  %v3658 = vld [vmem:[%s1 + $0x3c] sm:$0xf]
  %v3659 = vld [vmem:[%s1 + $0x40] sm:$0xf]
  %v3660 = vld [vmem:[%s1 + $0x44] sm:$0xf]
  %v3661 = vld [vmem:[%s1 + $0x48] sm:$0xf]
  %v3662 = vld [vmem:[%s1 + $0x4c] sm:$0xf]
  %v3663 = vld [vmem:[%s1 + $0x50] sm:$0xf]
  %v3664 = vld [vmem:[%s1 + $0x54] sm:$0xf]
  %v3665 = vld [vmem:[%s1 + $0x58] sm:$0xf]
  %v3666 = vld [vmem:[%s1 + $0x5c] sm:$0xf]
  %v3667 = vld [vmem:[%s1 + $0x60] sm:$0xf]
  %v3668 = vld [vmem:[%s1 + $0x64] sm:$0xf]
  %v3669 = vld [vmem:[%s1 + $0x68] sm:$0xf]
  %v3670 = vld [vmem:[%s1 + $0x6c] sm:$0xf]
  %v3671 = vld [vmem:[%s1 + $0x70] sm:$0xf]
  %v3672 = vld [vmem:[%s1 + $0x74] sm:$0xf]
  %v3673 = vld [vmem:[%s1 + $0x78] sm:$0xf]
  %v3674 = vld [vmem:[%s1 + $0x7c] sm:$0xf]
  %v3675 = vld [vmem:[%s2] sm:$0x1]
  %v3677 = vlaneseq
  %v3678 = vshrl.u32 %v3677, 7
  %v3679 = vsub.s32 0, %v3678
  %v3680 = vrot.slane %v3675, %v3679
  %v3698 = vunpack.c.l.b16 %v3627
  %v3699 = vunpack.c.h.b16 %v3627
  %v3700 = vunpack.c.l.b16 %v3628
  %v3701 = vunpack.c.h.b16 %v3628
  %v3702 = vunpack.c.l.b16 %v3629
  %v3703 = vunpack.c.h.b16 %v3629
  %v3704 = vunpack.c.l.b16 %v3630
  %v3705 = vunpack.c.h.b16 %v3630
  %v3706 = vunpack.c.l.b16 %v3631
  %v3707 = vunpack.c.h.b16 %v3631
  %v3708 = vunpack.c.l.b16 %v3632
  %v3709 = vunpack.c.h.b16 %v3632
  %v3710 = vunpack.c.l.b16 %v3633
  %v3711 = vunpack.c.h.b16 %v3633
  %v3712 = vunpack.c.l.b16 %v3634
  %v3713 = vunpack.c.h.b16 %v3634
  %v3714 = vunpack.c.l.b16 %v3635
  %v3715 = vunpack.c.h.b16 %v3635
  %v3716 = vunpack.c.l.b16 %v3636
  %v3717 = vunpack.c.h.b16 %v3636
  %v3718 = vunpack.c.l.b16 %v3637
  %v3719 = vunpack.c.h.b16 %v3637
  %v3720 = vunpack.c.l.b16 %v3638
  %v3721 = vunpack.c.h.b16 %v3638
  %v3722 = vunpack.c.l.b16 %v3639
  %v3723 = vunpack.c.h.b16 %v3639
  %v3724 = vunpack.c.l.b16 %v3640
  %v3725 = vunpack.c.h.b16 %v3640
  %v3726 = vunpack.c.l.b16 %v3641
  %v3727 = vunpack.c.h.b16 %v3641
  %v3728 = vunpack.c.l.b16 %v3642
  %v3729 = vunpack.c.h.b16 %v3642
  %v3730 = vpack.c.b16 %v3700, %v3698
  %v3731 = vpack.c.b16 %v3701, %v3699
  %v3732 = vpack.c.b16 %v3704, %v3702
  %v3733 = vpack.c.b16 %v3705, %v3703
  %v3734 = vpack.c.b16 %v3708, %v3706
  %v3735 = vpack.c.b16 %v3709, %v3707
  %v3736 = vpack.c.b16 %v3712, %v3710
  %v3737 = vpack.c.b16 %v3713, %v3711
  %v3738 = vpack.c.b16 %v3716, %v3714
  %v3739 = vpack.c.b16 %v3717, %v3715
  %v3740 = vpack.c.b16 %v3720, %v3718
  %v3741 = vpack.c.b16 %v3721, %v3719
  %v3742 = vpack.c.b16 %v3724, %v3722
  %v3743 = vpack.c.b16 %v3725, %v3723
  %v3744 = vpack.c.b16 %v3728, %v3726
  %v3745 = vpack.c.b16 %v3729, %v3727
  %v3794 = vunpack.c.l.b16 %v3643
  %v3795 = vunpack.c.l.b16 %v3644
  %v3796 = vunpack.c.l.b16 %v3645
  %v3797 = vunpack.c.l.b16 %v3646
  %v3798 = vunpack.c.l.b16 %v3647
  %v3799 = vunpack.c.l.b16 %v3648
  %v3800 = vunpack.c.l.b16 %v3649
  %v3801 = vunpack.c.l.b16 %v3650
  %v3802 = vunpack.c.l.b16 %v3651
  %v3803 = vunpack.c.l.b16 %v3652
  %v3804 = vunpack.c.l.b16 %v3653
  %v3805 = vunpack.c.l.b16 %v3654
  %v3806 = vunpack.c.l.b16 %v3655
  %v3807 = vunpack.c.l.b16 %v3656
  %v3808 = vunpack.c.l.b16 %v3657
  %v3809 = vunpack.c.l.b16 %v3658
  %v3810 = vunpack.c.l.b16 %v3659
  %v3811 = vunpack.c.l.b16 %v3660
  %v3812 = vunpack.c.l.b16 %v3661
  %v3813 = vunpack.c.l.b16 %v3662
  %v3814 = vunpack.c.l.b16 %v3663
  %v3815 = vunpack.c.l.b16 %v3664
  %v3816 = vunpack.c.l.b16 %v3665
  %v3817 = vunpack.c.l.b16 %v3666
  %v3818 = vunpack.c.l.b16 %v3667
  %v3819 = vunpack.c.l.b16 %v3668
  %v3820 = vunpack.c.l.b16 %v3669
  %v3821 = vunpack.c.l.b16 %v3670
  %v3822 = vunpack.c.l.b16 %v3671
  %v3823 = vunpack.c.l.b16 %v3672
  %v3824 = vunpack.c.l.b16 %v3673
  %v3825 = vunpack.c.l.b16 %v3674
  %v3826 = vpack.c.b16 %v3795, %v3794
  %v3827 = vpack.c.b16 %v3797, %v3796
  %v3828 = vpack.c.b16 %v3799, %v3798
  %v3829 = vpack.c.b16 %v3801, %v3800
  %v3830 = vpack.c.b16 %v3803, %v3802
  %v3831 = vpack.c.b16 %v3805, %v3804
  %v3832 = vpack.c.b16 %v3807, %v3806
  %v3833 = vpack.c.b16 %v3809, %v3808
  %v3834 = vpack.c.b16 %v3811, %v3810
  %v3835 = vpack.c.b16 %v3813, %v3812
  %v3836 = vpack.c.b16 %v3815, %v3814
  %v3837 = vpack.c.b16 %v3817, %v3816
  %v3838 = vpack.c.b16 %v3819, %v3818
  %v3839 = vpack.c.b16 %v3821, %v3820
  %v3840 = vpack.c.b16 %v3823, %v3822
  %v3841 = vpack.c.b16 %v3825, %v3824
  %3858 = vmatprep.subr.bf16.mxu0 0
  %3859 = vmatpush1.bf16.msra.mxu0 %v3833
  %3860 = vmatprep.subr.bf16.mxu0 0
  %3861 = vmatpush1.bf16.msra.mxu0 %v3832
  %3862 = vmatprep.subr.bf16.mxu0 0
  %3863 = vmatpush1.bf16.msra.mxu0 %v3831
  %3864 = vmatprep.subr.bf16.mxu0 0
  %3865 = vmatpush1.bf16.msra.mxu0 %v3830
  %3866 = vmatprep.subr.bf16.mxu0 0
  %3867 = vmatpush1.bf16.msra.mxu0 %v3829
  %3868 = vmatprep.subr.bf16.mxu0 0
  %3869 = vmatpush1.bf16.msra.mxu0 %v3828
  %3870 = vmatprep.subr.bf16.mxu0 0
  %3871 = vmatpush1.bf16.msra.mxu0 %v3827
  %3872 = vmatprep.subr.bf16.mxu0 0
  %3873 = vmatpush1.bf16.msra.mxu0 %v3826
  %3874 = vmatprep.subr.bf16.mxu0 0
  %3875 = vmatpush2.bf16.msra.mxu0 %v3841
  %3876 = vmatprep.subr.bf16.mxu0 0
  %3877 = vmatpush2.bf16.msra.mxu0 %v3840
  %3878 = vmatprep.subr.bf16.mxu0 0
  %3879 = vmatpush2.bf16.msra.mxu0 %v3839
  %3880 = vmatprep.subr.bf16.mxu0 0
  %3881 = vmatpush2.bf16.msra.mxu0 %v3838
  %3882 = vmatprep.subr.bf16.mxu0 0
  %3883 = vmatpush2.bf16.msra.mxu0 %v3837
  %3884 = vmatprep.subr.bf16.mxu0 0
  %3885 = vmatpush2.bf16.msra.mxu0 %v3836
  %3886 = vmatprep.subr.bf16.mxu0 0
  %3887 = vmatpush2.bf16.msra.mxu0 %v3835
  %3888 = vmatprep.subr.bf16.mxu0 0
  %3889 = vmatpush2.bf16.msra.mxu0 %v3834
  %3890 = vmatprep.mubr.bf16.mxu0 %v3731
  %3891 = vmatmul.mubr.bf16.gmra.mxu0 %v3730
  %v3892 = vpop.f32.mrf.mxu0
  %v3893 = vadd.f32 %v3680, %v3892
  %v3894 = vpop.f32.mrf.mxu0
  %v3895 = vpop.f32.mrf.mxu0
  %v3896 = vadd.f32 %v3680, %v3895
  %v3897 = vpop.f32.mrf.mxu0
  %3898 = vmatprep.mubr.bf16.mxu0 %v3733
  %3899 = vmatmul.mubr.bf16.gmra.mxu0 %v3732
  %v3900 = vpop.f32.mrf.mxu0
  %v3901 = vadd.f32 %v3680, %v3900
  %v3902 = vpop.f32.mrf.mxu0
  %v3903 = vpop.f32.mrf.mxu0
  %v3904 = vadd.f32 %v3680, %v3903
  %v3905 = vpop.f32.mrf.mxu0
  %3906 = vmatprep.mubr.bf16.mxu0 %v3735
  %3907 = vmatmul.mubr.bf16.gmra.mxu0 %v3734
  %v3908 = vpop.f32.mrf.mxu0
  %v3909 = vadd.f32 %v3680, %v3908
  %v3910 = vpop.f32.mrf.mxu0
  %v3911 = vpop.f32.mrf.mxu0
  %v3912 = vadd.f32 %v3680, %v3911
  %v3913 = vpop.f32.mrf.mxu0
  %3914 = vmatprep.mubr.bf16.mxu0 %v3737
  %3915 = vmatmul.mubr.bf16.gmra.mxu0 %v3736
  %v3916 = vpop.f32.mrf.mxu0
  %v3917 = vadd.f32 %v3680, %v3916
  %v3918 = vpop.f32.mrf.mxu0
  %v3919 = vpop.f32.mrf.mxu0
  %v3920 = vadd.f32 %v3680, %v3919
  %v3921 = vpop.f32.mrf.mxu0
  %3922 = vmatprep.mubr.bf16.mxu0 %v3739
  %3923 = vmatmul.mubr.bf16.gmra.mxu0 %v3738
  %v3924 = vpop.f32.mrf.mxu0
  %v3925 = vadd.f32 %v3680, %v3924
  %v3926 = vpop.f32.mrf.mxu0
  %v3927 = vpop.f32.mrf.mxu0
  %v3928 = vadd.f32 %v3680, %v3927
  %v3929 = vpop.f32.mrf.mxu0
  %3930 = vmatprep.mubr.bf16.mxu0 %v3741
  %3931 = vmatmul.mubr.bf16.gmra.mxu0 %v3740
  %v3932 = vpop.f32.mrf.mxu0
  %v3933 = vadd.f32 %v3680, %v3932
  %v3934 = vpop.f32.mrf.mxu0
  %v3935 = vpop.f32.mrf.mxu0
  %v3936 = vadd.f32 %v3680, %v3935
  %v3937 = vpop.f32.mrf.mxu0
  %3938 = vmatprep.mubr.bf16.mxu0 %v3743
  %3939 = vmatmul.mubr.bf16.gmra.mxu0 %v3742
  %v3940 = vpop.f32.mrf.mxu0
  %v3941 = vadd.f32 %v3680, %v3940
  %v3942 = vpop.f32.mrf.mxu0
  %v3943 = vpop.f32.mrf.mxu0
  %v3944 = vadd.f32 %v3680, %v3943
  %v3945 = vpop.f32.mrf.mxu0
  %3946 = vmatprep.mubr.bf16.mxu0 %v3745
  %3947 = vmatmul.mubr.bf16.gmra.mxu0 %v3744
  %v3948 = vpop.f32.mrf.mxu0
  %v3949 = vadd.f32 %v3680, %v3948
  %v3950 = vpop.f32.mrf.mxu0
  %v3951 = vpop.f32.mrf.mxu0
  %v3952 = vadd.f32 %v3680, %v3951
  %v3953 = vpop.f32.mrf.mxu0
  %3954 = vdwg.mxu0
  %v3955 = vmax.f32 %v3893, 0.0
  %v3956 = vmax.f32 %v3896, 0.0
  %v3957 = vmax.f32 %v3901, 0.0
  %v3958 = vmax.f32 %v3904, 0.0
  %v3959 = vmax.f32 %v3909, 0.0
  %v3960 = vmax.f32 %v3912, 0.0
  %v3961 = vmax.f32 %v3917, 0.0
  %v3962 = vmax.f32 %v3920, 0.0
  %v3963 = vmax.f32 %v3925, 0.0
  %v3964 = vmax.f32 %v3928, 0.0
  %v3965 = vmax.f32 %v3933, 0.0
  %v3966 = vmax.f32 %v3936, 0.0
  %v3967 = vmax.f32 %v3941, 0.0
  %v3968 = vmax.f32 %v3944, 0.0
  %v3969 = vmax.f32 %v3949, 0.0
  %v3970 = vmax.f32 %v3952, 0.0
  %v3971 = vpack.c.bf16 %v3956, %v3955
  %v3972 = vpack.c.bf16 %v3958, %v3957
  %v3973 = vpack.c.bf16 %v3960, %v3959
  %v3974 = vpack.c.bf16 %v3962, %v3961
  %v3975 = vpack.c.bf16 %v3964, %v3963
  %v3976 = vpack.c.bf16 %v3966, %v3965
  %v3977 = vpack.c.bf16 %v3968, %v3967
  %v3978 = vpack.c.bf16 %v3970, %v3969
  %v3987 = vunpack.c.l.b16 %v3971
  %v3988 = vunpack.c.h.b16 %v3971
  %v3989 = vunpack.c.l.b16 %v3972
  %v3990 = vunpack.c.h.b16 %v3972
  %v3991 = vunpack.c.l.b16 %v3973
  %v3992 = vunpack.c.h.b16 %v3973
  %v3993 = vunpack.c.l.b16 %v3974
  %v3994 = vunpack.c.h.b16 %v3974
  %v3995 = vunpack.c.l.b16 %v3975
  %v3996 = vunpack.c.h.b16 %v3975
  %v3997 = vunpack.c.l.b16 %v3976
  %v3998 = vunpack.c.h.b16 %v3976
  %v3999 = vunpack.c.l.b16 %v3977
  %v4000 = vunpack.c.h.b16 %v3977
  %v4001 = vunpack.c.l.b16 %v3978
  %v4002 = vunpack.c.h.b16 %v3978
  %v4003 = vpack.c.b16 %v3987, %v3987
  %v4004 = vpack.c.b16 %v3988, %v3988
  %v4005 = vpack.c.b16 %v3989, %v3989
  %v4006 = vpack.c.b16 %v3990, %v3990
  %v4007 = vpack.c.b16 %v3991, %v3991
  %v4008 = vpack.c.b16 %v3992, %v3992
  %v4009 = vpack.c.b16 %v3993, %v3993
  %v4010 = vpack.c.b16 %v3994, %v3994
  %v4011 = vpack.c.b16 %v3995, %v3995
  %v4012 = vpack.c.b16 %v3996, %v3996
  %v4013 = vpack.c.b16 %v3997, %v3997
  %v4014 = vpack.c.b16 %v3998, %v3998
  %v4015 = vpack.c.b16 %v3999, %v3999
  %v4016 = vpack.c.b16 %v4000, %v4000
  %v4017 = vpack.c.b16 %v4001, %v4001
  %v4018 = vpack.c.b16 %v4002, %v4002
  %4035 = vst.msk [vmem:[#allocation2 + $0x8] sm:$0xf] %vm447, %v4003
  %4036 = vst.msk [vmem:[#allocation2 + $0x18] sm:$0xf] %vm447, %v4004
  %4037 = vst.msk [vmem:[#allocation2 + $0x28] sm:$0xf] %vm447, %v4005
  %4038 = vst.msk [vmem:[#allocation2 + $0x38] sm:$0xf] %vm447, %v4006
  %4039 = vst.msk [vmem:[#allocation2 + $0x48] sm:$0xf] %vm447, %v4007
  %4040 = vst.msk [vmem:[#allocation2 + $0x58] sm:$0xf] %vm447, %v4008
  %4041 = vst.msk [vmem:[#allocation2 + $0x68] sm:$0xf] %vm447, %v4009
  %4042 = vst.msk [vmem:[#allocation2 + $0x78] sm:$0xf] %vm447, %v4010
  %4043 = vst.msk [vmem:[#allocation2 + $0x88] sm:$0xf] %vm447, %v4011
  %4044 = vst.msk [vmem:[#allocation2 + $0x98] sm:$0xf] %vm447, %v4012
  %4045 = vst.msk [vmem:[#allocation2 + $0xa8] sm:$0xf] %vm447, %v4013
  %4046 = vst.msk [vmem:[#allocation2 + $0xb8] sm:$0xf] %vm447, %v4014
  %4047 = vst.msk [vmem:[#allocation2 + $0xc8] sm:$0xf] %vm447, %v4015
  %4048 = vst.msk [vmem:[#allocation2 + $0xd8] sm:$0xf] %vm447, %v4016
  %4049 = vst.msk [vmem:[#allocation2 + $0xe8] sm:$0xf] %vm447, %v4017
  %4050 = vst.msk [vmem:[#allocation2 + $0xf8] sm:$0xf] %vm447, %v4018
  %v4051 = vld [vmem:[%s0 + $0x480] sm:$0xff]
  %v4052 = vld [vmem:[%s0 + $0x488] sm:$0xff]
  %v4053 = vld [vmem:[%s0 + $0x490] sm:$0xff]
  %v4054 = vld [vmem:[%s0 + $0x498] sm:$0xff]
  %v4055 = vld [vmem:[%s0 + $0x4a0] sm:$0xff]
  %v4056 = vld [vmem:[%s0 + $0x4a8] sm:$0xff]
  %v4057 = vld [vmem:[%s0 + $0x4b0] sm:$0xff]
  %v4058 = vld [vmem:[%s0 + $0x4b8] sm:$0xff]
  %v4059 = vld [vmem:[%s0 + $0x4c0] sm:$0xff]
  %v4060 = vld [vmem:[%s0 + $0x4c8] sm:$0xff]
  %v4061 = vld [vmem:[%s0 + $0x4d0] sm:$0xff]
  %v4062 = vld [vmem:[%s0 + $0x4d8] sm:$0xff]
  %v4063 = vld [vmem:[%s0 + $0x4e0] sm:$0xff]
  %v4064 = vld [vmem:[%s0 + $0x4e8] sm:$0xff]
  %v4065 = vld [vmem:[%s0 + $0x4f0] sm:$0xff]
  %v4066 = vld [vmem:[%s0 + $0x4f8] sm:$0xff]
  %v4067 = vld [vmem:[%s1] sm:$0xf]
  %v4068 = vld [vmem:[%s1 + $0x4] sm:$0xf]
  %v4069 = vld [vmem:[%s1 + $0x8] sm:$0xf]
  %v4070 = vld [vmem:[%s1 + $0xc] sm:$0xf]
  %v4071 = vld [vmem:[%s1 + $0x10] sm:$0xf]
  %v4072 = vld [vmem:[%s1 + $0x14] sm:$0xf]
  %v4073 = vld [vmem:[%s1 + $0x18] sm:$0xf]
  %v4074 = vld [vmem:[%s1 + $0x1c] sm:$0xf]
  %v4075 = vld [vmem:[%s1 + $0x20] sm:$0xf]
  %v4076 = vld [vmem:[%s1 + $0x24] sm:$0xf]
  %v4077 = vld [vmem:[%s1 + $0x28] sm:$0xf]
  %v4078 = vld [vmem:[%s1 + $0x2c] sm:$0xf]
  %v4079 = vld [vmem:[%s1 + $0x30] sm:$0xf]
  %v4080 = vld [vmem:[%s1 + $0x34] sm:$0xf]
  %v4081 = vld [vmem:[%s1 + $0x38] sm:$0xf]
  %v4082 = vld [vmem:[%s1 + $0x3c] sm:$0xf]
  %v4083 = vld [vmem:[%s1 + $0x40] sm:$0xf]
  %v4084 = vld [vmem:[%s1 + $0x44] sm:$0xf]
  %v4085 = vld [vmem:[%s1 + $0x48] sm:$0xf]
  %v4086 = vld [vmem:[%s1 + $0x4c] sm:$0xf]
  %v4087 = vld [vmem:[%s1 + $0x50] sm:$0xf]
  %v4088 = vld [vmem:[%s1 + $0x54] sm:$0xf]
  %v4089 = vld [vmem:[%s1 + $0x58] sm:$0xf]
  %v4090 = vld [vmem:[%s1 + $0x5c] sm:$0xf]
  %v4091 = vld [vmem:[%s1 + $0x60] sm:$0xf]
  %v4092 = vld [vmem:[%s1 + $0x64] sm:$0xf]
  %v4093 = vld [vmem:[%s1 + $0x68] sm:$0xf]
  %v4094 = vld [vmem:[%s1 + $0x6c] sm:$0xf]
  %v4095 = vld [vmem:[%s1 + $0x70] sm:$0xf]
  %v4096 = vld [vmem:[%s1 + $0x74] sm:$0xf]
  %v4097 = vld [vmem:[%s1 + $0x78] sm:$0xf]
  %v4098 = vld [vmem:[%s1 + $0x7c] sm:$0xf]
  %v4099 = vld [vmem:[%s2] sm:$0x1]
  %v4101 = vlaneseq
  %v4102 = vshrl.u32 %v4101, 7
  %v4103 = vsub.s32 0, %v4102
  %v4104 = vrot.slane %v4099, %v4103
  %v4122 = vunpack.c.l.b16 %v4051
  %v4123 = vunpack.c.h.b16 %v4051
  %v4124 = vunpack.c.l.b16 %v4052
  %v4125 = vunpack.c.h.b16 %v4052
  %v4126 = vunpack.c.l.b16 %v4053
  %v4127 = vunpack.c.h.b16 %v4053
  %v4128 = vunpack.c.l.b16 %v4054
  %v4129 = vunpack.c.h.b16 %v4054
  %v4130 = vunpack.c.l.b16 %v4055
  %v4131 = vunpack.c.h.b16 %v4055
  %v4132 = vunpack.c.l.b16 %v4056
  %v4133 = vunpack.c.h.b16 %v4056
  %v4134 = vunpack.c.l.b16 %v4057
  %v4135 = vunpack.c.h.b16 %v4057
  %v4136 = vunpack.c.l.b16 %v4058
  %v4137 = vunpack.c.h.b16 %v4058
  %v4138 = vunpack.c.l.b16 %v4059
  %v4139 = vunpack.c.h.b16 %v4059
  %v4140 = vunpack.c.l.b16 %v4060
  %v4141 = vunpack.c.h.b16 %v4060
  %v4142 = vunpack.c.l.b16 %v4061
  %v4143 = vunpack.c.h.b16 %v4061
  %v4144 = vunpack.c.l.b16 %v4062
  %v4145 = vunpack.c.h.b16 %v4062
  %v4146 = vunpack.c.l.b16 %v4063
  %v4147 = vunpack.c.h.b16 %v4063
  %v4148 = vunpack.c.l.b16 %v4064
  %v4149 = vunpack.c.h.b16 %v4064
  %v4150 = vunpack.c.l.b16 %v4065
  %v4151 = vunpack.c.h.b16 %v4065
  %v4152 = vunpack.c.l.b16 %v4066
  %v4153 = vunpack.c.h.b16 %v4066
  %v4154 = vpack.c.b16 %v4124, %v4122
  %v4155 = vpack.c.b16 %v4125, %v4123
  %v4156 = vpack.c.b16 %v4128, %v4126
  %v4157 = vpack.c.b16 %v4129, %v4127
  %v4158 = vpack.c.b16 %v4132, %v4130
  %v4159 = vpack.c.b16 %v4133, %v4131
  %v4160 = vpack.c.b16 %v4136, %v4134
  %v4161 = vpack.c.b16 %v4137, %v4135
  %v4162 = vpack.c.b16 %v4140, %v4138
  %v4163 = vpack.c.b16 %v4141, %v4139
  %v4164 = vpack.c.b16 %v4144, %v4142
  %v4165 = vpack.c.b16 %v4145, %v4143
  %v4166 = vpack.c.b16 %v4148, %v4146
  %v4167 = vpack.c.b16 %v4149, %v4147
  %v4168 = vpack.c.b16 %v4152, %v4150
  %v4169 = vpack.c.b16 %v4153, %v4151
  %v4218 = vunpack.c.l.b16 %v4067
  %v4219 = vunpack.c.l.b16 %v4068
  %v4220 = vunpack.c.l.b16 %v4069
  %v4221 = vunpack.c.l.b16 %v4070
  %v4222 = vunpack.c.l.b16 %v4071
  %v4223 = vunpack.c.l.b16 %v4072
  %v4224 = vunpack.c.l.b16 %v4073
  %v4225 = vunpack.c.l.b16 %v4074
  %v4226 = vunpack.c.l.b16 %v4075
  %v4227 = vunpack.c.l.b16 %v4076
  %v4228 = vunpack.c.l.b16 %v4077
  %v4229 = vunpack.c.l.b16 %v4078
  %v4230 = vunpack.c.l.b16 %v4079
  %v4231 = vunpack.c.l.b16 %v4080
  %v4232 = vunpack.c.l.b16 %v4081
  %v4233 = vunpack.c.l.b16 %v4082
  %v4234 = vunpack.c.l.b16 %v4083
  %v4235 = vunpack.c.l.b16 %v4084
  %v4236 = vunpack.c.l.b16 %v4085
  %v4237 = vunpack.c.l.b16 %v4086
  %v4238 = vunpack.c.l.b16 %v4087
  %v4239 = vunpack.c.l.b16 %v4088
  %v4240 = vunpack.c.l.b16 %v4089
  %v4241 = vunpack.c.l.b16 %v4090
  %v4242 = vunpack.c.l.b16 %v4091
  %v4243 = vunpack.c.l.b16 %v4092
  %v4244 = vunpack.c.l.b16 %v4093
  %v4245 = vunpack.c.l.b16 %v4094
  %v4246 = vunpack.c.l.b16 %v4095
  %v4247 = vunpack.c.l.b16 %v4096
  %v4248 = vunpack.c.l.b16 %v4097
  %v4249 = vunpack.c.l.b16 %v4098
  %v4250 = vpack.c.b16 %v4219, %v4218
  %v4251 = vpack.c.b16 %v4221, %v4220
  %v4252 = vpack.c.b16 %v4223, %v4222
  %v4253 = vpack.c.b16 %v4225, %v4224
  %v4254 = vpack.c.b16 %v4227, %v4226
  %v4255 = vpack.c.b16 %v4229, %v4228
  %v4256 = vpack.c.b16 %v4231, %v4230
  %v4257 = vpack.c.b16 %v4233, %v4232
  %v4258 = vpack.c.b16 %v4235, %v4234
  %v4259 = vpack.c.b16 %v4237, %v4236
  %v4260 = vpack.c.b16 %v4239, %v4238
  %v4261 = vpack.c.b16 %v4241, %v4240
  %v4262 = vpack.c.b16 %v4243, %v4242
  %v4263 = vpack.c.b16 %v4245, %v4244
  %v4264 = vpack.c.b16 %v4247, %v4246
  %v4265 = vpack.c.b16 %v4249, %v4248
  %4282 = vmatprep.subr.bf16.mxu0 0
  %4283 = vmatpush1.bf16.msra.mxu0 %v4257
  %4284 = vmatprep.subr.bf16.mxu0 0
  %4285 = vmatpush1.bf16.msra.mxu0 %v4256
  %4286 = vmatprep.subr.bf16.mxu0 0
  %4287 = vmatpush1.bf16.msra.mxu0 %v4255
  %4288 = vmatprep.subr.bf16.mxu0 0
  %4289 = vmatpush1.bf16.msra.mxu0 %v4254
  %4290 = vmatprep.subr.bf16.mxu0 0
  %4291 = vmatpush1.bf16.msra.mxu0 %v4253
  %4292 = vmatprep.subr.bf16.mxu0 0
  %4293 = vmatpush1.bf16.msra.mxu0 %v4252
  %4294 = vmatprep.subr.bf16.mxu0 0
  %4295 = vmatpush1.bf16.msra.mxu0 %v4251
  %4296 = vmatprep.subr.bf16.mxu0 0
  %4297 = vmatpush1.bf16.msra.mxu0 %v4250
  %4298 = vmatprep.subr.bf16.mxu0 0
  %4299 = vmatpush2.bf16.msra.mxu0 %v4265
  %4300 = vmatprep.subr.bf16.mxu0 0
  %4301 = vmatpush2.bf16.msra.mxu0 %v4264
  %4302 = vmatprep.subr.bf16.mxu0 0
  %4303 = vmatpush2.bf16.msra.mxu0 %v4263
  %4304 = vmatprep.subr.bf16.mxu0 0
  %4305 = vmatpush2.bf16.msra.mxu0 %v4262
  %4306 = vmatprep.subr.bf16.mxu0 0
  %4307 = vmatpush2.bf16.msra.mxu0 %v4261
  %4308 = vmatprep.subr.bf16.mxu0 0
  %4309 = vmatpush2.bf16.msra.mxu0 %v4260
  %4310 = vmatprep.subr.bf16.mxu0 0
  %4311 = vmatpush2.bf16.msra.mxu0 %v4259
  %4312 = vmatprep.subr.bf16.mxu0 0
  %4313 = vmatpush2.bf16.msra.mxu0 %v4258
  %4314 = vmatprep.mubr.bf16.mxu0 %v4155
  %4315 = vmatmul.mubr.bf16.gmra.mxu0 %v4154
  %v4316 = vpop.f32.mrf.mxu0
  %v4317 = vadd.f32 %v4104, %v4316
  %v4318 = vpop.f32.mrf.mxu0
  %v4319 = vpop.f32.mrf.mxu0
  %v4320 = vadd.f32 %v4104, %v4319
  %v4321 = vpop.f32.mrf.mxu0
  %4322 = vmatprep.mubr.bf16.mxu0 %v4157
  %4323 = vmatmul.mubr.bf16.gmra.mxu0 %v4156
  %v4324 = vpop.f32.mrf.mxu0
  %v4325 = vadd.f32 %v4104, %v4324
  %v4326 = vpop.f32.mrf.mxu0
  %v4327 = vpop.f32.mrf.mxu0
  %v4328 = vadd.f32 %v4104, %v4327
  %v4329 = vpop.f32.mrf.mxu0
  %4330 = vmatprep.mubr.bf16.mxu0 %v4159
  %4331 = vmatmul.mubr.bf16.gmra.mxu0 %v4158
  %v4332 = vpop.f32.mrf.mxu0
  %v4333 = vadd.f32 %v4104, %v4332
  %v4334 = vpop.f32.mrf.mxu0
  %v4335 = vpop.f32.mrf.mxu0
  %v4336 = vadd.f32 %v4104, %v4335
  %v4337 = vpop.f32.mrf.mxu0
  %4338 = vmatprep.mubr.bf16.mxu0 %v4161
  %4339 = vmatmul.mubr.bf16.gmra.mxu0 %v4160
  %v4340 = vpop.f32.mrf.mxu0
  %v4341 = vadd.f32 %v4104, %v4340
  %v4342 = vpop.f32.mrf.mxu0
  %v4343 = vpop.f32.mrf.mxu0
  %v4344 = vadd.f32 %v4104, %v4343
  %v4345 = vpop.f32.mrf.mxu0
  %4346 = vmatprep.mubr.bf16.mxu0 %v4163
  %4347 = vmatmul.mubr.bf16.gmra.mxu0 %v4162
  %v4348 = vpop.f32.mrf.mxu0
  %v4349 = vadd.f32 %v4104, %v4348
  %v4350 = vpop.f32.mrf.mxu0
  %v4351 = vpop.f32.mrf.mxu0
  %v4352 = vadd.f32 %v4104, %v4351
  %v4353 = vpop.f32.mrf.mxu0
  %4354 = vmatprep.mubr.bf16.mxu0 %v4165
  %4355 = vmatmul.mubr.bf16.gmra.mxu0 %v4164
  %v4356 = vpop.f32.mrf.mxu0
  %v4357 = vadd.f32 %v4104, %v4356
  %v4358 = vpop.f32.mrf.mxu0
  %v4359 = vpop.f32.mrf.mxu0
  %v4360 = vadd.f32 %v4104, %v4359
  %v4361 = vpop.f32.mrf.mxu0
  %4362 = vmatprep.mubr.bf16.mxu0 %v4167
  %4363 = vmatmul.mubr.bf16.gmra.mxu0 %v4166
  %v4364 = vpop.f32.mrf.mxu0
  %v4365 = vadd.f32 %v4104, %v4364
  %v4366 = vpop.f32.mrf.mxu0
  %v4367 = vpop.f32.mrf.mxu0
  %v4368 = vadd.f32 %v4104, %v4367
  %v4369 = vpop.f32.mrf.mxu0
  %4370 = vmatprep.mubr.bf16.mxu0 %v4169
  %4371 = vmatmul.mubr.bf16.gmra.mxu0 %v4168
  %v4372 = vpop.f32.mrf.mxu0
  %v4373 = vadd.f32 %v4104, %v4372
  %v4374 = vpop.f32.mrf.mxu0
  %v4375 = vpop.f32.mrf.mxu0
  %v4376 = vadd.f32 %v4104, %v4375
  %v4377 = vpop.f32.mrf.mxu0
  %4378 = vdwg.mxu0
  %v4379 = vmax.f32 %v4317, 0.0
  %v4380 = vmax.f32 %v4320, 0.0
  %v4381 = vmax.f32 %v4325, 0.0
  %v4382 = vmax.f32 %v4328, 0.0
  %v4383 = vmax.f32 %v4333, 0.0
  %v4384 = vmax.f32 %v4336, 0.0
  %v4385 = vmax.f32 %v4341, 0.0
  %v4386 = vmax.f32 %v4344, 0.0
  %v4387 = vmax.f32 %v4349, 0.0
  %v4388 = vmax.f32 %v4352, 0.0
  %v4389 = vmax.f32 %v4357, 0.0
  %v4390 = vmax.f32 %v4360, 0.0
  %v4391 = vmax.f32 %v4365, 0.0
  %v4392 = vmax.f32 %v4368, 0.0
  %v4393 = vmax.f32 %v4373, 0.0
  %v4394 = vmax.f32 %v4376, 0.0
  %v4395 = vpack.c.bf16 %v4380, %v4379
  %v4396 = vpack.c.bf16 %v4382, %v4381
  %v4397 = vpack.c.bf16 %v4384, %v4383
  %v4398 = vpack.c.bf16 %v4386, %v4385
  %v4399 = vpack.c.bf16 %v4388, %v4387
  %v4400 = vpack.c.bf16 %v4390, %v4389
  %v4401 = vpack.c.bf16 %v4392, %v4391
  %v4402 = vpack.c.bf16 %v4394, %v4393
  %v4411 = vunpack.c.l.b16 %v4395
  %v4412 = vunpack.c.h.b16 %v4395
  %v4413 = vunpack.c.l.b16 %v4396
  %v4414 = vunpack.c.h.b16 %v4396
  %v4415 = vunpack.c.l.b16 %v4397
  %v4416 = vunpack.c.h.b16 %v4397
  %v4417 = vunpack.c.l.b16 %v4398
  %v4418 = vunpack.c.h.b16 %v4398
  %v4419 = vunpack.c.l.b16 %v4399
  %v4420 = vunpack.c.h.b16 %v4399
  %v4421 = vunpack.c.l.b16 %v4400
  %v4422 = vunpack.c.h.b16 %v4400
  %v4423 = vunpack.c.l.b16 %v4401
  %v4424 = vunpack.c.h.b16 %v4401
  %v4425 = vunpack.c.l.b16 %v4402
  %v4426 = vunpack.c.h.b16 %v4402
  %v4427 = vpack.c.b16 %v4411, %v4411
  %v4428 = vpack.c.b16 %v4412, %v4412
  %v4429 = vpack.c.b16 %v4413, %v4413
  %v4430 = vpack.c.b16 %v4414, %v4414
  %v4431 = vpack.c.b16 %v4415, %v4415
  %v4432 = vpack.c.b16 %v4416, %v4416
  %v4433 = vpack.c.b16 %v4417, %v4417
  %v4434 = vpack.c.b16 %v4418, %v4418
  %v4435 = vpack.c.b16 %v4419, %v4419
  %v4436 = vpack.c.b16 %v4420, %v4420
  %v4437 = vpack.c.b16 %v4421, %v4421
  %v4438 = vpack.c.b16 %v4422, %v4422
  %v4439 = vpack.c.b16 %v4423, %v4423
  %v4440 = vpack.c.b16 %v4424, %v4424
  %v4441 = vpack.c.b16 %v4425, %v4425
  %v4442 = vpack.c.b16 %v4426, %v4426
  %4443 = vrot.lane.b32.xlu0 %v4427, 32
  %v4444 = vpop.permute.xlu0 %4443
  %4445 = vrot.lane.b32.xlu0 %v4428, 32
  %v4446 = vpop.permute.xlu0 %4445
  %4447 = vrot.lane.b32.xlu0 %v4429, 32
  %v4448 = vpop.permute.xlu0 %4447
  %4449 = vrot.lane.b32.xlu0 %v4430, 32
  %v4450 = vpop.permute.xlu0 %4449
  %4451 = vrot.lane.b32.xlu0 %v4431, 32
  %v4452 = vpop.permute.xlu0 %4451
  %4453 = vrot.lane.b32.xlu0 %v4432, 32
  %v4454 = vpop.permute.xlu0 %4453
  %4455 = vrot.lane.b32.xlu0 %v4433, 32
  %v4456 = vpop.permute.xlu0 %4455
  %4457 = vrot.lane.b32.xlu0 %v4434, 32
  %v4458 = vpop.permute.xlu0 %4457
  %4459 = vrot.lane.b32.xlu0 %v4435, 32
  %v4460 = vpop.permute.xlu0 %4459
  %4461 = vrot.lane.b32.xlu0 %v4436, 32
  %v4462 = vpop.permute.xlu0 %4461
  %4463 = vrot.lane.b32.xlu0 %v4437, 32
  %v4464 = vpop.permute.xlu0 %4463
  %4465 = vrot.lane.b32.xlu0 %v4438, 32
  %v4466 = vpop.permute.xlu0 %4465
  %4467 = vrot.lane.b32.xlu0 %v4439, 32
  %v4468 = vpop.permute.xlu0 %4467
  %4469 = vrot.lane.b32.xlu0 %v4440, 32
  %v4470 = vpop.permute.xlu0 %4469
  %4471 = vrot.lane.b32.xlu0 %v4441, 32
  %v4472 = vpop.permute.xlu0 %4471
  %4473 = vrot.lane.b32.xlu0 %v4442, 32
  %v4474 = vpop.permute.xlu0 %4473
  %4491 = vst.msk [vmem:[#allocation2 + $0x8] sm:$0xf] %vm904, %v4444
  %4492 = vst.msk [vmem:[#allocation2 + $0x18] sm:$0xf] %vm904, %v4446
  %4493 = vst.msk [vmem:[#allocation2 + $0x28] sm:$0xf] %vm904, %v4448
  %4494 = vst.msk [vmem:[#allocation2 + $0x38] sm:$0xf] %vm904, %v4450
  %4495 = vst.msk [vmem:[#allocation2 + $0x48] sm:$0xf] %vm904, %v4452
  %4496 = vst.msk [vmem:[#allocation2 + $0x58] sm:$0xf] %vm904, %v4454
  %4497 = vst.msk [vmem:[#allocation2 + $0x68] sm:$0xf] %vm904, %v4456
  %4498 = vst.msk [vmem:[#allocation2 + $0x78] sm:$0xf] %vm904, %v4458
  %4499 = vst.msk [vmem:[#allocation2 + $0x88] sm:$0xf] %vm904, %v4460
  %4500 = vst.msk [vmem:[#allocation2 + $0x98] sm:$0xf] %vm904, %v4462
  %4501 = vst.msk [vmem:[#allocation2 + $0xa8] sm:$0xf] %vm904, %v4464
  %4502 = vst.msk [vmem:[#allocation2 + $0xb8] sm:$0xf] %vm904, %v4466
  %4503 = vst.msk [vmem:[#allocation2 + $0xc8] sm:$0xf] %vm904, %v4468
  %4504 = vst.msk [vmem:[#allocation2 + $0xd8] sm:$0xf] %vm904, %v4470
  %4505 = vst.msk [vmem:[#allocation2 + $0xe8] sm:$0xf] %vm904, %v4472
  %4506 = vst.msk [vmem:[#allocation2 + $0xf8] sm:$0xf] %vm904, %v4474
  %v4507 = vld [vmem:[%s0 + $0x500] sm:$0xff]
  %v4508 = vld [vmem:[%s0 + $0x508] sm:$0xff]
  %v4509 = vld [vmem:[%s0 + $0x510] sm:$0xff]
  %v4510 = vld [vmem:[%s0 + $0x518] sm:$0xff]
  %v4511 = vld [vmem:[%s0 + $0x520] sm:$0xff]
  %v4512 = vld [vmem:[%s0 + $0x528] sm:$0xff]
  %v4513 = vld [vmem:[%s0 + $0x530] sm:$0xff]
  %v4514 = vld [vmem:[%s0 + $0x538] sm:$0xff]
  %v4515 = vld [vmem:[%s0 + $0x540] sm:$0xff]
  %v4516 = vld [vmem:[%s0 + $0x548] sm:$0xff]
  %v4517 = vld [vmem:[%s0 + $0x550] sm:$0xff]
  %v4518 = vld [vmem:[%s0 + $0x558] sm:$0xff]
  %v4519 = vld [vmem:[%s0 + $0x560] sm:$0xff]
  %v4520 = vld [vmem:[%s0 + $0x568] sm:$0xff]
  %v4521 = vld [vmem:[%s0 + $0x570] sm:$0xff]
  %v4522 = vld [vmem:[%s0 + $0x578] sm:$0xff]
  %v4523 = vld [vmem:[%s1] sm:$0xf]
  %v4524 = vld [vmem:[%s1 + $0x4] sm:$0xf]
  %v4525 = vld [vmem:[%s1 + $0x8] sm:$0xf]
  %v4526 = vld [vmem:[%s1 + $0xc] sm:$0xf]
  %v4527 = vld [vmem:[%s1 + $0x10] sm:$0xf]
  %v4528 = vld [vmem:[%s1 + $0x14] sm:$0xf]
  %v4529 = vld [vmem:[%s1 + $0x18] sm:$0xf]
  %v4530 = vld [vmem:[%s1 + $0x1c] sm:$0xf]
  %v4531 = vld [vmem:[%s1 + $0x20] sm:$0xf]
  %v4532 = vld [vmem:[%s1 + $0x24] sm:$0xf]
  %v4533 = vld [vmem:[%s1 + $0x28] sm:$0xf]
  %v4534 = vld [vmem:[%s1 + $0x2c] sm:$0xf]
  %v4535 = vld [vmem:[%s1 + $0x30] sm:$0xf]
  %v4536 = vld [vmem:[%s1 + $0x34] sm:$0xf]
  %v4537 = vld [vmem:[%s1 + $0x38] sm:$0xf]
  %v4538 = vld [vmem:[%s1 + $0x3c] sm:$0xf]
  %v4539 = vld [vmem:[%s1 + $0x40] sm:$0xf]
  %v4540 = vld [vmem:[%s1 + $0x44] sm:$0xf]
  %v4541 = vld [vmem:[%s1 + $0x48] sm:$0xf]
  %v4542 = vld [vmem:[%s1 + $0x4c] sm:$0xf]
  %v4543 = vld [vmem:[%s1 + $0x50] sm:$0xf]
  %v4544 = vld [vmem:[%s1 + $0x54] sm:$0xf]
  %v4545 = vld [vmem:[%s1 + $0x58] sm:$0xf]
  %v4546 = vld [vmem:[%s1 + $0x5c] sm:$0xf]
  %v4547 = vld [vmem:[%s1 + $0x60] sm:$0xf]
  %v4548 = vld [vmem:[%s1 + $0x64] sm:$0xf]
  %v4549 = vld [vmem:[%s1 + $0x68] sm:$0xf]
  %v4550 = vld [vmem:[%s1 + $0x6c] sm:$0xf]
  %v4551 = vld [vmem:[%s1 + $0x70] sm:$0xf]
  %v4552 = vld [vmem:[%s1 + $0x74] sm:$0xf]
  %v4553 = vld [vmem:[%s1 + $0x78] sm:$0xf]
  %v4554 = vld [vmem:[%s1 + $0x7c] sm:$0xf]
  %v4555 = vld [vmem:[%s2] sm:$0x1]
  %v4557 = vlaneseq
  %v4558 = vshrl.u32 %v4557, 7
  %v4559 = vsub.s32 0, %v4558
  %v4560 = vrot.slane %v4555, %v4559
  %v4578 = vunpack.c.l.b16 %v4507
  %v4579 = vunpack.c.h.b16 %v4507
  %v4580 = vunpack.c.l.b16 %v4508
  %v4581 = vunpack.c.h.b16 %v4508
  %v4582 = vunpack.c.l.b16 %v4509
  %v4583 = vunpack.c.h.b16 %v4509
  %v4584 = vunpack.c.l.b16 %v4510
  %v4585 = vunpack.c.h.b16 %v4510
  %v4586 = vunpack.c.l.b16 %v4511
  %v4587 = vunpack.c.h.b16 %v4511
  %v4588 = vunpack.c.l.b16 %v4512
  %v4589 = vunpack.c.h.b16 %v4512
  %v4590 = vunpack.c.l.b16 %v4513
  %v4591 = vunpack.c.h.b16 %v4513
  %v4592 = vunpack.c.l.b16 %v4514
  %v4593 = vunpack.c.h.b16 %v4514
  %v4594 = vunpack.c.l.b16 %v4515
  %v4595 = vunpack.c.h.b16 %v4515
  %v4596 = vunpack.c.l.b16 %v4516
  %v4597 = vunpack.c.h.b16 %v4516
  %v4598 = vunpack.c.l.b16 %v4517
  %v4599 = vunpack.c.h.b16 %v4517
  %v4600 = vunpack.c.l.b16 %v4518
  %v4601 = vunpack.c.h.b16 %v4518
  %v4602 = vunpack.c.l.b16 %v4519
  %v4603 = vunpack.c.h.b16 %v4519
  %v4604 = vunpack.c.l.b16 %v4520
  %v4605 = vunpack.c.h.b16 %v4520
  %v4606 = vunpack.c.l.b16 %v4521
  %v4607 = vunpack.c.h.b16 %v4521
  %v4608 = vunpack.c.l.b16 %v4522
  %v4609 = vunpack.c.h.b16 %v4522
  %v4610 = vpack.c.b16 %v4580, %v4578
  %v4611 = vpack.c.b16 %v4581, %v4579
  %v4612 = vpack.c.b16 %v4584, %v4582
  %v4613 = vpack.c.b16 %v4585, %v4583
  %v4614 = vpack.c.b16 %v4588, %v4586
  %v4615 = vpack.c.b16 %v4589, %v4587
  %v4616 = vpack.c.b16 %v4592, %v4590
  %v4617 = vpack.c.b16 %v4593, %v4591
  %v4618 = vpack.c.b16 %v4596, %v4594
  %v4619 = vpack.c.b16 %v4597, %v4595
  %v4620 = vpack.c.b16 %v4600, %v4598
  %v4621 = vpack.c.b16 %v4601, %v4599
  %v4622 = vpack.c.b16 %v4604, %v4602
  %v4623 = vpack.c.b16 %v4605, %v4603
  %v4624 = vpack.c.b16 %v4608, %v4606
  %v4625 = vpack.c.b16 %v4609, %v4607
  %v4674 = vunpack.c.l.b16 %v4523
  %v4675 = vunpack.c.l.b16 %v4524
  %v4676 = vunpack.c.l.b16 %v4525
  %v4677 = vunpack.c.l.b16 %v4526
  %v4678 = vunpack.c.l.b16 %v4527
  %v4679 = vunpack.c.l.b16 %v4528
  %v4680 = vunpack.c.l.b16 %v4529
  %v4681 = vunpack.c.l.b16 %v4530
  %v4682 = vunpack.c.l.b16 %v4531
  %v4683 = vunpack.c.l.b16 %v4532
  %v4684 = vunpack.c.l.b16 %v4533
  %v4685 = vunpack.c.l.b16 %v4534
  %v4686 = vunpack.c.l.b16 %v4535
  %v4687 = vunpack.c.l.b16 %v4536
  %v4688 = vunpack.c.l.b16 %v4537
  %v4689 = vunpack.c.l.b16 %v4538
  %v4690 = vunpack.c.l.b16 %v4539
  %v4691 = vunpack.c.l.b16 %v4540
  %v4692 = vunpack.c.l.b16 %v4541
  %v4693 = vunpack.c.l.b16 %v4542
  %v4694 = vunpack.c.l.b16 %v4543
  %v4695 = vunpack.c.l.b16 %v4544
  %v4696 = vunpack.c.l.b16 %v4545
  %v4697 = vunpack.c.l.b16 %v4546
  %v4698 = vunpack.c.l.b16 %v4547
  %v4699 = vunpack.c.l.b16 %v4548
  %v4700 = vunpack.c.l.b16 %v4549
  %v4701 = vunpack.c.l.b16 %v4550
  %v4702 = vunpack.c.l.b16 %v4551
  %v4703 = vunpack.c.l.b16 %v4552
  %v4704 = vunpack.c.l.b16 %v4553
  %v4705 = vunpack.c.l.b16 %v4554
  %v4706 = vpack.c.b16 %v4675, %v4674
  %v4707 = vpack.c.b16 %v4677, %v4676
  %v4708 = vpack.c.b16 %v4679, %v4678
  %v4709 = vpack.c.b16 %v4681, %v4680
  %v4710 = vpack.c.b16 %v4683, %v4682
  %v4711 = vpack.c.b16 %v4685, %v4684
  %v4712 = vpack.c.b16 %v4687, %v4686
  %v4713 = vpack.c.b16 %v4689, %v4688
  %v4714 = vpack.c.b16 %v4691, %v4690
  %v4715 = vpack.c.b16 %v4693, %v4692
  %v4716 = vpack.c.b16 %v4695, %v4694
  %v4717 = vpack.c.b16 %v4697, %v4696
  %v4718 = vpack.c.b16 %v4699, %v4698
  %v4719 = vpack.c.b16 %v4701, %v4700
  %v4720 = vpack.c.b16 %v4703, %v4702
  %v4721 = vpack.c.b16 %v4705, %v4704
  %4738 = vmatprep.subr.bf16.mxu0 0
  %4739 = vmatpush1.bf16.msra.mxu0 %v4713
  %4740 = vmatprep.subr.bf16.mxu0 0
  %4741 = vmatpush1.bf16.msra.mxu0 %v4712
  %4742 = vmatprep.subr.bf16.mxu0 0
  %4743 = vmatpush1.bf16.msra.mxu0 %v4711
  %4744 = vmatprep.subr.bf16.mxu0 0
  %4745 = vmatpush1.bf16.msra.mxu0 %v4710
  %4746 = vmatprep.subr.bf16.mxu0 0
  %4747 = vmatpush1.bf16.msra.mxu0 %v4709
  %4748 = vmatprep.subr.bf16.mxu0 0
  %4749 = vmatpush1.bf16.msra.mxu0 %v4708
  %4750 = vmatprep.subr.bf16.mxu0 0
  %4751 = vmatpush1.bf16.msra.mxu0 %v4707
  %4752 = vmatprep.subr.bf16.mxu0 0
  %4753 = vmatpush1.bf16.msra.mxu0 %v4706
  %4754 = vmatprep.subr.bf16.mxu0 0
  %4755 = vmatpush2.bf16.msra.mxu0 %v4721
  %4756 = vmatprep.subr.bf16.mxu0 0
  %4757 = vmatpush2.bf16.msra.mxu0 %v4720
  %4758 = vmatprep.subr.bf16.mxu0 0
  %4759 = vmatpush2.bf16.msra.mxu0 %v4719
  %4760 = vmatprep.subr.bf16.mxu0 0
  %4761 = vmatpush2.bf16.msra.mxu0 %v4718
  %4762 = vmatprep.subr.bf16.mxu0 0
  %4763 = vmatpush2.bf16.msra.mxu0 %v4717
  %4764 = vmatprep.subr.bf16.mxu0 0
  %4765 = vmatpush2.bf16.msra.mxu0 %v4716
  %4766 = vmatprep.subr.bf16.mxu0 0
  %4767 = vmatpush2.bf16.msra.mxu0 %v4715
  %4768 = vmatprep.subr.bf16.mxu0 0
  %4769 = vmatpush2.bf16.msra.mxu0 %v4714
  %4770 = vmatprep.mubr.bf16.mxu0 %v4611
  %4771 = vmatmul.mubr.bf16.gmra.mxu0 %v4610
  %v4772 = vpop.f32.mrf.mxu0
  %v4773 = vadd.f32 %v4560, %v4772
  %v4774 = vpop.f32.mrf.mxu0
  %v4775 = vpop.f32.mrf.mxu0
  %v4776 = vadd.f32 %v4560, %v4775
  %v4777 = vpop.f32.mrf.mxu0
  %4778 = vmatprep.mubr.bf16.mxu0 %v4613
  %4779 = vmatmul.mubr.bf16.gmra.mxu0 %v4612
  %v4780 = vpop.f32.mrf.mxu0
  %v4781 = vadd.f32 %v4560, %v4780
  %v4782 = vpop.f32.mrf.mxu0
  %v4783 = vpop.f32.mrf.mxu0
  %v4784 = vadd.f32 %v4560, %v4783
  %v4785 = vpop.f32.mrf.mxu0
  %4786 = vmatprep.mubr.bf16.mxu0 %v4615
  %4787 = vmatmul.mubr.bf16.gmra.mxu0 %v4614
  %v4788 = vpop.f32.mrf.mxu0
  %v4789 = vadd.f32 %v4560, %v4788
  %v4790 = vpop.f32.mrf.mxu0
  %v4791 = vpop.f32.mrf.mxu0
  %v4792 = vadd.f32 %v4560, %v4791
  %v4793 = vpop.f32.mrf.mxu0
  %4794 = vmatprep.mubr.bf16.mxu0 %v4617
  %4795 = vmatmul.mubr.bf16.gmra.mxu0 %v4616
  %v4796 = vpop.f32.mrf.mxu0
  %v4797 = vadd.f32 %v4560, %v4796
  %v4798 = vpop.f32.mrf.mxu0
  %v4799 = vpop.f32.mrf.mxu0
  %v4800 = vadd.f32 %v4560, %v4799
  %v4801 = vpop.f32.mrf.mxu0
  %4802 = vmatprep.mubr.bf16.mxu0 %v4619
  %4803 = vmatmul.mubr.bf16.gmra.mxu0 %v4618
  %v4804 = vpop.f32.mrf.mxu0
  %v4805 = vadd.f32 %v4560, %v4804
  %v4806 = vpop.f32.mrf.mxu0
  %v4807 = vpop.f32.mrf.mxu0
  %v4808 = vadd.f32 %v4560, %v4807
  %v4809 = vpop.f32.mrf.mxu0
  %4810 = vmatprep.mubr.bf16.mxu0 %v4621
  %4811 = vmatmul.mubr.bf16.gmra.mxu0 %v4620
  %v4812 = vpop.f32.mrf.mxu0
  %v4813 = vadd.f32 %v4560, %v4812
  %v4814 = vpop.f32.mrf.mxu0
  %v4815 = vpop.f32.mrf.mxu0
  %v4816 = vadd.f32 %v4560, %v4815
  %v4817 = vpop.f32.mrf.mxu0
  %4818 = vmatprep.mubr.bf16.mxu0 %v4623
  %4819 = vmatmul.mubr.bf16.gmra.mxu0 %v4622
  %v4820 = vpop.f32.mrf.mxu0
  %v4821 = vadd.f32 %v4560, %v4820
  %v4822 = vpop.f32.mrf.mxu0
  %v4823 = vpop.f32.mrf.mxu0
  %v4824 = vadd.f32 %v4560, %v4823
  %v4825 = vpop.f32.mrf.mxu0
  %4826 = vmatprep.mubr.bf16.mxu0 %v4625
  %4827 = vmatmul.mubr.bf16.gmra.mxu0 %v4624
  %v4828 = vpop.f32.mrf.mxu0
  %v4829 = vadd.f32 %v4560, %v4828
  %v4830 = vpop.f32.mrf.mxu0
  %v4831 = vpop.f32.mrf.mxu0
  %v4832 = vadd.f32 %v4560, %v4831
  %v4833 = vpop.f32.mrf.mxu0
  %4834 = vdwg.mxu0
  %v4835 = vmax.f32 %v4773, 0.0
  %v4836 = vmax.f32 %v4776, 0.0
  %v4837 = vmax.f32 %v4781, 0.0
  %v4838 = vmax.f32 %v4784, 0.0
  %v4839 = vmax.f32 %v4789, 0.0
  %v4840 = vmax.f32 %v4792, 0.0
  %v4841 = vmax.f32 %v4797, 0.0
  %v4842 = vmax.f32 %v4800, 0.0
  %v4843 = vmax.f32 %v4805, 0.0
  %v4844 = vmax.f32 %v4808, 0.0
  %v4845 = vmax.f32 %v4813, 0.0
  %v4846 = vmax.f32 %v4816, 0.0
  %v4847 = vmax.f32 %v4821, 0.0
  %v4848 = vmax.f32 %v4824, 0.0
  %v4849 = vmax.f32 %v4829, 0.0
  %v4850 = vmax.f32 %v4832, 0.0
  %v4851 = vpack.c.bf16 %v4836, %v4835
  %v4852 = vpack.c.bf16 %v4838, %v4837
  %v4853 = vpack.c.bf16 %v4840, %v4839
  %v4854 = vpack.c.bf16 %v4842, %v4841
  %v4855 = vpack.c.bf16 %v4844, %v4843
  %v4856 = vpack.c.bf16 %v4846, %v4845
  %v4857 = vpack.c.bf16 %v4848, %v4847
  %v4858 = vpack.c.bf16 %v4850, %v4849
  %v4867 = vunpack.c.l.b16 %v4851
  %v4868 = vunpack.c.h.b16 %v4851
  %v4869 = vunpack.c.l.b16 %v4852
  %v4870 = vunpack.c.h.b16 %v4852
  %v4871 = vunpack.c.l.b16 %v4853
  %v4872 = vunpack.c.h.b16 %v4853
  %v4873 = vunpack.c.l.b16 %v4854
  %v4874 = vunpack.c.h.b16 %v4854
  %v4875 = vunpack.c.l.b16 %v4855
  %v4876 = vunpack.c.h.b16 %v4855
  %v4877 = vunpack.c.l.b16 %v4856
  %v4878 = vunpack.c.h.b16 %v4856
  %v4879 = vunpack.c.l.b16 %v4857
  %v4880 = vunpack.c.h.b16 %v4857
  %v4881 = vunpack.c.l.b16 %v4858
  %v4882 = vunpack.c.h.b16 %v4858
  %v4883 = vpack.c.b16 %v4867, %v4867
  %v4884 = vpack.c.b16 %v4868, %v4868
  %v4885 = vpack.c.b16 %v4869, %v4869
  %v4886 = vpack.c.b16 %v4870, %v4870
  %v4887 = vpack.c.b16 %v4871, %v4871
  %v4888 = vpack.c.b16 %v4872, %v4872
  %v4889 = vpack.c.b16 %v4873, %v4873
  %v4890 = vpack.c.b16 %v4874, %v4874
  %v4891 = vpack.c.b16 %v4875, %v4875
  %v4892 = vpack.c.b16 %v4876, %v4876
  %v4893 = vpack.c.b16 %v4877, %v4877
  %v4894 = vpack.c.b16 %v4878, %v4878
  %v4895 = vpack.c.b16 %v4879, %v4879
  %v4896 = vpack.c.b16 %v4880, %v4880
  %v4897 = vpack.c.b16 %v4881, %v4881
  %v4898 = vpack.c.b16 %v4882, %v4882
  %4899 = vrot.lane.b32.xlu0 %v4883, 64
  %v4900 = vpop.permute.xlu0 %4899
  %4901 = vrot.lane.b32.xlu0 %v4884, 64
  %v4902 = vpop.permute.xlu0 %4901
  %4903 = vrot.lane.b32.xlu0 %v4885, 64
  %v4904 = vpop.permute.xlu0 %4903
  %4905 = vrot.lane.b32.xlu0 %v4886, 64
  %v4906 = vpop.permute.xlu0 %4905
  %4907 = vrot.lane.b32.xlu0 %v4887, 64
  %v4908 = vpop.permute.xlu0 %4907
  %4909 = vrot.lane.b32.xlu0 %v4888, 64
  %v4910 = vpop.permute.xlu0 %4909
  %4911 = vrot.lane.b32.xlu0 %v4889, 64
  %v4912 = vpop.permute.xlu0 %4911
  %4913 = vrot.lane.b32.xlu0 %v4890, 64
  %v4914 = vpop.permute.xlu0 %4913
  %4915 = vrot.lane.b32.xlu0 %v4891, 64
  %v4916 = vpop.permute.xlu0 %4915
  %4917 = vrot.lane.b32.xlu0 %v4892, 64
  %v4918 = vpop.permute.xlu0 %4917
  %4919 = vrot.lane.b32.xlu0 %v4893, 64
  %v4920 = vpop.permute.xlu0 %4919
  %4921 = vrot.lane.b32.xlu0 %v4894, 64
  %v4922 = vpop.permute.xlu0 %4921
  %4923 = vrot.lane.b32.xlu0 %v4895, 64
  %v4924 = vpop.permute.xlu0 %4923
  %4925 = vrot.lane.b32.xlu0 %v4896, 64
  %v4926 = vpop.permute.xlu0 %4925
  %4927 = vrot.lane.b32.xlu0 %v4897, 64
  %v4928 = vpop.permute.xlu0 %4927
  %4929 = vrot.lane.b32.xlu0 %v4898, 64
  %v4930 = vpop.permute.xlu0 %4929
  %4947 = vst.msk [vmem:[#allocation2 + $0x8] sm:$0xf] %vm1361, %v4900
  %4948 = vst.msk [vmem:[#allocation2 + $0x18] sm:$0xf] %vm1361, %v4902
  %4949 = vst.msk [vmem:[#allocation2 + $0x28] sm:$0xf] %vm1361, %v4904
  %4950 = vst.msk [vmem:[#allocation2 + $0x38] sm:$0xf] %vm1361, %v4906
  %4951 = vst.msk [vmem:[#allocation2 + $0x48] sm:$0xf] %vm1361, %v4908
  %4952 = vst.msk [vmem:[#allocation2 + $0x58] sm:$0xf] %vm1361, %v4910
  %4953 = vst.msk [vmem:[#allocation2 + $0x68] sm:$0xf] %vm1361, %v4912
  %4954 = vst.msk [vmem:[#allocation2 + $0x78] sm:$0xf] %vm1361, %v4914
  %4955 = vst.msk [vmem:[#allocation2 + $0x88] sm:$0xf] %vm1361, %v4916
  %4956 = vst.msk [vmem:[#allocation2 + $0x98] sm:$0xf] %vm1361, %v4918
  %4957 = vst.msk [vmem:[#allocation2 + $0xa8] sm:$0xf] %vm1361, %v4920
  %4958 = vst.msk [vmem:[#allocation2 + $0xb8] sm:$0xf] %vm1361, %v4922
  %4959 = vst.msk [vmem:[#allocation2 + $0xc8] sm:$0xf] %vm1361, %v4924
  %4960 = vst.msk [vmem:[#allocation2 + $0xd8] sm:$0xf] %vm1361, %v4926
  %4961 = vst.msk [vmem:[#allocation2 + $0xe8] sm:$0xf] %vm1361, %v4928
  %4962 = vst.msk [vmem:[#allocation2 + $0xf8] sm:$0xf] %vm1361, %v4930
  %v4963 = vld [vmem:[%s0 + $0x580] sm:$0xff]
  %v4964 = vld [vmem:[%s0 + $0x588] sm:$0xff]
  %v4965 = vld [vmem:[%s0 + $0x590] sm:$0xff]
  %v4966 = vld [vmem:[%s0 + $0x598] sm:$0xff]
  %v4967 = vld [vmem:[%s0 + $0x5a0] sm:$0xff]
  %v4968 = vld [vmem:[%s0 + $0x5a8] sm:$0xff]
  %v4969 = vld [vmem:[%s0 + $0x5b0] sm:$0xff]
  %v4970 = vld [vmem:[%s0 + $0x5b8] sm:$0xff]
  %v4971 = vld [vmem:[%s0 + $0x5c0] sm:$0xff]
  %v4972 = vld [vmem:[%s0 + $0x5c8] sm:$0xff]
  %v4973 = vld [vmem:[%s0 + $0x5d0] sm:$0xff]
  %v4974 = vld [vmem:[%s0 + $0x5d8] sm:$0xff]
  %v4975 = vld [vmem:[%s0 + $0x5e0] sm:$0xff]
  %v4976 = vld [vmem:[%s0 + $0x5e8] sm:$0xff]
  %v4977 = vld [vmem:[%s0 + $0x5f0] sm:$0xff]
  %v4978 = vld [vmem:[%s0 + $0x5f8] sm:$0xff]
  %v4979 = vld [vmem:[%s1] sm:$0xf]
  %v4980 = vld [vmem:[%s1 + $0x4] sm:$0xf]
  %v4981 = vld [vmem:[%s1 + $0x8] sm:$0xf]
  %v4982 = vld [vmem:[%s1 + $0xc] sm:$0xf]
  %v4983 = vld [vmem:[%s1 + $0x10] sm:$0xf]
  %v4984 = vld [vmem:[%s1 + $0x14] sm:$0xf]
  %v4985 = vld [vmem:[%s1 + $0x18] sm:$0xf]
  %v4986 = vld [vmem:[%s1 + $0x1c] sm:$0xf]
  %v4987 = vld [vmem:[%s1 + $0x20] sm:$0xf]
  %v4988 = vld [vmem:[%s1 + $0x24] sm:$0xf]
  %v4989 = vld [vmem:[%s1 + $0x28] sm:$0xf]
  %v4990 = vld [vmem:[%s1 + $0x2c] sm:$0xf]
  %v4991 = vld [vmem:[%s1 + $0x30] sm:$0xf]
  %v4992 = vld [vmem:[%s1 + $0x34] sm:$0xf]
  %v4993 = vld [vmem:[%s1 + $0x38] sm:$0xf]
  %v4994 = vld [vmem:[%s1 + $0x3c] sm:$0xf]
  %v4995 = vld [vmem:[%s1 + $0x40] sm:$0xf]
  %v4996 = vld [vmem:[%s1 + $0x44] sm:$0xf]
  %v4997 = vld [vmem:[%s1 + $0x48] sm:$0xf]
  %v4998 = vld [vmem:[%s1 + $0x4c] sm:$0xf]
  %v4999 = vld [vmem:[%s1 + $0x50] sm:$0xf]
  %v5000 = vld [vmem:[%s1 + $0x54] sm:$0xf]
  %v5001 = vld [vmem:[%s1 + $0x58] sm:$0xf]
  %v5002 = vld [vmem:[%s1 + $0x5c] sm:$0xf]
  %v5003 = vld [vmem:[%s1 + $0x60] sm:$0xf]
  %v5004 = vld [vmem:[%s1 + $0x64] sm:$0xf]
  %v5005 = vld [vmem:[%s1 + $0x68] sm:$0xf]
  %v5006 = vld [vmem:[%s1 + $0x6c] sm:$0xf]
  %v5007 = vld [vmem:[%s1 + $0x70] sm:$0xf]
  %v5008 = vld [vmem:[%s1 + $0x74] sm:$0xf]
  %v5009 = vld [vmem:[%s1 + $0x78] sm:$0xf]
  %v5010 = vld [vmem:[%s1 + $0x7c] sm:$0xf]
  %v5011 = vld [vmem:[%s2] sm:$0x1]
  %v5013 = vlaneseq
  %v5014 = vshrl.u32 %v5013, 7
  %v5015 = vsub.s32 0, %v5014
  %v5016 = vrot.slane %v5011, %v5015
  %v5034 = vunpack.c.l.b16 %v4963
  %v5035 = vunpack.c.h.b16 %v4963
  %v5036 = vunpack.c.l.b16 %v4964
  %v5037 = vunpack.c.h.b16 %v4964
  %v5038 = vunpack.c.l.b16 %v4965
  %v5039 = vunpack.c.h.b16 %v4965
  %v5040 = vunpack.c.l.b16 %v4966
  %v5041 = vunpack.c.h.b16 %v4966
  %v5042 = vunpack.c.l.b16 %v4967
  %v5043 = vunpack.c.h.b16 %v4967
  %v5044 = vunpack.c.l.b16 %v4968
  %v5045 = vunpack.c.h.b16 %v4968
  %v5046 = vunpack.c.l.b16 %v4969
  %v5047 = vunpack.c.h.b16 %v4969
  %v5048 = vunpack.c.l.b16 %v4970
  %v5049 = vunpack.c.h.b16 %v4970
  %v5050 = vunpack.c.l.b16 %v4971
  %v5051 = vunpack.c.h.b16 %v4971
  %v5052 = vunpack.c.l.b16 %v4972
  %v5053 = vunpack.c.h.b16 %v4972
  %v5054 = vunpack.c.l.b16 %v4973
  %v5055 = vunpack.c.h.b16 %v4973
  %v5056 = vunpack.c.l.b16 %v4974
  %v5057 = vunpack.c.h.b16 %v4974
  %v5058 = vunpack.c.l.b16 %v4975
  %v5059 = vunpack.c.h.b16 %v4975
  %v5060 = vunpack.c.l.b16 %v4976
  %v5061 = vunpack.c.h.b16 %v4976
  %v5062 = vunpack.c.l.b16 %v4977
  %v5063 = vunpack.c.h.b16 %v4977
  %v5064 = vunpack.c.l.b16 %v4978
  %v5065 = vunpack.c.h.b16 %v4978
  %v5066 = vpack.c.b16 %v5036, %v5034
  %v5067 = vpack.c.b16 %v5037, %v5035
  %v5068 = vpack.c.b16 %v5040, %v5038
  %v5069 = vpack.c.b16 %v5041, %v5039
  %v5070 = vpack.c.b16 %v5044, %v5042
  %v5071 = vpack.c.b16 %v5045, %v5043
  %v5072 = vpack.c.b16 %v5048, %v5046
  %v5073 = vpack.c.b16 %v5049, %v5047
  %v5074 = vpack.c.b16 %v5052, %v5050
  %v5075 = vpack.c.b16 %v5053, %v5051
  %v5076 = vpack.c.b16 %v5056, %v5054
  %v5077 = vpack.c.b16 %v5057, %v5055
  %v5078 = vpack.c.b16 %v5060, %v5058
  %v5079 = vpack.c.b16 %v5061, %v5059
  %v5080 = vpack.c.b16 %v5064, %v5062
  %v5081 = vpack.c.b16 %v5065, %v5063
  %v5130 = vunpack.c.l.b16 %v4979
  %v5131 = vunpack.c.l.b16 %v4980
  %v5132 = vunpack.c.l.b16 %v4981
  %v5133 = vunpack.c.l.b16 %v4982
  %v5134 = vunpack.c.l.b16 %v4983
  %v5135 = vunpack.c.l.b16 %v4984
  %v5136 = vunpack.c.l.b16 %v4985
  %v5137 = vunpack.c.l.b16 %v4986
  %v5138 = vunpack.c.l.b16 %v4987
  %v5139 = vunpack.c.l.b16 %v4988
  %v5140 = vunpack.c.l.b16 %v4989
  %v5141 = vunpack.c.l.b16 %v4990
  %v5142 = vunpack.c.l.b16 %v4991
  %v5143 = vunpack.c.l.b16 %v4992
  %v5144 = vunpack.c.l.b16 %v4993
  %v5145 = vunpack.c.l.b16 %v4994
  %v5146 = vunpack.c.l.b16 %v4995
  %v5147 = vunpack.c.l.b16 %v4996
  %v5148 = vunpack.c.l.b16 %v4997
  %v5149 = vunpack.c.l.b16 %v4998
  %v5150 = vunpack.c.l.b16 %v4999
  %v5151 = vunpack.c.l.b16 %v5000
  %v5152 = vunpack.c.l.b16 %v5001
  %v5153 = vunpack.c.l.b16 %v5002
  %v5154 = vunpack.c.l.b16 %v5003
  %v5155 = vunpack.c.l.b16 %v5004
  %v5156 = vunpack.c.l.b16 %v5005
  %v5157 = vunpack.c.l.b16 %v5006
  %v5158 = vunpack.c.l.b16 %v5007
  %v5159 = vunpack.c.l.b16 %v5008
  %v5160 = vunpack.c.l.b16 %v5009
  %v5161 = vunpack.c.l.b16 %v5010
  %v5162 = vpack.c.b16 %v5131, %v5130
  %v5163 = vpack.c.b16 %v5133, %v5132
  %v5164 = vpack.c.b16 %v5135, %v5134
  %v5165 = vpack.c.b16 %v5137, %v5136
  %v5166 = vpack.c.b16 %v5139, %v5138
  %v5167 = vpack.c.b16 %v5141, %v5140
  %v5168 = vpack.c.b16 %v5143, %v5142
  %v5169 = vpack.c.b16 %v5145, %v5144
  %v5170 = vpack.c.b16 %v5147, %v5146
  %v5171 = vpack.c.b16 %v5149, %v5148
  %v5172 = vpack.c.b16 %v5151, %v5150
  %v5173 = vpack.c.b16 %v5153, %v5152
  %v5174 = vpack.c.b16 %v5155, %v5154
  %v5175 = vpack.c.b16 %v5157, %v5156
  %v5176 = vpack.c.b16 %v5159, %v5158
  %v5177 = vpack.c.b16 %v5161, %v5160
  %5194 = vmatprep.subr.bf16.mxu0 0
  %5195 = vmatpush1.bf16.msra.mxu0 %v5169
  %5196 = vmatprep.subr.bf16.mxu0 0
  %5197 = vmatpush1.bf16.msra.mxu0 %v5168
  %5198 = vmatprep.subr.bf16.mxu0 0
  %5199 = vmatpush1.bf16.msra.mxu0 %v5167
  %5200 = vmatprep.subr.bf16.mxu0 0
  %5201 = vmatpush1.bf16.msra.mxu0 %v5166
  %5202 = vmatprep.subr.bf16.mxu0 0
  %5203 = vmatpush1.bf16.msra.mxu0 %v5165
  %5204 = vmatprep.subr.bf16.mxu0 0
  %5205 = vmatpush1.bf16.msra.mxu0 %v5164
  %5206 = vmatprep.subr.bf16.mxu0 0
  %5207 = vmatpush1.bf16.msra.mxu0 %v5163
  %5208 = vmatprep.subr.bf16.mxu0 0
  %5209 = vmatpush1.bf16.msra.mxu0 %v5162
  %5210 = vmatprep.subr.bf16.mxu0 0
  %5211 = vmatpush2.bf16.msra.mxu0 %v5177
  %5212 = vmatprep.subr.bf16.mxu0 0
  %5213 = vmatpush2.bf16.msra.mxu0 %v5176
  %5214 = vmatprep.subr.bf16.mxu0 0
  %5215 = vmatpush2.bf16.msra.mxu0 %v5175
  %5216 = vmatprep.subr.bf16.mxu0 0
  %5217 = vmatpush2.bf16.msra.mxu0 %v5174
  %5218 = vmatprep.subr.bf16.mxu0 0
  %5219 = vmatpush2.bf16.msra.mxu0 %v5173
  %5220 = vmatprep.subr.bf16.mxu0 0
  %5221 = vmatpush2.bf16.msra.mxu0 %v5172
  %5222 = vmatprep.subr.bf16.mxu0 0
  %5223 = vmatpush2.bf16.msra.mxu0 %v5171
  %5224 = vmatprep.subr.bf16.mxu0 0
  %5225 = vmatpush2.bf16.msra.mxu0 %v5170
  %5226 = vmatprep.mubr.bf16.mxu0 %v5067
  %5227 = vmatmul.mubr.bf16.gmra.mxu0 %v5066
  %v5228 = vpop.f32.mrf.mxu0
  %v5229 = vadd.f32 %v5016, %v5228
  %v5230 = vpop.f32.mrf.mxu0
  %v5231 = vpop.f32.mrf.mxu0
  %v5232 = vadd.f32 %v5016, %v5231
  %v5233 = vpop.f32.mrf.mxu0
  %5234 = vmatprep.mubr.bf16.mxu0 %v5069
  %5235 = vmatmul.mubr.bf16.gmra.mxu0 %v5068
  %v5236 = vpop.f32.mrf.mxu0
  %v5237 = vadd.f32 %v5016, %v5236
  %v5238 = vpop.f32.mrf.mxu0
  %v5239 = vpop.f32.mrf.mxu0
  %v5240 = vadd.f32 %v5016, %v5239
  %v5241 = vpop.f32.mrf.mxu0
  %5242 = vmatprep.mubr.bf16.mxu0 %v5071
  %5243 = vmatmul.mubr.bf16.gmra.mxu0 %v5070
  %v5244 = vpop.f32.mrf.mxu0
  %v5245 = vadd.f32 %v5016, %v5244
  %v5246 = vpop.f32.mrf.mxu0
  %v5247 = vpop.f32.mrf.mxu0
  %v5248 = vadd.f32 %v5016, %v5247
  %v5249 = vpop.f32.mrf.mxu0
  %5250 = vmatprep.mubr.bf16.mxu0 %v5073
  %5251 = vmatmul.mubr.bf16.gmra.mxu0 %v5072
  %v5252 = vpop.f32.mrf.mxu0
  %v5253 = vadd.f32 %v5016, %v5252
  %v5254 = vpop.f32.mrf.mxu0
  %v5255 = vpop.f32.mrf.mxu0
  %v5256 = vadd.f32 %v5016, %v5255
  %v5257 = vpop.f32.mrf.mxu0
  %5258 = vmatprep.mubr.bf16.mxu0 %v5075
  %5259 = vmatmul.mubr.bf16.gmra.mxu0 %v5074
  %v5260 = vpop.f32.mrf.mxu0
  %v5261 = vadd.f32 %v5016, %v5260
  %v5262 = vpop.f32.mrf.mxu0
  %v5263 = vpop.f32.mrf.mxu0
  %v5264 = vadd.f32 %v5016, %v5263
  %v5265 = vpop.f32.mrf.mxu0
  %5266 = vmatprep.mubr.bf16.mxu0 %v5077
  %5267 = vmatmul.mubr.bf16.gmra.mxu0 %v5076
  %v5268 = vpop.f32.mrf.mxu0
  %v5269 = vadd.f32 %v5016, %v5268
  %v5270 = vpop.f32.mrf.mxu0
  %v5271 = vpop.f32.mrf.mxu0
  %v5272 = vadd.f32 %v5016, %v5271
  %v5273 = vpop.f32.mrf.mxu0
  %5274 = vmatprep.mubr.bf16.mxu0 %v5079
  %5275 = vmatmul.mubr.bf16.gmra.mxu0 %v5078
  %v5276 = vpop.f32.mrf.mxu0
  %v5277 = vadd.f32 %v5016, %v5276
  %v5278 = vpop.f32.mrf.mxu0
  %v5279 = vpop.f32.mrf.mxu0
  %v5280 = vadd.f32 %v5016, %v5279
  %v5281 = vpop.f32.mrf.mxu0
  %5282 = vmatprep.mubr.bf16.mxu0 %v5081
  %5283 = vmatmul.mubr.bf16.gmra.mxu0 %v5080
  %v5284 = vpop.f32.mrf.mxu0
  %v5285 = vadd.f32 %v5016, %v5284
  %v5286 = vpop.f32.mrf.mxu0
  %v5287 = vpop.f32.mrf.mxu0
  %v5288 = vadd.f32 %v5016, %v5287
  %v5289 = vpop.f32.mrf.mxu0
  %5290 = vdwg.mxu0
  %v5291 = vmax.f32 %v5229, 0.0
  %v5292 = vmax.f32 %v5232, 0.0
  %v5293 = vmax.f32 %v5237, 0.0
  %v5294 = vmax.f32 %v5240, 0.0
  %v5295 = vmax.f32 %v5245, 0.0
  %v5296 = vmax.f32 %v5248, 0.0
  %v5297 = vmax.f32 %v5253, 0.0
  %v5298 = vmax.f32 %v5256, 0.0
  %v5299 = vmax.f32 %v5261, 0.0
  %v5300 = vmax.f32 %v5264, 0.0
  %v5301 = vmax.f32 %v5269, 0.0
  %v5302 = vmax.f32 %v5272, 0.0
  %v5303 = vmax.f32 %v5277, 0.0
  %v5304 = vmax.f32 %v5280, 0.0
  %v5305 = vmax.f32 %v5285, 0.0
  %v5306 = vmax.f32 %v5288, 0.0
  %v5307 = vpack.c.bf16 %v5292, %v5291
  %v5308 = vpack.c.bf16 %v5294, %v5293
  %v5309 = vpack.c.bf16 %v5296, %v5295
  %v5310 = vpack.c.bf16 %v5298, %v5297
  %v5311 = vpack.c.bf16 %v5300, %v5299
  %v5312 = vpack.c.bf16 %v5302, %v5301
  %v5313 = vpack.c.bf16 %v5304, %v5303
  %v5314 = vpack.c.bf16 %v5306, %v5305
  %v5323 = vunpack.c.l.b16 %v5307
  %v5324 = vunpack.c.h.b16 %v5307
  %v5325 = vunpack.c.l.b16 %v5308
  %v5326 = vunpack.c.h.b16 %v5308
  %v5327 = vunpack.c.l.b16 %v5309
  %v5328 = vunpack.c.h.b16 %v5309
  %v5329 = vunpack.c.l.b16 %v5310
  %v5330 = vunpack.c.h.b16 %v5310
  %v5331 = vunpack.c.l.b16 %v5311
  %v5332 = vunpack.c.h.b16 %v5311
  %v5333 = vunpack.c.l.b16 %v5312
  %v5334 = vunpack.c.h.b16 %v5312
  %v5335 = vunpack.c.l.b16 %v5313
  %v5336 = vunpack.c.h.b16 %v5313
  %v5337 = vunpack.c.l.b16 %v5314
  %v5338 = vunpack.c.h.b16 %v5314
  %v5339 = vpack.c.b16 %v5323, %v5323
  %v5340 = vpack.c.b16 %v5324, %v5324
  %v5341 = vpack.c.b16 %v5325, %v5325
  %v5342 = vpack.c.b16 %v5326, %v5326
  %v5343 = vpack.c.b16 %v5327, %v5327
  %v5344 = vpack.c.b16 %v5328, %v5328
  %v5345 = vpack.c.b16 %v5329, %v5329
  %v5346 = vpack.c.b16 %v5330, %v5330
  %v5347 = vpack.c.b16 %v5331, %v5331
  %v5348 = vpack.c.b16 %v5332, %v5332
  %v5349 = vpack.c.b16 %v5333, %v5333
  %v5350 = vpack.c.b16 %v5334, %v5334
  %v5351 = vpack.c.b16 %v5335, %v5335
  %v5352 = vpack.c.b16 %v5336, %v5336
  %v5353 = vpack.c.b16 %v5337, %v5337
  %v5354 = vpack.c.b16 %v5338, %v5338
  %5355 = vrot.lane.b32.xlu0 %v5339, 96
  %v5356 = vpop.permute.xlu0 %5355
  %5357 = vrot.lane.b32.xlu0 %v5340, 96
  %v5358 = vpop.permute.xlu0 %5357
  %5359 = vrot.lane.b32.xlu0 %v5341, 96
  %v5360 = vpop.permute.xlu0 %5359
  %5361 = vrot.lane.b32.xlu0 %v5342, 96
  %v5362 = vpop.permute.xlu0 %5361
  %5363 = vrot.lane.b32.xlu0 %v5343, 96
  %v5364 = vpop.permute.xlu0 %5363
  %5365 = vrot.lane.b32.xlu0 %v5344, 96
  %v5366 = vpop.permute.xlu0 %5365
  %5367 = vrot.lane.b32.xlu0 %v5345, 96
  %v5368 = vpop.permute.xlu0 %5367
  %5369 = vrot.lane.b32.xlu0 %v5346, 96
  %v5370 = vpop.permute.xlu0 %5369
  %5371 = vrot.lane.b32.xlu0 %v5347, 96
  %v5372 = vpop.permute.xlu0 %5371
  %5373 = vrot.lane.b32.xlu0 %v5348, 96
  %v5374 = vpop.permute.xlu0 %5373
  %5375 = vrot.lane.b32.xlu0 %v5349, 96
  %v5376 = vpop.permute.xlu0 %5375
  %5377 = vrot.lane.b32.xlu0 %v5350, 96
  %v5378 = vpop.permute.xlu0 %5377
  %5379 = vrot.lane.b32.xlu0 %v5351, 96
  %v5380 = vpop.permute.xlu0 %5379
  %5381 = vrot.lane.b32.xlu0 %v5352, 96
  %v5382 = vpop.permute.xlu0 %5381
  %5383 = vrot.lane.b32.xlu0 %v5353, 96
  %v5384 = vpop.permute.xlu0 %5383
  %5385 = vrot.lane.b32.xlu0 %v5354, 96
  %v5386 = vpop.permute.xlu0 %5385
  %5403 = vst.msk [vmem:[#allocation2 + $0x8] sm:$0xf] %vm1818, %v5356
  %5404 = vst.msk [vmem:[#allocation2 + $0x18] sm:$0xf] %vm1818, %v5358
  %5405 = vst.msk [vmem:[#allocation2 + $0x28] sm:$0xf] %vm1818, %v5360
  %5406 = vst.msk [vmem:[#allocation2 + $0x38] sm:$0xf] %vm1818, %v5362
  %5407 = vst.msk [vmem:[#allocation2 + $0x48] sm:$0xf] %vm1818, %v5364
  %5408 = vst.msk [vmem:[#allocation2 + $0x58] sm:$0xf] %vm1818, %v5366
  %5409 = vst.msk [vmem:[#allocation2 + $0x68] sm:$0xf] %vm1818, %v5368
  %5410 = vst.msk [vmem:[#allocation2 + $0x78] sm:$0xf] %vm1818, %v5370
  %5411 = vst.msk [vmem:[#allocation2 + $0x88] sm:$0xf] %vm1818, %v5372
  %5412 = vst.msk [vmem:[#allocation2 + $0x98] sm:$0xf] %vm1818, %v5374
  %5413 = vst.msk [vmem:[#allocation2 + $0xa8] sm:$0xf] %vm1818, %v5376
  %5414 = vst.msk [vmem:[#allocation2 + $0xb8] sm:$0xf] %vm1818, %v5378
  %5415 = vst.msk [vmem:[#allocation2 + $0xc8] sm:$0xf] %vm1818, %v5380
  %5416 = vst.msk [vmem:[#allocation2 + $0xd8] sm:$0xf] %vm1818, %v5382
  %5417 = vst.msk [vmem:[#allocation2 + $0xe8] sm:$0xf] %vm1818, %v5384
  %5418 = vst.msk [vmem:[#allocation2 + $0xf8] sm:$0xf] %vm1818, %v5386
  %v5419 = vld [vmem:[%s0 + $0x600] sm:$0xff]
  %v5420 = vld [vmem:[%s0 + $0x608] sm:$0xff]
  %v5421 = vld [vmem:[%s0 + $0x610] sm:$0xff]
  %v5422 = vld [vmem:[%s0 + $0x618] sm:$0xff]
  %v5423 = vld [vmem:[%s0 + $0x620] sm:$0xff]
  %v5424 = vld [vmem:[%s0 + $0x628] sm:$0xff]
  %v5425 = vld [vmem:[%s0 + $0x630] sm:$0xff]
  %v5426 = vld [vmem:[%s0 + $0x638] sm:$0xff]
  %v5427 = vld [vmem:[%s0 + $0x640] sm:$0xff]
  %v5428 = vld [vmem:[%s0 + $0x648] sm:$0xff]
  %v5429 = vld [vmem:[%s0 + $0x650] sm:$0xff]
  %v5430 = vld [vmem:[%s0 + $0x658] sm:$0xff]
  %v5431 = vld [vmem:[%s0 + $0x660] sm:$0xff]
  %v5432 = vld [vmem:[%s0 + $0x668] sm:$0xff]
  %v5433 = vld [vmem:[%s0 + $0x670] sm:$0xff]
  %v5434 = vld [vmem:[%s0 + $0x678] sm:$0xff]
  %v5435 = vld [vmem:[%s1] sm:$0xf]
  %v5436 = vld [vmem:[%s1 + $0x4] sm:$0xf]
  %v5437 = vld [vmem:[%s1 + $0x8] sm:$0xf]
  %v5438 = vld [vmem:[%s1 + $0xc] sm:$0xf]
  %v5439 = vld [vmem:[%s1 + $0x10] sm:$0xf]
  %v5440 = vld [vmem:[%s1 + $0x14] sm:$0xf]
  %v5441 = vld [vmem:[%s1 + $0x18] sm:$0xf]
  %v5442 = vld [vmem:[%s1 + $0x1c] sm:$0xf]
  %v5443 = vld [vmem:[%s1 + $0x20] sm:$0xf]
  %v5444 = vld [vmem:[%s1 + $0x24] sm:$0xf]
  %v5445 = vld [vmem:[%s1 + $0x28] sm:$0xf]
  %v5446 = vld [vmem:[%s1 + $0x2c] sm:$0xf]
  %v5447 = vld [vmem:[%s1 + $0x30] sm:$0xf]
  %v5448 = vld [vmem:[%s1 + $0x34] sm:$0xf]
  %v5449 = vld [vmem:[%s1 + $0x38] sm:$0xf]
  %v5450 = vld [vmem:[%s1 + $0x3c] sm:$0xf]
  %v5451 = vld [vmem:[%s1 + $0x40] sm:$0xf]
  %v5452 = vld [vmem:[%s1 + $0x44] sm:$0xf]
  %v5453 = vld [vmem:[%s1 + $0x48] sm:$0xf]
  %v5454 = vld [vmem:[%s1 + $0x4c] sm:$0xf]
  %v5455 = vld [vmem:[%s1 + $0x50] sm:$0xf]
  %v5456 = vld [vmem:[%s1 + $0x54] sm:$0xf]
  %v5457 = vld [vmem:[%s1 + $0x58] sm:$0xf]
  %v5458 = vld [vmem:[%s1 + $0x5c] sm:$0xf]
  %v5459 = vld [vmem:[%s1 + $0x60] sm:$0xf]
  %v5460 = vld [vmem:[%s1 + $0x64] sm:$0xf]
  %v5461 = vld [vmem:[%s1 + $0x68] sm:$0xf]
  %v5462 = vld [vmem:[%s1 + $0x6c] sm:$0xf]
  %v5463 = vld [vmem:[%s1 + $0x70] sm:$0xf]
  %v5464 = vld [vmem:[%s1 + $0x74] sm:$0xf]
  %v5465 = vld [vmem:[%s1 + $0x78] sm:$0xf]
  %v5466 = vld [vmem:[%s1 + $0x7c] sm:$0xf]
  %v5467 = vld [vmem:[%s2] sm:$0x1]
  %v5469 = vlaneseq
  %v5470 = vshrl.u32 %v5469, 7
  %v5471 = vsub.s32 0, %v5470
  %v5472 = vrot.slane %v5467, %v5471
  %v5490 = vunpack.c.l.b16 %v5419
  %v5491 = vunpack.c.h.b16 %v5419
  %v5492 = vunpack.c.l.b16 %v5420
  %v5493 = vunpack.c.h.b16 %v5420
  %v5494 = vunpack.c.l.b16 %v5421
  %v5495 = vunpack.c.h.b16 %v5421
  %v5496 = vunpack.c.l.b16 %v5422
  %v5497 = vunpack.c.h.b16 %v5422
  %v5498 = vunpack.c.l.b16 %v5423
  %v5499 = vunpack.c.h.b16 %v5423
  %v5500 = vunpack.c.l.b16 %v5424
  %v5501 = vunpack.c.h.b16 %v5424
  %v5502 = vunpack.c.l.b16 %v5425
  %v5503 = vunpack.c.h.b16 %v5425
  %v5504 = vunpack.c.l.b16 %v5426
  %v5505 = vunpack.c.h.b16 %v5426
  %v5506 = vunpack.c.l.b16 %v5427
  %v5507 = vunpack.c.h.b16 %v5427
  %v5508 = vunpack.c.l.b16 %v5428
  %v5509 = vunpack.c.h.b16 %v5428
  %v5510 = vunpack.c.l.b16 %v5429
  %v5511 = vunpack.c.h.b16 %v5429
  %v5512 = vunpack.c.l.b16 %v5430
  %v5513 = vunpack.c.h.b16 %v5430
  %v5514 = vunpack.c.l.b16 %v5431
  %v5515 = vunpack.c.h.b16 %v5431
  %v5516 = vunpack.c.l.b16 %v5432
  %v5517 = vunpack.c.h.b16 %v5432
  %v5518 = vunpack.c.l.b16 %v5433
  %v5519 = vunpack.c.h.b16 %v5433
  %v5520 = vunpack.c.l.b16 %v5434
  %v5521 = vunpack.c.h.b16 %v5434
  %v5522 = vpack.c.b16 %v5492, %v5490
  %v5523 = vpack.c.b16 %v5493, %v5491
  %v5524 = vpack.c.b16 %v5496, %v5494
  %v5525 = vpack.c.b16 %v5497, %v5495
  %v5526 = vpack.c.b16 %v5500, %v5498
  %v5527 = vpack.c.b16 %v5501, %v5499
  %v5528 = vpack.c.b16 %v5504, %v5502
  %v5529 = vpack.c.b16 %v5505, %v5503
  %v5530 = vpack.c.b16 %v5508, %v5506
  %v5531 = vpack.c.b16 %v5509, %v5507
  %v5532 = vpack.c.b16 %v5512, %v5510
  %v5533 = vpack.c.b16 %v5513, %v5511
  %v5534 = vpack.c.b16 %v5516, %v5514
  %v5535 = vpack.c.b16 %v5517, %v5515
  %v5536 = vpack.c.b16 %v5520, %v5518
  %v5537 = vpack.c.b16 %v5521, %v5519
  %v5586 = vunpack.c.l.b16 %v5435
  %v5587 = vunpack.c.l.b16 %v5436
  %v5588 = vunpack.c.l.b16 %v5437
  %v5589 = vunpack.c.l.b16 %v5438
  %v5590 = vunpack.c.l.b16 %v5439
  %v5591 = vunpack.c.l.b16 %v5440
  %v5592 = vunpack.c.l.b16 %v5441
  %v5593 = vunpack.c.l.b16 %v5442
  %v5594 = vunpack.c.l.b16 %v5443
  %v5595 = vunpack.c.l.b16 %v5444
  %v5596 = vunpack.c.l.b16 %v5445
  %v5597 = vunpack.c.l.b16 %v5446
  %v5598 = vunpack.c.l.b16 %v5447
  %v5599 = vunpack.c.l.b16 %v5448
  %v5600 = vunpack.c.l.b16 %v5449
  %v5601 = vunpack.c.l.b16 %v5450
  %v5602 = vunpack.c.l.b16 %v5451
  %v5603 = vunpack.c.l.b16 %v5452
  %v5604 = vunpack.c.l.b16 %v5453
  %v5605 = vunpack.c.l.b16 %v5454
  %v5606 = vunpack.c.l.b16 %v5455
  %v5607 = vunpack.c.l.b16 %v5456
  %v5608 = vunpack.c.l.b16 %v5457
  %v5609 = vunpack.c.l.b16 %v5458
  %v5610 = vunpack.c.l.b16 %v5459
  %v5611 = vunpack.c.l.b16 %v5460
  %v5612 = vunpack.c.l.b16 %v5461
  %v5613 = vunpack.c.l.b16 %v5462
  %v5614 = vunpack.c.l.b16 %v5463
  %v5615 = vunpack.c.l.b16 %v5464
  %v5616 = vunpack.c.l.b16 %v5465
  %v5617 = vunpack.c.l.b16 %v5466
  %v5618 = vpack.c.b16 %v5587, %v5586
  %v5619 = vpack.c.b16 %v5589, %v5588
  %v5620 = vpack.c.b16 %v5591, %v5590
  %v5621 = vpack.c.b16 %v5593, %v5592
  %v5622 = vpack.c.b16 %v5595, %v5594
  %v5623 = vpack.c.b16 %v5597, %v5596
  %v5624 = vpack.c.b16 %v5599, %v5598
  %v5625 = vpack.c.b16 %v5601, %v5600
  %v5626 = vpack.c.b16 %v5603, %v5602
  %v5627 = vpack.c.b16 %v5605, %v5604
  %v5628 = vpack.c.b16 %v5607, %v5606
  %v5629 = vpack.c.b16 %v5609, %v5608
  %v5630 = vpack.c.b16 %v5611, %v5610
  %v5631 = vpack.c.b16 %v5613, %v5612
  %v5632 = vpack.c.b16 %v5615, %v5614
  %v5633 = vpack.c.b16 %v5617, %v5616
  %5650 = vmatprep.subr.bf16.mxu0 0
  %5651 = vmatpush1.bf16.msra.mxu0 %v5625
  %5652 = vmatprep.subr.bf16.mxu0 0
  %5653 = vmatpush1.bf16.msra.mxu0 %v5624
  %5654 = vmatprep.subr.bf16.mxu0 0
  %5655 = vmatpush1.bf16.msra.mxu0 %v5623
  %5656 = vmatprep.subr.bf16.mxu0 0
  %5657 = vmatpush1.bf16.msra.mxu0 %v5622
  %5658 = vmatprep.subr.bf16.mxu0 0
  %5659 = vmatpush1.bf16.msra.mxu0 %v5621
  %5660 = vmatprep.subr.bf16.mxu0 0
  %5661 = vmatpush1.bf16.msra.mxu0 %v5620
  %5662 = vmatprep.subr.bf16.mxu0 0
  %5663 = vmatpush1.bf16.msra.mxu0 %v5619
  %5664 = vmatprep.subr.bf16.mxu0 0
  %5665 = vmatpush1.bf16.msra.mxu0 %v5618
  %5666 = vmatprep.subr.bf16.mxu0 0
  %5667 = vmatpush2.bf16.msra.mxu0 %v5633
  %5668 = vmatprep.subr.bf16.mxu0 0
  %5669 = vmatpush2.bf16.msra.mxu0 %v5632
  %5670 = vmatprep.subr.bf16.mxu0 0
  %5671 = vmatpush2.bf16.msra.mxu0 %v5631
  %5672 = vmatprep.subr.bf16.mxu0 0
  %5673 = vmatpush2.bf16.msra.mxu0 %v5630
  %5674 = vmatprep.subr.bf16.mxu0 0
  %5675 = vmatpush2.bf16.msra.mxu0 %v5629
  %5676 = vmatprep.subr.bf16.mxu0 0
  %5677 = vmatpush2.bf16.msra.mxu0 %v5628
  %5678 = vmatprep.subr.bf16.mxu0 0
  %5679 = vmatpush2.bf16.msra.mxu0 %v5627
  %5680 = vmatprep.subr.bf16.mxu0 0
  %5681 = vmatpush2.bf16.msra.mxu0 %v5626
  %5682 = vmatprep.mubr.bf16.mxu0 %v5523
  %5683 = vmatmul.mubr.bf16.gmra.mxu0 %v5522
  %v5684 = vpop.f32.mrf.mxu0
  %v5685 = vadd.f32 %v5472, %v5684
  %v5686 = vpop.f32.mrf.mxu0
  %v5687 = vpop.f32.mrf.mxu0
  %v5688 = vadd.f32 %v5472, %v5687
  %v5689 = vpop.f32.mrf.mxu0
  %5690 = vmatprep.mubr.bf16.mxu0 %v5525
  %5691 = vmatmul.mubr.bf16.gmra.mxu0 %v5524
  %v5692 = vpop.f32.mrf.mxu0
  %v5693 = vadd.f32 %v5472, %v5692
  %v5694 = vpop.f32.mrf.mxu0
  %v5695 = vpop.f32.mrf.mxu0
  %v5696 = vadd.f32 %v5472, %v5695
  %v5697 = vpop.f32.mrf.mxu0
  %5698 = vmatprep.mubr.bf16.mxu0 %v5527
  %5699 = vmatmul.mubr.bf16.gmra.mxu0 %v5526
  %v5700 = vpop.f32.mrf.mxu0
  %v5701 = vadd.f32 %v5472, %v5700
  %v5702 = vpop.f32.mrf.mxu0
  %v5703 = vpop.f32.mrf.mxu0
  %v5704 = vadd.f32 %v5472, %v5703
  %v5705 = vpop.f32.mrf.mxu0
  %5706 = vmatprep.mubr.bf16.mxu0 %v5529
  %5707 = vmatmul.mubr.bf16.gmra.mxu0 %v5528
  %v5708 = vpop.f32.mrf.mxu0
  %v5709 = vadd.f32 %v5472, %v5708
  %v5710 = vpop.f32.mrf.mxu0
  %v5711 = vpop.f32.mrf.mxu0
  %v5712 = vadd.f32 %v5472, %v5711
  %v5713 = vpop.f32.mrf.mxu0
  %5714 = vmatprep.mubr.bf16.mxu0 %v5531
  %5715 = vmatmul.mubr.bf16.gmra.mxu0 %v5530
  %v5716 = vpop.f32.mrf.mxu0
  %v5717 = vadd.f32 %v5472, %v5716
  %v5718 = vpop.f32.mrf.mxu0
  %v5719 = vpop.f32.mrf.mxu0
  %v5720 = vadd.f32 %v5472, %v5719
  %v5721 = vpop.f32.mrf.mxu0
  %5722 = vmatprep.mubr.bf16.mxu0 %v5533
  %5723 = vmatmul.mubr.bf16.gmra.mxu0 %v5532
  %v5724 = vpop.f32.mrf.mxu0
  %v5725 = vadd.f32 %v5472, %v5724
  %v5726 = vpop.f32.mrf.mxu0
  %v5727 = vpop.f32.mrf.mxu0
  %v5728 = vadd.f32 %v5472, %v5727
  %v5729 = vpop.f32.mrf.mxu0
  %5730 = vmatprep.mubr.bf16.mxu0 %v5535
  %5731 = vmatmul.mubr.bf16.gmra.mxu0 %v5534
  %v5732 = vpop.f32.mrf.mxu0
  %v5733 = vadd.f32 %v5472, %v5732
  %v5734 = vpop.f32.mrf.mxu0
  %v5735 = vpop.f32.mrf.mxu0
  %v5736 = vadd.f32 %v5472, %v5735
  %v5737 = vpop.f32.mrf.mxu0
  %5738 = vmatprep.mubr.bf16.mxu0 %v5537
  %5739 = vmatmul.mubr.bf16.gmra.mxu0 %v5536
  %v5740 = vpop.f32.mrf.mxu0
  %v5741 = vadd.f32 %v5472, %v5740
  %v5742 = vpop.f32.mrf.mxu0
  %v5743 = vpop.f32.mrf.mxu0
  %v5744 = vadd.f32 %v5472, %v5743
  %v5745 = vpop.f32.mrf.mxu0
  %5746 = vdwg.mxu0
  %v5747 = vmax.f32 %v5685, 0.0
  %v5748 = vmax.f32 %v5688, 0.0
  %v5749 = vmax.f32 %v5693, 0.0
  %v5750 = vmax.f32 %v5696, 0.0
  %v5751 = vmax.f32 %v5701, 0.0
  %v5752 = vmax.f32 %v5704, 0.0
  %v5753 = vmax.f32 %v5709, 0.0
  %v5754 = vmax.f32 %v5712, 0.0
  %v5755 = vmax.f32 %v5717, 0.0
  %v5756 = vmax.f32 %v5720, 0.0
  %v5757 = vmax.f32 %v5725, 0.0
  %v5758 = vmax.f32 %v5728, 0.0
  %v5759 = vmax.f32 %v5733, 0.0
  %v5760 = vmax.f32 %v5736, 0.0
  %v5761 = vmax.f32 %v5741, 0.0
  %v5762 = vmax.f32 %v5744, 0.0
  %v5763 = vpack.c.bf16 %v5748, %v5747
  %v5764 = vpack.c.bf16 %v5750, %v5749
  %v5765 = vpack.c.bf16 %v5752, %v5751
  %v5766 = vpack.c.bf16 %v5754, %v5753
  %v5767 = vpack.c.bf16 %v5756, %v5755
  %v5768 = vpack.c.bf16 %v5758, %v5757
  %v5769 = vpack.c.bf16 %v5760, %v5759
  %v5770 = vpack.c.bf16 %v5762, %v5761
  %v5779 = vunpack.c.l.b16 %v5763
  %v5780 = vunpack.c.h.b16 %v5763
  %v5781 = vunpack.c.l.b16 %v5764
  %v5782 = vunpack.c.h.b16 %v5764
  %v5783 = vunpack.c.l.b16 %v5765
  %v5784 = vunpack.c.h.b16 %v5765
  %v5785 = vunpack.c.l.b16 %v5766
  %v5786 = vunpack.c.h.b16 %v5766
  %v5787 = vunpack.c.l.b16 %v5767
  %v5788 = vunpack.c.h.b16 %v5767
  %v5789 = vunpack.c.l.b16 %v5768
  %v5790 = vunpack.c.h.b16 %v5768
  %v5791 = vunpack.c.l.b16 %v5769
  %v5792 = vunpack.c.h.b16 %v5769
  %v5793 = vunpack.c.l.b16 %v5770
  %v5794 = vunpack.c.h.b16 %v5770
  %v5795 = vpack.c.b16 %v5779, %v5779
  %v5796 = vpack.c.b16 %v5780, %v5780
  %v5797 = vpack.c.b16 %v5781, %v5781
  %v5798 = vpack.c.b16 %v5782, %v5782
  %v5799 = vpack.c.b16 %v5783, %v5783
  %v5800 = vpack.c.b16 %v5784, %v5784
  %v5801 = vpack.c.b16 %v5785, %v5785
  %v5802 = vpack.c.b16 %v5786, %v5786
  %v5803 = vpack.c.b16 %v5787, %v5787
  %v5804 = vpack.c.b16 %v5788, %v5788
  %v5805 = vpack.c.b16 %v5789, %v5789
  %v5806 = vpack.c.b16 %v5790, %v5790
  %v5807 = vpack.c.b16 %v5791, %v5791
  %v5808 = vpack.c.b16 %v5792, %v5792
  %v5809 = vpack.c.b16 %v5793, %v5793
  %v5810 = vpack.c.b16 %v5794, %v5794
  %5827 = vst.msk [vmem:[#allocation2 + $0xc] sm:$0xf] %vm447, %v5795
  %5828 = vst.msk [vmem:[#allocation2 + $0x1c] sm:$0xf] %vm447, %v5796
  %5829 = vst.msk [vmem:[#allocation2 + $0x2c] sm:$0xf] %vm447, %v5797
  %5830 = vst.msk [vmem:[#allocation2 + $0x3c] sm:$0xf] %vm447, %v5798
  %5831 = vst.msk [vmem:[#allocation2 + $0x4c] sm:$0xf] %vm447, %v5799
  %5832 = vst.msk [vmem:[#allocation2 + $0x5c] sm:$0xf] %vm447, %v5800
  %5833 = vst.msk [vmem:[#allocation2 + $0x6c] sm:$0xf] %vm447, %v5801
  %5834 = vst.msk [vmem:[#allocation2 + $0x7c] sm:$0xf] %vm447, %v5802
  %5835 = vst.msk [vmem:[#allocation2 + $0x8c] sm:$0xf] %vm447, %v5803
  %5836 = vst.msk [vmem:[#allocation2 + $0x9c] sm:$0xf] %vm447, %v5804
  %5837 = vst.msk [vmem:[#allocation2 + $0xac] sm:$0xf] %vm447, %v5805
  %5838 = vst.msk [vmem:[#allocation2 + $0xbc] sm:$0xf] %vm447, %v5806
  %5839 = vst.msk [vmem:[#allocation2 + $0xcc] sm:$0xf] %vm447, %v5807
  %5840 = vst.msk [vmem:[#allocation2 + $0xdc] sm:$0xf] %vm447, %v5808
  %5841 = vst.msk [vmem:[#allocation2 + $0xec] sm:$0xf] %vm447, %v5809
  %5842 = vst.msk [vmem:[#allocation2 + $0xfc] sm:$0xf] %vm447, %v5810
  %v5843 = vld [vmem:[%s0 + $0x680] sm:$0xff]
  %v5844 = vld [vmem:[%s0 + $0x688] sm:$0xff]
  %v5845 = vld [vmem:[%s0 + $0x690] sm:$0xff]
  %v5846 = vld [vmem:[%s0 + $0x698] sm:$0xff]
  %v5847 = vld [vmem:[%s0 + $0x6a0] sm:$0xff]
  %v5848 = vld [vmem:[%s0 + $0x6a8] sm:$0xff]
  %v5849 = vld [vmem:[%s0 + $0x6b0] sm:$0xff]
  %v5850 = vld [vmem:[%s0 + $0x6b8] sm:$0xff]
  %v5851 = vld [vmem:[%s0 + $0x6c0] sm:$0xff]
  %v5852 = vld [vmem:[%s0 + $0x6c8] sm:$0xff]
  %v5853 = vld [vmem:[%s0 + $0x6d0] sm:$0xff]
  %v5854 = vld [vmem:[%s0 + $0x6d8] sm:$0xff]
  %v5855 = vld [vmem:[%s0 + $0x6e0] sm:$0xff]
  %v5856 = vld [vmem:[%s0 + $0x6e8] sm:$0xff]
  %v5857 = vld [vmem:[%s0 + $0x6f0] sm:$0xff]
  %v5858 = vld [vmem:[%s0 + $0x6f8] sm:$0xff]
  %v5859 = vld [vmem:[%s1] sm:$0xf]
  %v5860 = vld [vmem:[%s1 + $0x4] sm:$0xf]
  %v5861 = vld [vmem:[%s1 + $0x8] sm:$0xf]
  %v5862 = vld [vmem:[%s1 + $0xc] sm:$0xf]
  %v5863 = vld [vmem:[%s1 + $0x10] sm:$0xf]
  %v5864 = vld [vmem:[%s1 + $0x14] sm:$0xf]
  %v5865 = vld [vmem:[%s1 + $0x18] sm:$0xf]
  %v5866 = vld [vmem:[%s1 + $0x1c] sm:$0xf]
  %v5867 = vld [vmem:[%s1 + $0x20] sm:$0xf]
  %v5868 = vld [vmem:[%s1 + $0x24] sm:$0xf]
  %v5869 = vld [vmem:[%s1 + $0x28] sm:$0xf]
  %v5870 = vld [vmem:[%s1 + $0x2c] sm:$0xf]
  %v5871 = vld [vmem:[%s1 + $0x30] sm:$0xf]
  %v5872 = vld [vmem:[%s1 + $0x34] sm:$0xf]
  %v5873 = vld [vmem:[%s1 + $0x38] sm:$0xf]
  %v5874 = vld [vmem:[%s1 + $0x3c] sm:$0xf]
  %v5875 = vld [vmem:[%s1 + $0x40] sm:$0xf]
  %v5876 = vld [vmem:[%s1 + $0x44] sm:$0xf]
  %v5877 = vld [vmem:[%s1 + $0x48] sm:$0xf]
  %v5878 = vld [vmem:[%s1 + $0x4c] sm:$0xf]
  %v5879 = vld [vmem:[%s1 + $0x50] sm:$0xf]
  %v5880 = vld [vmem:[%s1 + $0x54] sm:$0xf]
  %v5881 = vld [vmem:[%s1 + $0x58] sm:$0xf]
  %v5882 = vld [vmem:[%s1 + $0x5c] sm:$0xf]
  %v5883 = vld [vmem:[%s1 + $0x60] sm:$0xf]
  %v5884 = vld [vmem:[%s1 + $0x64] sm:$0xf]
  %v5885 = vld [vmem:[%s1 + $0x68] sm:$0xf]
  %v5886 = vld [vmem:[%s1 + $0x6c] sm:$0xf]
  %v5887 = vld [vmem:[%s1 + $0x70] sm:$0xf]
  %v5888 = vld [vmem:[%s1 + $0x74] sm:$0xf]
  %v5889 = vld [vmem:[%s1 + $0x78] sm:$0xf]
  %v5890 = vld [vmem:[%s1 + $0x7c] sm:$0xf]
  %v5891 = vld [vmem:[%s2] sm:$0x1]
  %v5893 = vlaneseq
  %v5894 = vshrl.u32 %v5893, 7
  %v5895 = vsub.s32 0, %v5894
  %v5896 = vrot.slane %v5891, %v5895
  %v5914 = vunpack.c.l.b16 %v5843
  %v5915 = vunpack.c.h.b16 %v5843
  %v5916 = vunpack.c.l.b16 %v5844
  %v5917 = vunpack.c.h.b16 %v5844
  %v5918 = vunpack.c.l.b16 %v5845
  %v5919 = vunpack.c.h.b16 %v5845
  %v5920 = vunpack.c.l.b16 %v5846
  %v5921 = vunpack.c.h.b16 %v5846
  %v5922 = vunpack.c.l.b16 %v5847
  %v5923 = vunpack.c.h.b16 %v5847
  %v5924 = vunpack.c.l.b16 %v5848
  %v5925 = vunpack.c.h.b16 %v5848
  %v5926 = vunpack.c.l.b16 %v5849
  %v5927 = vunpack.c.h.b16 %v5849
  %v5928 = vunpack.c.l.b16 %v5850
  %v5929 = vunpack.c.h.b16 %v5850
  %v5930 = vunpack.c.l.b16 %v5851
  %v5931 = vunpack.c.h.b16 %v5851
  %v5932 = vunpack.c.l.b16 %v5852
  %v5933 = vunpack.c.h.b16 %v5852
  %v5934 = vunpack.c.l.b16 %v5853
  %v5935 = vunpack.c.h.b16 %v5853
  %v5936 = vunpack.c.l.b16 %v5854
  %v5937 = vunpack.c.h.b16 %v5854
  %v5938 = vunpack.c.l.b16 %v5855
  %v5939 = vunpack.c.h.b16 %v5855
  %v5940 = vunpack.c.l.b16 %v5856
  %v5941 = vunpack.c.h.b16 %v5856
  %v5942 = vunpack.c.l.b16 %v5857
  %v5943 = vunpack.c.h.b16 %v5857
  %v5944 = vunpack.c.l.b16 %v5858
  %v5945 = vunpack.c.h.b16 %v5858
  %v5946 = vpack.c.b16 %v5916, %v5914
  %v5947 = vpack.c.b16 %v5917, %v5915
  %v5948 = vpack.c.b16 %v5920, %v5918
  %v5949 = vpack.c.b16 %v5921, %v5919
  %v5950 = vpack.c.b16 %v5924, %v5922
  %v5951 = vpack.c.b16 %v5925, %v5923
  %v5952 = vpack.c.b16 %v5928, %v5926
  %v5953 = vpack.c.b16 %v5929, %v5927
  %v5954 = vpack.c.b16 %v5932, %v5930
  %v5955 = vpack.c.b16 %v5933, %v5931
  %v5956 = vpack.c.b16 %v5936, %v5934
  %v5957 = vpack.c.b16 %v5937, %v5935
  %v5958 = vpack.c.b16 %v5940, %v5938
  %v5959 = vpack.c.b16 %v5941, %v5939
  %v5960 = vpack.c.b16 %v5944, %v5942
  %v5961 = vpack.c.b16 %v5945, %v5943
  %v6010 = vunpack.c.l.b16 %v5859
  %v6011 = vunpack.c.l.b16 %v5860
  %v6012 = vunpack.c.l.b16 %v5861
  %v6013 = vunpack.c.l.b16 %v5862
  %v6014 = vunpack.c.l.b16 %v5863
  %v6015 = vunpack.c.l.b16 %v5864
  %v6016 = vunpack.c.l.b16 %v5865
  %v6017 = vunpack.c.l.b16 %v5866
  %v6018 = vunpack.c.l.b16 %v5867
  %v6019 = vunpack.c.l.b16 %v5868
  %v6020 = vunpack.c.l.b16 %v5869
  %v6021 = vunpack.c.l.b16 %v5870
  %v6022 = vunpack.c.l.b16 %v5871
  %v6023 = vunpack.c.l.b16 %v5872
  %v6024 = vunpack.c.l.b16 %v5873
  %v6025 = vunpack.c.l.b16 %v5874
  %v6026 = vunpack.c.l.b16 %v5875
  %v6027 = vunpack.c.l.b16 %v5876
  %v6028 = vunpack.c.l.b16 %v5877
  %v6029 = vunpack.c.l.b16 %v5878
  %v6030 = vunpack.c.l.b16 %v5879
  %v6031 = vunpack.c.l.b16 %v5880
  %v6032 = vunpack.c.l.b16 %v5881
  %v6033 = vunpack.c.l.b16 %v5882
  %v6034 = vunpack.c.l.b16 %v5883
  %v6035 = vunpack.c.l.b16 %v5884
  %v6036 = vunpack.c.l.b16 %v5885
  %v6037 = vunpack.c.l.b16 %v5886
  %v6038 = vunpack.c.l.b16 %v5887
  %v6039 = vunpack.c.l.b16 %v5888
  %v6040 = vunpack.c.l.b16 %v5889
  %v6041 = vunpack.c.l.b16 %v5890
  %v6042 = vpack.c.b16 %v6011, %v6010
  %v6043 = vpack.c.b16 %v6013, %v6012
  %v6044 = vpack.c.b16 %v6015, %v6014
  %v6045 = vpack.c.b16 %v6017, %v6016
  %v6046 = vpack.c.b16 %v6019, %v6018
  %v6047 = vpack.c.b16 %v6021, %v6020
  %v6048 = vpack.c.b16 %v6023, %v6022
  %v6049 = vpack.c.b16 %v6025, %v6024
  %v6050 = vpack.c.b16 %v6027, %v6026
  %v6051 = vpack.c.b16 %v6029, %v6028
  %v6052 = vpack.c.b16 %v6031, %v6030
  %v6053 = vpack.c.b16 %v6033, %v6032
  %v6054 = vpack.c.b16 %v6035, %v6034
  %v6055 = vpack.c.b16 %v6037, %v6036
  %v6056 = vpack.c.b16 %v6039, %v6038
  %v6057 = vpack.c.b16 %v6041, %v6040
  %6074 = vmatprep.subr.bf16.mxu0 0
  %6075 = vmatpush1.bf16.msra.mxu0 %v6049
  %6076 = vmatprep.subr.bf16.mxu0 0
  %6077 = vmatpush1.bf16.msra.mxu0 %v6048
  %6078 = vmatprep.subr.bf16.mxu0 0
  %6079 = vmatpush1.bf16.msra.mxu0 %v6047
  %6080 = vmatprep.subr.bf16.mxu0 0
  %6081 = vmatpush1.bf16.msra.mxu0 %v6046
  %6082 = vmatprep.subr.bf16.mxu0 0
  %6083 = vmatpush1.bf16.msra.mxu0 %v6045
  %6084 = vmatprep.subr.bf16.mxu0 0
  %6085 = vmatpush1.bf16.msra.mxu0 %v6044
  %6086 = vmatprep.subr.bf16.mxu0 0
  %6087 = vmatpush1.bf16.msra.mxu0 %v6043
  %6088 = vmatprep.subr.bf16.mxu0 0
  %6089 = vmatpush1.bf16.msra.mxu0 %v6042
  %6090 = vmatprep.subr.bf16.mxu0 0
  %6091 = vmatpush2.bf16.msra.mxu0 %v6057
  %6092 = vmatprep.subr.bf16.mxu0 0
  %6093 = vmatpush2.bf16.msra.mxu0 %v6056
  %6094 = vmatprep.subr.bf16.mxu0 0
  %6095 = vmatpush2.bf16.msra.mxu0 %v6055
  %6096 = vmatprep.subr.bf16.mxu0 0
  %6097 = vmatpush2.bf16.msra.mxu0 %v6054
  %6098 = vmatprep.subr.bf16.mxu0 0
  %6099 = vmatpush2.bf16.msra.mxu0 %v6053
  %6100 = vmatprep.subr.bf16.mxu0 0
  %6101 = vmatpush2.bf16.msra.mxu0 %v6052
  %6102 = vmatprep.subr.bf16.mxu0 0
  %6103 = vmatpush2.bf16.msra.mxu0 %v6051
  %6104 = vmatprep.subr.bf16.mxu0 0
  %6105 = vmatpush2.bf16.msra.mxu0 %v6050
  %6106 = vmatprep.mubr.bf16.mxu0 %v5947
  %6107 = vmatmul.mubr.bf16.gmra.mxu0 %v5946
  %v6108 = vpop.f32.mrf.mxu0
  %v6109 = vadd.f32 %v5896, %v6108
  %v6110 = vpop.f32.mrf.mxu0
  %v6111 = vpop.f32.mrf.mxu0
  %v6112 = vadd.f32 %v5896, %v6111
  %v6113 = vpop.f32.mrf.mxu0
  %6114 = vmatprep.mubr.bf16.mxu0 %v5949
  %6115 = vmatmul.mubr.bf16.gmra.mxu0 %v5948
  %v6116 = vpop.f32.mrf.mxu0
  %v6117 = vadd.f32 %v5896, %v6116
  %v6118 = vpop.f32.mrf.mxu0
  %v6119 = vpop.f32.mrf.mxu0
  %v6120 = vadd.f32 %v5896, %v6119
  %v6121 = vpop.f32.mrf.mxu0
  %6122 = vmatprep.mubr.bf16.mxu0 %v5951
  %6123 = vmatmul.mubr.bf16.gmra.mxu0 %v5950
  %v6124 = vpop.f32.mrf.mxu0
  %v6125 = vadd.f32 %v5896, %v6124
  %v6126 = vpop.f32.mrf.mxu0
  %v6127 = vpop.f32.mrf.mxu0
  %v6128 = vadd.f32 %v5896, %v6127
  %v6129 = vpop.f32.mrf.mxu0
  %6130 = vmatprep.mubr.bf16.mxu0 %v5953
  %6131 = vmatmul.mubr.bf16.gmra.mxu0 %v5952
  %v6132 = vpop.f32.mrf.mxu0
  %v6133 = vadd.f32 %v5896, %v6132
  %v6134 = vpop.f32.mrf.mxu0
  %v6135 = vpop.f32.mrf.mxu0
  %v6136 = vadd.f32 %v5896, %v6135
  %v6137 = vpop.f32.mrf.mxu0
  %6138 = vmatprep.mubr.bf16.mxu0 %v5955
  %6139 = vmatmul.mubr.bf16.gmra.mxu0 %v5954
  %v6140 = vpop.f32.mrf.mxu0
  %v6141 = vadd.f32 %v5896, %v6140
  %v6142 = vpop.f32.mrf.mxu0
  %v6143 = vpop.f32.mrf.mxu0
  %v6144 = vadd.f32 %v5896, %v6143
  %v6145 = vpop.f32.mrf.mxu0
  %6146 = vmatprep.mubr.bf16.mxu0 %v5957
  %6147 = vmatmul.mubr.bf16.gmra.mxu0 %v5956
  %v6148 = vpop.f32.mrf.mxu0
  %v6149 = vadd.f32 %v5896, %v6148
  %v6150 = vpop.f32.mrf.mxu0
  %v6151 = vpop.f32.mrf.mxu0
  %v6152 = vadd.f32 %v5896, %v6151
  %v6153 = vpop.f32.mrf.mxu0
  %6154 = vmatprep.mubr.bf16.mxu0 %v5959
  %6155 = vmatmul.mubr.bf16.gmra.mxu0 %v5958
  %v6156 = vpop.f32.mrf.mxu0
  %v6157 = vadd.f32 %v5896, %v6156
  %v6158 = vpop.f32.mrf.mxu0
  %v6159 = vpop.f32.mrf.mxu0
  %v6160 = vadd.f32 %v5896, %v6159
  %v6161 = vpop.f32.mrf.mxu0
  %6162 = vmatprep.mubr.bf16.mxu0 %v5961
  %6163 = vmatmul.mubr.bf16.gmra.mxu0 %v5960
  %v6164 = vpop.f32.mrf.mxu0
  %v6165 = vadd.f32 %v5896, %v6164
  %v6166 = vpop.f32.mrf.mxu0
  %v6167 = vpop.f32.mrf.mxu0
  %v6168 = vadd.f32 %v5896, %v6167
  %v6169 = vpop.f32.mrf.mxu0
  %6170 = vdwg.mxu0
  %v6171 = vmax.f32 %v6109, 0.0
  %v6172 = vmax.f32 %v6112, 0.0
  %v6173 = vmax.f32 %v6117, 0.0
  %v6174 = vmax.f32 %v6120, 0.0
  %v6175 = vmax.f32 %v6125, 0.0
  %v6176 = vmax.f32 %v6128, 0.0
  %v6177 = vmax.f32 %v6133, 0.0
  %v6178 = vmax.f32 %v6136, 0.0
  %v6179 = vmax.f32 %v6141, 0.0
  %v6180 = vmax.f32 %v6144, 0.0
  %v6181 = vmax.f32 %v6149, 0.0
  %v6182 = vmax.f32 %v6152, 0.0
  %v6183 = vmax.f32 %v6157, 0.0
  %v6184 = vmax.f32 %v6160, 0.0
  %v6185 = vmax.f32 %v6165, 0.0
  %v6186 = vmax.f32 %v6168, 0.0
  %v6187 = vpack.c.bf16 %v6172, %v6171
  %v6188 = vpack.c.bf16 %v6174, %v6173
  %v6189 = vpack.c.bf16 %v6176, %v6175
  %v6190 = vpack.c.bf16 %v6178, %v6177
  %v6191 = vpack.c.bf16 %v6180, %v6179
  %v6192 = vpack.c.bf16 %v6182, %v6181
  %v6193 = vpack.c.bf16 %v6184, %v6183
  %v6194 = vpack.c.bf16 %v6186, %v6185
  %v6203 = vunpack.c.l.b16 %v6187
  %v6204 = vunpack.c.h.b16 %v6187
  %v6205 = vunpack.c.l.b16 %v6188
  %v6206 = vunpack.c.h.b16 %v6188
  %v6207 = vunpack.c.l.b16 %v6189
  %v6208 = vunpack.c.h.b16 %v6189
  %v6209 = vunpack.c.l.b16 %v6190
  %v6210 = vunpack.c.h.b16 %v6190
  %v6211 = vunpack.c.l.b16 %v6191
  %v6212 = vunpack.c.h.b16 %v6191
  %v6213 = vunpack.c.l.b16 %v6192
  %v6214 = vunpack.c.h.b16 %v6192
  %v6215 = vunpack.c.l.b16 %v6193
  %v6216 = vunpack.c.h.b16 %v6193
  %v6217 = vunpack.c.l.b16 %v6194
  %v6218 = vunpack.c.h.b16 %v6194
  %v6219 = vpack.c.b16 %v6203, %v6203
  %v6220 = vpack.c.b16 %v6204, %v6204
  %v6221 = vpack.c.b16 %v6205, %v6205
  %v6222 = vpack.c.b16 %v6206, %v6206
  %v6223 = vpack.c.b16 %v6207, %v6207
  %v6224 = vpack.c.b16 %v6208, %v6208
  %v6225 = vpack.c.b16 %v6209, %v6209
  %v6226 = vpack.c.b16 %v6210, %v6210
  %v6227 = vpack.c.b16 %v6211, %v6211
  %v6228 = vpack.c.b16 %v6212, %v6212
  %v6229 = vpack.c.b16 %v6213, %v6213
  %v6230 = vpack.c.b16 %v6214, %v6214
  %v6231 = vpack.c.b16 %v6215, %v6215
  %v6232 = vpack.c.b16 %v6216, %v6216
  %v6233 = vpack.c.b16 %v6217, %v6217
  %v6234 = vpack.c.b16 %v6218, %v6218
  %6235 = vrot.lane.b32.xlu0 %v6219, 32
  %v6236 = vpop.permute.xlu0 %6235
  %6237 = vrot.lane.b32.xlu0 %v6220, 32
  %v6238 = vpop.permute.xlu0 %6237
  %6239 = vrot.lane.b32.xlu0 %v6221, 32
  %v6240 = vpop.permute.xlu0 %6239
  %6241 = vrot.lane.b32.xlu0 %v6222, 32
  %v6242 = vpop.permute.xlu0 %6241
  %6243 = vrot.lane.b32.xlu0 %v6223, 32
  %v6244 = vpop.permute.xlu0 %6243
  %6245 = vrot.lane.b32.xlu0 %v6224, 32
  %v6246 = vpop.permute.xlu0 %6245
  %6247 = vrot.lane.b32.xlu0 %v6225, 32
  %v6248 = vpop.permute.xlu0 %6247
  %6249 = vrot.lane.b32.xlu0 %v6226, 32
  %v6250 = vpop.permute.xlu0 %6249
  %6251 = vrot.lane.b32.xlu0 %v6227, 32
  %v6252 = vpop.permute.xlu0 %6251
  %6253 = vrot.lane.b32.xlu0 %v6228, 32
  %v6254 = vpop.permute.xlu0 %6253
  %6255 = vrot.lane.b32.xlu0 %v6229, 32
  %v6256 = vpop.permute.xlu0 %6255
  %6257 = vrot.lane.b32.xlu0 %v6230, 32
  %v6258 = vpop.permute.xlu0 %6257
  %6259 = vrot.lane.b32.xlu0 %v6231, 32
  %v6260 = vpop.permute.xlu0 %6259
  %6261 = vrot.lane.b32.xlu0 %v6232, 32
  %v6262 = vpop.permute.xlu0 %6261
  %6263 = vrot.lane.b32.xlu0 %v6233, 32
  %v6264 = vpop.permute.xlu0 %6263
  %6265 = vrot.lane.b32.xlu0 %v6234, 32
  %v6266 = vpop.permute.xlu0 %6265
  %6283 = vst.msk [vmem:[#allocation2 + $0xc] sm:$0xf] %vm904, %v6236
  %6284 = vst.msk [vmem:[#allocation2 + $0x1c] sm:$0xf] %vm904, %v6238
  %6285 = vst.msk [vmem:[#allocation2 + $0x2c] sm:$0xf] %vm904, %v6240
  %6286 = vst.msk [vmem:[#allocation2 + $0x3c] sm:$0xf] %vm904, %v6242
  %6287 = vst.msk [vmem:[#allocation2 + $0x4c] sm:$0xf] %vm904, %v6244
  %6288 = vst.msk [vmem:[#allocation2 + $0x5c] sm:$0xf] %vm904, %v6246
  %6289 = vst.msk [vmem:[#allocation2 + $0x6c] sm:$0xf] %vm904, %v6248
  %6290 = vst.msk [vmem:[#allocation2 + $0x7c] sm:$0xf] %vm904, %v6250
  %6291 = vst.msk [vmem:[#allocation2 + $0x8c] sm:$0xf] %vm904, %v6252
  %6292 = vst.msk [vmem:[#allocation2 + $0x9c] sm:$0xf] %vm904, %v6254
  %6293 = vst.msk [vmem:[#allocation2 + $0xac] sm:$0xf] %vm904, %v6256
  %6294 = vst.msk [vmem:[#allocation2 + $0xbc] sm:$0xf] %vm904, %v6258
  %6295 = vst.msk [vmem:[#allocation2 + $0xcc] sm:$0xf] %vm904, %v6260
  %6296 = vst.msk [vmem:[#allocation2 + $0xdc] sm:$0xf] %vm904, %v6262
  %6297 = vst.msk [vmem:[#allocation2 + $0xec] sm:$0xf] %vm904, %v6264
  %6298 = vst.msk [vmem:[#allocation2 + $0xfc] sm:$0xf] %vm904, %v6266
  %v6299 = vld [vmem:[%s0 + $0x700] sm:$0xff]
  %v6300 = vld [vmem:[%s0 + $0x708] sm:$0xff]
  %v6301 = vld [vmem:[%s0 + $0x710] sm:$0xff]
  %v6302 = vld [vmem:[%s0 + $0x718] sm:$0xff]
  %v6303 = vld [vmem:[%s0 + $0x720] sm:$0xff]
  %v6304 = vld [vmem:[%s0 + $0x728] sm:$0xff]
  %v6305 = vld [vmem:[%s0 + $0x730] sm:$0xff]
  %v6306 = vld [vmem:[%s0 + $0x738] sm:$0xff]
  %v6307 = vld [vmem:[%s0 + $0x740] sm:$0xff]
  %v6308 = vld [vmem:[%s0 + $0x748] sm:$0xff]
  %v6309 = vld [vmem:[%s0 + $0x750] sm:$0xff]
  %v6310 = vld [vmem:[%s0 + $0x758] sm:$0xff]
  %v6311 = vld [vmem:[%s0 + $0x760] sm:$0xff]
  %v6312 = vld [vmem:[%s0 + $0x768] sm:$0xff]
  %v6313 = vld [vmem:[%s0 + $0x770] sm:$0xff]
  %v6314 = vld [vmem:[%s0 + $0x778] sm:$0xff]
  %v6315 = vld [vmem:[%s1] sm:$0xf]
  %v6316 = vld [vmem:[%s1 + $0x4] sm:$0xf]
  %v6317 = vld [vmem:[%s1 + $0x8] sm:$0xf]
  %v6318 = vld [vmem:[%s1 + $0xc] sm:$0xf]
  %v6319 = vld [vmem:[%s1 + $0x10] sm:$0xf]
  %v6320 = vld [vmem:[%s1 + $0x14] sm:$0xf]
  %v6321 = vld [vmem:[%s1 + $0x18] sm:$0xf]
  %v6322 = vld [vmem:[%s1 + $0x1c] sm:$0xf]
  %v6323 = vld [vmem:[%s1 + $0x20] sm:$0xf]
  %v6324 = vld [vmem:[%s1 + $0x24] sm:$0xf]
  %v6325 = vld [vmem:[%s1 + $0x28] sm:$0xf]
  %v6326 = vld [vmem:[%s1 + $0x2c] sm:$0xf]
  %v6327 = vld [vmem:[%s1 + $0x30] sm:$0xf]
  %v6328 = vld [vmem:[%s1 + $0x34] sm:$0xf]
  %v6329 = vld [vmem:[%s1 + $0x38] sm:$0xf]
  %v6330 = vld [vmem:[%s1 + $0x3c] sm:$0xf]
  %v6331 = vld [vmem:[%s1 + $0x40] sm:$0xf]
  %v6332 = vld [vmem:[%s1 + $0x44] sm:$0xf]
  %v6333 = vld [vmem:[%s1 + $0x48] sm:$0xf]
  %v6334 = vld [vmem:[%s1 + $0x4c] sm:$0xf]
  %v6335 = vld [vmem:[%s1 + $0x50] sm:$0xf]
  %v6336 = vld [vmem:[%s1 + $0x54] sm:$0xf]
  %v6337 = vld [vmem:[%s1 + $0x58] sm:$0xf]
  %v6338 = vld [vmem:[%s1 + $0x5c] sm:$0xf]
  %v6339 = vld [vmem:[%s1 + $0x60] sm:$0xf]
  %v6340 = vld [vmem:[%s1 + $0x64] sm:$0xf]
  %v6341 = vld [vmem:[%s1 + $0x68] sm:$0xf]
  %v6342 = vld [vmem:[%s1 + $0x6c] sm:$0xf]
  %v6343 = vld [vmem:[%s1 + $0x70] sm:$0xf]
  %v6344 = vld [vmem:[%s1 + $0x74] sm:$0xf]
  %v6345 = vld [vmem:[%s1 + $0x78] sm:$0xf]
  %v6346 = vld [vmem:[%s1 + $0x7c] sm:$0xf]
  %v6347 = vld [vmem:[%s2] sm:$0x1]
  %v6349 = vlaneseq
  %v6350 = vshrl.u32 %v6349, 7
  %v6351 = vsub.s32 0, %v6350
  %v6352 = vrot.slane %v6347, %v6351
  %v6370 = vunpack.c.l.b16 %v6299
  %v6371 = vunpack.c.h.b16 %v6299
  %v6372 = vunpack.c.l.b16 %v6300
  %v6373 = vunpack.c.h.b16 %v6300
  %v6374 = vunpack.c.l.b16 %v6301
  %v6375 = vunpack.c.h.b16 %v6301
  %v6376 = vunpack.c.l.b16 %v6302
  %v6377 = vunpack.c.h.b16 %v6302
  %v6378 = vunpack.c.l.b16 %v6303
  %v6379 = vunpack.c.h.b16 %v6303
  %v6380 = vunpack.c.l.b16 %v6304
  %v6381 = vunpack.c.h.b16 %v6304
  %v6382 = vunpack.c.l.b16 %v6305
  %v6383 = vunpack.c.h.b16 %v6305
  %v6384 = vunpack.c.l.b16 %v6306
  %v6385 = vunpack.c.h.b16 %v6306
  %v6386 = vunpack.c.l.b16 %v6307
  %v6387 = vunpack.c.h.b16 %v6307
  %v6388 = vunpack.c.l.b16 %v6308
  %v6389 = vunpack.c.h.b16 %v6308
  %v6390 = vunpack.c.l.b16 %v6309
  %v6391 = vunpack.c.h.b16 %v6309
  %v6392 = vunpack.c.l.b16 %v6310
  %v6393 = vunpack.c.h.b16 %v6310
  %v6394 = vunpack.c.l.b16 %v6311
  %v6395 = vunpack.c.h.b16 %v6311
  %v6396 = vunpack.c.l.b16 %v6312
  %v6397 = vunpack.c.h.b16 %v6312
  %v6398 = vunpack.c.l.b16 %v6313
  %v6399 = vunpack.c.h.b16 %v6313
  %v6400 = vunpack.c.l.b16 %v6314
  %v6401 = vunpack.c.h.b16 %v6314
  %v6402 = vpack.c.b16 %v6372, %v6370
  %v6403 = vpack.c.b16 %v6373, %v6371
  %v6404 = vpack.c.b16 %v6376, %v6374
  %v6405 = vpack.c.b16 %v6377, %v6375
  %v6406 = vpack.c.b16 %v6380, %v6378
  %v6407 = vpack.c.b16 %v6381, %v6379
  %v6408 = vpack.c.b16 %v6384, %v6382
  %v6409 = vpack.c.b16 %v6385, %v6383
  %v6410 = vpack.c.b16 %v6388, %v6386
  %v6411 = vpack.c.b16 %v6389, %v6387
  %v6412 = vpack.c.b16 %v6392, %v6390
  %v6413 = vpack.c.b16 %v6393, %v6391
  %v6414 = vpack.c.b16 %v6396, %v6394
  %v6415 = vpack.c.b16 %v6397, %v6395
  %v6416 = vpack.c.b16 %v6400, %v6398
  %v6417 = vpack.c.b16 %v6401, %v6399
  %v6466 = vunpack.c.l.b16 %v6315
  %v6467 = vunpack.c.l.b16 %v6316
  %v6468 = vunpack.c.l.b16 %v6317
  %v6469 = vunpack.c.l.b16 %v6318
  %v6470 = vunpack.c.l.b16 %v6319
  %v6471 = vunpack.c.l.b16 %v6320
  %v6472 = vunpack.c.l.b16 %v6321
  %v6473 = vunpack.c.l.b16 %v6322
  %v6474 = vunpack.c.l.b16 %v6323
  %v6475 = vunpack.c.l.b16 %v6324
  %v6476 = vunpack.c.l.b16 %v6325
  %v6477 = vunpack.c.l.b16 %v6326
  %v6478 = vunpack.c.l.b16 %v6327
  %v6479 = vunpack.c.l.b16 %v6328
  %v6480 = vunpack.c.l.b16 %v6329
  %v6481 = vunpack.c.l.b16 %v6330
  %v6482 = vunpack.c.l.b16 %v6331
  %v6483 = vunpack.c.l.b16 %v6332
  %v6484 = vunpack.c.l.b16 %v6333
  %v6485 = vunpack.c.l.b16 %v6334
  %v6486 = vunpack.c.l.b16 %v6335
  %v6487 = vunpack.c.l.b16 %v6336
  %v6488 = vunpack.c.l.b16 %v6337
  %v6489 = vunpack.c.l.b16 %v6338
  %v6490 = vunpack.c.l.b16 %v6339
  %v6491 = vunpack.c.l.b16 %v6340
  %v6492 = vunpack.c.l.b16 %v6341
  %v6493 = vunpack.c.l.b16 %v6342
  %v6494 = vunpack.c.l.b16 %v6343
  %v6495 = vunpack.c.l.b16 %v6344
  %v6496 = vunpack.c.l.b16 %v6345
  %v6497 = vunpack.c.l.b16 %v6346
  %v6498 = vpack.c.b16 %v6467, %v6466
  %v6499 = vpack.c.b16 %v6469, %v6468
  %v6500 = vpack.c.b16 %v6471, %v6470
  %v6501 = vpack.c.b16 %v6473, %v6472
  %v6502 = vpack.c.b16 %v6475, %v6474
  %v6503 = vpack.c.b16 %v6477, %v6476
  %v6504 = vpack.c.b16 %v6479, %v6478
  %v6505 = vpack.c.b16 %v6481, %v6480
  %v6506 = vpack.c.b16 %v6483, %v6482
  %v6507 = vpack.c.b16 %v6485, %v6484
  %v6508 = vpack.c.b16 %v6487, %v6486
  %v6509 = vpack.c.b16 %v6489, %v6488
  %v6510 = vpack.c.b16 %v6491, %v6490
  %v6511 = vpack.c.b16 %v6493, %v6492
  %v6512 = vpack.c.b16 %v6495, %v6494
  %v6513 = vpack.c.b16 %v6497, %v6496
  %6530 = vmatprep.subr.bf16.mxu0 0
  %6531 = vmatpush1.bf16.msra.mxu0 %v6505
  %6532 = vmatprep.subr.bf16.mxu0 0
  %6533 = vmatpush1.bf16.msra.mxu0 %v6504
  %6534 = vmatprep.subr.bf16.mxu0 0
  %6535 = vmatpush1.bf16.msra.mxu0 %v6503
  %6536 = vmatprep.subr.bf16.mxu0 0
  %6537 = vmatpush1.bf16.msra.mxu0 %v6502
  %6538 = vmatprep.subr.bf16.mxu0 0
  %6539 = vmatpush1.bf16.msra.mxu0 %v6501
  %6540 = vmatprep.subr.bf16.mxu0 0
  %6541 = vmatpush1.bf16.msra.mxu0 %v6500
  %6542 = vmatprep.subr.bf16.mxu0 0
  %6543 = vmatpush1.bf16.msra.mxu0 %v6499
  %6544 = vmatprep.subr.bf16.mxu0 0
  %6545 = vmatpush1.bf16.msra.mxu0 %v6498
  %6546 = vmatprep.subr.bf16.mxu0 0
  %6547 = vmatpush2.bf16.msra.mxu0 %v6513
  %6548 = vmatprep.subr.bf16.mxu0 0
  %6549 = vmatpush2.bf16.msra.mxu0 %v6512
  %6550 = vmatprep.subr.bf16.mxu0 0
  %6551 = vmatpush2.bf16.msra.mxu0 %v6511
  %6552 = vmatprep.subr.bf16.mxu0 0
  %6553 = vmatpush2.bf16.msra.mxu0 %v6510
  %6554 = vmatprep.subr.bf16.mxu0 0
  %6555 = vmatpush2.bf16.msra.mxu0 %v6509
  %6556 = vmatprep.subr.bf16.mxu0 0
  %6557 = vmatpush2.bf16.msra.mxu0 %v6508
  %6558 = vmatprep.subr.bf16.mxu0 0
  %6559 = vmatpush2.bf16.msra.mxu0 %v6507
  %6560 = vmatprep.subr.bf16.mxu0 0
  %6561 = vmatpush2.bf16.msra.mxu0 %v6506
  %6562 = vmatprep.mubr.bf16.mxu0 %v6403
  %6563 = vmatmul.mubr.bf16.gmra.mxu0 %v6402
  %v6564 = vpop.f32.mrf.mxu0
  %v6565 = vadd.f32 %v6352, %v6564
  %v6566 = vpop.f32.mrf.mxu0
  %v6567 = vpop.f32.mrf.mxu0
  %v6568 = vadd.f32 %v6352, %v6567
  %v6569 = vpop.f32.mrf.mxu0
  %6570 = vmatprep.mubr.bf16.mxu0 %v6405
  %6571 = vmatmul.mubr.bf16.gmra.mxu0 %v6404
  %v6572 = vpop.f32.mrf.mxu0
  %v6573 = vadd.f32 %v6352, %v6572
  %v6574 = vpop.f32.mrf.mxu0
  %v6575 = vpop.f32.mrf.mxu0
  %v6576 = vadd.f32 %v6352, %v6575
  %v6577 = vpop.f32.mrf.mxu0
  %6578 = vmatprep.mubr.bf16.mxu0 %v6407
  %6579 = vmatmul.mubr.bf16.gmra.mxu0 %v6406
  %v6580 = vpop.f32.mrf.mxu0
  %v6581 = vadd.f32 %v6352, %v6580
  %v6582 = vpop.f32.mrf.mxu0
  %v6583 = vpop.f32.mrf.mxu0
  %v6584 = vadd.f32 %v6352, %v6583
  %v6585 = vpop.f32.mrf.mxu0
  %6586 = vmatprep.mubr.bf16.mxu0 %v6409
  %6587 = vmatmul.mubr.bf16.gmra.mxu0 %v6408
  %v6588 = vpop.f32.mrf.mxu0
  %v6589 = vadd.f32 %v6352, %v6588
  %v6590 = vpop.f32.mrf.mxu0
  %v6591 = vpop.f32.mrf.mxu0
  %v6592 = vadd.f32 %v6352, %v6591
  %v6593 = vpop.f32.mrf.mxu0
  %6594 = vmatprep.mubr.bf16.mxu0 %v6411
  %6595 = vmatmul.mubr.bf16.gmra.mxu0 %v6410
  %v6596 = vpop.f32.mrf.mxu0
  %v6597 = vadd.f32 %v6352, %v6596
  %v6598 = vpop.f32.mrf.mxu0
  %v6599 = vpop.f32.mrf.mxu0
  %v6600 = vadd.f32 %v6352, %v6599
  %v6601 = vpop.f32.mrf.mxu0
  %6602 = vmatprep.mubr.bf16.mxu0 %v6413
  %6603 = vmatmul.mubr.bf16.gmra.mxu0 %v6412
  %v6604 = vpop.f32.mrf.mxu0
  %v6605 = vadd.f32 %v6352, %v6604
  %v6606 = vpop.f32.mrf.mxu0
  %v6607 = vpop.f32.mrf.mxu0
  %v6608 = vadd.f32 %v6352, %v6607
  %v6609 = vpop.f32.mrf.mxu0
  %6610 = vmatprep.mubr.bf16.mxu0 %v6415
  %6611 = vmatmul.mubr.bf16.gmra.mxu0 %v6414
  %v6612 = vpop.f32.mrf.mxu0
  %v6613 = vadd.f32 %v6352, %v6612
  %v6614 = vpop.f32.mrf.mxu0
  %v6615 = vpop.f32.mrf.mxu0
  %v6616 = vadd.f32 %v6352, %v6615
  %v6617 = vpop.f32.mrf.mxu0
  %6618 = vmatprep.mubr.bf16.mxu0 %v6417
  %6619 = vmatmul.mubr.bf16.gmra.mxu0 %v6416
  %v6620 = vpop.f32.mrf.mxu0
  %v6621 = vadd.f32 %v6352, %v6620
  %v6622 = vpop.f32.mrf.mxu0
  %v6623 = vpop.f32.mrf.mxu0
  %v6624 = vadd.f32 %v6352, %v6623
  %v6625 = vpop.f32.mrf.mxu0
  %6626 = vdwg.mxu0
  %v6627 = vmax.f32 %v6565, 0.0
  %v6628 = vmax.f32 %v6568, 0.0
  %v6629 = vmax.f32 %v6573, 0.0
  %v6630 = vmax.f32 %v6576, 0.0
  %v6631 = vmax.f32 %v6581, 0.0
  %v6632 = vmax.f32 %v6584, 0.0
  %v6633 = vmax.f32 %v6589, 0.0
  %v6634 = vmax.f32 %v6592, 0.0
  %v6635 = vmax.f32 %v6597, 0.0
  %v6636 = vmax.f32 %v6600, 0.0
  %v6637 = vmax.f32 %v6605, 0.0
  %v6638 = vmax.f32 %v6608, 0.0
  %v6639 = vmax.f32 %v6613, 0.0
  %v6640 = vmax.f32 %v6616, 0.0
  %v6641 = vmax.f32 %v6621, 0.0
  %v6642 = vmax.f32 %v6624, 0.0
  %v6643 = vpack.c.bf16 %v6628, %v6627
  %v6644 = vpack.c.bf16 %v6630, %v6629
  %v6645 = vpack.c.bf16 %v6632, %v6631
  %v6646 = vpack.c.bf16 %v6634, %v6633
  %v6647 = vpack.c.bf16 %v6636, %v6635
  %v6648 = vpack.c.bf16 %v6638, %v6637
  %v6649 = vpack.c.bf16 %v6640, %v6639
  %v6650 = vpack.c.bf16 %v6642, %v6641
  %v6659 = vunpack.c.l.b16 %v6643
  %v6660 = vunpack.c.h.b16 %v6643
  %v6661 = vunpack.c.l.b16 %v6644
  %v6662 = vunpack.c.h.b16 %v6644
  %v6663 = vunpack.c.l.b16 %v6645
  %v6664 = vunpack.c.h.b16 %v6645
  %v6665 = vunpack.c.l.b16 %v6646
  %v6666 = vunpack.c.h.b16 %v6646
  %v6667 = vunpack.c.l.b16 %v6647
  %v6668 = vunpack.c.h.b16 %v6647
  %v6669 = vunpack.c.l.b16 %v6648
  %v6670 = vunpack.c.h.b16 %v6648
  %v6671 = vunpack.c.l.b16 %v6649
  %v6672 = vunpack.c.h.b16 %v6649
  %v6673 = vunpack.c.l.b16 %v6650
  %v6674 = vunpack.c.h.b16 %v6650
  %v6675 = vpack.c.b16 %v6659, %v6659
  %v6676 = vpack.c.b16 %v6660, %v6660
  %v6677 = vpack.c.b16 %v6661, %v6661
  %v6678 = vpack.c.b16 %v6662, %v6662
  %v6679 = vpack.c.b16 %v6663, %v6663
  %v6680 = vpack.c.b16 %v6664, %v6664
  %v6681 = vpack.c.b16 %v6665, %v6665
  %v6682 = vpack.c.b16 %v6666, %v6666
  %v6683 = vpack.c.b16 %v6667, %v6667
  %v6684 = vpack.c.b16 %v6668, %v6668
  %v6685 = vpack.c.b16 %v6669, %v6669
  %v6686 = vpack.c.b16 %v6670, %v6670
  %v6687 = vpack.c.b16 %v6671, %v6671
  %v6688 = vpack.c.b16 %v6672, %v6672
  %v6689 = vpack.c.b16 %v6673, %v6673
  %v6690 = vpack.c.b16 %v6674, %v6674
  %6691 = vrot.lane.b32.xlu0 %v6675, 64
  %v6692 = vpop.permute.xlu0 %6691
  %6693 = vrot.lane.b32.xlu0 %v6676, 64
  %v6694 = vpop.permute.xlu0 %6693
  %6695 = vrot.lane.b32.xlu0 %v6677, 64
  %v6696 = vpop.permute.xlu0 %6695
  %6697 = vrot.lane.b32.xlu0 %v6678, 64
  %v6698 = vpop.permute.xlu0 %6697
  %6699 = vrot.lane.b32.xlu0 %v6679, 64
  %v6700 = vpop.permute.xlu0 %6699
  %6701 = vrot.lane.b32.xlu0 %v6680, 64
  %v6702 = vpop.permute.xlu0 %6701
  %6703 = vrot.lane.b32.xlu0 %v6681, 64
  %v6704 = vpop.permute.xlu0 %6703
  %6705 = vrot.lane.b32.xlu0 %v6682, 64
  %v6706 = vpop.permute.xlu0 %6705
  %6707 = vrot.lane.b32.xlu0 %v6683, 64
  %v6708 = vpop.permute.xlu0 %6707
  %6709 = vrot.lane.b32.xlu0 %v6684, 64
  %v6710 = vpop.permute.xlu0 %6709
  %6711 = vrot.lane.b32.xlu0 %v6685, 64
  %v6712 = vpop.permute.xlu0 %6711
  %6713 = vrot.lane.b32.xlu0 %v6686, 64
  %v6714 = vpop.permute.xlu0 %6713
  %6715 = vrot.lane.b32.xlu0 %v6687, 64
  %v6716 = vpop.permute.xlu0 %6715
  %6717 = vrot.lane.b32.xlu0 %v6688, 64
  %v6718 = vpop.permute.xlu0 %6717
  %6719 = vrot.lane.b32.xlu0 %v6689, 64
  %v6720 = vpop.permute.xlu0 %6719
  %6721 = vrot.lane.b32.xlu0 %v6690, 64
  %v6722 = vpop.permute.xlu0 %6721
  %6739 = vst.msk [vmem:[#allocation2 + $0xc] sm:$0xf] %vm1361, %v6692
  %6740 = vst.msk [vmem:[#allocation2 + $0x1c] sm:$0xf] %vm1361, %v6694
  %6741 = vst.msk [vmem:[#allocation2 + $0x2c] sm:$0xf] %vm1361, %v6696
  %6742 = vst.msk [vmem:[#allocation2 + $0x3c] sm:$0xf] %vm1361, %v6698
  %6743 = vst.msk [vmem:[#allocation2 + $0x4c] sm:$0xf] %vm1361, %v6700
  %6744 = vst.msk [vmem:[#allocation2 + $0x5c] sm:$0xf] %vm1361, %v6702
  %6745 = vst.msk [vmem:[#allocation2 + $0x6c] sm:$0xf] %vm1361, %v6704
  %6746 = vst.msk [vmem:[#allocation2 + $0x7c] sm:$0xf] %vm1361, %v6706
  %6747 = vst.msk [vmem:[#allocation2 + $0x8c] sm:$0xf] %vm1361, %v6708
  %6748 = vst.msk [vmem:[#allocation2 + $0x9c] sm:$0xf] %vm1361, %v6710
  %6749 = vst.msk [vmem:[#allocation2 + $0xac] sm:$0xf] %vm1361, %v6712
  %6750 = vst.msk [vmem:[#allocation2 + $0xbc] sm:$0xf] %vm1361, %v6714
  %6751 = vst.msk [vmem:[#allocation2 + $0xcc] sm:$0xf] %vm1361, %v6716
  %6752 = vst.msk [vmem:[#allocation2 + $0xdc] sm:$0xf] %vm1361, %v6718
  %6753 = vst.msk [vmem:[#allocation2 + $0xec] sm:$0xf] %vm1361, %v6720
  %6754 = vst.msk [vmem:[#allocation2 + $0xfc] sm:$0xf] %vm1361, %v6722
  %v6755 = vld [vmem:[%s0 + $0x780] sm:$0xff]
  %v6756 = vld [vmem:[%s0 + $0x788] sm:$0xff]
  %v6757 = vld [vmem:[%s0 + $0x790] sm:$0xff]
  %v6758 = vld [vmem:[%s0 + $0x798] sm:$0xff]
  %v6759 = vld [vmem:[%s0 + $0x7a0] sm:$0xff]
  %v6760 = vld [vmem:[%s0 + $0x7a8] sm:$0xff]
  %v6761 = vld [vmem:[%s0 + $0x7b0] sm:$0xff]
  %v6762 = vld [vmem:[%s0 + $0x7b8] sm:$0xff]
  %v6763 = vld [vmem:[%s0 + $0x7c0] sm:$0xff]
  %v6764 = vld [vmem:[%s0 + $0x7c8] sm:$0xff]
  %v6765 = vld [vmem:[%s0 + $0x7d0] sm:$0xff]
  %v6766 = vld [vmem:[%s0 + $0x7d8] sm:$0xff]
  %v6767 = vld [vmem:[%s0 + $0x7e0] sm:$0xff]
  %v6768 = vld [vmem:[%s0 + $0x7e8] sm:$0xff]
  %v6769 = vld [vmem:[%s0 + $0x7f0] sm:$0xff]
  %v6770 = vld [vmem:[%s0 + $0x7f8] sm:$0xff]
  %v6771 = vld [vmem:[%s1] sm:$0xf]
  %v6772 = vld [vmem:[%s1 + $0x4] sm:$0xf]
  %v6773 = vld [vmem:[%s1 + $0x8] sm:$0xf]
  %v6774 = vld [vmem:[%s1 + $0xc] sm:$0xf]
  %v6775 = vld [vmem:[%s1 + $0x10] sm:$0xf]
  %v6776 = vld [vmem:[%s1 + $0x14] sm:$0xf]
  %v6777 = vld [vmem:[%s1 + $0x18] sm:$0xf]
  %v6778 = vld [vmem:[%s1 + $0x1c] sm:$0xf]
  %v6779 = vld [vmem:[%s1 + $0x20] sm:$0xf]
  %v6780 = vld [vmem:[%s1 + $0x24] sm:$0xf]
  %v6781 = vld [vmem:[%s1 + $0x28] sm:$0xf]
  %v6782 = vld [vmem:[%s1 + $0x2c] sm:$0xf]
  %v6783 = vld [vmem:[%s1 + $0x30] sm:$0xf]
  %v6784 = vld [vmem:[%s1 + $0x34] sm:$0xf]
  %v6785 = vld [vmem:[%s1 + $0x38] sm:$0xf]
  %v6786 = vld [vmem:[%s1 + $0x3c] sm:$0xf]
  %v6787 = vld [vmem:[%s1 + $0x40] sm:$0xf]
  %v6788 = vld [vmem:[%s1 + $0x44] sm:$0xf]
  %v6789 = vld [vmem:[%s1 + $0x48] sm:$0xf]
  %v6790 = vld [vmem:[%s1 + $0x4c] sm:$0xf]
  %v6791 = vld [vmem:[%s1 + $0x50] sm:$0xf]
  %v6792 = vld [vmem:[%s1 + $0x54] sm:$0xf]
  %v6793 = vld [vmem:[%s1 + $0x58] sm:$0xf]
  %v6794 = vld [vmem:[%s1 + $0x5c] sm:$0xf]
  %v6795 = vld [vmem:[%s1 + $0x60] sm:$0xf]
  %v6796 = vld [vmem:[%s1 + $0x64] sm:$0xf]
  %v6797 = vld [vmem:[%s1 + $0x68] sm:$0xf]
  %v6798 = vld [vmem:[%s1 + $0x6c] sm:$0xf]
  %v6799 = vld [vmem:[%s1 + $0x70] sm:$0xf]
  %v6800 = vld [vmem:[%s1 + $0x74] sm:$0xf]
  %v6801 = vld [vmem:[%s1 + $0x78] sm:$0xf]
  %v6802 = vld [vmem:[%s1 + $0x7c] sm:$0xf]
  %v6803 = vld [vmem:[%s2] sm:$0x1]
  %v6805 = vlaneseq
  %v6806 = vshrl.u32 %v6805, 7
  %v6807 = vsub.s32 0, %v6806
  %v6808 = vrot.slane %v6803, %v6807
  %v6826 = vunpack.c.l.b16 %v6755
  %v6827 = vunpack.c.h.b16 %v6755
  %v6828 = vunpack.c.l.b16 %v6756
  %v6829 = vunpack.c.h.b16 %v6756
  %v6830 = vunpack.c.l.b16 %v6757
  %v6831 = vunpack.c.h.b16 %v6757
  %v6832 = vunpack.c.l.b16 %v6758
  %v6833 = vunpack.c.h.b16 %v6758
  %v6834 = vunpack.c.l.b16 %v6759
  %v6835 = vunpack.c.h.b16 %v6759
  %v6836 = vunpack.c.l.b16 %v6760
  %v6837 = vunpack.c.h.b16 %v6760
  %v6838 = vunpack.c.l.b16 %v6761
  %v6839 = vunpack.c.h.b16 %v6761
  %v6840 = vunpack.c.l.b16 %v6762
  %v6841 = vunpack.c.h.b16 %v6762
  %v6842 = vunpack.c.l.b16 %v6763
  %v6843 = vunpack.c.h.b16 %v6763
  %v6844 = vunpack.c.l.b16 %v6764
  %v6845 = vunpack.c.h.b16 %v6764
  %v6846 = vunpack.c.l.b16 %v6765
  %v6847 = vunpack.c.h.b16 %v6765
  %v6848 = vunpack.c.l.b16 %v6766
  %v6849 = vunpack.c.h.b16 %v6766
  %v6850 = vunpack.c.l.b16 %v6767
  %v6851 = vunpack.c.h.b16 %v6767
  %v6852 = vunpack.c.l.b16 %v6768
  %v6853 = vunpack.c.h.b16 %v6768
  %v6854 = vunpack.c.l.b16 %v6769
  %v6855 = vunpack.c.h.b16 %v6769
  %v6856 = vunpack.c.l.b16 %v6770
  %v6857 = vunpack.c.h.b16 %v6770
  %v6858 = vpack.c.b16 %v6828, %v6826
  %v6859 = vpack.c.b16 %v6829, %v6827
  %v6860 = vpack.c.b16 %v6832, %v6830
  %v6861 = vpack.c.b16 %v6833, %v6831
  %v6862 = vpack.c.b16 %v6836, %v6834
  %v6863 = vpack.c.b16 %v6837, %v6835
  %v6864 = vpack.c.b16 %v6840, %v6838
  %v6865 = vpack.c.b16 %v6841, %v6839
  %v6866 = vpack.c.b16 %v6844, %v6842
  %v6867 = vpack.c.b16 %v6845, %v6843
  %v6868 = vpack.c.b16 %v6848, %v6846
  %v6869 = vpack.c.b16 %v6849, %v6847
  %v6870 = vpack.c.b16 %v6852, %v6850
  %v6871 = vpack.c.b16 %v6853, %v6851
  %v6872 = vpack.c.b16 %v6856, %v6854
  %v6873 = vpack.c.b16 %v6857, %v6855
  %v6922 = vunpack.c.l.b16 %v6771
  %v6923 = vunpack.c.l.b16 %v6772
  %v6924 = vunpack.c.l.b16 %v6773
  %v6925 = vunpack.c.l.b16 %v6774
  %v6926 = vunpack.c.l.b16 %v6775
  %v6927 = vunpack.c.l.b16 %v6776
  %v6928 = vunpack.c.l.b16 %v6777
  %v6929 = vunpack.c.l.b16 %v6778
  %v6930 = vunpack.c.l.b16 %v6779
  %v6931 = vunpack.c.l.b16 %v6780
  %v6932 = vunpack.c.l.b16 %v6781
  %v6933 = vunpack.c.l.b16 %v6782
  %v6934 = vunpack.c.l.b16 %v6783
  %v6935 = vunpack.c.l.b16 %v6784
  %v6936 = vunpack.c.l.b16 %v6785
  %v6937 = vunpack.c.l.b16 %v6786
  %v6938 = vunpack.c.l.b16 %v6787
  %v6939 = vunpack.c.l.b16 %v6788
  %v6940 = vunpack.c.l.b16 %v6789
  %v6941 = vunpack.c.l.b16 %v6790
  %v6942 = vunpack.c.l.b16 %v6791
  %v6943 = vunpack.c.l.b16 %v6792
  %v6944 = vunpack.c.l.b16 %v6793
  %v6945 = vunpack.c.l.b16 %v6794
  %v6946 = vunpack.c.l.b16 %v6795
  %v6947 = vunpack.c.l.b16 %v6796
  %v6948 = vunpack.c.l.b16 %v6797
  %v6949 = vunpack.c.l.b16 %v6798
  %v6950 = vunpack.c.l.b16 %v6799
  %v6951 = vunpack.c.l.b16 %v6800
  %v6952 = vunpack.c.l.b16 %v6801
  %v6953 = vunpack.c.l.b16 %v6802
  %v6954 = vpack.c.b16 %v6923, %v6922
  %v6955 = vpack.c.b16 %v6925, %v6924
  %v6956 = vpack.c.b16 %v6927, %v6926
  %v6957 = vpack.c.b16 %v6929, %v6928
  %v6958 = vpack.c.b16 %v6931, %v6930
  %v6959 = vpack.c.b16 %v6933, %v6932
  %v6960 = vpack.c.b16 %v6935, %v6934
  %v6961 = vpack.c.b16 %v6937, %v6936
  %v6962 = vpack.c.b16 %v6939, %v6938
  %v6963 = vpack.c.b16 %v6941, %v6940
  %v6964 = vpack.c.b16 %v6943, %v6942
  %v6965 = vpack.c.b16 %v6945, %v6944
  %v6966 = vpack.c.b16 %v6947, %v6946
  %v6967 = vpack.c.b16 %v6949, %v6948
  %v6968 = vpack.c.b16 %v6951, %v6950
  %v6969 = vpack.c.b16 %v6953, %v6952
  %6986 = vmatprep.subr.bf16.mxu0 0
  %6987 = vmatpush1.bf16.msra.mxu0 %v6961
  %6988 = vmatprep.subr.bf16.mxu0 0
  %6989 = vmatpush1.bf16.msra.mxu0 %v6960
  %6990 = vmatprep.subr.bf16.mxu0 0
  %6991 = vmatpush1.bf16.msra.mxu0 %v6959
  %6992 = vmatprep.subr.bf16.mxu0 0
  %6993 = vmatpush1.bf16.msra.mxu0 %v6958
  %6994 = vmatprep.subr.bf16.mxu0 0
  %6995 = vmatpush1.bf16.msra.mxu0 %v6957
  %6996 = vmatprep.subr.bf16.mxu0 0
  %6997 = vmatpush1.bf16.msra.mxu0 %v6956
  %6998 = vmatprep.subr.bf16.mxu0 0
  %6999 = vmatpush1.bf16.msra.mxu0 %v6955
  %7000 = vmatprep.subr.bf16.mxu0 0
  %7001 = vmatpush1.bf16.msra.mxu0 %v6954
  %7002 = vmatprep.subr.bf16.mxu0 0
  %7003 = vmatpush2.bf16.msra.mxu0 %v6969
  %7004 = vmatprep.subr.bf16.mxu0 0
  %7005 = vmatpush2.bf16.msra.mxu0 %v6968
  %7006 = vmatprep.subr.bf16.mxu0 0
  %7007 = vmatpush2.bf16.msra.mxu0 %v6967
  %7008 = vmatprep.subr.bf16.mxu0 0
  %7009 = vmatpush2.bf16.msra.mxu0 %v6966
  %7010 = vmatprep.subr.bf16.mxu0 0
  %7011 = vmatpush2.bf16.msra.mxu0 %v6965
  %7012 = vmatprep.subr.bf16.mxu0 0
  %7013 = vmatpush2.bf16.msra.mxu0 %v6964
  %7014 = vmatprep.subr.bf16.mxu0 0
  %7015 = vmatpush2.bf16.msra.mxu0 %v6963
  %7016 = vmatprep.subr.bf16.mxu0 0
  %7017 = vmatpush2.bf16.msra.mxu0 %v6962
  %7018 = vmatprep.mubr.bf16.mxu0 %v6859
  %7019 = vmatmul.mubr.bf16.gmra.mxu0 %v6858
  %v7020 = vpop.f32.mrf.mxu0
  %v7021 = vadd.f32 %v6808, %v7020
  %v7022 = vpop.f32.mrf.mxu0
  %v7023 = vpop.f32.mrf.mxu0
  %v7024 = vadd.f32 %v6808, %v7023
  %v7025 = vpop.f32.mrf.mxu0
  %7026 = vmatprep.mubr.bf16.mxu0 %v6861
  %7027 = vmatmul.mubr.bf16.gmra.mxu0 %v6860
  %v7028 = vpop.f32.mrf.mxu0
  %v7029 = vadd.f32 %v6808, %v7028
  %v7030 = vpop.f32.mrf.mxu0
  %v7031 = vpop.f32.mrf.mxu0
  %v7032 = vadd.f32 %v6808, %v7031
  %v7033 = vpop.f32.mrf.mxu0
  %7034 = vmatprep.mubr.bf16.mxu0 %v6863
  %7035 = vmatmul.mubr.bf16.gmra.mxu0 %v6862
  %v7036 = vpop.f32.mrf.mxu0
  %v7037 = vadd.f32 %v6808, %v7036
  %v7038 = vpop.f32.mrf.mxu0
  %v7039 = vpop.f32.mrf.mxu0
  %v7040 = vadd.f32 %v6808, %v7039
  %v7041 = vpop.f32.mrf.mxu0
  %7042 = vmatprep.mubr.bf16.mxu0 %v6865
  %7043 = vmatmul.mubr.bf16.gmra.mxu0 %v6864
  %v7044 = vpop.f32.mrf.mxu0
  %v7045 = vadd.f32 %v6808, %v7044
  %v7046 = vpop.f32.mrf.mxu0
  %v7047 = vpop.f32.mrf.mxu0
  %v7048 = vadd.f32 %v6808, %v7047
  %v7049 = vpop.f32.mrf.mxu0
  %7050 = vmatprep.mubr.bf16.mxu0 %v6867
  %7051 = vmatmul.mubr.bf16.gmra.mxu0 %v6866
  %v7052 = vpop.f32.mrf.mxu0
  %v7053 = vadd.f32 %v6808, %v7052
  %v7054 = vpop.f32.mrf.mxu0
  %v7055 = vpop.f32.mrf.mxu0
  %v7056 = vadd.f32 %v6808, %v7055
  %v7057 = vpop.f32.mrf.mxu0
  %7058 = vmatprep.mubr.bf16.mxu0 %v6869
  %7059 = vmatmul.mubr.bf16.gmra.mxu0 %v6868
  %v7060 = vpop.f32.mrf.mxu0
  %v7061 = vadd.f32 %v6808, %v7060
  %v7062 = vpop.f32.mrf.mxu0
  %v7063 = vpop.f32.mrf.mxu0
  %v7064 = vadd.f32 %v6808, %v7063
  %v7065 = vpop.f32.mrf.mxu0
  %7066 = vmatprep.mubr.bf16.mxu0 %v6871
  %7067 = vmatmul.mubr.bf16.gmra.mxu0 %v6870
  %v7068 = vpop.f32.mrf.mxu0
  %v7069 = vadd.f32 %v6808, %v7068
  %v7070 = vpop.f32.mrf.mxu0
  %v7071 = vpop.f32.mrf.mxu0
  %v7072 = vadd.f32 %v6808, %v7071
  %v7073 = vpop.f32.mrf.mxu0
  %7074 = vmatprep.mubr.bf16.mxu0 %v6873
  %7075 = vmatmul.mubr.bf16.gmra.mxu0 %v6872
  %v7076 = vpop.f32.mrf.mxu0
  %v7077 = vadd.f32 %v6808, %v7076
  %v7078 = vpop.f32.mrf.mxu0
  %v7079 = vpop.f32.mrf.mxu0
  %v7080 = vadd.f32 %v6808, %v7079
  %v7081 = vpop.f32.mrf.mxu0
  %7082 = vdwg.mxu0
  %v7083 = vmax.f32 %v7021, 0.0
  %v7084 = vmax.f32 %v7024, 0.0
  %v7085 = vmax.f32 %v7029, 0.0
  %v7086 = vmax.f32 %v7032, 0.0
  %v7087 = vmax.f32 %v7037, 0.0
  %v7088 = vmax.f32 %v7040, 0.0
  %v7089 = vmax.f32 %v7045, 0.0
  %v7090 = vmax.f32 %v7048, 0.0
  %v7091 = vmax.f32 %v7053, 0.0
  %v7092 = vmax.f32 %v7056, 0.0
  %v7093 = vmax.f32 %v7061, 0.0
  %v7094 = vmax.f32 %v7064, 0.0
  %v7095 = vmax.f32 %v7069, 0.0
  %v7096 = vmax.f32 %v7072, 0.0
  %v7097 = vmax.f32 %v7077, 0.0
  %v7098 = vmax.f32 %v7080, 0.0
  %v7099 = vpack.c.bf16 %v7084, %v7083
  %v7100 = vpack.c.bf16 %v7086, %v7085
  %v7101 = vpack.c.bf16 %v7088, %v7087
  %v7102 = vpack.c.bf16 %v7090, %v7089
  %v7103 = vpack.c.bf16 %v7092, %v7091
  %v7104 = vpack.c.bf16 %v7094, %v7093
  %v7105 = vpack.c.bf16 %v7096, %v7095
  %v7106 = vpack.c.bf16 %v7098, %v7097
  %v7115 = vunpack.c.l.b16 %v7099
  %v7116 = vunpack.c.h.b16 %v7099
  %v7117 = vunpack.c.l.b16 %v7100
  %v7118 = vunpack.c.h.b16 %v7100
  %v7119 = vunpack.c.l.b16 %v7101
  %v7120 = vunpack.c.h.b16 %v7101
  %v7121 = vunpack.c.l.b16 %v7102
  %v7122 = vunpack.c.h.b16 %v7102
  %v7123 = vunpack.c.l.b16 %v7103
  %v7124 = vunpack.c.h.b16 %v7103
  %v7125 = vunpack.c.l.b16 %v7104
  %v7126 = vunpack.c.h.b16 %v7104
  %v7127 = vunpack.c.l.b16 %v7105
  %v7128 = vunpack.c.h.b16 %v7105
  %v7129 = vunpack.c.l.b16 %v7106
  %v7130 = vunpack.c.h.b16 %v7106
  %v7131 = vpack.c.b16 %v7115, %v7115
  %v7132 = vpack.c.b16 %v7116, %v7116
  %v7133 = vpack.c.b16 %v7117, %v7117
  %v7134 = vpack.c.b16 %v7118, %v7118
  %v7135 = vpack.c.b16 %v7119, %v7119
  %v7136 = vpack.c.b16 %v7120, %v7120
  %v7137 = vpack.c.b16 %v7121, %v7121
  %v7138 = vpack.c.b16 %v7122, %v7122
  %v7139 = vpack.c.b16 %v7123, %v7123
  %v7140 = vpack.c.b16 %v7124, %v7124
  %v7141 = vpack.c.b16 %v7125, %v7125
  %v7142 = vpack.c.b16 %v7126, %v7126
  %v7143 = vpack.c.b16 %v7127, %v7127
  %v7144 = vpack.c.b16 %v7128, %v7128
  %v7145 = vpack.c.b16 %v7129, %v7129
  %v7146 = vpack.c.b16 %v7130, %v7130
  %7147 = vrot.lane.b32.xlu0 %v7131, 96
  %v7148 = vpop.permute.xlu0 %7147
  %7149 = vrot.lane.b32.xlu0 %v7132, 96
  %v7150 = vpop.permute.xlu0 %7149
  %7151 = vrot.lane.b32.xlu0 %v7133, 96
  %v7152 = vpop.permute.xlu0 %7151
  %7153 = vrot.lane.b32.xlu0 %v7134, 96
  %v7154 = vpop.permute.xlu0 %7153
  %7155 = vrot.lane.b32.xlu0 %v7135, 96
  %v7156 = vpop.permute.xlu0 %7155
  %7157 = vrot.lane.b32.xlu0 %v7136, 96
  %v7158 = vpop.permute.xlu0 %7157
  %7159 = vrot.lane.b32.xlu0 %v7137, 96
  %v7160 = vpop.permute.xlu0 %7159
  %7161 = vrot.lane.b32.xlu0 %v7138, 96
  %v7162 = vpop.permute.xlu0 %7161
  %7163 = vrot.lane.b32.xlu0 %v7139, 96
  %v7164 = vpop.permute.xlu0 %7163
  %7165 = vrot.lane.b32.xlu0 %v7140, 96
  %v7166 = vpop.permute.xlu0 %7165
  %7167 = vrot.lane.b32.xlu0 %v7141, 96
  %v7168 = vpop.permute.xlu0 %7167
  %7169 = vrot.lane.b32.xlu0 %v7142, 96
  %v7170 = vpop.permute.xlu0 %7169
  %7171 = vrot.lane.b32.xlu0 %v7143, 96
  %v7172 = vpop.permute.xlu0 %7171
  %7173 = vrot.lane.b32.xlu0 %v7144, 96
  %v7174 = vpop.permute.xlu0 %7173
  %7175 = vrot.lane.b32.xlu0 %v7145, 96
  %v7176 = vpop.permute.xlu0 %7175
  %7177 = vrot.lane.b32.xlu0 %v7146, 96
  %v7178 = vpop.permute.xlu0 %7177
  %7195 = vst.msk [vmem:[#allocation2 + $0xc] sm:$0xf] %vm1818, %v7148
  %7196 = vst.msk [vmem:[#allocation2 + $0x1c] sm:$0xf] %vm1818, %v7150
  %7197 = vst.msk [vmem:[#allocation2 + $0x2c] sm:$0xf] %vm1818, %v7152
  %7198 = vst.msk [vmem:[#allocation2 + $0x3c] sm:$0xf] %vm1818, %v7154
  %7199 = vst.msk [vmem:[#allocation2 + $0x4c] sm:$0xf] %vm1818, %v7156
  %7200 = vst.msk [vmem:[#allocation2 + $0x5c] sm:$0xf] %vm1818, %v7158
  %7201 = vst.msk [vmem:[#allocation2 + $0x6c] sm:$0xf] %vm1818, %v7160
  %7202 = vst.msk [vmem:[#allocation2 + $0x7c] sm:$0xf] %vm1818, %v7162
  %7203 = vst.msk [vmem:[#allocation2 + $0x8c] sm:$0xf] %vm1818, %v7164
  %7204 = vst.msk [vmem:[#allocation2 + $0x9c] sm:$0xf] %vm1818, %v7166
  %7205 = vst.msk [vmem:[#allocation2 + $0xac] sm:$0xf] %vm1818, %v7168
  %7206 = vst.msk [vmem:[#allocation2 + $0xbc] sm:$0xf] %vm1818, %v7170
  %7207 = vst.msk [vmem:[#allocation2 + $0xcc] sm:$0xf] %vm1818, %v7172
  %7208 = vst.msk [vmem:[#allocation2 + $0xdc] sm:$0xf] %vm1818, %v7174
  %7209 = vst.msk [vmem:[#allocation2 + $0xec] sm:$0xf] %vm1818, %v7176
  %7210 = vst.msk [vmem:[#allocation2 + $0xfc] sm:$0xf] %vm1818, %v7178
  %v7211 = vld [vmem:[#allocation2] sm:$0xff]
  %v7212 = vld [vmem:[#allocation2 + $0x8] sm:$0xff]
  %v7213 = vld [vmem:[#allocation2 + $0x10] sm:$0xff]
  %v7214 = vld [vmem:[#allocation2 + $0x18] sm:$0xff]
  %v7215 = vld [vmem:[#allocation2 + $0x20] sm:$0xff]
  %v7216 = vld [vmem:[#allocation2 + $0x28] sm:$0xff]
  %v7217 = vld [vmem:[#allocation2 + $0x30] sm:$0xff]
  %v7218 = vld [vmem:[#allocation2 + $0x38] sm:$0xff]
  %v7219 = vld [vmem:[#allocation2 + $0x40] sm:$0xff]
  %v7220 = vld [vmem:[#allocation2 + $0x48] sm:$0xff]
  %v7221 = vld [vmem:[#allocation2 + $0x50] sm:$0xff]
  %v7222 = vld [vmem:[#allocation2 + $0x58] sm:$0xff]
  %v7223 = vld [vmem:[#allocation2 + $0x60] sm:$0xff]
  %v7224 = vld [vmem:[#allocation2 + $0x68] sm:$0xff]
  %v7225 = vld [vmem:[#allocation2 + $0x70] sm:$0xff]
  %v7226 = vld [vmem:[#allocation2 + $0x78] sm:$0xff]
  %v7227 = vld [vmem:[#allocation2 + $0x80] sm:$0xff]
  %v7228 = vld [vmem:[#allocation2 + $0x88] sm:$0xff]
  %v7229 = vld [vmem:[#allocation2 + $0x90] sm:$0xff]
  %v7230 = vld [vmem:[#allocation2 + $0x98] sm:$0xff]
  %v7231 = vld [vmem:[#allocation2 + $0xa0] sm:$0xff]
  %v7232 = vld [vmem:[#allocation2 + $0xa8] sm:$0xff]
  %v7233 = vld [vmem:[#allocation2 + $0xb0] sm:$0xff]
  %v7234 = vld [vmem:[#allocation2 + $0xb8] sm:$0xff]
  %v7235 = vld [vmem:[#allocation2 + $0xc0] sm:$0xff]
  %v7236 = vld [vmem:[#allocation2 + $0xc8] sm:$0xff]
  %v7237 = vld [vmem:[#allocation2 + $0xd0] sm:$0xff]
  %v7238 = vld [vmem:[#allocation2 + $0xd8] sm:$0xff]
  %v7239 = vld [vmem:[#allocation2 + $0xe0] sm:$0xff]
  %v7240 = vld [vmem:[#allocation2 + $0xe8] sm:$0xff]
  %v7241 = vld [vmem:[#allocation2 + $0xf0] sm:$0xff]
  %v7242 = vld [vmem:[#allocation2 + $0xf8] sm:$0xff]
  %v7243 = vld [vmem:[%s3] sm:$0xf]
  %v7244 = vld [vmem:[%s3 + $0x4] sm:$0xf]
  %v7245 = vld [vmem:[%s3 + $0x8] sm:$0xf]
  %v7246 = vld [vmem:[%s3 + $0xc] sm:$0xf]
  %v7247 = vld [vmem:[%s3 + $0x10] sm:$0xf]
  %v7248 = vld [vmem:[%s3 + $0x14] sm:$0xf]
  %v7249 = vld [vmem:[%s3 + $0x18] sm:$0xf]
  %v7250 = vld [vmem:[%s3 + $0x1c] sm:$0xf]
  %v7251 = vld [vmem:[%s3 + $0x20] sm:$0xf]
  %v7252 = vld [vmem:[%s3 + $0x24] sm:$0xf]
  %v7253 = vld [vmem:[%s3 + $0x28] sm:$0xf]
  %v7254 = vld [vmem:[%s3 + $0x2c] sm:$0xf]
  %v7255 = vld [vmem:[%s3 + $0x30] sm:$0xf]
  %v7256 = vld [vmem:[%s3 + $0x34] sm:$0xf]
  %v7257 = vld [vmem:[%s3 + $0x38] sm:$0xf]
  %v7258 = vld [vmem:[%s3 + $0x3c] sm:$0xf]
  %v7259 = vld [vmem:[%s3 + $0x40] sm:$0xf]
  %v7260 = vld [vmem:[%s3 + $0x44] sm:$0xf]
  %v7261 = vld [vmem:[%s3 + $0x48] sm:$0xf]
  %v7262 = vld [vmem:[%s3 + $0x4c] sm:$0xf]
  %v7263 = vld [vmem:[%s3 + $0x50] sm:$0xf]
  %v7264 = vld [vmem:[%s3 + $0x54] sm:$0xf]
  %v7265 = vld [vmem:[%s3 + $0x58] sm:$0xf]
  %v7266 = vld [vmem:[%s3 + $0x5c] sm:$0xf]
  %v7267 = vld [vmem:[%s3 + $0x60] sm:$0xf]
  %v7268 = vld [vmem:[%s3 + $0x64] sm:$0xf]
  %v7269 = vld [vmem:[%s3 + $0x68] sm:$0xf]
  %v7270 = vld [vmem:[%s3 + $0x6c] sm:$0xf]
  %v7271 = vld [vmem:[%s3 + $0x70] sm:$0xf]
  %v7272 = vld [vmem:[%s3 + $0x74] sm:$0xf]
  %v7273 = vld [vmem:[%s3 + $0x78] sm:$0xf]
  %v7274 = vld [vmem:[%s3 + $0x7c] sm:$0xf]
  %v7275 = vld [vmem:[%s3 + $0x80] sm:$0xf]
  %v7276 = vld [vmem:[%s3 + $0x84] sm:$0xf]
  %v7277 = vld [vmem:[%s3 + $0x88] sm:$0xf]
  %v7278 = vld [vmem:[%s3 + $0x8c] sm:$0xf]
  %v7279 = vld [vmem:[%s3 + $0x90] sm:$0xf]
  %v7280 = vld [vmem:[%s3 + $0x94] sm:$0xf]
  %v7281 = vld [vmem:[%s3 + $0x98] sm:$0xf]
  %v7282 = vld [vmem:[%s3 + $0x9c] sm:$0xf]
  %v7283 = vld [vmem:[%s3 + $0xa0] sm:$0xf]
  %v7284 = vld [vmem:[%s3 + $0xa4] sm:$0xf]
  %v7285 = vld [vmem:[%s3 + $0xa8] sm:$0xf]
  %v7286 = vld [vmem:[%s3 + $0xac] sm:$0xf]
  %v7287 = vld [vmem:[%s3 + $0xb0] sm:$0xf]
  %v7288 = vld [vmem:[%s3 + $0xb4] sm:$0xf]
  %v7289 = vld [vmem:[%s3 + $0xb8] sm:$0xf]
  %v7290 = vld [vmem:[%s3 + $0xbc] sm:$0xf]
  %v7291 = vld [vmem:[%s3 + $0xc0] sm:$0xf]
  %v7292 = vld [vmem:[%s3 + $0xc4] sm:$0xf]
  %v7293 = vld [vmem:[%s3 + $0xc8] sm:$0xf]
  %v7294 = vld [vmem:[%s3 + $0xcc] sm:$0xf]
  %v7295 = vld [vmem:[%s3 + $0xd0] sm:$0xf]
  %v7296 = vld [vmem:[%s3 + $0xd4] sm:$0xf]
  %v7297 = vld [vmem:[%s3 + $0xd8] sm:$0xf]
  %v7298 = vld [vmem:[%s3 + $0xdc] sm:$0xf]
  %v7299 = vld [vmem:[%s3 + $0xe0] sm:$0xf]
  %v7300 = vld [vmem:[%s3 + $0xe4] sm:$0xf]
  %v7301 = vld [vmem:[%s3 + $0xe8] sm:$0xf]
  %v7302 = vld [vmem:[%s3 + $0xec] sm:$0xf]
  %v7303 = vld [vmem:[%s3 + $0xf0] sm:$0xf]
  %v7304 = vld [vmem:[%s3 + $0xf4] sm:$0xf]
  %v7305 = vld [vmem:[%s3 + $0xf8] sm:$0xf]
  %v7306 = vld [vmem:[%s3 + $0xfc] sm:$0xf]
  %v7307 = vld [vmem:[%s4] sm:$0x1]
  %v7309 = vlaneseq
  %v7310 = vshrl.u32 %v7309, 7
  %v7311 = vsub.s32 0, %v7310
  %v7312 = vrot.slane %v7307, %v7311
  %v7346 = vunpack.c.l.b16 %v7211
  %v7347 = vunpack.c.h.b16 %v7211
  %v7348 = vunpack.c.l.b16 %v7212
  %v7349 = vunpack.c.h.b16 %v7212
  %v7350 = vunpack.c.l.b16 %v7213
  %v7351 = vunpack.c.h.b16 %v7213
  %v7352 = vunpack.c.l.b16 %v7214
  %v7353 = vunpack.c.h.b16 %v7214
  %v7354 = vunpack.c.l.b16 %v7215
  %v7355 = vunpack.c.h.b16 %v7215
  %v7356 = vunpack.c.l.b16 %v7216
  %v7357 = vunpack.c.h.b16 %v7216
  %v7358 = vunpack.c.l.b16 %v7217
  %v7359 = vunpack.c.h.b16 %v7217
  %v7360 = vunpack.c.l.b16 %v7218
  %v7361 = vunpack.c.h.b16 %v7218
  %v7362 = vunpack.c.l.b16 %v7219
  %v7363 = vunpack.c.h.b16 %v7219
  %v7364 = vunpack.c.l.b16 %v7220
  %v7365 = vunpack.c.h.b16 %v7220
  %v7366 = vunpack.c.l.b16 %v7221
  %v7367 = vunpack.c.h.b16 %v7221
  %v7368 = vunpack.c.l.b16 %v7222
  %v7369 = vunpack.c.h.b16 %v7222
  %v7370 = vunpack.c.l.b16 %v7223
  %v7371 = vunpack.c.h.b16 %v7223
  %v7372 = vunpack.c.l.b16 %v7224
  %v7373 = vunpack.c.h.b16 %v7224
  %v7374 = vunpack.c.l.b16 %v7225
  %v7375 = vunpack.c.h.b16 %v7225
  %v7376 = vunpack.c.l.b16 %v7226
  %v7377 = vunpack.c.h.b16 %v7226
  %v7378 = vunpack.c.l.b16 %v7227
  %v7379 = vunpack.c.h.b16 %v7227
  %v7380 = vunpack.c.l.b16 %v7228
  %v7381 = vunpack.c.h.b16 %v7228
  %v7382 = vunpack.c.l.b16 %v7229
  %v7383 = vunpack.c.h.b16 %v7229
  %v7384 = vunpack.c.l.b16 %v7230
  %v7385 = vunpack.c.h.b16 %v7230
  %v7386 = vunpack.c.l.b16 %v7231
  %v7387 = vunpack.c.h.b16 %v7231
  %v7388 = vunpack.c.l.b16 %v7232
  %v7389 = vunpack.c.h.b16 %v7232
  %v7390 = vunpack.c.l.b16 %v7233
  %v7391 = vunpack.c.h.b16 %v7233
  %v7392 = vunpack.c.l.b16 %v7234
  %v7393 = vunpack.c.h.b16 %v7234
  %v7394 = vunpack.c.l.b16 %v7235
  %v7395 = vunpack.c.h.b16 %v7235
  %v7396 = vunpack.c.l.b16 %v7236
  %v7397 = vunpack.c.h.b16 %v7236
  %v7398 = vunpack.c.l.b16 %v7237
  %v7399 = vunpack.c.h.b16 %v7237
  %v7400 = vunpack.c.l.b16 %v7238
  %v7401 = vunpack.c.h.b16 %v7238
  %v7402 = vunpack.c.l.b16 %v7239
  %v7403 = vunpack.c.h.b16 %v7239
  %v7404 = vunpack.c.l.b16 %v7240
  %v7405 = vunpack.c.h.b16 %v7240
  %v7406 = vunpack.c.l.b16 %v7241
  %v7407 = vunpack.c.h.b16 %v7241
  %v7408 = vunpack.c.l.b16 %v7242
  %v7409 = vunpack.c.h.b16 %v7242
  %v7410 = vpack.c.b16 %v7350, %v7346
  %v7411 = vpack.c.b16 %v7351, %v7347
  %v7412 = vpack.c.b16 %v7352, %v7348
  %v7413 = vpack.c.b16 %v7353, %v7349
  %v7414 = vpack.c.b16 %v7358, %v7354
  %v7415 = vpack.c.b16 %v7359, %v7355
  %v7416 = vpack.c.b16 %v7360, %v7356
  %v7417 = vpack.c.b16 %v7361, %v7357
  %v7418 = vpack.c.b16 %v7366, %v7362
  %v7419 = vpack.c.b16 %v7367, %v7363
  %v7420 = vpack.c.b16 %v7368, %v7364
  %v7421 = vpack.c.b16 %v7369, %v7365
  %v7422 = vpack.c.b16 %v7374, %v7370
  %v7423 = vpack.c.b16 %v7375, %v7371
  %v7424 = vpack.c.b16 %v7376, %v7372
  %v7425 = vpack.c.b16 %v7377, %v7373
  %v7426 = vpack.c.b16 %v7382, %v7378
  %v7427 = vpack.c.b16 %v7383, %v7379
  %v7428 = vpack.c.b16 %v7384, %v7380
  %v7429 = vpack.c.b16 %v7385, %v7381
  %v7430 = vpack.c.b16 %v7390, %v7386
  %v7431 = vpack.c.b16 %v7391, %v7387
  %v7432 = vpack.c.b16 %v7392, %v7388
  %v7433 = vpack.c.b16 %v7393, %v7389
  %v7434 = vpack.c.b16 %v7398, %v7394
  %v7435 = vpack.c.b16 %v7399, %v7395
  %v7436 = vpack.c.b16 %v7400, %v7396
  %v7437 = vpack.c.b16 %v7401, %v7397
  %v7438 = vpack.c.b16 %v7406, %v7402
  %v7439 = vpack.c.b16 %v7407, %v7403
  %v7440 = vpack.c.b16 %v7408, %v7404
  %v7441 = vpack.c.b16 %v7409, %v7405
  %v7538 = vunpack.c.l.b16 %v7243
  %v7539 = vunpack.c.l.b16 %v7244
  %v7540 = vunpack.c.l.b16 %v7245
  %v7541 = vunpack.c.l.b16 %v7246
  %v7542 = vunpack.c.l.b16 %v7247
  %v7543 = vunpack.c.l.b16 %v7248
  %v7544 = vunpack.c.l.b16 %v7249
  %v7545 = vunpack.c.l.b16 %v7250
  %v7546 = vunpack.c.l.b16 %v7251
  %v7547 = vunpack.c.l.b16 %v7252
  %v7548 = vunpack.c.l.b16 %v7253
  %v7549 = vunpack.c.l.b16 %v7254
  %v7550 = vunpack.c.l.b16 %v7255
  %v7551 = vunpack.c.l.b16 %v7256
  %v7552 = vunpack.c.l.b16 %v7257
  %v7553 = vunpack.c.l.b16 %v7258
  %v7554 = vunpack.c.l.b16 %v7259
  %v7555 = vunpack.c.l.b16 %v7260
  %v7556 = vunpack.c.l.b16 %v7261
  %v7557 = vunpack.c.l.b16 %v7262
  %v7558 = vunpack.c.l.b16 %v7263
  %v7559 = vunpack.c.l.b16 %v7264
  %v7560 = vunpack.c.l.b16 %v7265
  %v7561 = vunpack.c.l.b16 %v7266
  %v7562 = vunpack.c.l.b16 %v7267
  %v7563 = vunpack.c.l.b16 %v7268
  %v7564 = vunpack.c.l.b16 %v7269
  %v7565 = vunpack.c.l.b16 %v7270
  %v7566 = vunpack.c.l.b16 %v7271
  %v7567 = vunpack.c.l.b16 %v7272
  %v7568 = vunpack.c.l.b16 %v7273
  %v7569 = vunpack.c.l.b16 %v7274
  %v7570 = vunpack.c.l.b16 %v7275
  %v7571 = vunpack.c.l.b16 %v7276
  %v7572 = vunpack.c.l.b16 %v7277
  %v7573 = vunpack.c.l.b16 %v7278
  %v7574 = vunpack.c.l.b16 %v7279
  %v7575 = vunpack.c.l.b16 %v7280
  %v7576 = vunpack.c.l.b16 %v7281
  %v7577 = vunpack.c.l.b16 %v7282
  %v7578 = vunpack.c.l.b16 %v7283
  %v7579 = vunpack.c.l.b16 %v7284
  %v7580 = vunpack.c.l.b16 %v7285
  %v7581 = vunpack.c.l.b16 %v7286
  %v7582 = vunpack.c.l.b16 %v7287
  %v7583 = vunpack.c.l.b16 %v7288
  %v7584 = vunpack.c.l.b16 %v7289
  %v7585 = vunpack.c.l.b16 %v7290
  %v7586 = vunpack.c.l.b16 %v7291
  %v7587 = vunpack.c.l.b16 %v7292
  %v7588 = vunpack.c.l.b16 %v7293
  %v7589 = vunpack.c.l.b16 %v7294
  %v7590 = vunpack.c.l.b16 %v7295
  %v7591 = vunpack.c.l.b16 %v7296
  %v7592 = vunpack.c.l.b16 %v7297
  %v7593 = vunpack.c.l.b16 %v7298
  %v7594 = vunpack.c.l.b16 %v7299
  %v7595 = vunpack.c.l.b16 %v7300
  %v7596 = vunpack.c.l.b16 %v7301
  %v7597 = vunpack.c.l.b16 %v7302
  %v7598 = vunpack.c.l.b16 %v7303
  %v7599 = vunpack.c.l.b16 %v7304
  %v7600 = vunpack.c.l.b16 %v7305
  %v7601 = vunpack.c.l.b16 %v7306
  %v7602 = vpack.c.b16 %v7539, %v7538
  %v7603 = vpack.c.b16 %v7541, %v7540
  %v7604 = vpack.c.b16 %v7543, %v7542
  %v7605 = vpack.c.b16 %v7545, %v7544
  %v7606 = vpack.c.b16 %v7547, %v7546
  %v7607 = vpack.c.b16 %v7549, %v7548
  %v7608 = vpack.c.b16 %v7551, %v7550
  %v7609 = vpack.c.b16 %v7553, %v7552
  %v7610 = vpack.c.b16 %v7555, %v7554
  %v7611 = vpack.c.b16 %v7557, %v7556
  %v7612 = vpack.c.b16 %v7559, %v7558
  %v7613 = vpack.c.b16 %v7561, %v7560
  %v7614 = vpack.c.b16 %v7563, %v7562
  %v7615 = vpack.c.b16 %v7565, %v7564
  %v7616 = vpack.c.b16 %v7567, %v7566
  %v7617 = vpack.c.b16 %v7569, %v7568
  %v7618 = vpack.c.b16 %v7571, %v7570
  %v7619 = vpack.c.b16 %v7573, %v7572
  %v7620 = vpack.c.b16 %v7575, %v7574
  %v7621 = vpack.c.b16 %v7577, %v7576
  %v7622 = vpack.c.b16 %v7579, %v7578
  %v7623 = vpack.c.b16 %v7581, %v7580
  %v7624 = vpack.c.b16 %v7583, %v7582
  %v7625 = vpack.c.b16 %v7585, %v7584
  %v7626 = vpack.c.b16 %v7587, %v7586
  %v7627 = vpack.c.b16 %v7589, %v7588
  %v7628 = vpack.c.b16 %v7591, %v7590
  %v7629 = vpack.c.b16 %v7593, %v7592
  %v7630 = vpack.c.b16 %v7595, %v7594
  %v7631 = vpack.c.b16 %v7597, %v7596
  %v7632 = vpack.c.b16 %v7599, %v7598
  %v7633 = vpack.c.b16 %v7601, %v7600
  %7666 = vmatprep.subr.bf16.mxu0 0
  %7667 = vmatpush1.bf16.msra.mxu0 %v7609
  %7668 = vmatprep.subr.bf16.mxu0 0
  %7669 = vmatpush1.bf16.msra.mxu0 %v7608
  %7670 = vmatprep.subr.bf16.mxu0 0
  %7671 = vmatpush1.bf16.msra.mxu0 %v7607
  %7672 = vmatprep.subr.bf16.mxu0 0
  %7673 = vmatpush1.bf16.msra.mxu0 %v7606
  %7674 = vmatprep.subr.bf16.mxu0 0
  %7675 = vmatpush1.bf16.msra.mxu0 %v7605
  %7676 = vmatprep.subr.bf16.mxu0 0
  %7677 = vmatpush1.bf16.msra.mxu0 %v7604
  %7678 = vmatprep.subr.bf16.mxu0 0
  %7679 = vmatpush1.bf16.msra.mxu0 %v7603
  %7680 = vmatprep.subr.bf16.mxu0 0
  %7681 = vmatpush1.bf16.msra.mxu0 %v7602
  %7682 = vmatprep.subr.bf16.mxu0 0
  %7683 = vmatpush2.bf16.msra.mxu0 %v7617
  %7684 = vmatprep.subr.bf16.mxu0 0
  %7685 = vmatpush2.bf16.msra.mxu0 %v7616
  %7686 = vmatprep.subr.bf16.mxu0 0
  %7687 = vmatpush2.bf16.msra.mxu0 %v7615
  %7688 = vmatprep.subr.bf16.mxu0 0
  %7689 = vmatpush2.bf16.msra.mxu0 %v7614
  %7690 = vmatprep.subr.bf16.mxu0 0
  %7691 = vmatpush2.bf16.msra.mxu0 %v7613
  %7692 = vmatprep.subr.bf16.mxu0 0
  %7693 = vmatpush2.bf16.msra.mxu0 %v7612
  %7694 = vmatprep.subr.bf16.mxu0 0
  %7695 = vmatpush2.bf16.msra.mxu0 %v7611
  %7696 = vmatprep.subr.bf16.mxu0 0
  %7697 = vmatpush2.bf16.msra.mxu0 %v7610
  %7698 = vmatprep.mubr.bf16.mxu0 %v7411
  %7699 = vmatmul.mubr.bf16.gmra.mxu0 %v7410
  %v7700 = vpop.f32.mrf.mxu0
  %v7701 = vadd.f32 %v7312, %v7700
  %v7702 = vpop.f32.mrf.mxu0
  %v7703 = vpop.f32.mrf.mxu0
  %v7704 = vadd.f32 %v7312, %v7703
  %v7705 = vpop.f32.mrf.mxu0
  %7706 = vmatprep.mubr.bf16.mxu0 %v7415
  %7707 = vmatmul.mubr.bf16.gmra.mxu0 %v7414
  %v7708 = vpop.f32.mrf.mxu0
  %v7709 = vadd.f32 %v7312, %v7708
  %v7710 = vpop.f32.mrf.mxu0
  %v7711 = vpop.f32.mrf.mxu0
  %v7712 = vadd.f32 %v7312, %v7711
  %v7713 = vpop.f32.mrf.mxu0
  %7714 = vmatprep.mubr.bf16.mxu0 %v7419
  %7715 = vmatmul.mubr.bf16.gmra.mxu0 %v7418
  %v7716 = vpop.f32.mrf.mxu0
  %v7717 = vadd.f32 %v7312, %v7716
  %v7718 = vpop.f32.mrf.mxu0
  %v7719 = vpop.f32.mrf.mxu0
  %v7720 = vadd.f32 %v7312, %v7719
  %v7721 = vpop.f32.mrf.mxu0
  %7722 = vmatprep.mubr.bf16.mxu0 %v7423
  %7723 = vmatmul.mubr.bf16.gmra.mxu0 %v7422
  %v7724 = vpop.f32.mrf.mxu0
  %v7725 = vadd.f32 %v7312, %v7724
  %v7726 = vpop.f32.mrf.mxu0
  %v7727 = vpop.f32.mrf.mxu0
  %v7728 = vadd.f32 %v7312, %v7727
  %v7729 = vpop.f32.mrf.mxu0
  %7730 = vmatprep.mubr.bf16.mxu0 %v7427
  %7731 = vmatmul.mubr.bf16.gmra.mxu0 %v7426
  %v7732 = vpop.f32.mrf.mxu0
  %v7733 = vadd.f32 %v7312, %v7732
  %v7734 = vpop.f32.mrf.mxu0
  %v7735 = vpop.f32.mrf.mxu0
  %v7736 = vadd.f32 %v7312, %v7735
  %v7737 = vpop.f32.mrf.mxu0
  %7738 = vmatprep.mubr.bf16.mxu0 %v7431
  %7739 = vmatmul.mubr.bf16.gmra.mxu0 %v7430
  %v7740 = vpop.f32.mrf.mxu0
  %v7741 = vadd.f32 %v7312, %v7740
  %v7742 = vpop.f32.mrf.mxu0
  %v7743 = vpop.f32.mrf.mxu0
  %v7744 = vadd.f32 %v7312, %v7743
  %v7745 = vpop.f32.mrf.mxu0
  %7746 = vmatprep.mubr.bf16.mxu0 %v7435
  %7747 = vmatmul.mubr.bf16.gmra.mxu0 %v7434
  %v7748 = vpop.f32.mrf.mxu0
  %v7749 = vadd.f32 %v7312, %v7748
  %v7750 = vpop.f32.mrf.mxu0
  %v7751 = vpop.f32.mrf.mxu0
  %v7752 = vadd.f32 %v7312, %v7751
  %v7753 = vpop.f32.mrf.mxu0
  %7754 = vmatprep.mubr.bf16.mxu0 %v7439
  %7755 = vmatmul.mubr.bf16.gmra.mxu0 %v7438
  %v7756 = vpop.f32.mrf.mxu0
  %v7757 = vadd.f32 %v7312, %v7756
  %v7758 = vpop.f32.mrf.mxu0
  %v7759 = vpop.f32.mrf.mxu0
  %v7760 = vadd.f32 %v7312, %v7759
  %v7761 = vpop.f32.mrf.mxu0
  %7762 = vdwg.mxu0
  %7763 = vmatprep.subr.bf16.mxu0 0
  %7764 = vmatpush1.bf16.msra.mxu0 %v7625
  %7765 = vmatprep.subr.bf16.mxu0 0
  %7766 = vmatpush1.bf16.msra.mxu0 %v7624
  %7767 = vmatprep.subr.bf16.mxu0 0
  %7768 = vmatpush1.bf16.msra.mxu0 %v7623
  %7769 = vmatprep.subr.bf16.mxu0 0
  %7770 = vmatpush1.bf16.msra.mxu0 %v7622
  %7771 = vmatprep.subr.bf16.mxu0 0
  %7772 = vmatpush1.bf16.msra.mxu0 %v7621
  %7773 = vmatprep.subr.bf16.mxu0 0
  %7774 = vmatpush1.bf16.msra.mxu0 %v7620
  %7775 = vmatprep.subr.bf16.mxu0 0
  %7776 = vmatpush1.bf16.msra.mxu0 %v7619
  %7777 = vmatprep.subr.bf16.mxu0 0
  %7778 = vmatpush1.bf16.msra.mxu0 %v7618
  %7779 = vmatprep.subr.bf16.mxu0 0
  %7780 = vmatpush2.bf16.msra.mxu0 %v7633
  %7781 = vmatprep.subr.bf16.mxu0 0
  %7782 = vmatpush2.bf16.msra.mxu0 %v7632
  %7783 = vmatprep.subr.bf16.mxu0 0
  %7784 = vmatpush2.bf16.msra.mxu0 %v7631
  %7785 = vmatprep.subr.bf16.mxu0 0
  %7786 = vmatpush2.bf16.msra.mxu0 %v7630
  %7787 = vmatprep.subr.bf16.mxu0 0
  %7788 = vmatpush2.bf16.msra.mxu0 %v7629
  %7789 = vmatprep.subr.bf16.mxu0 0
  %7790 = vmatpush2.bf16.msra.mxu0 %v7628
  %7791 = vmatprep.subr.bf16.mxu0 0
  %7792 = vmatpush2.bf16.msra.mxu0 %v7627
  %7793 = vmatprep.subr.bf16.mxu0 0
  %7794 = vmatpush2.bf16.msra.mxu0 %v7626
  %7795 = vmatprep.mubr.bf16.mxu0 %v7413
  %7796 = vmatmul.mubr.bf16.gmra.mxu0 %v7412
  %v7797 = vpop.f32.mrf.mxu0
  %v7798 = vadd.f32 %v7701, %v7797
  %v7799 = vpop.f32.mrf.mxu0
  %v7800 = vpop.f32.mrf.mxu0
  %v7801 = vadd.f32 %v7704, %v7800
  %v7802 = vpop.f32.mrf.mxu0
  %7803 = vmatprep.mubr.bf16.mxu0 %v7417
  %7804 = vmatmul.mubr.bf16.gmra.mxu0 %v7416
  %v7805 = vpop.f32.mrf.mxu0
  %v7806 = vadd.f32 %v7709, %v7805
  %v7807 = vpop.f32.mrf.mxu0
  %v7808 = vpop.f32.mrf.mxu0
  %v7809 = vadd.f32 %v7712, %v7808
  %v7810 = vpop.f32.mrf.mxu0
  %7811 = vmatprep.mubr.bf16.mxu0 %v7421
  %7812 = vmatmul.mubr.bf16.gmra.mxu0 %v7420
  %v7813 = vpop.f32.mrf.mxu0
  %v7814 = vadd.f32 %v7717, %v7813
  %v7815 = vpop.f32.mrf.mxu0
  %v7816 = vpop.f32.mrf.mxu0
  %v7817 = vadd.f32 %v7720, %v7816
  %v7818 = vpop.f32.mrf.mxu0
  %7819 = vmatprep.mubr.bf16.mxu0 %v7425
  %7820 = vmatmul.mubr.bf16.gmra.mxu0 %v7424
  %v7821 = vpop.f32.mrf.mxu0
  %v7822 = vadd.f32 %v7725, %v7821
  %v7823 = vpop.f32.mrf.mxu0
  %v7824 = vpop.f32.mrf.mxu0
  %v7825 = vadd.f32 %v7728, %v7824
  %v7826 = vpop.f32.mrf.mxu0
  %7827 = vmatprep.mubr.bf16.mxu0 %v7429
  %7828 = vmatmul.mubr.bf16.gmra.mxu0 %v7428
  %v7829 = vpop.f32.mrf.mxu0
  %v7830 = vadd.f32 %v7733, %v7829
  %v7831 = vpop.f32.mrf.mxu0
  %v7832 = vpop.f32.mrf.mxu0
  %v7833 = vadd.f32 %v7736, %v7832
  %v7834 = vpop.f32.mrf.mxu0
  %7835 = vmatprep.mubr.bf16.mxu0 %v7433
  %7836 = vmatmul.mubr.bf16.gmra.mxu0 %v7432
  %v7837 = vpop.f32.mrf.mxu0
  %v7838 = vadd.f32 %v7741, %v7837
  %v7839 = vpop.f32.mrf.mxu0
  %v7840 = vpop.f32.mrf.mxu0
  %v7841 = vadd.f32 %v7744, %v7840
  %v7842 = vpop.f32.mrf.mxu0
  %7843 = vmatprep.mubr.bf16.mxu0 %v7437
  %7844 = vmatmul.mubr.bf16.gmra.mxu0 %v7436
  %v7845 = vpop.f32.mrf.mxu0
  %v7846 = vadd.f32 %v7749, %v7845
  %v7847 = vpop.f32.mrf.mxu0
  %v7848 = vpop.f32.mrf.mxu0
  %v7849 = vadd.f32 %v7752, %v7848
  %v7850 = vpop.f32.mrf.mxu0
  %7851 = vmatprep.mubr.bf16.mxu0 %v7441
  %7852 = vmatmul.mubr.bf16.gmra.mxu0 %v7440
  %v7853 = vpop.f32.mrf.mxu0
  %v7854 = vadd.f32 %v7757, %v7853
  %v7855 = vpop.f32.mrf.mxu0
  %v7856 = vpop.f32.mrf.mxu0
  %v7857 = vadd.f32 %v7760, %v7856
  %v7858 = vpop.f32.mrf.mxu0
  %7859 = vdwg.mxu0
  %v7860 = vmax.f32 %v7798, 0.0
  %v7861 = vmax.f32 %v7801, 0.0
  %v7862 = vmax.f32 %v7806, 0.0
  %v7863 = vmax.f32 %v7809, 0.0
  %v7864 = vmax.f32 %v7814, 0.0
  %v7865 = vmax.f32 %v7817, 0.0
  %v7866 = vmax.f32 %v7822, 0.0
  %v7867 = vmax.f32 %v7825, 0.0
  %v7868 = vmax.f32 %v7830, 0.0
  %v7869 = vmax.f32 %v7833, 0.0
  %v7870 = vmax.f32 %v7838, 0.0
  %v7871 = vmax.f32 %v7841, 0.0
  %v7872 = vmax.f32 %v7846, 0.0
  %v7873 = vmax.f32 %v7849, 0.0
  %v7874 = vmax.f32 %v7854, 0.0
  %v7875 = vmax.f32 %v7857, 0.0
  %v7876 = vpack.c.bf16 %v7861, %v7860
  %v7877 = vpack.c.bf16 %v7863, %v7862
  %v7878 = vpack.c.bf16 %v7865, %v7864
  %v7879 = vpack.c.bf16 %v7867, %v7866
  %v7880 = vpack.c.bf16 %v7869, %v7868
  %v7881 = vpack.c.bf16 %v7871, %v7870
  %v7882 = vpack.c.bf16 %v7873, %v7872
  %v7883 = vpack.c.bf16 %v7875, %v7874
  %v7892 = vunpack.c.l.b16 %v7876
  %v7893 = vunpack.c.h.b16 %v7876
  %v7894 = vunpack.c.l.b16 %v7877
  %v7895 = vunpack.c.h.b16 %v7877
  %v7896 = vunpack.c.l.b16 %v7878
  %v7897 = vunpack.c.h.b16 %v7878
  %v7898 = vunpack.c.l.b16 %v7879
  %v7899 = vunpack.c.h.b16 %v7879
  %v7900 = vunpack.c.l.b16 %v7880
  %v7901 = vunpack.c.h.b16 %v7880
  %v7902 = vunpack.c.l.b16 %v7881
  %v7903 = vunpack.c.h.b16 %v7881
  %v7904 = vunpack.c.l.b16 %v7882
  %v7905 = vunpack.c.h.b16 %v7882
  %v7906 = vunpack.c.l.b16 %v7883
  %v7907 = vunpack.c.h.b16 %v7883
  %v7908 = vpack.c.b16 %v7892, %v7892
  %v7909 = vpack.c.b16 %v7893, %v7893
  %v7910 = vpack.c.b16 %v7894, %v7894
  %v7911 = vpack.c.b16 %v7895, %v7895
  %v7912 = vpack.c.b16 %v7896, %v7896
  %v7913 = vpack.c.b16 %v7897, %v7897
  %v7914 = vpack.c.b16 %v7898, %v7898
  %v7915 = vpack.c.b16 %v7899, %v7899
  %v7916 = vpack.c.b16 %v7900, %v7900
  %v7917 = vpack.c.b16 %v7901, %v7901
  %v7918 = vpack.c.b16 %v7902, %v7902
  %v7919 = vpack.c.b16 %v7903, %v7903
  %v7920 = vpack.c.b16 %v7904, %v7904
  %v7921 = vpack.c.b16 %v7905, %v7905
  %v7922 = vpack.c.b16 %v7906, %v7906
  %v7923 = vpack.c.b16 %v7907, %v7907
  %vm7940 = vcmask 519168
  %7941 = vst.msk [vmem:[#allocation3] sm:$0xf] %vm7940, %v7908
  %7942 = vst.msk [vmem:[#allocation3 + $0x4] sm:$0xf] %vm7940, %v7909
  %7943 = vst.msk [vmem:[#allocation3 + $0x8] sm:$0xf] %vm7940, %v7910
  %7944 = vst.msk [vmem:[#allocation3 + $0xc] sm:$0xf] %vm7940, %v7911
  %7945 = vst.msk [vmem:[#allocation3 + $0x10] sm:$0xf] %vm7940, %v7912
  %7946 = vst.msk [vmem:[#allocation3 + $0x14] sm:$0xf] %vm7940, %v7913
  %7947 = vst.msk [vmem:[#allocation3 + $0x18] sm:$0xf] %vm7940, %v7914
  %7948 = vst.msk [vmem:[#allocation3 + $0x1c] sm:$0xf] %vm7940, %v7915
  %7949 = vst.msk [vmem:[#allocation3 + $0x20] sm:$0xf] %vm7940, %v7916
  %7950 = vst.msk [vmem:[#allocation3 + $0x24] sm:$0xf] %vm7940, %v7917
  %7951 = vst.msk [vmem:[#allocation3 + $0x28] sm:$0xf] %vm7940, %v7918
  %7952 = vst.msk [vmem:[#allocation3 + $0x2c] sm:$0xf] %vm7940, %v7919
  %7953 = vst.msk [vmem:[#allocation3 + $0x30] sm:$0xf] %vm7940, %v7920
  %7954 = vst.msk [vmem:[#allocation3 + $0x34] sm:$0xf] %vm7940, %v7921
  %7955 = vst.msk [vmem:[#allocation3 + $0x38] sm:$0xf] %vm7940, %v7922
  %7956 = vst.msk [vmem:[#allocation3 + $0x3c] sm:$0xf] %vm7940, %v7923
  %v7957 = vld [vmem:[#allocation3] sm:$0xf]
  %v7958 = vld [vmem:[#allocation3 + $0x4] sm:$0xf]
  %7959 = vst.msk [vmem:[#allocation4] sm:$0xf] %vm7940, %v7957
  %7960 = vst.msk [vmem:[#allocation4 + $0x14] sm:$0xf] %vm7940, %v7958
  %v7961 = vld [vmem:[#allocation3 + $0x10] sm:$0xf]
  %v7962 = vld [vmem:[#allocation3 + $0x14] sm:$0xf]
  %7963 = vst.msk [vmem:[#allocation4 + $0x28] sm:$0xf] %vm7940, %v7961
  %7964 = vst.msk [vmem:[#allocation4 + $0x3c] sm:$0xf] %vm7940, %v7962
  %v7965 = vld [vmem:[#allocation3 + $0x4] sm:$0xf]
  %v7966 = vld [vmem:[#allocation3 + $0x8] sm:$0xf]
  %7969 = vrot.lane.b32.xlu0 %v7965, 64
  %v7970 = vpop.permute.xlu0 %7969
  %7971 = vrot.lane.b32.xlu0 %v7966, 64
  %v7972 = vpop.permute.xlu0 %7971
  %vm7975 = vcmask 1043968
  %7976 = vst.msk [vmem:[#allocation4] sm:$0xf] %vm7975, %v7970
  %7977 = vst.msk [vmem:[#allocation4 + $0x14] sm:$0xf] %vm7975, %v7972
  %v7978 = vld [vmem:[#allocation3 + $0x14] sm:$0xf]
  %v7979 = vld [vmem:[#allocation3 + $0x18] sm:$0xf]
  %7982 = vrot.lane.b32.xlu0 %v7978, 64
  %v7983 = vpop.permute.xlu0 %7982
  %7984 = vrot.lane.b32.xlu0 %v7979, 64
  %v7985 = vpop.permute.xlu0 %7984
  %7988 = vst.msk [vmem:[#allocation4 + $0x28] sm:$0xf] %vm7975, %v7983
  %7989 = vst.msk [vmem:[#allocation4 + $0x3c] sm:$0xf] %vm7975, %v7985
  %v7990 = vld [vmem:[#allocation3 + $0x8] sm:$0xf]
  %v7991 = vld [vmem:[#allocation3 + $0xc] sm:$0xf]
  %7992 = vst.msk [vmem:[#allocation4 + $0x4] sm:$0xf] %vm7940, %v7990
  %7993 = vst.msk [vmem:[#allocation4 + $0x18] sm:$0xf] %vm7940, %v7991
  %v7994 = vld [vmem:[#allocation3 + $0x18] sm:$0xf]
  %v7995 = vld [vmem:[#allocation3 + $0x1c] sm:$0xf]
  %7996 = vst.msk [vmem:[#allocation4 + $0x2c] sm:$0xf] %vm7940, %v7994
  %7997 = vst.msk [vmem:[#allocation4 + $0x40] sm:$0xf] %vm7940, %v7995
  %v7998 = vld [vmem:[#allocation3 + $0x10] sm:$0xf]
  %v7999 = vld [vmem:[#allocation3 + $0x14] sm:$0xf]
  %8002 = vrot.lane.b32.xlu0 %v7998, 64
  %v8003 = vpop.permute.xlu0 %8002
  %8004 = vrot.lane.b32.xlu0 %v7999, 64
  %v8005 = vpop.permute.xlu0 %8004
  %8008 = vst.msk [vmem:[#allocation4 + $0x4] sm:$0xf] %vm7975, %v8003
  %8009 = vst.msk [vmem:[#allocation4 + $0x18] sm:$0xf] %vm7975, %v8005
  %v8010 = vld [vmem:[#allocation3 + $0x20] sm:$0xf]
  %v8011 = vld [vmem:[#allocation3 + $0x24] sm:$0xf]
  %8014 = vrot.lane.b32.xlu0 %v8010, 64
  %v8015 = vpop.permute.xlu0 %8014
  %8016 = vrot.lane.b32.xlu0 %v8011, 64
  %v8017 = vpop.permute.xlu0 %8016
  %8020 = vst.msk [vmem:[#allocation4 + $0x2c] sm:$0xf] %vm7975, %v8015
  %8021 = vst.msk [vmem:[#allocation4 + $0x40] sm:$0xf] %vm7975, %v8017
  %v8022 = vld [vmem:[#allocation3 + $0x14] sm:$0xf]
  %v8023 = vld [vmem:[#allocation3 + $0x18] sm:$0xf]
  %8024 = vst.msk [vmem:[#allocation4 + $0x8] sm:$0xf] %vm7940, %v8022
  %8025 = vst.msk [vmem:[#allocation4 + $0x1c] sm:$0xf] %vm7940, %v8023
  %v8026 = vld [vmem:[#allocation3 + $0x24] sm:$0xf]
  %v8027 = vld [vmem:[#allocation3 + $0x28] sm:$0xf]
  %8028 = vst.msk [vmem:[#allocation4 + $0x30] sm:$0xf] %vm7940, %v8026
  %8029 = vst.msk [vmem:[#allocation4 + $0x44] sm:$0xf] %vm7940, %v8027
  %v8030 = vld [vmem:[#allocation3 + $0x18] sm:$0xf]
  %v8031 = vld [vmem:[#allocation3 + $0x1c] sm:$0xf]
  %8034 = vrot.lane.b32.xlu0 %v8030, 64
  %v8035 = vpop.permute.xlu0 %8034
  %8036 = vrot.lane.b32.xlu0 %v8031, 64
  %v8037 = vpop.permute.xlu0 %8036
  %8040 = vst.msk [vmem:[#allocation4 + $0x8] sm:$0xf] %vm7975, %v8035
  %8041 = vst.msk [vmem:[#allocation4 + $0x1c] sm:$0xf] %vm7975, %v8037
  %v8042 = vld [vmem:[#allocation3 + $0x28] sm:$0xf]
  %v8043 = vld [vmem:[#allocation3 + $0x2c] sm:$0xf]
  %8046 = vrot.lane.b32.xlu0 %v8042, 64
  %v8047 = vpop.permute.xlu0 %8046
  %8048 = vrot.lane.b32.xlu0 %v8043, 64
  %v8049 = vpop.permute.xlu0 %8048
  %8052 = vst.msk [vmem:[#allocation4 + $0x30] sm:$0xf] %vm7975, %v8047
  %8053 = vst.msk [vmem:[#allocation4 + $0x44] sm:$0xf] %vm7975, %v8049
  %v8054 = vld [vmem:[#allocation3 + $0x20] sm:$0xf]
  %v8055 = vld [vmem:[#allocation3 + $0x24] sm:$0xf]
  %8056 = vst.msk [vmem:[#allocation4 + $0xc] sm:$0xf] %vm7940, %v8054
  %8057 = vst.msk [vmem:[#allocation4 + $0x20] sm:$0xf] %vm7940, %v8055
  %v8058 = vld [vmem:[#allocation3 + $0x30] sm:$0xf]
  %v8059 = vld [vmem:[#allocation3 + $0x34] sm:$0xf]
  %8060 = vst.msk [vmem:[#allocation4 + $0x34] sm:$0xf] %vm7940, %v8058
  %8061 = vst.msk [vmem:[#allocation4 + $0x48] sm:$0xf] %vm7940, %v8059
  %v8062 = vld [vmem:[#allocation3 + $0x24] sm:$0xf]
  %v8063 = vld [vmem:[#allocation3 + $0x28] sm:$0xf]
  %8066 = vrot.lane.b32.xlu0 %v8062, 64
  %v8067 = vpop.permute.xlu0 %8066
  %8068 = vrot.lane.b32.xlu0 %v8063, 64
  %v8069 = vpop.permute.xlu0 %8068
  %8072 = vst.msk [vmem:[#allocation4 + $0xc] sm:$0xf] %vm7975, %v8067
  %8073 = vst.msk [vmem:[#allocation4 + $0x20] sm:$0xf] %vm7975, %v8069
  %v8074 = vld [vmem:[#allocation3 + $0x34] sm:$0xf]
  %v8075 = vld [vmem:[#allocation3 + $0x38] sm:$0xf]
  %8078 = vrot.lane.b32.xlu0 %v8074, 64
  %v8079 = vpop.permute.xlu0 %8078
  %8080 = vrot.lane.b32.xlu0 %v8075, 64
  %v8081 = vpop.permute.xlu0 %8080
  %8084 = vst.msk [vmem:[#allocation4 + $0x34] sm:$0xf] %vm7975, %v8079
  %8085 = vst.msk [vmem:[#allocation4 + $0x48] sm:$0xf] %vm7975, %v8081
  %v8086 = vld [vmem:[#allocation3 + $0x28] sm:$0xf]
  %v8087 = vld [vmem:[#allocation3 + $0x2c] sm:$0xf]
  %8088 = vst.msk [vmem:[#allocation4 + $0x10] sm:$0xf] %vm7940, %v8086
  %8089 = vst.msk [vmem:[#allocation4 + $0x24] sm:$0xf] %vm7940, %v8087
  %v8090 = vld [vmem:[#allocation3 + $0x38] sm:$0xf]
  %v8091 = vld [vmem:[#allocation3 + $0x3c] sm:$0xf]
  %8092 = vst.msk [vmem:[#allocation4 + $0x38] sm:$0xf] %vm7940, %v8090
  %8093 = vst.msk [vmem:[#allocation4 + $0x4c] sm:$0xf] %vm7940, %v8091
  %v8094 = vld [vmem:[#allocation4] sm:$0xff]
  %v8095 = vld [vmem:[#allocation4 + $0x8] sm:$0xff]
  %v8096 = vld [vmem:[#allocation4 + $0x10] sm:$0xf]
  %v8097 = vld [vmem:[#allocation4 + $0x14] sm:$0xff]
  %v8098 = vld [vmem:[#allocation4 + $0x1c] sm:$0xff]
  %v8099 = vld [vmem:[#allocation4 + $0x24] sm:$0xf]
  %v8100 = vld [vmem:[#allocation4 + $0x28] sm:$0xff]
  %v8101 = vld [vmem:[#allocation4 + $0x30] sm:$0xff]
  %v8102 = vld [vmem:[#allocation4 + $0x38] sm:$0xf]
  %v8103 = vld [vmem:[#allocation4 + $0x3c] sm:$0xff]
  %v8104 = vld [vmem:[#allocation4 + $0x44] sm:$0xff]
  %v8105 = vld [vmem:[#allocation4 + $0x4c] sm:$0xf]
  %v8106 = vld [vmem:[%s5] sm:$0xf]
  %v8107 = vld [vmem:[%s5 + $0x4] sm:$0xf]
  %v8108 = vld [vmem:[%s5 + $0x8] sm:$0xf]
  %v8109 = vld [vmem:[%s5 + $0xc] sm:$0xf]
  %v8110 = vld [vmem:[%s5 + $0x10] sm:$0xf]
  %v8111 = vld [vmem:[%s5 + $0x14] sm:$0xf]
  %v8112 = vld [vmem:[%s5 + $0x18] sm:$0xf]
  %v8113 = vld [vmem:[%s5 + $0x1c] sm:$0xf]
  %v8114 = vld [vmem:[%s5 + $0x20] sm:$0xf]
  %v8115 = vld [vmem:[%s5 + $0x24] sm:$0xf]
  %v8116 = vld [vmem:[%s5 + $0x28] sm:$0xf]
  %v8117 = vld [vmem:[%s5 + $0x2c] sm:$0xf]
  %v8118 = vld [vmem:[%s5 + $0x30] sm:$0xf]
  %v8119 = vld [vmem:[%s5 + $0x34] sm:$0xf]
  %v8120 = vld [vmem:[%s5 + $0x38] sm:$0xf]
  %v8121 = vld [vmem:[%s5 + $0x3c] sm:$0xf]
  %v8122 = vld [vmem:[%s5 + $0x40] sm:$0xf]
  %v8123 = vld [vmem:[%s5 + $0x44] sm:$0xf]
  %v8124 = vld [vmem:[%s5 + $0x48] sm:$0xf]
  %v8125 = vld [vmem:[%s5 + $0x4c] sm:$0xf]
  %v8126 = vld [vmem:[%s5 + $0x50] sm:$0xf]
  %v8127 = vld [vmem:[%s5 + $0x54] sm:$0xf]
  %v8128 = vld [vmem:[%s5 + $0x58] sm:$0xf]
  %v8129 = vld [vmem:[%s5 + $0x5c] sm:$0xf]
  %v8130 = vld [vmem:[%s5 + $0x60] sm:$0xf]
  %v8131 = vld [vmem:[%s5 + $0x64] sm:$0xf]
  %v8132 = vld [vmem:[%s5 + $0x68] sm:$0xf]
  %v8133 = vld [vmem:[%s5 + $0x6c] sm:$0xf]
  %v8134 = vld [vmem:[%s5 + $0x70] sm:$0xf]
  %v8135 = vld [vmem:[%s5 + $0x74] sm:$0xf]
  %v8136 = vld [vmem:[%s5 + $0x78] sm:$0xf]
  %v8137 = vld [vmem:[%s5 + $0x7c] sm:$0xf]
  %v8138 = vld [vmem:[%s5 + $0x80] sm:$0xf]
  %v8139 = vld [vmem:[%s5 + $0x84] sm:$0xf]
  %v8140 = vld [vmem:[%s5 + $0x88] sm:$0xf]
  %v8141 = vld [vmem:[%s5 + $0x8c] sm:$0xf]
  %v8142 = vld [vmem:[%s5 + $0x90] sm:$0xf]
  %v8143 = vld [vmem:[%s5 + $0x94] sm:$0xf]
  %v8144 = vld [vmem:[%s5 + $0x98] sm:$0xf]
  %v8145 = vld [vmem:[%s5 + $0x9c] sm:$0xf]
  %v8146 = vld [vmem:[%s5 + $0xa0] sm:$0xf]
  %v8147 = vld [vmem:[%s5 + $0xa4] sm:$0xf]
  %v8148 = vld [vmem:[%s5 + $0xa8] sm:$0xf]
  %v8149 = vld [vmem:[%s5 + $0xac] sm:$0xf]
  %v8150 = vld [vmem:[%s5 + $0xb0] sm:$0xf]
  %v8151 = vld [vmem:[%s5 + $0xb4] sm:$0xf]
  %v8152 = vld [vmem:[%s5 + $0xb8] sm:$0xf]
  %v8153 = vld [vmem:[%s5 + $0xbc] sm:$0xf]
  %v8154 = vld [vmem:[%s5 + $0xc0] sm:$0xf]
  %v8155 = vld [vmem:[%s5 + $0xc4] sm:$0xf]
  %v8156 = vld [vmem:[%s5 + $0xc8] sm:$0xf]
  %v8157 = vld [vmem:[%s5 + $0xcc] sm:$0xf]
  %v8158 = vld [vmem:[%s5 + $0xd0] sm:$0xf]
  %v8159 = vld [vmem:[%s5 + $0xd4] sm:$0xf]
  %v8160 = vld [vmem:[%s5 + $0xd8] sm:$0xf]
  %v8161 = vld [vmem:[%s5 + $0xdc] sm:$0xf]
  %v8162 = vld [vmem:[%s5 + $0xe0] sm:$0xf]
  %v8163 = vld [vmem:[%s5 + $0xe4] sm:$0xf]
  %v8164 = vld [vmem:[%s5 + $0xe8] sm:$0xf]
  %v8165 = vld [vmem:[%s5 + $0xec] sm:$0xf]
  %v8166 = vld [vmem:[%s5 + $0xf0] sm:$0xf]
  %v8167 = vld [vmem:[%s5 + $0xf4] sm:$0xf]
  %v8168 = vld [vmem:[%s5 + $0xf8] sm:$0xf]
  %v8169 = vld [vmem:[%s5 + $0xfc] sm:$0xf]
  %v8170 = vld [vmem:[%s5 + $0x100] sm:$0xf]
  %v8171 = vld [vmem:[%s5 + $0x104] sm:$0xf]
  %v8172 = vld [vmem:[%s5 + $0x108] sm:$0xf]
  %v8173 = vld [vmem:[%s5 + $0x10c] sm:$0xf]
  %v8174 = vld [vmem:[%s5 + $0x110] sm:$0xf]
  %v8175 = vld [vmem:[%s5 + $0x114] sm:$0xf]
  %v8176 = vld [vmem:[%s5 + $0x118] sm:$0xf]
  %v8177 = vld [vmem:[%s5 + $0x11c] sm:$0xf]
  %v8178 = vld [vmem:[%s6] sm:$0x1]
  %v8180 = vlaneseq
  %v8181 = vshrl.u32 %v8180, 7
  %v8182 = vsub.s32 0, %v8181
  %v8183 = vrot.slane %v8178, %v8182
  %v8197 = vunpack.c.l.b16 %v8094
  %v8198 = vunpack.c.h.b16 %v8094
  %v8199 = vunpack.c.l.b16 %v8095
  %v8200 = vunpack.c.h.b16 %v8095
  %v8201 = vunpack.c.l.b16 %v8096
  %v8202 = vunpack.c.l.b16 %v8097
  %v8203 = vunpack.c.h.b16 %v8097
  %v8204 = vunpack.c.l.b16 %v8098
  %v8205 = vunpack.c.h.b16 %v8098
  %v8206 = vunpack.c.l.b16 %v8099
  %v8207 = vunpack.c.l.b16 %v8100
  %v8208 = vunpack.c.h.b16 %v8100
  %v8209 = vunpack.c.l.b16 %v8101
  %v8210 = vunpack.c.h.b16 %v8101
  %v8211 = vunpack.c.l.b16 %v8102
  %v8212 = vunpack.c.l.b16 %v8103
  %v8213 = vunpack.c.h.b16 %v8103
  %v8214 = vunpack.c.l.b16 %v8104
  %v8215 = vunpack.c.h.b16 %v8104
  %v8216 = vunpack.c.l.b16 %v8105
  %v8217 = vpack.c.b16 %v8202, %v8197
  %v8218 = vpack.c.b16 %v8203, %v8198
  %v8219 = vpack.c.b16 %v8204, %v8199
  %v8220 = vpack.c.b16 %v8205, %v8200
  %v8221 = vpack.c.b16 %v8206, %v8201
  %v8222 = vpack.c.b16 %v8212, %v8207
  %v8223 = vpack.c.b16 %v8213, %v8208
  %v8224 = vpack.c.b16 %v8214, %v8209
  %v8225 = vpack.c.b16 %v8215, %v8210
  %v8226 = vpack.c.b16 %v8216, %v8211
  %v8307 = vunpack.c.l.b16 %v8106
  %v8308 = vunpack.c.l.b16 %v8107
  %v8309 = vunpack.c.l.b16 %v8108
  %v8310 = vunpack.c.l.b16 %v8109
  %v8311 = vunpack.c.l.b16 %v8110
  %v8312 = vunpack.c.l.b16 %v8111
  %v8313 = vunpack.c.l.b16 %v8112
  %v8314 = vunpack.c.l.b16 %v8113
  %v8315 = vunpack.c.l.b16 %v8114
  %v8316 = vunpack.c.l.b16 %v8115
  %v8317 = vunpack.c.l.b16 %v8116
  %v8318 = vunpack.c.l.b16 %v8117
  %v8319 = vunpack.c.l.b16 %v8118
  %v8320 = vunpack.c.l.b16 %v8119
  %v8321 = vunpack.c.l.b16 %v8120
  %v8322 = vunpack.c.l.b16 %v8121
  %v8323 = vunpack.c.l.b16 %v8122
  %v8324 = vunpack.c.l.b16 %v8123
  %v8325 = vunpack.c.l.b16 %v8124
  %v8326 = vunpack.c.l.b16 %v8125
  %v8327 = vunpack.c.l.b16 %v8126
  %v8328 = vunpack.c.l.b16 %v8127
  %v8329 = vunpack.c.l.b16 %v8128
  %v8330 = vunpack.c.l.b16 %v8129
  %v8331 = vunpack.c.l.b16 %v8130
  %v8332 = vunpack.c.l.b16 %v8131
  %v8333 = vunpack.c.l.b16 %v8132
  %v8334 = vunpack.c.l.b16 %v8133
  %v8335 = vunpack.c.l.b16 %v8134
  %v8336 = vunpack.c.l.b16 %v8135
  %v8337 = vunpack.c.l.b16 %v8136
  %v8338 = vunpack.c.l.b16 %v8137
  %v8339 = vunpack.c.l.b16 %v8138
  %v8340 = vunpack.c.l.b16 %v8139
  %v8341 = vunpack.c.l.b16 %v8140
  %v8342 = vunpack.c.l.b16 %v8141
  %v8343 = vunpack.c.l.b16 %v8142
  %v8344 = vunpack.c.l.b16 %v8143
  %v8345 = vunpack.c.l.b16 %v8144
  %v8346 = vunpack.c.l.b16 %v8145
  %v8347 = vunpack.c.l.b16 %v8146
  %v8348 = vunpack.c.l.b16 %v8147
  %v8349 = vunpack.c.l.b16 %v8148
  %v8350 = vunpack.c.l.b16 %v8149
  %v8351 = vunpack.c.l.b16 %v8150
  %v8352 = vunpack.c.l.b16 %v8151
  %v8353 = vunpack.c.l.b16 %v8152
  %v8354 = vunpack.c.l.b16 %v8153
  %v8355 = vunpack.c.l.b16 %v8154
  %v8356 = vunpack.c.l.b16 %v8155
  %v8357 = vunpack.c.l.b16 %v8156
  %v8358 = vunpack.c.l.b16 %v8157
  %v8359 = vunpack.c.l.b16 %v8158
  %v8360 = vunpack.c.l.b16 %v8159
  %v8361 = vunpack.c.l.b16 %v8160
  %v8362 = vunpack.c.l.b16 %v8161
  %v8363 = vunpack.c.l.b16 %v8162
  %v8364 = vunpack.c.l.b16 %v8163
  %v8365 = vunpack.c.l.b16 %v8164
  %v8366 = vunpack.c.l.b16 %v8165
  %v8367 = vunpack.c.l.b16 %v8166
  %v8368 = vunpack.c.l.b16 %v8167
  %v8369 = vunpack.c.l.b16 %v8168
  %v8370 = vunpack.c.l.b16 %v8169
  %v8371 = vunpack.c.l.b16 %v8170
  %v8372 = vunpack.c.l.b16 %v8171
  %v8373 = vunpack.c.l.b16 %v8172
  %v8374 = vunpack.c.l.b16 %v8173
  %v8375 = vunpack.c.l.b16 %v8174
  %v8376 = vunpack.c.l.b16 %v8175
  %v8377 = vunpack.c.l.b16 %v8176
  %v8378 = vunpack.c.l.b16 %v8177
  %v8379 = vpack.c.b16 %v8308, %v8307
  %v8380 = vpack.c.b16 %v8310, %v8309
  %v8381 = vpack.c.b16 %v8312, %v8311
  %v8382 = vpack.c.b16 %v8314, %v8313
  %v8383 = vpack.c.b16 %v8316, %v8315
  %v8384 = vpack.c.b16 %v8318, %v8317
  %v8385 = vpack.c.b16 %v8320, %v8319
  %v8386 = vpack.c.b16 %v8322, %v8321
  %v8387 = vpack.c.b16 %v8324, %v8323
  %v8388 = vpack.c.b16 %v8326, %v8325
  %v8389 = vpack.c.b16 %v8328, %v8327
  %v8390 = vpack.c.b16 %v8330, %v8329
  %v8391 = vpack.c.b16 %v8332, %v8331
  %v8392 = vpack.c.b16 %v8334, %v8333
  %v8393 = vpack.c.b16 %v8336, %v8335
  %v8394 = vpack.c.b16 %v8338, %v8337
  %v8395 = vpack.c.b16 %v8340, %v8339
  %v8396 = vpack.c.b16 %v8342, %v8341
  %v8397 = vpack.c.b16 %v8344, %v8343
  %v8398 = vpack.c.b16 %v8346, %v8345
  %v8399 = vpack.c.b16 %v8348, %v8347
  %v8400 = vpack.c.b16 %v8350, %v8349
  %v8401 = vpack.c.b16 %v8352, %v8351
  %v8402 = vpack.c.b16 %v8354, %v8353
  %v8403 = vpack.c.b16 %v8356, %v8355
  %v8404 = vpack.c.b16 %v8358, %v8357
  %v8405 = vpack.c.b16 %v8360, %v8359
  %v8406 = vpack.c.b16 %v8362, %v8361
  %v8407 = vpack.c.b16 %v8364, %v8363
  %v8408 = vpack.c.b16 %v8366, %v8365
  %v8409 = vpack.c.b16 %v8368, %v8367
  %v8410 = vpack.c.b16 %v8370, %v8369
  %v8411 = vpack.c.b16 %v8372, %v8371
  %v8412 = vpack.c.b16 %v8374, %v8373
  %v8413 = vpack.c.b16 %v8376, %v8375
  %v8414 = vpack.c.b16 %v8378, %v8377
  %vm8451 = vcmask 523264
  %v8453 = vsel %vm8451, %v8221, 0
  %v8456 = vsel %vm8451, %v8226, 0
  %8458 = vmatprep.subr.bf16.mxu0 0
  %8459 = vmatpush1.bf16.msra.mxu0 %v8386
  %8460 = vmatprep.subr.bf16.mxu0 0
  %8461 = vmatpush1.bf16.msra.mxu0 %v8385
  %8462 = vmatprep.subr.bf16.mxu0 0
  %8463 = vmatpush1.bf16.msra.mxu0 %v8384
  %8464 = vmatprep.subr.bf16.mxu0 0
  %8465 = vmatpush1.bf16.msra.mxu0 %v8383
  %8466 = vmatprep.subr.bf16.mxu0 0
  %8467 = vmatpush1.bf16.msra.mxu0 %v8382
  %8468 = vmatprep.subr.bf16.mxu0 0
  %8469 = vmatpush1.bf16.msra.mxu0 %v8381
  %8470 = vmatprep.subr.bf16.mxu0 0
  %8471 = vmatpush1.bf16.msra.mxu0 %v8380
  %8472 = vmatprep.subr.bf16.mxu0 0
  %8473 = vmatpush1.bf16.msra.mxu0 %v8379
  %8474 = vmatprep.subr.bf16.mxu0 0
  %8475 = vmatpush2.bf16.msra.mxu0 %v8394
  %8476 = vmatprep.subr.bf16.mxu0 0
  %8477 = vmatpush2.bf16.msra.mxu0 %v8393
  %8478 = vmatprep.subr.bf16.mxu0 0
  %8479 = vmatpush2.bf16.msra.mxu0 %v8392
  %8480 = vmatprep.subr.bf16.mxu0 0
  %8481 = vmatpush2.bf16.msra.mxu0 %v8391
  %8482 = vmatprep.subr.bf16.mxu0 0
  %8483 = vmatpush2.bf16.msra.mxu0 %v8390
  %8484 = vmatprep.subr.bf16.mxu0 0
  %8485 = vmatpush2.bf16.msra.mxu0 %v8389
  %8486 = vmatprep.subr.bf16.mxu0 0
  %8487 = vmatpush2.bf16.msra.mxu0 %v8388
  %8488 = vmatprep.subr.bf16.mxu0 0
  %8489 = vmatpush2.bf16.msra.mxu0 %v8387
  %8490 = vmatprep.mubr.bf16.mxu0 %v8218
  %8491 = vmatmul.mubr.bf16.gmra.mxu0 %v8217
  %v8492 = vpop.f32.mrf.mxu0
  %v8493 = vadd.f32 %v8183, %v8492
  %v8494 = vpop.f32.mrf.mxu0
  %v8495 = vpop.f32.mrf.mxu0
  %v8496 = vadd.f32 %v8183, %v8495
  %v8497 = vpop.f32.mrf.mxu0
  %8498 = vmatprep.mubr.bf16.mxu0 %v8223
  %8499 = vmatmul.mubr.bf16.gmra.mxu0 %v8222
  %v8500 = vpop.f32.mrf.mxu0
  %v8501 = vadd.f32 %v8183, %v8500
  %v8502 = vpop.f32.mrf.mxu0
  %v8503 = vpop.f32.mrf.mxu0
  %v8504 = vadd.f32 %v8183, %v8503
  %v8505 = vpop.f32.mrf.mxu0
  %8506 = vdwg.mxu0
  %8507 = vmatprep.subr.bf16.mxu0 0
  %8508 = vmatpush1.bf16.msra.mxu0 %v8402
  %8509 = vmatprep.subr.bf16.mxu0 0
  %8510 = vmatpush1.bf16.msra.mxu0 %v8401
  %8511 = vmatprep.subr.bf16.mxu0 0
  %8512 = vmatpush1.bf16.msra.mxu0 %v8400
  %8513 = vmatprep.subr.bf16.mxu0 0
  %8514 = vmatpush1.bf16.msra.mxu0 %v8399
  %8515 = vmatprep.subr.bf16.mxu0 0
  %8516 = vmatpush1.bf16.msra.mxu0 %v8398
  %8517 = vmatprep.subr.bf16.mxu0 0
  %8518 = vmatpush1.bf16.msra.mxu0 %v8397
  %8519 = vmatprep.subr.bf16.mxu0 0
  %8520 = vmatpush1.bf16.msra.mxu0 %v8396
  %8521 = vmatprep.subr.bf16.mxu0 0
  %8522 = vmatpush1.bf16.msra.mxu0 %v8395
  %8523 = vmatprep.subr.bf16.mxu0 0
  %8524 = vmatpush2.bf16.msra.mxu0 %v8410
  %8525 = vmatprep.subr.bf16.mxu0 0
  %8526 = vmatpush2.bf16.msra.mxu0 %v8409
  %8527 = vmatprep.subr.bf16.mxu0 0
  %8528 = vmatpush2.bf16.msra.mxu0 %v8408
  %8529 = vmatprep.subr.bf16.mxu0 0
  %8530 = vmatpush2.bf16.msra.mxu0 %v8407
  %8531 = vmatprep.subr.bf16.mxu0 0
  %8532 = vmatpush2.bf16.msra.mxu0 %v8406
  %8533 = vmatprep.subr.bf16.mxu0 0
  %8534 = vmatpush2.bf16.msra.mxu0 %v8405
  %8535 = vmatprep.subr.bf16.mxu0 0
  %8536 = vmatpush2.bf16.msra.mxu0 %v8404
  %8537 = vmatprep.subr.bf16.mxu0 0
  %8538 = vmatpush2.bf16.msra.mxu0 %v8403
  %8539 = vmatprep.mubr.bf16.mxu0 %v8220
  %8540 = vmatmul.mubr.bf16.gmra.mxu0 %v8219
  %v8541 = vpop.f32.mrf.mxu0
  %v8542 = vadd.f32 %v8493, %v8541
  %v8543 = vpop.f32.mrf.mxu0
  %v8544 = vpop.f32.mrf.mxu0
  %v8545 = vadd.f32 %v8496, %v8544
  %v8546 = vpop.f32.mrf.mxu0
  %8547 = vmatprep.mubr.bf16.mxu0 %v8225
  %8548 = vmatmul.mubr.bf16.gmra.mxu0 %v8224
  %v8549 = vpop.f32.mrf.mxu0
  %v8550 = vadd.f32 %v8501, %v8549
  %v8551 = vpop.f32.mrf.mxu0
  %v8552 = vpop.f32.mrf.mxu0
  %v8553 = vadd.f32 %v8504, %v8552
  %v8554 = vpop.f32.mrf.mxu0
  %8555 = vdwg.mxu0
  %8556 = vmatprep.subr.bf16.mxu0 0
  %8557 = vmatpush1.bf16.msra.mxu0 0
  %8558 = vmatprep.subr.bf16.mxu0 0
  %8559 = vmatpush1.bf16.msra.mxu0 0
  %8560 = vmatprep.subr.bf16.mxu0 0
  %8561 = vmatpush1.bf16.msra.mxu0 0
  %8562 = vmatprep.subr.bf16.mxu0 0
  %8563 = vmatpush1.bf16.msra.mxu0 0
  %8564 = vmatprep.subr.bf16.mxu0 0
  %8565 = vmatpush1.bf16.msra.mxu0 %v8414
  %8566 = vmatprep.subr.bf16.mxu0 0
  %8567 = vmatpush1.bf16.msra.mxu0 %v8413
  %8568 = vmatprep.subr.bf16.mxu0 0
  %8569 = vmatpush1.bf16.msra.mxu0 %v8412
  %8570 = vmatprep.subr.bf16.mxu0 0
  %8571 = vmatpush1.bf16.msra.mxu0 %v8411
  %8572 = vmatprep.subr.bf16.mxu0 0
  %8573 = vmatpush2.bf16.msra.mxu0 0
  %8574 = vmatprep.subr.bf16.mxu0 0
  %8575 = vmatpush2.bf16.msra.mxu0 0
  %8576 = vmatprep.subr.bf16.mxu0 0
  %8577 = vmatpush2.bf16.msra.mxu0 0
  %8578 = vmatprep.subr.bf16.mxu0 0
  %8579 = vmatpush2.bf16.msra.mxu0 0
  %8580 = vmatprep.subr.bf16.mxu0 0
  %8581 = vmatpush2.bf16.msra.mxu0 0
  %8582 = vmatprep.subr.bf16.mxu0 0
  %8583 = vmatpush2.bf16.msra.mxu0 0
  %8584 = vmatprep.subr.bf16.mxu0 0
  %8585 = vmatpush2.bf16.msra.mxu0 0
  %8586 = vmatprep.subr.bf16.mxu0 0
  %8587 = vmatpush2.bf16.msra.mxu0 0
  %8588 = vmatprep.mubr.bf16.mxu0 0
  %8589 = vmatmul.mubr.bf16.gmra.mxu0 %v8453
  %v8590 = vpop.f32.mrf.mxu0
  %v8591 = vadd.f32 %v8542, %v8590
  %v8592 = vpop.f32.mrf.mxu0
  %v8593 = vpop.f32.mrf.mxu0
  %v8594 = vadd.f32 %v8545, %v8593
  %v8595 = vpop.f32.mrf.mxu0
  %8596 = vmatprep.mubr.bf16.mxu0 0
  %8597 = vmatmul.mubr.bf16.gmra.mxu0 %v8456
  %v8598 = vpop.f32.mrf.mxu0
  %v8599 = vadd.f32 %v8550, %v8598
  %v8600 = vpop.f32.mrf.mxu0
  %v8601 = vpop.f32.mrf.mxu0
  %v8602 = vadd.f32 %v8553, %v8601
  %v8603 = vpop.f32.mrf.mxu0
  %8604 = vdwg.mxu0
  %v8605 = vmax.f32 %v8591, 0.0
  %v8606 = vmax.f32 %v8594, 0.0
  %v8607 = vmax.f32 %v8599, 0.0
  %v8608 = vmax.f32 %v8602, 0.0
  %v8609 = vpack.c.bf16 %v8605, %v8605
  %8610 = vst.msk [vmem:[#allocation5] sm:$0xf] %vm7940, %v8609
  %v8611 = vpack.c.bf16 %v8606, %v8606
  %v8613 = vunpack.c.l.b16 %v8611
  %v8614 = vpack.c.b16 %v8613, %v8613
  %8615 = vrot.lane.b32.xlu0 %v8614, 64
  %v8616 = vpop.permute.xlu0 %8615
  %8618 = vst.msk [vmem:[#allocation5] sm:$0xf] %vm7975, %v8616
  %v8619 = vpack.c.bf16 %v8607, %v8607
  %8620 = vst.msk [vmem:[#allocation5 + $0x4] sm:$0xf] %vm7940, %v8619
  %v8621 = vpack.c.bf16 %v8608, %v8608
  %v8623 = vunpack.c.l.b16 %v8621
  %v8624 = vpack.c.b16 %v8623, %v8623
  %8625 = vrot.lane.b32.xlu0 %v8624, 64
  %v8626 = vpop.permute.xlu0 %8625
  %8628 = vst.msk [vmem:[#allocation5 + $0x4] sm:$0xf] %vm7975, %v8626
  %v8629 = vld [vmem:[#allocation5] sm:$0xff]
  %v8630 = vld [vmem:[%s7] sm:$0xff]
  %v8631 = vld [vmem:[%s7 + $0x8] sm:$0xff]
  %v8632 = vld [vmem:[%s7 + $0x10] sm:$0xff]
  %v8633 = vld [vmem:[%s7 + $0x18] sm:$0xff]
  %v8634 = vld [vmem:[%s7 + $0x20] sm:$0xff]
  %v8635 = vld [vmem:[%s7 + $0x28] sm:$0xff]
  %v8636 = vld [vmem:[%s7 + $0x30] sm:$0xff]
  %v8637 = vld [vmem:[%s7 + $0x38] sm:$0xff]
  %v8638 = vld [vmem:[%s7 + $0x40] sm:$0xff]
  %v8639 = vld [vmem:[%s7 + $0x48] sm:$0xff]
  %v8640 = vld [vmem:[%s7 + $0x50] sm:$0xff]
  %v8641 = vld [vmem:[%s7 + $0x58] sm:$0xff]
  %v8642 = vld [vmem:[%s7 + $0x60] sm:$0xff]
  %v8643 = vld [vmem:[%s7 + $0x68] sm:$0xff]
  %v8644 = vld [vmem:[%s7 + $0x70] sm:$0xff]
  %v8645 = vld [vmem:[%s7 + $0x78] sm:$0xff]
  %v8646 = vld [vmem:[%s7 + $0x80] sm:$0xff]
  %v8647 = vld [vmem:[%s7 + $0x88] sm:$0xff]
  %v8648 = vld [vmem:[%s7 + $0x90] sm:$0xff]
  %v8649 = vld [vmem:[%s7 + $0x98] sm:$0xff]
  %v8650 = vld [vmem:[%s7 + $0xa0] sm:$0xff]
  %v8651 = vld [vmem:[%s7 + $0xa8] sm:$0xff]
  %v8652 = vld [vmem:[%s7 + $0xb0] sm:$0xff]
  %v8653 = vld [vmem:[%s7 + $0xb8] sm:$0xff]
  %v8654 = vld [vmem:[%s7 + $0xc0] sm:$0xff]
  %v8655 = vld [vmem:[%s7 + $0xc8] sm:$0xff]
  %v8656 = vld [vmem:[%s7 + $0xd0] sm:$0xff]
  %v8657 = vld [vmem:[%s7 + $0xd8] sm:$0xff]
  %v8658 = vld [vmem:[%s7 + $0xe0] sm:$0xff]
  %v8659 = vld [vmem:[%s7 + $0xe8] sm:$0xff]
  %v8660 = vld [vmem:[%s7 + $0xf0] sm:$0xff]
  %v8661 = vld [vmem:[%s7 + $0xf8] sm:$0xff]
  %v8662 = vld [vmem:[%s7 + $0x100] sm:$0xff]
  %v8663 = vld [vmem:[%s7 + $0x108] sm:$0xff]
  %v8664 = vld [vmem:[%s7 + $0x110] sm:$0xff]
  %v8665 = vld [vmem:[%s7 + $0x118] sm:$0xff]
  %v8666 = vld [vmem:[%s7 + $0x120] sm:$0xff]
  %v8667 = vld [vmem:[%s7 + $0x128] sm:$0xff]
  %v8668 = vld [vmem:[%s7 + $0x130] sm:$0xff]
  %v8669 = vld [vmem:[%s7 + $0x138] sm:$0xff]
  %v8670 = vld [vmem:[%s7 + $0x140] sm:$0xff]
  %v8671 = vld [vmem:[%s7 + $0x148] sm:$0xff]
  %v8672 = vld [vmem:[%s7 + $0x150] sm:$0xff]
  %v8673 = vld [vmem:[%s7 + $0x158] sm:$0xff]
  %v8674 = vld [vmem:[%s7 + $0x160] sm:$0xff]
  %v8675 = vld [vmem:[%s7 + $0x168] sm:$0xff]
  %v8676 = vld [vmem:[%s7 + $0x170] sm:$0xff]
  %v8677 = vld [vmem:[%s7 + $0x178] sm:$0xff]
  %v8678 = vld [vmem:[%s7 + $0x180] sm:$0xff]
  %v8679 = vld [vmem:[%s7 + $0x188] sm:$0xff]
  %v8680 = vld [vmem:[%s7 + $0x190] sm:$0xff]
  %v8681 = vld [vmem:[%s7 + $0x198] sm:$0xff]
  %v8682 = vld [vmem:[%s7 + $0x1a0] sm:$0xff]
  %v8683 = vld [vmem:[%s7 + $0x1a8] sm:$0xff]
  %v8684 = vld [vmem:[%s7 + $0x1b0] sm:$0xff]
  %v8685 = vld [vmem:[%s7 + $0x1b8] sm:$0xff]
  %v8686 = vld [vmem:[%s7 + $0x1c0] sm:$0xff]
  %v8687 = vld [vmem:[%s7 + $0x1c8] sm:$0xff]
  %v8688 = vld [vmem:[%s7 + $0x1d0] sm:$0xff]
  %v8689 = vld [vmem:[%s7 + $0x1d8] sm:$0xff]
  %v8690 = vld [vmem:[%s7 + $0x1e0] sm:$0xff]
  %v8691 = vld [vmem:[%s7 + $0x1e8] sm:$0xff]
  %v8692 = vld [vmem:[%s7 + $0x1f0] sm:$0xff]
  %v8693 = vld [vmem:[%s7 + $0x1f8] sm:$0xff]
  %v8694 = vld [vmem:[%s8] sm:$0xf]
  %v8696 = vlaneseq
  %v8697 = vshrl.u32 %v8696, 7
  %v8698 = vsub.s32 0, %v8697
  %v8699 = vrot.slane %v8694, %v8698
  %v8700 = vlaneseq
  %v8701 = vshrl.u32 %v8700, 7
  %v8702 = vsub.s32 1, %v8701
  %v8703 = vrot.slane %v8694, %v8702
  %v8704 = vlaneseq
  %v8705 = vshrl.u32 %v8704, 7
  %v8706 = vsub.s32 2, %v8705
  %v8707 = vrot.slane %v8694, %v8706
  %v8708 = vlaneseq
  %v8709 = vshrl.u32 %v8708, 7
  %v8710 = vsub.s32 3, %v8709
  %v8711 = vrot.slane %v8694, %v8710
  %v8717 = vunpack.c.l.b16 %v8629
  %v8718 = vunpack.c.h.b16 %v8629
  %v8719 = vpack.c.b16 %v8717, %v8717
  %v8720 = vpack.c.b16 %v8718, %v8718
  %v8787 = vunpack.c.l.b16 %v8630
  %v8788 = vunpack.c.h.b16 %v8630
  %v8789 = vunpack.c.l.b16 %v8631
  %v8790 = vunpack.c.h.b16 %v8631
  %v8791 = vunpack.c.l.b16 %v8632
  %v8792 = vunpack.c.h.b16 %v8632
  %v8793 = vunpack.c.l.b16 %v8633
  %v8794 = vunpack.c.h.b16 %v8633
  %v8795 = vunpack.c.l.b16 %v8634
  %v8796 = vunpack.c.h.b16 %v8634
  %v8797 = vunpack.c.l.b16 %v8635
  %v8798 = vunpack.c.h.b16 %v8635
  %v8799 = vunpack.c.l.b16 %v8636
  %v8800 = vunpack.c.h.b16 %v8636
  %v8801 = vunpack.c.l.b16 %v8637
  %v8802 = vunpack.c.h.b16 %v8637
  %v8803 = vunpack.c.l.b16 %v8638
  %v8804 = vunpack.c.h.b16 %v8638
  %v8805 = vunpack.c.l.b16 %v8639
  %v8806 = vunpack.c.h.b16 %v8639
  %v8807 = vunpack.c.l.b16 %v8640
  %v8808 = vunpack.c.h.b16 %v8640
  %v8809 = vunpack.c.l.b16 %v8641
  %v8810 = vunpack.c.h.b16 %v8641
  %v8811 = vunpack.c.l.b16 %v8642
  %v8812 = vunpack.c.h.b16 %v8642
  %v8813 = vunpack.c.l.b16 %v8643
  %v8814 = vunpack.c.h.b16 %v8643
  %v8815 = vunpack.c.l.b16 %v8644
  %v8816 = vunpack.c.h.b16 %v8644
  %v8817 = vunpack.c.l.b16 %v8645
  %v8818 = vunpack.c.h.b16 %v8645
  %v8819 = vunpack.c.l.b16 %v8646
  %v8820 = vunpack.c.h.b16 %v8646
  %v8821 = vunpack.c.l.b16 %v8647
  %v8822 = vunpack.c.h.b16 %v8647
  %v8823 = vunpack.c.l.b16 %v8648
  %v8824 = vunpack.c.h.b16 %v8648
  %v8825 = vunpack.c.l.b16 %v8649
  %v8826 = vunpack.c.h.b16 %v8649
  %v8827 = vunpack.c.l.b16 %v8650
  %v8828 = vunpack.c.h.b16 %v8650
  %v8829 = vunpack.c.l.b16 %v8651
  %v8830 = vunpack.c.h.b16 %v8651
  %v8831 = vunpack.c.l.b16 %v8652
  %v8832 = vunpack.c.h.b16 %v8652
  %v8833 = vunpack.c.l.b16 %v8653
  %v8834 = vunpack.c.h.b16 %v8653
  %v8835 = vunpack.c.l.b16 %v8654
  %v8836 = vunpack.c.h.b16 %v8654
  %v8837 = vunpack.c.l.b16 %v8655
  %v8838 = vunpack.c.h.b16 %v8655
  %v8839 = vunpack.c.l.b16 %v8656
  %v8840 = vunpack.c.h.b16 %v8656
  %v8841 = vunpack.c.l.b16 %v8657
  %v8842 = vunpack.c.h.b16 %v8657
  %v8843 = vunpack.c.l.b16 %v8658
  %v8844 = vunpack.c.h.b16 %v8658
  %v8845 = vunpack.c.l.b16 %v8659
  %v8846 = vunpack.c.h.b16 %v8659
  %v8847 = vunpack.c.l.b16 %v8660
  %v8848 = vunpack.c.h.b16 %v8660
  %v8849 = vunpack.c.l.b16 %v8661
  %v8850 = vunpack.c.h.b16 %v8661
  %v8851 = vunpack.c.l.b16 %v8662
  %v8852 = vunpack.c.h.b16 %v8662
  %v8853 = vunpack.c.l.b16 %v8663
  %v8854 = vunpack.c.h.b16 %v8663
  %v8855 = vunpack.c.l.b16 %v8664
  %v8856 = vunpack.c.h.b16 %v8664
  %v8857 = vunpack.c.l.b16 %v8665
  %v8858 = vunpack.c.h.b16 %v8665
  %v8859 = vunpack.c.l.b16 %v8666
  %v8860 = vunpack.c.h.b16 %v8666
  %v8861 = vunpack.c.l.b16 %v8667
  %v8862 = vunpack.c.h.b16 %v8667
  %v8863 = vunpack.c.l.b16 %v8668
  %v8864 = vunpack.c.h.b16 %v8668
  %v8865 = vunpack.c.l.b16 %v8669
  %v8866 = vunpack.c.h.b16 %v8669
  %v8867 = vunpack.c.l.b16 %v8670
  %v8868 = vunpack.c.h.b16 %v8670
  %v8869 = vunpack.c.l.b16 %v8671
  %v8870 = vunpack.c.h.b16 %v8671
  %v8871 = vunpack.c.l.b16 %v8672
  %v8872 = vunpack.c.h.b16 %v8672
  %v8873 = vunpack.c.l.b16 %v8673
  %v8874 = vunpack.c.h.b16 %v8673
  %v8875 = vunpack.c.l.b16 %v8674
  %v8876 = vunpack.c.h.b16 %v8674
  %v8877 = vunpack.c.l.b16 %v8675
  %v8878 = vunpack.c.h.b16 %v8675
  %v8879 = vunpack.c.l.b16 %v8676
  %v8880 = vunpack.c.h.b16 %v8676
  %v8881 = vunpack.c.l.b16 %v8677
  %v8882 = vunpack.c.h.b16 %v8677
  %v8883 = vunpack.c.l.b16 %v8678
  %v8884 = vunpack.c.h.b16 %v8678
  %v8885 = vunpack.c.l.b16 %v8679
  %v8886 = vunpack.c.h.b16 %v8679
  %v8887 = vunpack.c.l.b16 %v8680
  %v8888 = vunpack.c.h.b16 %v8680
  %v8889 = vunpack.c.l.b16 %v8681
  %v8890 = vunpack.c.h.b16 %v8681
  %v8891 = vunpack.c.l.b16 %v8682
  %v8892 = vunpack.c.h.b16 %v8682
  %v8893 = vunpack.c.l.b16 %v8683
  %v8894 = vunpack.c.h.b16 %v8683
  %v8895 = vunpack.c.l.b16 %v8684
  %v8896 = vunpack.c.h.b16 %v8684
  %v8897 = vunpack.c.l.b16 %v8685
  %v8898 = vunpack.c.h.b16 %v8685
  %v8899 = vunpack.c.l.b16 %v8686
  %v8900 = vunpack.c.h.b16 %v8686
  %v8901 = vunpack.c.l.b16 %v8687
  %v8902 = vunpack.c.h.b16 %v8687
  %v8903 = vunpack.c.l.b16 %v8688
  %v8904 = vunpack.c.h.b16 %v8688
  %v8905 = vunpack.c.l.b16 %v8689
  %v8906 = vunpack.c.h.b16 %v8689
  %v8907 = vunpack.c.l.b16 %v8690
  %v8908 = vunpack.c.h.b16 %v8690
  %v8909 = vunpack.c.l.b16 %v8691
  %v8910 = vunpack.c.h.b16 %v8691
  %v8911 = vunpack.c.l.b16 %v8692
  %v8912 = vunpack.c.h.b16 %v8692
  %v8913 = vunpack.c.l.b16 %v8693
  %v8914 = vunpack.c.h.b16 %v8693
  %v8915 = vpack.c.b16 %v8791, %v8787
  %v8916 = vpack.c.b16 %v8792, %v8788
  %v8917 = vpack.c.b16 %v8793, %v8789
  %v8918 = vpack.c.b16 %v8794, %v8790
  %v8919 = vpack.c.b16 %v8799, %v8795
  %v8920 = vpack.c.b16 %v8800, %v8796
  %v8921 = vpack.c.b16 %v8801, %v8797
  %v8922 = vpack.c.b16 %v8802, %v8798
  %v8923 = vpack.c.b16 %v8807, %v8803
  %v8924 = vpack.c.b16 %v8808, %v8804
  %v8925 = vpack.c.b16 %v8809, %v8805
  %v8926 = vpack.c.b16 %v8810, %v8806
  %v8927 = vpack.c.b16 %v8815, %v8811
  %v8928 = vpack.c.b16 %v8816, %v8812
  %v8929 = vpack.c.b16 %v8817, %v8813
  %v8930 = vpack.c.b16 %v8818, %v8814
  %v8931 = vpack.c.b16 %v8823, %v8819
  %v8932 = vpack.c.b16 %v8824, %v8820
  %v8933 = vpack.c.b16 %v8825, %v8821
  %v8934 = vpack.c.b16 %v8826, %v8822
  %v8935 = vpack.c.b16 %v8831, %v8827
  %v8936 = vpack.c.b16 %v8832, %v8828
  %v8937 = vpack.c.b16 %v8833, %v8829
  %v8938 = vpack.c.b16 %v8834, %v8830
  %v8939 = vpack.c.b16 %v8839, %v8835
  %v8940 = vpack.c.b16 %v8840, %v8836
  %v8941 = vpack.c.b16 %v8841, %v8837
  %v8942 = vpack.c.b16 %v8842, %v8838
  %v8943 = vpack.c.b16 %v8847, %v8843
  %v8944 = vpack.c.b16 %v8848, %v8844
  %v8945 = vpack.c.b16 %v8849, %v8845
  %v8946 = vpack.c.b16 %v8850, %v8846
  %v8947 = vpack.c.b16 %v8855, %v8851
  %v8948 = vpack.c.b16 %v8856, %v8852
  %v8949 = vpack.c.b16 %v8857, %v8853
  %v8950 = vpack.c.b16 %v8858, %v8854
  %v8951 = vpack.c.b16 %v8863, %v8859
  %v8952 = vpack.c.b16 %v8864, %v8860
  %v8953 = vpack.c.b16 %v8865, %v8861
  %v8954 = vpack.c.b16 %v8866, %v8862
  %v8955 = vpack.c.b16 %v8871, %v8867
  %v8956 = vpack.c.b16 %v8872, %v8868
  %v8957 = vpack.c.b16 %v8873, %v8869
  %v8958 = vpack.c.b16 %v8874, %v8870
  %v8959 = vpack.c.b16 %v8879, %v8875
  %v8960 = vpack.c.b16 %v8880, %v8876
  %v8961 = vpack.c.b16 %v8881, %v8877
  %v8962 = vpack.c.b16 %v8882, %v8878
  %v8963 = vpack.c.b16 %v8887, %v8883
  %v8964 = vpack.c.b16 %v8888, %v8884
  %v8965 = vpack.c.b16 %v8889, %v8885
  %v8966 = vpack.c.b16 %v8890, %v8886
  %v8967 = vpack.c.b16 %v8895, %v8891
  %v8968 = vpack.c.b16 %v8896, %v8892
  %v8969 = vpack.c.b16 %v8897, %v8893
  %v8970 = vpack.c.b16 %v8898, %v8894
  %v8971 = vpack.c.b16 %v8903, %v8899
  %v8972 = vpack.c.b16 %v8904, %v8900
  %v8973 = vpack.c.b16 %v8905, %v8901
  %v8974 = vpack.c.b16 %v8906, %v8902
  %v8975 = vpack.c.b16 %v8911, %v8907
  %v8976 = vpack.c.b16 %v8912, %v8908
  %v8977 = vpack.c.b16 %v8913, %v8909
  %v8978 = vpack.c.b16 %v8914, %v8910
  %9043 = vmatprep.subr.bf16.mxu0 %v8944
  %9044 = vmatpush1.bf16.msra.mxu0 %v8943
  %9045 = vmatprep.subr.bf16.mxu0 %v8940
  %9046 = vmatpush1.bf16.msra.mxu0 %v8939
  %9047 = vmatprep.subr.bf16.mxu0 %v8936
  %9048 = vmatpush1.bf16.msra.mxu0 %v8935
  %9049 = vmatprep.subr.bf16.mxu0 %v8932
  %9050 = vmatpush1.bf16.msra.mxu0 %v8931
  %9051 = vmatprep.subr.bf16.mxu0 %v8928
  %9052 = vmatpush1.bf16.msra.mxu0 %v8927
  %9053 = vmatprep.subr.bf16.mxu0 %v8924
  %9054 = vmatpush1.bf16.msra.mxu0 %v8923
  %9055 = vmatprep.subr.bf16.mxu0 %v8920
  %9056 = vmatpush1.bf16.msra.mxu0 %v8919
  %9057 = vmatprep.subr.bf16.mxu0 %v8916
  %9058 = vmatpush1.bf16.msra.mxu0 %v8915
  %9059 = vmatprep.subr.bf16.mxu0 %v8976
  %9060 = vmatpush2.bf16.msra.mxu0 %v8975
  %9061 = vmatprep.subr.bf16.mxu0 %v8972
  %9062 = vmatpush2.bf16.msra.mxu0 %v8971
  %9063 = vmatprep.subr.bf16.mxu0 %v8968
  %9064 = vmatpush2.bf16.msra.mxu0 %v8967
  %9065 = vmatprep.subr.bf16.mxu0 %v8964
  %9066 = vmatpush2.bf16.msra.mxu0 %v8963
  %9067 = vmatprep.subr.bf16.mxu0 %v8960
  %9068 = vmatpush2.bf16.msra.mxu0 %v8959
  %9069 = vmatprep.subr.bf16.mxu0 %v8956
  %9070 = vmatpush2.bf16.msra.mxu0 %v8955
  %9071 = vmatprep.subr.bf16.mxu0 %v8952
  %9072 = vmatpush2.bf16.msra.mxu0 %v8951
  %9073 = vmatprep.subr.bf16.mxu0 %v8948
  %9074 = vmatpush2.bf16.msra.mxu0 %v8947
  %9075 = vmatprep.mubr.bf16.mxu0 %v8720
  %9076 = vmatmul.mubr.bf16.gmra.mxu0 %v8719
  %v9077 = vpop.f32.mrf.mxu0
  %v9078 = vadd.f32 %v8699, %v9077
  %v9079 = vpop.f32.mrf.mxu0
  %v9080 = vadd.f32 %v8703, %v9079
  %v9081 = vpop.f32.mrf.mxu0
  %v9082 = vpop.f32.mrf.mxu0
  %9083 = vdwg.mxu0
  %9084 = vmatprep.subr.bf16.mxu0 %v8946
  %9085 = vmatpush1.bf16.msra.mxu0 %v8945
  %9086 = vmatprep.subr.bf16.mxu0 %v8942
  %9087 = vmatpush1.bf16.msra.mxu0 %v8941
  %9088 = vmatprep.subr.bf16.mxu0 %v8938
  %9089 = vmatpush1.bf16.msra.mxu0 %v8937
  %9090 = vmatprep.subr.bf16.mxu0 %v8934
  %9091 = vmatpush1.bf16.msra.mxu0 %v8933
  %9092 = vmatprep.subr.bf16.mxu0 %v8930
  %9093 = vmatpush1.bf16.msra.mxu0 %v8929
  %9094 = vmatprep.subr.bf16.mxu0 %v8926
  %9095 = vmatpush1.bf16.msra.mxu0 %v8925
  %9096 = vmatprep.subr.bf16.mxu0 %v8922
  %9097 = vmatpush1.bf16.msra.mxu0 %v8921
  %9098 = vmatprep.subr.bf16.mxu0 %v8918
  %9099 = vmatpush1.bf16.msra.mxu0 %v8917
  %9100 = vmatprep.subr.bf16.mxu0 %v8978
  %9101 = vmatpush2.bf16.msra.mxu0 %v8977
  %9102 = vmatprep.subr.bf16.mxu0 %v8974
  %9103 = vmatpush2.bf16.msra.mxu0 %v8973
  %9104 = vmatprep.subr.bf16.mxu0 %v8970
  %9105 = vmatpush2.bf16.msra.mxu0 %v8969
  %9106 = vmatprep.subr.bf16.mxu0 %v8966
  %9107 = vmatpush2.bf16.msra.mxu0 %v8965
  %9108 = vmatprep.subr.bf16.mxu0 %v8962
  %9109 = vmatpush2.bf16.msra.mxu0 %v8961
  %9110 = vmatprep.subr.bf16.mxu0 %v8958
  %9111 = vmatpush2.bf16.msra.mxu0 %v8957
  %9112 = vmatprep.subr.bf16.mxu0 %v8954
  %9113 = vmatpush2.bf16.msra.mxu0 %v8953
  %9114 = vmatprep.subr.bf16.mxu0 %v8950
  %9115 = vmatpush2.bf16.msra.mxu0 %v8949
  %9116 = vmatprep.mubr.bf16.mxu0 %v8720
  %9117 = vmatmul.mubr.bf16.gmra.mxu0 %v8719
  %v9118 = vpop.f32.mrf.mxu0
  %v9119 = vadd.f32 %v8707, %v9118
  %v9120 = vpop.f32.mrf.mxu0
  %v9121 = vadd.f32 %v8711, %v9120
  %v9122 = vpop.f32.mrf.mxu0
  %v9123 = vpop.f32.mrf.mxu0
  %9124 = vdwg.mxu0
  %v9125 = vmax.f32 %v9078, 0.0
  %v9126 = vmax.f32 %v9080, 0.0
  %v9127 = vmax.f32 %v9119, 0.0
  %v9128 = vmax.f32 %v9121, 0.0
  %v9129 = vpack.c.bf16 %v9125, %v9125
  %v9130 = vpack.c.bf16 %v9126, %v9126
  %v9131 = vpack.c.bf16 %v9127, %v9127
  %v9132 = vpack.c.bf16 %v9128, %v9128
  %v9133 = vld [vmem:[%s9] sm:$0xf]
  %v9134 = vld [vmem:[%s9 + $0x4] sm:$0xf]
  %v9135 = vld [vmem:[%s9 + $0x8] sm:$0xf]
  %v9136 = vld [vmem:[%s9 + $0xc] sm:$0xf]
  %v9137 = vld [vmem:[%s9 + $0x10] sm:$0xf]
  %v9138 = vld [vmem:[%s9 + $0x14] sm:$0xf]
  %v9139 = vld [vmem:[%s9 + $0x18] sm:$0xf]
  %v9140 = vld [vmem:[%s9 + $0x1c] sm:$0xf]
  %v9141 = vld [vmem:[%s9 + $0x20] sm:$0xf]
  %v9142 = vld [vmem:[%s9 + $0x24] sm:$0xf]
  %v9143 = vld [vmem:[%s9 + $0x28] sm:$0xf]
  %v9144 = vld [vmem:[%s9 + $0x2c] sm:$0xf]
  %v9145 = vld [vmem:[%s9 + $0x30] sm:$0xf]
  %v9146 = vld [vmem:[%s9 + $0x34] sm:$0xf]
  %v9147 = vld [vmem:[%s9 + $0x38] sm:$0xf]
  %v9148 = vld [vmem:[%s9 + $0x3c] sm:$0xf]
  %v9149 = vld [vmem:[%s9 + $0x40] sm:$0xf]
  %v9150 = vld [vmem:[%s9 + $0x44] sm:$0xf]
  %v9151 = vld [vmem:[%s9 + $0x48] sm:$0xf]
  %v9152 = vld [vmem:[%s9 + $0x4c] sm:$0xf]
  %v9153 = vld [vmem:[%s9 + $0x50] sm:$0xf]
  %v9154 = vld [vmem:[%s9 + $0x54] sm:$0xf]
  %v9155 = vld [vmem:[%s9 + $0x58] sm:$0xf]
  %v9156 = vld [vmem:[%s9 + $0x5c] sm:$0xf]
  %v9157 = vld [vmem:[%s9 + $0x60] sm:$0xf]
  %v9158 = vld [vmem:[%s9 + $0x64] sm:$0xf]
  %v9159 = vld [vmem:[%s9 + $0x68] sm:$0xf]
  %v9160 = vld [vmem:[%s9 + $0x6c] sm:$0xf]
  %v9161 = vld [vmem:[%s9 + $0x70] sm:$0xf]
  %v9162 = vld [vmem:[%s9 + $0x74] sm:$0xf]
  %v9163 = vld [vmem:[%s9 + $0x78] sm:$0xf]
  %v9164 = vld [vmem:[%s9 + $0x7c] sm:$0xf]
  %v9165 = vld [vmem:[%s9 + $0x80] sm:$0xf]
  %v9166 = vld [vmem:[%s9 + $0x84] sm:$0xf]
  %v9167 = vld [vmem:[%s9 + $0x88] sm:$0xf]
  %v9168 = vld [vmem:[%s9 + $0x8c] sm:$0xf]
  %v9169 = vld [vmem:[%s9 + $0x90] sm:$0xf]
  %v9170 = vld [vmem:[%s9 + $0x94] sm:$0xf]
  %v9171 = vld [vmem:[%s9 + $0x98] sm:$0xf]
  %v9172 = vld [vmem:[%s9 + $0x9c] sm:$0xf]
  %v9173 = vld [vmem:[%s9 + $0xa0] sm:$0xf]
  %v9174 = vld [vmem:[%s9 + $0xa4] sm:$0xf]
  %v9175 = vld [vmem:[%s9 + $0xa8] sm:$0xf]
  %v9176 = vld [vmem:[%s9 + $0xac] sm:$0xf]
  %v9177 = vld [vmem:[%s9 + $0xb0] sm:$0xf]
  %v9178 = vld [vmem:[%s9 + $0xb4] sm:$0xf]
  %v9179 = vld [vmem:[%s9 + $0xb8] sm:$0xf]
  %v9180 = vld [vmem:[%s9 + $0xbc] sm:$0xf]
  %v9181 = vld [vmem:[%s9 + $0xc0] sm:$0xf]
  %v9182 = vld [vmem:[%s9 + $0xc4] sm:$0xf]
  %v9183 = vld [vmem:[%s9 + $0xc8] sm:$0xf]
  %v9184 = vld [vmem:[%s9 + $0xcc] sm:$0xf]
  %v9185 = vld [vmem:[%s9 + $0xd0] sm:$0xf]
  %v9186 = vld [vmem:[%s9 + $0xd4] sm:$0xf]
  %v9187 = vld [vmem:[%s9 + $0xd8] sm:$0xf]
  %v9188 = vld [vmem:[%s9 + $0xdc] sm:$0xf]
  %v9189 = vld [vmem:[%s9 + $0xe0] sm:$0xf]
  %v9190 = vld [vmem:[%s9 + $0xe4] sm:$0xf]
  %v9191 = vld [vmem:[%s9 + $0xe8] sm:$0xf]
  %v9192 = vld [vmem:[%s9 + $0xec] sm:$0xf]
  %v9193 = vld [vmem:[%s9 + $0xf0] sm:$0xf]
  %v9194 = vld [vmem:[%s9 + $0xf4] sm:$0xf]
  %v9195 = vld [vmem:[%s9 + $0xf8] sm:$0xf]
  %v9196 = vld [vmem:[%s9 + $0xfc] sm:$0xf]
  %v9197 = vld [vmem:[%s10] sm:$0x1]
  %v9199 = vlaneseq
  %v9200 = vshrl.u32 %v9199, 7
  %v9201 = vsub.s32 0, %v9200
  %v9202 = vrot.slane %v9197, %v9201
  %v9268 = vunpack.c.l.b16 %v9133
  %v9269 = vunpack.c.l.b16 %v9134
  %v9270 = vunpack.c.l.b16 %v9135
  %v9271 = vunpack.c.l.b16 %v9136
  %v9272 = vunpack.c.l.b16 %v9137
  %v9273 = vunpack.c.l.b16 %v9138
  %v9274 = vunpack.c.l.b16 %v9139
  %v9275 = vunpack.c.l.b16 %v9140
  %v9276 = vunpack.c.l.b16 %v9141
  %v9277 = vunpack.c.l.b16 %v9142
  %v9278 = vunpack.c.l.b16 %v9143
  %v9279 = vunpack.c.l.b16 %v9144
  %v9280 = vunpack.c.l.b16 %v9145
  %v9281 = vunpack.c.l.b16 %v9146
  %v9282 = vunpack.c.l.b16 %v9147
  %v9283 = vunpack.c.l.b16 %v9148
  %v9284 = vunpack.c.l.b16 %v9149
  %v9285 = vunpack.c.l.b16 %v9150
  %v9286 = vunpack.c.l.b16 %v9151
  %v9287 = vunpack.c.l.b16 %v9152
  %v9288 = vunpack.c.l.b16 %v9153
  %v9289 = vunpack.c.l.b16 %v9154
  %v9290 = vunpack.c.l.b16 %v9155
  %v9291 = vunpack.c.l.b16 %v9156
  %v9292 = vunpack.c.l.b16 %v9157
  %v9293 = vunpack.c.l.b16 %v9158
  %v9294 = vunpack.c.l.b16 %v9159
  %v9295 = vunpack.c.l.b16 %v9160
  %v9296 = vunpack.c.l.b16 %v9161
  %v9297 = vunpack.c.l.b16 %v9162
  %v9298 = vunpack.c.l.b16 %v9163
  %v9299 = vunpack.c.l.b16 %v9164
  %v9300 = vunpack.c.l.b16 %v9165
  %v9301 = vunpack.c.l.b16 %v9166
  %v9302 = vunpack.c.l.b16 %v9167
  %v9303 = vunpack.c.l.b16 %v9168
  %v9304 = vunpack.c.l.b16 %v9169
  %v9305 = vunpack.c.l.b16 %v9170
  %v9306 = vunpack.c.l.b16 %v9171
  %v9307 = vunpack.c.l.b16 %v9172
  %v9308 = vunpack.c.l.b16 %v9173
  %v9309 = vunpack.c.l.b16 %v9174
  %v9310 = vunpack.c.l.b16 %v9175
  %v9311 = vunpack.c.l.b16 %v9176
  %v9312 = vunpack.c.l.b16 %v9177
  %v9313 = vunpack.c.l.b16 %v9178
  %v9314 = vunpack.c.l.b16 %v9179
  %v9315 = vunpack.c.l.b16 %v9180
  %v9316 = vunpack.c.l.b16 %v9181
  %v9317 = vunpack.c.l.b16 %v9182
  %v9318 = vunpack.c.l.b16 %v9183
  %v9319 = vunpack.c.l.b16 %v9184
  %v9320 = vunpack.c.l.b16 %v9185
  %v9321 = vunpack.c.l.b16 %v9186
  %v9322 = vunpack.c.l.b16 %v9187
  %v9323 = vunpack.c.l.b16 %v9188
  %v9324 = vunpack.c.l.b16 %v9189
  %v9325 = vunpack.c.l.b16 %v9190
  %v9326 = vunpack.c.l.b16 %v9191
  %v9327 = vunpack.c.l.b16 %v9192
  %v9328 = vunpack.c.l.b16 %v9193
  %v9329 = vunpack.c.l.b16 %v9194
  %v9330 = vunpack.c.l.b16 %v9195
  %v9331 = vunpack.c.l.b16 %v9196
  %v9332 = vpack.c.b16 %v9269, %v9268
  %v9333 = vpack.c.b16 %v9271, %v9270
  %v9334 = vpack.c.b16 %v9273, %v9272
  %v9335 = vpack.c.b16 %v9275, %v9274
  %v9336 = vpack.c.b16 %v9277, %v9276
  %v9337 = vpack.c.b16 %v9279, %v9278
  %v9338 = vpack.c.b16 %v9281, %v9280
  %v9339 = vpack.c.b16 %v9283, %v9282
  %v9340 = vpack.c.b16 %v9285, %v9284
  %v9341 = vpack.c.b16 %v9287, %v9286
  %v9342 = vpack.c.b16 %v9289, %v9288
  %v9343 = vpack.c.b16 %v9291, %v9290
  %v9344 = vpack.c.b16 %v9293, %v9292
  %v9345 = vpack.c.b16 %v9295, %v9294
  %v9346 = vpack.c.b16 %v9297, %v9296
  %v9347 = vpack.c.b16 %v9299, %v9298
  %v9348 = vpack.c.b16 %v9301, %v9300
  %v9349 = vpack.c.b16 %v9303, %v9302
  %v9350 = vpack.c.b16 %v9305, %v9304
  %v9351 = vpack.c.b16 %v9307, %v9306
  %v9352 = vpack.c.b16 %v9309, %v9308
  %v9353 = vpack.c.b16 %v9311, %v9310
  %v9354 = vpack.c.b16 %v9313, %v9312
  %v9355 = vpack.c.b16 %v9315, %v9314
  %v9356 = vpack.c.b16 %v9317, %v9316
  %v9357 = vpack.c.b16 %v9319, %v9318
  %v9358 = vpack.c.b16 %v9321, %v9320
  %v9359 = vpack.c.b16 %v9323, %v9322
  %v9360 = vpack.c.b16 %v9325, %v9324
  %v9361 = vpack.c.b16 %v9327, %v9326
  %v9362 = vpack.c.b16 %v9329, %v9328
  %v9363 = vpack.c.b16 %v9331, %v9330
  %9396 = vmatprep.subr.bf16.mxu0 0
  %9397 = vmatpush1.bf16.msra.mxu0 %v9339
  %9398 = vmatprep.subr.bf16.mxu0 0
  %9399 = vmatpush1.bf16.msra.mxu0 %v9338
  %9400 = vmatprep.subr.bf16.mxu0 0
  %9401 = vmatpush1.bf16.msra.mxu0 %v9337
  %9402 = vmatprep.subr.bf16.mxu0 0
  %9403 = vmatpush1.bf16.msra.mxu0 %v9336
  %9404 = vmatprep.subr.bf16.mxu0 0
  %9405 = vmatpush1.bf16.msra.mxu0 %v9335
  %9406 = vmatprep.subr.bf16.mxu0 0
  %9407 = vmatpush1.bf16.msra.mxu0 %v9334
  %9408 = vmatprep.subr.bf16.mxu0 0
  %9409 = vmatpush1.bf16.msra.mxu0 %v9333
  %9410 = vmatprep.subr.bf16.mxu0 0
  %9411 = vmatpush1.bf16.msra.mxu0 %v9332
  %9412 = vmatprep.subr.bf16.mxu0 0
  %9413 = vmatpush2.bf16.msra.mxu0 %v9347
  %9414 = vmatprep.subr.bf16.mxu0 0
  %9415 = vmatpush2.bf16.msra.mxu0 %v9346
  %9416 = vmatprep.subr.bf16.mxu0 0
  %9417 = vmatpush2.bf16.msra.mxu0 %v9345
  %9418 = vmatprep.subr.bf16.mxu0 0
  %9419 = vmatpush2.bf16.msra.mxu0 %v9344
  %9420 = vmatprep.subr.bf16.mxu0 0
  %9421 = vmatpush2.bf16.msra.mxu0 %v9343
  %9422 = vmatprep.subr.bf16.mxu0 0
  %9423 = vmatpush2.bf16.msra.mxu0 %v9342
  %9424 = vmatprep.subr.bf16.mxu0 0
  %9425 = vmatpush2.bf16.msra.mxu0 %v9341
  %9426 = vmatprep.subr.bf16.mxu0 0
  %9427 = vmatpush2.bf16.msra.mxu0 %v9340
  %9428 = vmatprep.mubr.bf16.mxu0 %v9130
  %9429 = vmatmul.mubr.bf16.gmra.mxu0 %v9129
  %v9430 = vpop.f32.mrf.mxu0
  %v9431 = vadd.f32 %v9202, %v9430
  %v9432 = vpop.f32.mrf.mxu0
  %v9433 = vpop.f32.mrf.mxu0
  %v9434 = vpop.f32.mrf.mxu0
  %9435 = vdwg.mxu0
  %9436 = vmatprep.subr.bf16.mxu0 0
  %9437 = vmatpush1.bf16.msra.mxu0 %v9355
  %9438 = vmatprep.subr.bf16.mxu0 0
  %9439 = vmatpush1.bf16.msra.mxu0 %v9354
  %9440 = vmatprep.subr.bf16.mxu0 0
  %9441 = vmatpush1.bf16.msra.mxu0 %v9353
  %9442 = vmatprep.subr.bf16.mxu0 0
  %9443 = vmatpush1.bf16.msra.mxu0 %v9352
  %9444 = vmatprep.subr.bf16.mxu0 0
  %9445 = vmatpush1.bf16.msra.mxu0 %v9351
  %9446 = vmatprep.subr.bf16.mxu0 0
  %9447 = vmatpush1.bf16.msra.mxu0 %v9350
  %9448 = vmatprep.subr.bf16.mxu0 0
  %9449 = vmatpush1.bf16.msra.mxu0 %v9349
  %9450 = vmatprep.subr.bf16.mxu0 0
  %9451 = vmatpush1.bf16.msra.mxu0 %v9348
  %9452 = vmatprep.subr.bf16.mxu0 0
  %9453 = vmatpush2.bf16.msra.mxu0 %v9363
  %9454 = vmatprep.subr.bf16.mxu0 0
  %9455 = vmatpush2.bf16.msra.mxu0 %v9362
  %9456 = vmatprep.subr.bf16.mxu0 0
  %9457 = vmatpush2.bf16.msra.mxu0 %v9361
  %9458 = vmatprep.subr.bf16.mxu0 0
  %9459 = vmatpush2.bf16.msra.mxu0 %v9360
  %9460 = vmatprep.subr.bf16.mxu0 0
  %9461 = vmatpush2.bf16.msra.mxu0 %v9359
  %9462 = vmatprep.subr.bf16.mxu0 0
  %9463 = vmatpush2.bf16.msra.mxu0 %v9358
  %9464 = vmatprep.subr.bf16.mxu0 0
  %9465 = vmatpush2.bf16.msra.mxu0 %v9357
  %9466 = vmatprep.subr.bf16.mxu0 0
  %9467 = vmatpush2.bf16.msra.mxu0 %v9356
  %9468 = vmatprep.mubr.bf16.mxu0 %v9132
  %9469 = vmatmul.mubr.bf16.gmra.mxu0 %v9131
  %v9470 = vpop.f32.mrf.mxu0
  %v9471 = vadd.f32 %v9431, %v9470
  %v9472 = vpop.f32.mrf.mxu0
  %v9473 = vpop.f32.mrf.mxu0
  %v9474 = vpop.f32.mrf.mxu0
  %9475 = vdwg.mxu0
  %9476 = vst [vmem:[%s11] sm:$0xff] %v9471
  // Predicated region
  $region46: #{qlearner_forward.1} parent=0 // pred_check
    _
  $region47: #{qlearner_forward.1} parent=0 // pred_check_branch
    %9478 = sbr.rel (0) target = $region49
  $region48: #{qlearner_forward.1} parent=0 // pred_region
    _
  $region49: #{qlearner_forward.1} parent=0 // pred_fallthru
    _
  // Predicated region
  $region50: #{qlearner_forward.1} parent=0 // pred_check
    _
  $region51: #{qlearner_forward.1} parent=0 // pred_check_branch
    %9480 = sbr.rel (0) target = $region53
  $region52: #{qlearner_forward.1} parent=0 // pred_region
    _
  $region53: #{qlearner_forward.1} parent=0 // pred_fallthru
    _

</llo_original>
